<compile_context>
chip_gen: v5e
topology: v5e:2x2
jax: 0.10.0
libtpu: 0.0.40
codegen_flags: <defaults>
</compile_context>

<pallas_src>
import functools
import math

import jax
import jax.numpy as jnp
from jax.experimental import pallas as pl
from jax.experimental.pallas import tpu as pltpu

_LN_EPS = 1e-5


# ----------------------------- in-kernel helpers ----------------------------

def _ln(x, g, b):
    mu = jnp.mean(x, axis=-1, keepdims=True)
    var = jnp.mean(jnp.square(x - mu), axis=-1, keepdims=True)
    return (x - mu) * jax.lax.rsqrt(var + _LN_EPS) * g + b


def _gelu_exact(x):
    # matches torch nn.GELU() default (approximate='none')
    return 0.5 * x * (1.0 + jax.lax.erf(x * (1.0 / math.sqrt(2.0))))


def _softmax_rows(s):
    s = s - jnp.max(s, axis=-1, keepdims=True)
    p = jnp.exp(s)
    return p / jnp.sum(p, axis=-1, keepdims=True)


def _cparams():
    # Single grid step (whole problem is VMEM-resident) -> "arbitrary" is the honest semantics.
    return pltpu.CompilerParams(dimension_semantics=("arbitrary",))


def _full_spec(shape):
    # Whole array as one block (block_shape == full dims satisfies the (8,128) rule).
    return pl.BlockSpec(tuple(shape), lambda i: (0,) * len(shape))


# ------------------------ fused Transformer encoder kernel -------------------

def _transformer_kernel(x_ref, ag_ref, ab_ref, wqkv_ref, wo_ref, bo_ref,
                        fg_ref, fb_ref, w1_ref, b1_ref, w2_ref, b2_ref,
                        ng_ref, nb_ref, o_ref, *, depth, heads, dim_head, B, N):
    scale = dim_head ** -0.5
    inner = heads * dim_head
    x = x_ref[...].astype(jnp.float32)                                  # [B*N, D]

    for d in range(depth):                                              # static unroll over layers
        # ---- self-attention block: x = Attn(LN(x)) @ Wo + bo + x ----
        xn = _ln(x, ag_ref[d], ab_ref[d])
        qkv = jnp.dot(xn, wqkv_ref[d], preferred_element_type=jnp.float32)   # [BN, 3*inner]
        per_batch = []
        for b in range(B):                                              # tiny static unroll
            r0 = b * N
            per_head = []
            for h in range(heads):
                lo = h * dim_head
                qh = qkv[r0:r0 + N, lo:lo + dim_head]                   # [N, dh]
                kh = qkv[r0:r0 + N, inner + lo:inner + lo + dim_head]
                vh = qkv[r0:r0 + N, 2 * inner + lo:2 * inner + lo + dim_head]
                s = jax.lax.dot_general(qh, kh, (((1,), (1,)), ((), ())),
                                        preferred_element_type=jnp.float32) * scale
                p = _softmax_rows(s)                                    # exact division
                per_head.append(jnp.dot(p, vh, preferred_element_type=jnp.float32))
            per_batch.append(jnp.concatenate(per_head, axis=-1))        # [N, inner]
        attn = jnp.concatenate(per_batch, axis=0)                       # [BN, inner]
        x = x + jnp.dot(attn, wo_ref[d], preferred_element_type=jnp.float32) + bo_ref[d]

        # ---- feed-forward block: x = W2(GELU(W1(LN(x)))) + x ----
        xn = _ln(x, fg_ref[d], fb_ref[d])
        h1 = _gelu_exact(jnp.dot(xn, w1_ref[d], preferred_element_type=jnp.float32) + b1_ref[d])
        x = x + jnp.dot(h1, w2_ref[d], preferred_element_type=jnp.float32) + b2_ref[d]

    # ---- final Transformer LayerNorm ----
    x = _ln(x, ng_ref[...], nb_ref[...])
    o_ref[...] = x.astype(o_ref.dtype)


def transformer_call(p, x2d, B, N):
    BN, D = x2d.shape
    args = [x2d, p["attn_ln_g"], p["attn_ln_b"], p["Wqkv"], p["Wo"], p["bo"],
            p["ff_ln_g"], p["ff_ln_b"], p["W1"], p["b1"], p["W2"], p["b2"],
            p["norm_g"], p["norm_b"]]
    kernel = functools.partial(_transformer_kernel, depth=p["depth"], heads=p["heads"],
                               dim_head=p["dim_head"], B=B, N=N)
    return pl.pallas_call(
        kernel,
        out_shape=jax.ShapeDtypeStruct((BN, D), x2d.dtype),
        grid=(1,),
        in_specs=[_full_spec(a.shape) for a in args],
        out_specs=_full_spec((BN, D)),
        compiler_params=_cparams(),
    )(*args)


# ------------------------ fused CrossTransformer kernel ----------------------

def _take_dir(refs, i, has_proj):
    d = {}
    if has_proj:
        d["Wpi"], d["bpi"] = refs[i], refs[i + 1]
        i += 2
    for k in ("ln_g", "ln_b", "Wq", "Wkv", "Wo", "bo"):
        d[k] = refs[i]
        i += 1
    if has_proj:
        d["Wpo"], d["bpo"] = refs[i], refs[i + 1]
        i += 2
    return d, i


def _cross_dir(cls, ctx_slab, w, d, *, B, M, heads, dim_head, has_proj):
    # cls: [B, dim_in], ctx_slab: [B*M, dim_ctx].  Implements
    #   ProjectOut(Attention(LN(ProjectIn(cls)), context=ctx, kv_include_self=True)) + cls
    scale = dim_head ** -0.5
    inner = heads * dim_head
    if has_proj:
        x = jnp.dot(cls, w["Wpi"][d], preferred_element_type=jnp.float32) + w["bpi"][d]
    else:
        x = cls
    xn = _ln(x, w["ln_g"][d], w["ln_b"][d])                                     # [B, dc]
    q = jnp.dot(xn, w["Wq"][d], preferred_element_type=jnp.float32)             # [B, inner]
    kv_self = jnp.dot(xn, w["Wkv"][d], preferred_element_type=jnp.float32)      # [B, 2*inner]
    kv_ctx = jnp.dot(ctx_slab, w["Wkv"][d], preferred_element_type=jnp.float32)  # [B*M, 2*inner]

    per_batch = []
    for b in range(B):
        # kv_include_self: keys/values over [self_token, context_tokens]
        kv_b = jnp.concatenate([kv_self[b:b + 1, :], kv_ctx[b * M:(b + 1) * M, :]], axis=0)
        per_head = []
        for h in range(heads):
            lo = h * dim_head
            qh = q[b:b + 1, lo:lo + dim_head]                                   # [1, dh]
            kh = kv_b[:, lo:lo + dim_head]                                      # [M+1, dh]
            vh = kv_b[:, inner + lo:inner + lo + dim_head]
            s = jax.lax.dot_general(qh, kh, (((1,), (1,)), ((), ())),
                                    preferred_element_type=jnp.float32) * scale
            p = _softmax_rows(s)
            per_head.append(jnp.dot(p, vh, preferred_element_type=jnp.float32))  # [1, dh]
        per_batch.append(jnp.concatenate(per_head, axis=-1))                    # [1, inner]
    attn = jnp.concatenate(per_batch, axis=0)                                   # [B, inner]

    y = jnp.dot(attn, w["Wo"][d], preferred_element_type=jnp.float32) + w["bo"][d]
    if has_proj:
        y = jnp.dot(y, w["Wpo"][d], preferred_element_type=jnp.float32) + w["bpo"][d]
    return cls + y


def _cross_kernel(*refs, B, n_sm, n_lg, depth, heads, dim_head, proj_s2l, proj_l2s):
    i = 0
    sm_ref = refs[i]; i += 1
    lg_ref = refs[i]; i += 1
    s2l, i = _take_dir(refs, i, proj_s2l)
    l2s, i = _take_dir(refs, i, proj_l2s)
    o_sm_ref = refs[i]; i += 1
    o_lg_ref = refs[i]; i += 1

    sm = sm_ref[...].astype(jnp.float32)                    # [B*n_sm, sm_dim]
    lg = lg_ref[...].astype(jnp.float32)                    # [B*n_lg, lg_dim]
    M_sm, M_lg = n_sm - 1, n_lg - 1

    sm_cls = jnp.concatenate([sm[b * n_sm:b * n_sm + 1, :] for b in range(B)], axis=0)   # [B, sm]
    lg_cls = jnp.concatenate([lg[b * n_lg:b * n_lg + 1, :] for b in range(B)], axis=0)   # [B, lg]
    sm_patch = jnp.concatenate([sm[b * n_sm + 1:(b + 1) * n_sm, :] for b in range(B)], axis=0)
    lg_patch = jnp.concatenate([lg[b * n_lg + 1:(b + 1) * n_lg, :] for b in range(B)], axis=0)

    for d in range(depth):                                  # static unroll over cross layers
        sm_cls = _cross_dir(sm_cls, lg_patch, s2l, d, B=B, M=M_lg,
                            heads=heads, dim_head=dim_head, has_proj=proj_s2l)
        lg_cls = _cross_dir(lg_cls, sm_patch, l2s, d, B=B, M=M_sm,
                            heads=heads, dim_head=dim_head, has_proj=proj_l2s)

    # Re-assemble full token slabs (cls row updated, patch rows passed through) as one
    # lane-dense full store per output.
    new_sm = jnp.concatenate(
        [jnp.concatenate([sm_cls[b:b + 1, :], sm[b * n_sm + 1:(b + 1) * n_sm, :]], axis=0)
         for b in range(B)], axis=0)
    new_lg = jnp.concatenate(
        [jnp.concatenate([lg_cls[b:b + 1, :], lg[b * n_lg + 1:(b + 1) * n_lg, :]], axis=0)
         for b in range(B)], axis=0)
    o_sm_ref[...] = new_sm.astype(o_sm_ref.dtype)
    o_lg_ref[...] = new_lg.astype(o_lg_ref.dtype)


def cross_call(p, sm2d, lg2d, B, n_sm, n_lg):
    def dir_args(d):
        keys = (["Wpi", "bpi"] if d["has_proj"] else []) \
            + ["ln_g", "ln_b", "Wq", "Wkv", "Wo", "bo"] \
            + (["Wpo", "bpo"] if d["has_proj"] else [])
        return [d[k] for k in keys]

    args = [sm2d, lg2d] + dir_args(p["s2l"]) + dir_args(p["l2s"])
    kernel = functools.partial(
        _cross_kernel, B=B, n_sm=n_sm, n_lg=n_lg, depth=p["depth"],
        heads=p["heads"], dim_head=p["dim_head"],
        proj_s2l=p["s2l"]["has_proj"], proj_l2s=p["l2s"]["has_proj"])
    return pl.pallas_call(
        kernel,
        out_shape=(jax.ShapeDtypeStruct(sm2d.shape, sm2d.dtype),
                   jax.ShapeDtypeStruct(lg2d.shape, lg2d.dtype)),
        grid=(1,),
        in_specs=[_full_spec(a.shape) for a in args],
        out_specs=(_full_spec(sm2d.shape), _full_spec(lg2d.shape)),
        compiler_params=_cparams(),
    )(*args)


# ----------------------- parameters (deterministic init) --------------------

def _init_w(key, din, dout, scale=0.02):
    return jax.random.normal(key, (din, dout), jnp.float32) * scale


def init_transformer(key, dim, depth, heads, dim_head, mlp_dim):
    inner = heads * dim_head
    Wqkv, Wo, W1, W2 = [], [], [], []
    for kk in jax.random.split(key, depth):
        k1, k2, k3, k4, k5 = jax.random.split(kk, 5)
        # to_q (bias=False) and to_kv (bias=False) fused as [dim, 3*inner] = [q | k | v]
        Wqkv.append(jnp.concatenate([_init_w(k1, dim, inner), _init_w(k2, dim, 2 * inner)], axis=1))
        Wo.append(_init_w(k3, inner, dim))
        W1.append(_init_w(k4, dim, mlp_dim))
        W2.append(_init_w(k5, mlp_dim, dim))
    z = lambda *s: jnp.zeros(s, jnp.float32)
    o = lambda *s: jnp.ones(s, jnp.float32)
    return {"depth": depth, "heads": heads, "dim_head": dim_head,
            "attn_ln_g": o(depth, 1, dim), "attn_ln_b": z(depth, 1, dim),
            "Wqkv": jnp.stack(Wqkv), "Wo": jnp.stack(Wo), "bo": z(depth, 1, dim),
            "ff_ln_g": o(depth, 1, dim), "ff_ln_b": z(depth, 1, dim),
            "W1": jnp.stack(W1), "b1": z(depth, 1, mlp_dim),
            "W2": jnp.stack(W2), "b2": z(depth, 1, dim),
            "norm_g": o(1, dim), "norm_b": z(1, dim)}


def init_cross_dir(key, dim_in, dim_out, depth, heads, dim_head):
    inner = heads * dim_head
    need_proj = dim_in != dim_out
    Wpi, Wpo, Wq, Wkv, Wo = [], [], [], [], []
    for kk in jax.random.split(key, depth):
        k1, k2, k3, k4, k5 = jax.random.split(kk, 5)
        if need_proj:
            Wpi.append(_init_w(k1, dim_in, dim_out))
            Wpo.append(_init_w(k2, dim_out, dim_in))
        Wq.append(_init_w(k3, dim_out, inner))
        Wkv.append(_init_w(k4, dim_out, 2 * inner))
        Wo.append(_init_w(k5, inner, dim_out))
    z = lambda *s: jnp.zeros(s, jnp.float32)
    p = {"has_proj": need_proj,
         "ln_g": jnp.ones((depth, 1, dim_out), jnp.float32), "ln_b": z(depth, 1, dim_out),
         "Wq": jnp.stack(Wq), "Wkv": jnp.stack(Wkv),
         "Wo": jnp.stack(Wo), "bo": z(depth, 1, dim_out)}
    if need_proj:
        p.update(Wpi=jnp.stack(Wpi), bpi=z(depth, 1, dim_out),
                 Wpo=jnp.stack(Wpo), bpo=z(depth, 1, dim_in))
    return p


def init_cross(key, sm_dim, lg_dim, depth, heads, dim_head):
    k1, k2 = jax.random.split(key)
    return {"depth": depth, "heads": heads, "dim_head": dim_head,
            "s2l": init_cross_dir(k1, sm_dim, lg_dim, depth, heads, dim_head),
            "l2s": init_cross_dir(k2, lg_dim, sm_dim, depth, heads, dim_head)}


def init_multiscale_encoder(key, *, depth, sm_dim, lg_dim, sm_enc_params, lg_enc_params,
                            cross_attn_heads, cross_attn_depth, cross_attn_dim_head=64):
    layers = []
    for kk in jax.random.split(key, depth):
        ks, kl, kc = jax.random.split(kk, 3)
        layers.append({"sm_enc": init_transformer(ks, sm_dim, **sm_enc_params),
                       "lg_enc": init_transformer(kl, lg_dim, **lg_enc_params),
                       "cross": init_cross(kc, sm_dim, lg_dim, cross_attn_depth,
                                           cross_attn_heads, cross_attn_dim_head)})
    return {"layers": layers}


# ------------------------------- forward pass --------------------------------

def multiscale_encoder_fwd(params, sm_tokens, lg_tokens):
    B, n_sm, sm_dim = sm_tokens.shape
    _, n_lg, lg_dim = lg_tokens.shape
    # Residual stream travels as lane-dense [B*N, D] slabs end-to-end.
    sm = sm_tokens.reshape(B * n_sm, sm_dim)
    lg = lg_tokens.reshape(B * n_lg, lg_dim)
    for lyr in params["layers"]:
        sm = transformer_call(lyr["sm_enc"], sm, B, n_sm)     # 1 pallas_call: full sm encoder
        lg = transformer_call(lyr["lg_enc"], lg, B, n_lg)     # 1 pallas_call: full lg encoder
        sm, lg = cross_call(lyr["cross"], sm, lg, B, n_sm, n_lg)  # 1 pallas_call: full cross stage
    return sm.reshape(B, n_sm, sm_dim), lg.reshape(B, n_lg, lg_dim)


# ----------------------------------- main ------------------------------------

if __name__ == "__main__":
    key = jax.random.PRNGKey(0)
    kp, ks, kl = jax.random.split(key, 3)

    B = 2
    n_sm, n_lg = 9, 9            # 1 cls + 8 patch tokens each
    sm_dim, lg_dim = 32, 64

    params = init_multiscale_encoder(
        kp,
        depth=1,
        sm_dim=sm_dim, lg_dim=lg_dim,
        sm_enc_params=dict(depth=2, heads=2, dim_head=16, mlp_dim=64),
        lg_enc_params=dict(depth=2, heads=2, dim_head=16, mlp_dim=64),
        cross_attn_heads=2, cross_attn_depth=2, cross_attn_dim_head=16,
    )

    sm_tokens = jax.random.normal(ks, (B, n_sm, sm_dim), jnp.float32)
    lg_tokens = jax.random.normal(kl, (B, n_lg, lg_dim), jnp.float32)

    # params closed over so depth/heads/dim_head stay static Python ints under jit.
    fwd = jax.jit(functools.partial(multiscale_encoder_fwd, params))

    sm_out, lg_out = fwd(sm_tokens, lg_tokens)
    jax.block_until_ready((sm_out, lg_out))

    assert sm_out.shape == (B, n_sm, sm_dim)
    assert lg_out.shape == (B, n_lg, lg_dim)
    assert bool(jnp.all(jnp.isfinite(sm_out))) and bool(jnp.all(jnp.isfinite(lg_out)))
    print("KERNEL_OK")
</pallas_src>

<mosaic_0001>
module attributes {stable_mosaic.version = 11 : i64} {
  func.func @_transformer_kernel(%arg0: i32, %arg1: memref<18x64xf32, #tpu.memory_space<vmem>>, %arg2: memref<2x1x64xf32, #tpu.memory_space<vmem>>, %arg3: memref<2x1x64xf32, #tpu.memory_space<vmem>>, %arg4: memref<2x64x96xf32, #tpu.memory_space<vmem>>, %arg5: memref<2x32x64xf32, #tpu.memory_space<vmem>>, %arg6: memref<2x1x64xf32, #tpu.memory_space<vmem>>, %arg7: memref<2x1x64xf32, #tpu.memory_space<vmem>>, %arg8: memref<2x1x64xf32, #tpu.memory_space<vmem>>, %arg9: memref<2x64x64xf32, #tpu.memory_space<vmem>>, %arg10: memref<2x1x64xf32, #tpu.memory_space<vmem>>, %arg11: memref<2x64x64xf32, #tpu.memory_space<vmem>>, %arg12: memref<2x1x64xf32, #tpu.memory_space<vmem>>, %arg13: memref<1x64xf32, #tpu.memory_space<vmem>>, %arg14: memref<1x64xf32, #tpu.memory_space<vmem>>, %arg15: memref<18x64xf32, #tpu.memory_space<vmem>>) attributes {dimension_semantics = [#tpu.dimension_semantics<arbitrary>], iteration_bounds = array<i64: 1>, scalar_prefetch = 0 : i64, scratch_operands = 0 : i64, tpu.core_type = #tpu.core_type<tc>, window_params = [{pipeline_mode = #tpu.pipeline_mode<synchronous>, transform_indices = @transform_0, window_bounds = array<i64: 18, 64>}, {pipeline_mode = #tpu.pipeline_mode<synchronous>, transform_indices = @transform_1, window_bounds = array<i64: 2, 1, 64>}, {pipeline_mode = #tpu.pipeline_mode<synchronous>, transform_indices = @transform_2, window_bounds = array<i64: 2, 1, 64>}, {pipeline_mode = #tpu.pipeline_mode<synchronous>, transform_indices = @transform_3, window_bounds = array<i64: 2, 64, 96>}, {pipeline_mode = #tpu.pipeline_mode<synchronous>, transform_indices = @transform_4, window_bounds = array<i64: 2, 32, 64>}, {pipeline_mode = #tpu.pipeline_mode<synchronous>, transform_indices = @transform_5, window_bounds = array<i64: 2, 1, 64>}, {pipeline_mode = #tpu.pipeline_mode<synchronous>, transform_indices = @transform_6, window_bounds = array<i64: 2, 1, 64>}, {pipeline_mode = #tpu.pipeline_mode<synchronous>, transform_indices = @transform_7, window_bounds = array<i64: 2, 1, 64>}, {pipeline_mode = #tpu.pipeline_mode<synchronous>, transform_indices = @transform_8, window_bounds = array<i64: 2, 64, 64>}, {pipeline_mode = #tpu.pipeline_mode<synchronous>, transform_indices = @transform_9, window_bounds = array<i64: 2, 1, 64>}, {pipeline_mode = #tpu.pipeline_mode<synchronous>, transform_indices = @transform_10, window_bounds = array<i64: 2, 64, 64>}, {pipeline_mode = #tpu.pipeline_mode<synchronous>, transform_indices = @transform_11, window_bounds = array<i64: 2, 1, 64>}, {pipeline_mode = #tpu.pipeline_mode<synchronous>, transform_indices = @transform_12, window_bounds = array<i64: 1, 64>}, {pipeline_mode = #tpu.pipeline_mode<synchronous>, transform_indices = @transform_13, window_bounds = array<i64: 1, 64>}, {pipeline_mode = #tpu.pipeline_mode<synchronous>, transform_indices = @transform_14, window_bounds = array<i64: 18, 64>}]} {
    %c0 = arith.constant 0 : index
    %c0_0 = arith.constant 0 : index
    %0 = vector.load %arg1[%c0, %c0_0] : memref<18x64xf32, #tpu.memory_space<vmem>>, vector<18x64xf32>
    %c0_1 = arith.constant 0 : index
    %c0_2 = arith.constant 0 : index
    %c0_3 = arith.constant 0 : index
    %1 = vector.load %arg2[%c0_1, %c0_2, %c0_3] : memref<2x1x64xf32, #tpu.memory_space<vmem>>, vector<1x1x64xf32>
    %2 = vector.shape_cast %1 : vector<1x1x64xf32> to vector<1x64xf32>
    %c0_4 = arith.constant 0 : index
    %c0_5 = arith.constant 0 : index
    %c0_6 = arith.constant 0 : index
    %3 = vector.load %arg3[%c0_4, %c0_5, %c0_6] : memref<2x1x64xf32, #tpu.memory_space<vmem>>, vector<1x1x64xf32>
    %4 = vector.shape_cast %3 : vector<1x1x64xf32> to vector<1x64xf32>
    %cst = arith.constant dense<0.000000e+00> : vector<18xf32>
    %5 = vector.multi_reduction <add>, %0, %cst [1] : vector<18x64xf32> to vector<18xf32>
    %6 = vector.shape_cast %5 : vector<18xf32> to vector<18x1xf32>
    %cst_7 = arith.constant 6.400000e+01 : f32
    %7 = vector.broadcast %cst_7 : f32 to vector<18x1xf32>
    %8 = arith.divf %6, %7 : vector<18x1xf32>
    %9 = vector.broadcast %8 : vector<18x1xf32> to vector<18x64xf32>
    %10 = arith.subf %0, %9 : vector<18x64xf32>
    %11 = arith.mulf %10, %10 : vector<18x64xf32>
    %cst_8 = arith.constant dense<0.000000e+00> : vector<18xf32>
    %12 = vector.multi_reduction <add>, %11, %cst_8 [1] : vector<18x64xf32> to vector<18xf32>
    %13 = vector.shape_cast %12 : vector<18xf32> to vector<18x1xf32>
    %cst_9 = arith.constant 6.400000e+01 : f32
    %14 = vector.broadcast %cst_9 : f32 to vector<18x1xf32>
    %15 = arith.divf %13, %14 : vector<18x1xf32>
    %16 = vector.broadcast %8 : vector<18x1xf32> to vector<18x64xf32>
    %17 = arith.subf %0, %16 : vector<18x64xf32>
    %cst_10 = arith.constant 9.99999974E-6 : f32
    %18 = vector.broadcast %cst_10 : f32 to vector<18x1xf32>
    %19 = arith.addf %15, %18 : vector<18x1xf32>
    %20 = math.rsqrt %19 : vector<18x1xf32>
    %21 = vector.broadcast %20 : vector<18x1xf32> to vector<18x64xf32>
    %22 = arith.mulf %17, %21 : vector<18x64xf32>
    %23 = vector.broadcast %2 : vector<1x64xf32> to vector<18x64xf32>
    %24 = arith.mulf %22, %23 : vector<18x64xf32>
    %25 = vector.broadcast %4 : vector<1x64xf32> to vector<18x64xf32>
    %26 = arith.addf %24, %25 : vector<18x64xf32>
    %c0_11 = arith.constant 0 : index
    %c0_12 = arith.constant 0 : index
    %c0_13 = arith.constant 0 : index
    %27 = vector.load %arg4[%c0_11, %c0_12, %c0_13] : memref<2x64x96xf32, #tpu.memory_space<vmem>>, vector<1x64x96xf32>
    %28 = vector.shape_cast %27 : vector<1x64x96xf32> to vector<64x96xf32>
    %cst_14 = arith.constant dense<0.000000e+00> : vector<18x96xf32>
    %29 = tpu.matmul %26, %28, %cst_14 {dimension_numbers = #tpu.dot_dimension_numbers<[1], [0], [0], [1], [0, 0, 1, 1], [], []>} : vector<18x64xf32>, vector<64x96xf32>, vector<18x96xf32> -> vector<18x96xf32>
    %30 = vector.extract_strided_slice %29 {offsets = [0, 0], sizes = [9, 16], strides = [1, 1]} : vector<18x96xf32> to vector<9x16xf32>
    %31 = vector.extract_strided_slice %29 {offsets = [0, 32], sizes = [9, 16], strides = [1, 1]} : vector<18x96xf32> to vector<9x16xf32>
    %32 = vector.extract_strided_slice %29 {offsets = [0, 64], sizes = [9, 16], strides = [1, 1]} : vector<18x96xf32> to vector<9x16xf32>
    %cst_15 = arith.constant dense<0.000000e+00> : vector<9x9xf32>
    %33 = tpu.matmul %30, %31, %cst_15 {dimension_numbers = #tpu.dot_dimension_numbers<[1], [1], [0], [0], [0, 0, 1, 0], [], []>} : vector<9x16xf32>, vector<9x16xf32>, vector<9x9xf32> -> vector<9x9xf32>
    %cst_16 = arith.constant 2.500000e-01 : f32
    %34 = vector.broadcast %cst_16 : f32 to vector<9x9xf32>
    %35 = arith.mulf %33, %34 : vector<9x9xf32>
    %cst_17 = arith.constant dense<0xFF800000> : vector<9xf32>
    %36 = vector.multi_reduction <maximumf>, %35, %cst_17 [1] : vector<9x9xf32> to vector<9xf32>
    %37 = vector.shape_cast %36 : vector<9xf32> to vector<9x1xf32>
    %38 = vector.broadcast %37 : vector<9x1xf32> to vector<9x9xf32>
    %39 = arith.subf %35, %38 : vector<9x9xf32>
    %40 = math.exp %39 : vector<9x9xf32>
    %cst_18 = arith.constant dense<0.000000e+00> : vector<9xf32>
    %41 = vector.multi_reduction <add>, %40, %cst_18 [1] : vector<9x9xf32> to vector<9xf32>
    %42 = vector.shape_cast %41 : vector<9xf32> to vector<9x1xf32>
    %43 = vector.broadcast %42 : vector<9x1xf32> to vector<9x9xf32>
    %44 = arith.divf %40, %43 : vector<9x9xf32>
    %cst_19 = arith.constant dense<0.000000e+00> : vector<9x16xf32>
    %45 = tpu.matmul %44, %32, %cst_19 {dimension_numbers = #tpu.dot_dimension_numbers<[1], [0], [0], [1], [0, 0, 1, 1], [], []>} : vector<9x9xf32>, vector<9x16xf32>, vector<9x16xf32> -> vector<9x16xf32>
    %46 = vector.extract_strided_slice %29 {offsets = [0, 16], sizes = [9, 16], strides = [1, 1]} : vector<18x96xf32> to vector<9x16xf32>
    %47 = vector.extract_strided_slice %29 {offsets = [0, 48], sizes = [9, 16], strides = [1, 1]} : vector<18x96xf32> to vector<9x16xf32>
    %48 = vector.extract_strided_slice %29 {offsets = [0, 80], sizes = [9, 16], strides = [1, 1]} : vector<18x96xf32> to vector<9x16xf32>
    %cst_20 = arith.constant dense<0.000000e+00> : vector<9x9xf32>
    %49 = tpu.matmul %46, %47, %cst_20 {dimension_numbers = #tpu.dot_dimension_numbers<[1], [1], [0], [0], [0, 0, 1, 0], [], []>} : vector<9x16xf32>, vector<9x16xf32>, vector<9x9xf32> -> vector<9x9xf32>
    %cst_21 = arith.constant 2.500000e-01 : f32
    %50 = vector.broadcast %cst_21 : f32 to vector<9x9xf32>
    %51 = arith.mulf %49, %50 : vector<9x9xf32>
    %cst_22 = arith.constant dense<0xFF800000> : vector<9xf32>
    %52 = vector.multi_reduction <maximumf>, %51, %cst_22 [1] : vector<9x9xf32> to vector<9xf32>
    %53 = vector.shape_cast %52 : vector<9xf32> to vector<9x1xf32>
    %54 = vector.broadcast %53 : vector<9x1xf32> to vector<9x9xf32>
    %55 = arith.subf %51, %54 : vector<9x9xf32>
    %56 = math.exp %55 : vector<9x9xf32>
    %cst_23 = arith.constant dense<0.000000e+00> : vector<9xf32>
    %57 = vector.multi_reduction <add>, %56, %cst_23 [1] : vector<9x9xf32> to vector<9xf32>
    %58 = vector.shape_cast %57 : vector<9xf32> to vector<9x1xf32>
    %59 = vector.broadcast %58 : vector<9x1xf32> to vector<9x9xf32>
    %60 = arith.divf %56, %59 : vector<9x9xf32>
    %cst_24 = arith.constant dense<0.000000e+00> : vector<9x16xf32>
    %61 = tpu.matmul %60, %48, %cst_24 {dimension_numbers = #tpu.dot_dimension_numbers<[1], [0], [0], [1], [0, 0, 1, 1], [], []>} : vector<9x9xf32>, vector<9x16xf32>, vector<9x16xf32> -> vector<9x16xf32>
    %62 = tpu.concatenate %45, %61 in 1 : vector<9x16xf32>, vector<9x16xf32> -> vector<9x32xf32>
    %63 = vector.extract_strided_slice %29 {offsets = [9, 0], sizes = [9, 16], strides = [1, 1]} : vector<18x96xf32> to vector<9x16xf32>
    %64 = vector.extract_strided_slice %29 {offsets = [9, 32], sizes = [9, 16], strides = [1, 1]} : vector<18x96xf32> to vector<9x16xf32>
    %65 = vector.extract_strided_slice %29 {offsets = [9, 64], sizes = [9, 16], strides = [1, 1]} : vector<18x96xf32> to vector<9x16xf32>
    %cst_25 = arith.constant dense<0.000000e+00> : vector<9x9xf32>
    %66 = tpu.matmul %63, %64, %cst_25 {dimension_numbers = #tpu.dot_dimension_numbers<[1], [1], [0], [0], [0, 0, 1, 0], [], []>} : vector<9x16xf32>, vector<9x16xf32>, vector<9x9xf32> -> vector<9x9xf32>
    %cst_26 = arith.constant 2.500000e-01 : f32
    %67 = vector.broadcast %cst_26 : f32 to vector<9x9xf32>
    %68 = arith.mulf %66, %67 : vector<9x9xf32>
    %cst_27 = arith.constant dense<0xFF800000> : vector<9xf32>
    %69 = vector.multi_reduction <maximumf>, %68, %cst_27 [1] : vector<9x9xf32> to vector<9xf32>
    %70 = vector.shape_cast %69 : vector<9xf32> to vector<9x1xf32>
    %71 = vector.broadcast %70 : vector<9x1xf32> to vector<9x9xf32>
    %72 = arith.subf %68, %71 : vector<9x9xf32>
    %73 = math.exp %72 : vector<9x9xf32>
    %cst_28 = arith.constant dense<0.000000e+00> : vector<9xf32>
    %74 = vector.multi_reduction <add>, %73, %cst_28 [1] : vector<9x9xf32> to vector<9xf32>
    %75 = vector.shape_cast %74 : vector<9xf32> to vector<9x1xf32>
    %76 = vector.broadcast %75 : vector<9x1xf32> to vector<9x9xf32>
    %77 = arith.divf %73, %76 : vector<9x9xf32>
    %cst_29 = arith.constant dense<0.000000e+00> : vector<9x16xf32>
    %78 = tpu.matmul %77, %65, %cst_29 {dimension_numbers = #tpu.dot_dimension_numbers<[1], [0], [0], [1], [0, 0, 1, 1], [], []>} : vector<9x9xf32>, vector<9x16xf32>, vector<9x16xf32> -> vector<9x16xf32>
    %79 = vector.extract_strided_slice %29 {offsets = [9, 16], sizes = [9, 16], strides = [1, 1]} : vector<18x96xf32> to vector<9x16xf32>
    %80 = vector.extract_strided_slice %29 {offsets = [9, 48], sizes = [9, 16], strides = [1, 1]} : vector<18x96xf32> to vector<9x16xf32>
    %81 = vector.extract_strided_slice %29 {offsets = [9, 80], sizes = [9, 16], strides = [1, 1]} : vector<18x96xf32> to vector<9x16xf32>
    %cst_30 = arith.constant dense<0.000000e+00> : vector<9x9xf32>
    %82 = tpu.matmul %79, %80, %cst_30 {dimension_numbers = #tpu.dot_dimension_numbers<[1], [1], [0], [0], [0, 0, 1, 0], [], []>} : vector<9x16xf32>, vector<9x16xf32>, vector<9x9xf32> -> vector<9x9xf32>
    %cst_31 = arith.constant 2.500000e-01 : f32
    %83 = vector.broadcast %cst_31 : f32 to vector<9x9xf32>
    %84 = arith.mulf %82, %83 : vector<9x9xf32>
    %cst_32 = arith.constant dense<0xFF800000> : vector<9xf32>
    %85 = vector.multi_reduction <maximumf>, %84, %cst_32 [1] : vector<9x9xf32> to vector<9xf32>
    %86 = vector.shape_cast %85 : vector<9xf32> to vector<9x1xf32>
    %87 = vector.broadcast %86 : vector<9x1xf32> to vector<9x9xf32>
    %88 = arith.subf %84, %87 : vector<9x9xf32>
    %89 = math.exp %88 : vector<9x9xf32>
    %cst_33 = arith.constant dense<0.000000e+00> : vector<9xf32>
    %90 = vector.multi_reduction <add>, %89, %cst_33 [1] : vector<9x9xf32> to vector<9xf32>
    %91 = vector.shape_cast %90 : vector<9xf32> to vector<9x1xf32>
    %92 = vector.broadcast %91 : vector<9x1xf32> to vector<9x9xf32>
    %93 = arith.divf %89, %92 : vector<9x9xf32>
    %cst_34 = arith.constant dense<0.000000e+00> : vector<9x16xf32>
    %94 = tpu.matmul %93, %81, %cst_34 {dimension_numbers = #tpu.dot_dimension_numbers<[1], [0], [0], [1], [0, 0, 1, 1], [], []>} : vector<9x9xf32>, vector<9x16xf32>, vector<9x16xf32> -> vector<9x16xf32>
    %95 = tpu.concatenate %78, %94 in 1 : vector<9x16xf32>, vector<9x16xf32> -> vector<9x32xf32>
    %96 = tpu.concatenate %62, %95 in 0 : vector<9x32xf32>, vector<9x32xf32> -> vector<18x32xf32>
    %c0_35 = arith.constant 0 : index
    %c0_36 = arith.constant 0 : index
    %c0_37 = arith.constant 0 : index
    %97 = vector.load %arg5[%c0_35, %c0_36, %c0_37] : memref<2x32x64xf32, #tpu.memory_space<vmem>>, vector<1x32x64xf32>
    %98 = vector.shape_cast %97 : vector<1x32x64xf32> to vector<32x64xf32>
    %cst_38 = arith.constant dense<0.000000e+00> : vector<18x64xf32>
    %99 = tpu.matmul %96, %98, %cst_38 {dimension_numbers = #tpu.dot_dimension_numbers<[1], [0], [0], [1], [0, 0, 1, 1], [], []>} : vector<18x32xf32>, vector<32x64xf32>, vector<18x64xf32> -> vector<18x64xf32>
    %100 = arith.addf %0, %99 : vector<18x64xf32>
    %c0_39 = arith.constant 0 : index
    %c0_40 = arith.constant 0 : index
    %c0_41 = arith.constant 0 : index
    %101 = vector.load %arg6[%c0_39, %c0_40, %c0_41] : memref<2x1x64xf32, #tpu.memory_space<vmem>>, vector<1x1x64xf32>
    %102 = vector.shape_cast %101 : vector<1x1x64xf32> to vector<1x64xf32>
    %103 = vector.broadcast %102 : vector<1x64xf32> to vector<18x64xf32>
    %104 = arith.addf %100, %103 : vector<18x64xf32>
    %c0_42 = arith.constant 0 : index
    %c0_43 = arith.constant 0 : index
    %c0_44 = arith.constant 0 : index
    %105 = vector.load %arg7[%c0_42, %c0_43, %c0_44] : memref<2x1x64xf32, #tpu.memory_space<vmem>>, vector<1x1x64xf32>
    %106 = vector.shape_cast %105 : vector<1x1x64xf32> to vector<1x64xf32>
    %c0_45 = arith.constant 0 : index
    %c0_46 = arith.constant 0 : index
    %c0_47 = arith.constant 0 : index
    %107 = vector.load %arg8[%c0_45, %c0_46, %c0_47] : memref<2x1x64xf32, #tpu.memory_space<vmem>>, vector<1x1x64xf32>
    %108 = vector.shape_cast %107 : vector<1x1x64xf32> to vector<1x64xf32>
    %cst_48 = arith.constant dense<0.000000e+00> : vector<18xf32>
    %109 = vector.multi_reduction <add>, %104, %cst_48 [1] : vector<18x64xf32> to vector<18xf32>
    %110 = vector.shape_cast %109 : vector<18xf32> to vector<18x1xf32>
    %cst_49 = arith.constant 6.400000e+01 : f32
    %111 = vector.broadcast %cst_49 : f32 to vector<18x1xf32>
    %112 = arith.divf %110, %111 : vector<18x1xf32>
    %113 = vector.broadcast %112 : vector<18x1xf32> to vector<18x64xf32>
    %114 = arith.subf %104, %113 : vector<18x64xf32>
    %115 = arith.mulf %114, %114 : vector<18x64xf32>
    %cst_50 = arith.constant dense<0.000000e+00> : vector<18xf32>
    %116 = vector.multi_reduction <add>, %115, %cst_50 [1] : vector<18x64xf32> to vector<18xf32>
    %117 = vector.shape_cast %116 : vector<18xf32> to vector<18x1xf32>
    %cst_51 = arith.constant 6.400000e+01 : f32
    %118 = vector.broadcast %cst_51 : f32 to vector<18x1xf32>
    %119 = arith.divf %117, %118 : vector<18x1xf32>
    %120 = vector.broadcast %112 : vector<18x1xf32> to vector<18x64xf32>
    %121 = arith.subf %104, %120 : vector<18x64xf32>
    %cst_52 = arith.constant 9.99999974E-6 : f32
    %122 = vector.broadcast %cst_52 : f32 to vector<18x1xf32>
    %123 = arith.addf %119, %122 : vector<18x1xf32>
    %124 = math.rsqrt %123 : vector<18x1xf32>
    %125 = vector.broadcast %124 : vector<18x1xf32> to vector<18x64xf32>
    %126 = arith.mulf %121, %125 : vector<18x64xf32>
    %127 = vector.broadcast %106 : vector<1x64xf32> to vector<18x64xf32>
    %128 = arith.mulf %126, %127 : vector<18x64xf32>
    %129 = vector.broadcast %108 : vector<1x64xf32> to vector<18x64xf32>
    %130 = arith.addf %128, %129 : vector<18x64xf32>
    %c0_53 = arith.constant 0 : index
    %c0_54 = arith.constant 0 : index
    %c0_55 = arith.constant 0 : index
    %131 = vector.load %arg9[%c0_53, %c0_54, %c0_55] : memref<2x64x64xf32, #tpu.memory_space<vmem>>, vector<1x64x64xf32>
    %132 = vector.shape_cast %131 : vector<1x64x64xf32> to vector<64x64xf32>
    %cst_56 = arith.constant dense<0.000000e+00> : vector<18x64xf32>
    %133 = tpu.matmul %130, %132, %cst_56 {dimension_numbers = #tpu.dot_dimension_numbers<[1], [0], [0], [1], [0, 0, 1, 1], [], []>} : vector<18x64xf32>, vector<64x64xf32>, vector<18x64xf32> -> vector<18x64xf32>
    %c0_57 = arith.constant 0 : index
    %c0_58 = arith.constant 0 : index
    %c0_59 = arith.constant 0 : index
    %134 = vector.load %arg10[%c0_57, %c0_58, %c0_59] : memref<2x1x64xf32, #tpu.memory_space<vmem>>, vector<1x1x64xf32>
    %135 = vector.shape_cast %134 : vector<1x1x64xf32> to vector<1x64xf32>
    %136 = vector.broadcast %135 : vector<1x64xf32> to vector<18x64xf32>
    %137 = arith.addf %133, %136 : vector<18x64xf32>
    %cst_60 = arith.constant 5.000000e-01 : f32
    %138 = vector.broadcast %cst_60 : f32 to vector<18x64xf32>
    %139 = arith.mulf %138, %137 : vector<18x64xf32>
    %cst_61 = arith.constant 0.707106769 : f32
    %140 = vector.broadcast %cst_61 : f32 to vector<18x64xf32>
    %141 = arith.mulf %137, %140 : vector<18x64xf32>
    %142 = math.erf %141 : vector<18x64xf32>
    %cst_62 = arith.constant 1.000000e+00 : f32
    %143 = vector.broadcast %cst_62 : f32 to vector<18x64xf32>
    %144 = arith.addf %143, %142 : vector<18x64xf32>
    %145 = arith.mulf %139, %144 : vector<18x64xf32>
    %c0_63 = arith.constant 0 : index
    %c0_64 = arith.constant 0 : index
    %c0_65 = arith.constant 0 : index
    %146 = vector.load %arg11[%c0_63, %c0_64, %c0_65] : memref<2x64x64xf32, #tpu.memory_space<vmem>>, vector<1x64x64xf32>
    %147 = vector.shape_cast %146 : vector<1x64x64xf32> to vector<64x64xf32>
    %cst_66 = arith.constant dense<0.000000e+00> : vector<18x64xf32>
    %148 = tpu.matmul %145, %147, %cst_66 {dimension_numbers = #tpu.dot_dimension_numbers<[1], [0], [0], [1], [0, 0, 1, 1], [], []>} : vector<18x64xf32>, vector<64x64xf32>, vector<18x64xf32> -> vector<18x64xf32>
    %149 = arith.addf %104, %148 : vector<18x64xf32>
    %c0_67 = arith.constant 0 : index
    %c0_68 = arith.constant 0 : index
    %c0_69 = arith.constant 0 : index
    %150 = vector.load %arg12[%c0_67, %c0_68, %c0_69] : memref<2x1x64xf32, #tpu.memory_space<vmem>>, vector<1x1x64xf32>
    %151 = vector.shape_cast %150 : vector<1x1x64xf32> to vector<1x64xf32>
    %152 = vector.broadcast %151 : vector<1x64xf32> to vector<18x64xf32>
    %153 = arith.addf %149, %152 : vector<18x64xf32>
    %c1 = arith.constant 1 : index
    %c0_70 = arith.constant 0 : index
    %c0_71 = arith.constant 0 : index
    %154 = vector.load %arg2[%c1, %c0_70, %c0_71] : memref<2x1x64xf32, #tpu.memory_space<vmem>>, vector<1x1x64xf32>
    %155 = vector.shape_cast %154 : vector<1x1x64xf32> to vector<1x64xf32>
    %c1_72 = arith.constant 1 : index
    %c0_73 = arith.constant 0 : index
    %c0_74 = arith.constant 0 : index
    %156 = vector.load %arg3[%c1_72, %c0_73, %c0_74] : memref<2x1x64xf32, #tpu.memory_space<vmem>>, vector<1x1x64xf32>
    %157 = vector.shape_cast %156 : vector<1x1x64xf32> to vector<1x64xf32>
    %cst_75 = arith.constant dense<0.000000e+00> : vector<18xf32>
    %158 = vector.multi_reduction <add>, %153, %cst_75 [1] : vector<18x64xf32> to vector<18xf32>
    %159 = vector.shape_cast %158 : vector<18xf32> to vector<18x1xf32>
    %cst_76 = arith.constant 6.400000e+01 : f32
    %160 = vector.broadcast %cst_76 : f32 to vector<18x1xf32>
    %161 = arith.divf %159, %160 : vector<18x1xf32>
    %162 = vector.broadcast %161 : vector<18x1xf32> to vector<18x64xf32>
    %163 = arith.subf %153, %162 : vector<18x64xf32>
    %164 = arith.mulf %163, %163 : vector<18x64xf32>
    %cst_77 = arith.constant dense<0.000000e+00> : vector<18xf32>
    %165 = vector.multi_reduction <add>, %164, %cst_77 [1] : vector<18x64xf32> to vector<18xf32>
    %166 = vector.shape_cast %165 : vector<18xf32> to vector<18x1xf32>
    %cst_78 = arith.constant 6.400000e+01 : f32
    %167 = vector.broadcast %cst_78 : f32 to vector<18x1xf32>
    %168 = arith.divf %166, %167 : vector<18x1xf32>
    %169 = vector.broadcast %161 : vector<18x1xf32> to vector<18x64xf32>
    %170 = arith.subf %153, %169 : vector<18x64xf32>
    %cst_79 = arith.constant 9.99999974E-6 : f32
    %171 = vector.broadcast %cst_79 : f32 to vector<18x1xf32>
    %172 = arith.addf %168, %171 : vector<18x1xf32>
    %173 = math.rsqrt %172 : vector<18x1xf32>
    %174 = vector.broadcast %173 : vector<18x1xf32> to vector<18x64xf32>
    %175 = arith.mulf %170, %174 : vector<18x64xf32>
    %176 = vector.broadcast %155 : vector<1x64xf32> to vector<18x64xf32>
    %177 = arith.mulf %175, %176 : vector<18x64xf32>
    %178 = vector.broadcast %157 : vector<1x64xf32> to vector<18x64xf32>
    %179 = arith.addf %177, %178 : vector<18x64xf32>
    %c1_80 = arith.constant 1 : index
    %c0_81 = arith.constant 0 : index
    %c0_82 = arith.constant 0 : index
    %180 = vector.load %arg4[%c1_80, %c0_81, %c0_82] : memref<2x64x96xf32, #tpu.memory_space<vmem>>, vector<1x64x96xf32>
    %181 = vector.shape_cast %180 : vector<1x64x96xf32> to vector<64x96xf32>
    %cst_83 = arith.constant dense<0.000000e+00> : vector<18x96xf32>
    %182 = tpu.matmul %179, %181, %cst_83 {dimension_numbers = #tpu.dot_dimension_numbers<[1], [0], [0], [1], [0, 0, 1, 1], [], []>} : vector<18x64xf32>, vector<64x96xf32>, vector<18x96xf32> -> vector<18x96xf32>
    %183 = vector.extract_strided_slice %182 {offsets = [0, 0], sizes = [9, 16], strides = [1, 1]} : vector<18x96xf32> to vector<9x16xf32>
    %184 = vector.extract_strided_slice %182 {offsets = [0, 32], sizes = [9, 16], strides = [1, 1]} : vector<18x96xf32> to vector<9x16xf32>
    %185 = vector.extract_strided_slice %182 {offsets = [0, 64], sizes = [9, 16], strides = [1, 1]} : vector<18x96xf32> to vector<9x16xf32>
    %cst_84 = arith.constant dense<0.000000e+00> : vector<9x9xf32>
    %186 = tpu.matmul %183, %184, %cst_84 {dimension_numbers = #tpu.dot_dimension_numbers<[1], [1], [0], [0], [0, 0, 1, 0], [], []>} : vector<9x16xf32>, vector<9x16xf32>, vector<9x9xf32> -> vector<9x9xf32>
    %cst_85 = arith.constant 2.500000e-01 : f32
    %187 = vector.broadcast %cst_85 : f32 to vector<9x9xf32>
    %188 = arith.mulf %186, %187 : vector<9x9xf32>
    %cst_86 = arith.constant dense<0xFF800000> : vector<9xf32>
    %189 = vector.multi_reduction <maximumf>, %188, %cst_86 [1] : vector<9x9xf32> to vector<9xf32>
    %190 = vector.shape_cast %189 : vector<9xf32> to vector<9x1xf32>
    %191 = vector.broadcast %190 : vector<9x1xf32> to vector<9x9xf32>
    %192 = arith.subf %188, %191 : vector<9x9xf32>
    %193 = math.exp %192 : vector<9x9xf32>
    %cst_87 = arith.constant dense<0.000000e+00> : vector<9xf32>
    %194 = vector.multi_reduction <add>, %193, %cst_87 [1] : vector<9x9xf32> to vector<9xf32>
    %195 = vector.shape_cast %194 : vector<9xf32> to vector<9x1xf32>
    %196 = vector.broadcast %195 : vector<9x1xf32> to vector<9x9xf32>
    %197 = arith.divf %193, %196 : vector<9x9xf32>
    %cst_88 = arith.constant dense<0.000000e+00> : vector<9x16xf32>
    %198 = tpu.matmul %197, %185, %cst_88 {dimension_numbers = #tpu.dot_dimension_numbers<[1], [0], [0], [1], [0, 0, 1, 1], [], []>} : vector<9x9xf32>, vector<9x16xf32>, vector<9x16xf32> -> vector<9x16xf32>
    %199 = vector.extract_strided_slice %182 {offsets = [0, 16], sizes = [9, 16], strides = [1, 1]} : vector<18x96xf32> to vector<9x16xf32>
    %200 = vector.extract_strided_slice %182 {offsets = [0, 48], sizes = [9, 16], strides = [1, 1]} : vector<18x96xf32> to vector<9x16xf32>
    %201 = vector.extract_strided_slice %182 {offsets = [0, 80], sizes = [9, 16], strides = [1, 1]} : vector<18x96xf32> to vector<9x16xf32>
    %cst_89 = arith.constant dense<0.000000e+00> : vector<9x9xf32>
    %202 = tpu.matmul %199, %200, %cst_89 {dimension_numbers = #tpu.dot_dimension_numbers<[1], [1], [0], [0], [0, 0, 1, 0], [], []>} : vector<9x16xf32>, vector<9x16xf32>, vector<9x9xf32> -> vector<9x9xf32>
    %cst_90 = arith.constant 2.500000e-01 : f32
    %203 = vector.broadcast %cst_90 : f32 to vector<9x9xf32>
    %204 = arith.mulf %202, %203 : vector<9x9xf32>
    %cst_91 = arith.constant dense<0xFF800000> : vector<9xf32>
    %205 = vector.multi_reduction <maximumf>, %204, %cst_91 [1] : vector<9x9xf32> to vector<9xf32>
    %206 = vector.shape_cast %205 : vector<9xf32> to vector<9x1xf32>
    %207 = vector.broadcast %206 : vector<9x1xf32> to vector<9x9xf32>
    %208 = arith.subf %204, %207 : vector<9x9xf32>
    %209 = math.exp %208 : vector<9x9xf32>
    %cst_92 = arith.constant dense<0.000000e+00> : vector<9xf32>
    %210 = vector.multi_reduction <add>, %209, %cst_92 [1] : vector<9x9xf32> to vector<9xf32>
    %211 = vector.shape_cast %210 : vector<9xf32> to vector<9x1xf32>
    %212 = vector.broadcast %211 : vector<9x1xf32> to vector<9x9xf32>
    %213 = arith.divf %209, %212 : vector<9x9xf32>
    %cst_93 = arith.constant dense<0.000000e+00> : vector<9x16xf32>
    %214 = tpu.matmul %213, %201, %cst_93 {dimension_numbers = #tpu.dot_dimension_numbers<[1], [0], [0], [1], [0, 0, 1, 1], [], []>} : vector<9x9xf32>, vector<9x16xf32>, vector<9x16xf32> -> vector<9x16xf32>
    %215 = tpu.concatenate %198, %214 in 1 : vector<9x16xf32>, vector<9x16xf32> -> vector<9x32xf32>
    %216 = vector.extract_strided_slice %182 {offsets = [9, 0], sizes = [9, 16], strides = [1, 1]} : vector<18x96xf32> to vector<9x16xf32>
    %217 = vector.extract_strided_slice %182 {offsets = [9, 32], sizes = [9, 16], strides = [1, 1]} : vector<18x96xf32> to vector<9x16xf32>
    %218 = vector.extract_strided_slice %182 {offsets = [9, 64], sizes = [9, 16], strides = [1, 1]} : vector<18x96xf32> to vector<9x16xf32>
    %cst_94 = arith.constant dense<0.000000e+00> : vector<9x9xf32>
    %219 = tpu.matmul %216, %217, %cst_94 {dimension_numbers = #tpu.dot_dimension_numbers<[1], [1], [0], [0], [0, 0, 1, 0], [], []>} : vector<9x16xf32>, vector<9x16xf32>, vector<9x9xf32> -> vector<9x9xf32>
    %cst_95 = arith.constant 2.500000e-01 : f32
    %220 = vector.broadcast %cst_95 : f32 to vector<9x9xf32>
    %221 = arith.mulf %219, %220 : vector<9x9xf32>
    %cst_96 = arith.constant dense<0xFF800000> : vector<9xf32>
    %222 = vector.multi_reduction <maximumf>, %221, %cst_96 [1] : vector<9x9xf32> to vector<9xf32>
    %223 = vector.shape_cast %222 : vector<9xf32> to vector<9x1xf32>
    %224 = vector.broadcast %223 : vector<9x1xf32> to vector<9x9xf32>
    %225 = arith.subf %221, %224 : vector<9x9xf32>
    %226 = math.exp %225 : vector<9x9xf32>
    %cst_97 = arith.constant dense<0.000000e+00> : vector<9xf32>
    %227 = vector.multi_reduction <add>, %226, %cst_97 [1] : vector<9x9xf32> to vector<9xf32>
    %228 = vector.shape_cast %227 : vector<9xf32> to vector<9x1xf32>
    %229 = vector.broadcast %228 : vector<9x1xf32> to vector<9x9xf32>
    %230 = arith.divf %226, %229 : vector<9x9xf32>
    %cst_98 = arith.constant dense<0.000000e+00> : vector<9x16xf32>
    %231 = tpu.matmul %230, %218, %cst_98 {dimension_numbers = #tpu.dot_dimension_numbers<[1], [0], [0], [1], [0, 0, 1, 1], [], []>} : vector<9x9xf32>, vector<9x16xf32>, vector<9x16xf32> -> vector<9x16xf32>
    %232 = vector.extract_strided_slice %182 {offsets = [9, 16], sizes = [9, 16], strides = [1, 1]} : vector<18x96xf32> to vector<9x16xf32>
    %233 = vector.extract_strided_slice %182 {offsets = [9, 48], sizes = [9, 16], strides = [1, 1]} : vector<18x96xf32> to vector<9x16xf32>
    %234 = vector.extract_strided_slice %182 {offsets = [9, 80], sizes = [9, 16], strides = [1, 1]} : vector<18x96xf32> to vector<9x16xf32>
    %cst_99 = arith.constant dense<0.000000e+00> : vector<9x9xf32>
    %235 = tpu.matmul %232, %233, %cst_99 {dimension_numbers = #tpu.dot_dimension_numbers<[1], [1], [0], [0], [0, 0, 1, 0], [], []>} : vector<9x16xf32>, vector<9x16xf32>, vector<9x9xf32> -> vector<9x9xf32>
    %cst_100 = arith.constant 2.500000e-01 : f32
    %236 = vector.broadcast %cst_100 : f32 to vector<9x9xf32>
    %237 = arith.mulf %235, %236 : vector<9x9xf32>
    %cst_101 = arith.constant dense<0xFF800000> : vector<9xf32>
    %238 = vector.multi_reduction <maximumf>, %237, %cst_101 [1] : vector<9x9xf32> to vector<9xf32>
    %239 = vector.shape_cast %238 : vector<9xf32> to vector<9x1xf32>
    %240 = vector.broadcast %239 : vector<9x1xf32> to vector<9x9xf32>
    %241 = arith.subf %237, %240 : vector<9x9xf32>
    %242 = math.exp %241 : vector<9x9xf32>
    %cst_102 = arith.constant dense<0.000000e+00> : vector<9xf32>
    %243 = vector.multi_reduction <add>, %242, %cst_102 [1] : vector<9x9xf32> to vector<9xf32>
    %244 = vector.shape_cast %243 : vector<9xf32> to vector<9x1xf32>
    %245 = vector.broadcast %244 : vector<9x1xf32> to vector<9x9xf32>
    %246 = arith.divf %242, %245 : vector<9x9xf32>
    %cst_103 = arith.constant dense<0.000000e+00> : vector<9x16xf32>
    %247 = tpu.matmul %246, %234, %cst_103 {dimension_numbers = #tpu.dot_dimension_numbers<[1], [0], [0], [1], [0, 0, 1, 1], [], []>} : vector<9x9xf32>, vector<9x16xf32>, vector<9x16xf32> -> vector<9x16xf32>
    %248 = tpu.concatenate %231, %247 in 1 : vector<9x16xf32>, vector<9x16xf32> -> vector<9x32xf32>
    %249 = tpu.concatenate %215, %248 in 0 : vector<9x32xf32>, vector<9x32xf32> -> vector<18x32xf32>
    %c1_104 = arith.constant 1 : index
    %c0_105 = arith.constant 0 : index
    %c0_106 = arith.constant 0 : index
    %250 = vector.load %arg5[%c1_104, %c0_105, %c0_106] : memref<2x32x64xf32, #tpu.memory_space<vmem>>, vector<1x32x64xf32>
    %251 = vector.shape_cast %250 : vector<1x32x64xf32> to vector<32x64xf32>
    %cst_107 = arith.constant dense<0.000000e+00> : vector<18x64xf32>
    %252 = tpu.matmul %249, %251, %cst_107 {dimension_numbers = #tpu.dot_dimension_numbers<[1], [0], [0], [1], [0, 0, 1, 1], [], []>} : vector<18x32xf32>, vector<32x64xf32>, vector<18x64xf32> -> vector<18x64xf32>
    %253 = arith.addf %153, %252 : vector<18x64xf32>
    %c1_108 = arith.constant 1 : index
    %c0_109 = arith.constant 0 : index
    %c0_110 = arith.constant 0 : index
    %254 = vector.load %arg6[%c1_108, %c0_109, %c0_110] : memref<2x1x64xf32, #tpu.memory_space<vmem>>, vector<1x1x64xf32>
    %255 = vector.shape_cast %254 : vector<1x1x64xf32> to vector<1x64xf32>
    %256 = vector.broadcast %255 : vector<1x64xf32> to vector<18x64xf32>
    %257 = arith.addf %253, %256 : vector<18x64xf32>
    %c1_111 = arith.constant 1 : index
    %c0_112 = arith.constant 0 : index
    %c0_113 = arith.constant 0 : index
    %258 = vector.load %arg7[%c1_111, %c0_112, %c0_113] : memref<2x1x64xf32, #tpu.memory_space<vmem>>, vector<1x1x64xf32>
    %259 = vector.shape_cast %258 : vector<1x1x64xf32> to vector<1x64xf32>
    %c1_114 = arith.constant 1 : index
    %c0_115 = arith.constant 0 : index
    %c0_116 = arith.constant 0 : index
    %260 = vector.load %arg8[%c1_114, %c0_115, %c0_116] : memref<2x1x64xf32, #tpu.memory_space<vmem>>, vector<1x1x64xf32>
    %261 = vector.shape_cast %260 : vector<1x1x64xf32> to vector<1x64xf32>
    %cst_117 = arith.constant dense<0.000000e+00> : vector<18xf32>
    %262 = vector.multi_reduction <add>, %257, %cst_117 [1] : vector<18x64xf32> to vector<18xf32>
    %263 = vector.shape_cast %262 : vector<18xf32> to vector<18x1xf32>
    %cst_118 = arith.constant 6.400000e+01 : f32
    %264 = vector.broadcast %cst_118 : f32 to vector<18x1xf32>
    %265 = arith.divf %263, %264 : vector<18x1xf32>
    %266 = vector.broadcast %265 : vector<18x1xf32> to vector<18x64xf32>
    %267 = arith.subf %257, %266 : vector<18x64xf32>
    %268 = arith.mulf %267, %267 : vector<18x64xf32>
    %cst_119 = arith.constant dense<0.000000e+00> : vector<18xf32>
    %269 = vector.multi_reduction <add>, %268, %cst_119 [1] : vector<18x64xf32> to vector<18xf32>
    %270 = vector.shape_cast %269 : vector<18xf32> to vector<18x1xf32>
    %cst_120 = arith.constant 6.400000e+01 : f32
    %271 = vector.broadcast %cst_120 : f32 to vector<18x1xf32>
    %272 = arith.divf %270, %271 : vector<18x1xf32>
    %273 = vector.broadcast %265 : vector<18x1xf32> to vector<18x64xf32>
    %274 = arith.subf %257, %273 : vector<18x64xf32>
    %cst_121 = arith.constant 9.99999974E-6 : f32
    %275 = vector.broadcast %cst_121 : f32 to vector<18x1xf32>
    %276 = arith.addf %272, %275 : vector<18x1xf32>
    %277 = math.rsqrt %276 : vector<18x1xf32>
    %278 = vector.broadcast %277 : vector<18x1xf32> to vector<18x64xf32>
    %279 = arith.mulf %274, %278 : vector<18x64xf32>
    %280 = vector.broadcast %259 : vector<1x64xf32> to vector<18x64xf32>
    %281 = arith.mulf %279, %280 : vector<18x64xf32>
    %282 = vector.broadcast %261 : vector<1x64xf32> to vector<18x64xf32>
    %283 = arith.addf %281, %282 : vector<18x64xf32>
    %c1_122 = arith.constant 1 : index
    %c0_123 = arith.constant 0 : index
    %c0_124 = arith.constant 0 : index
    %284 = vector.load %arg9[%c1_122, %c0_123, %c0_124] : memref<2x64x64xf32, #tpu.memory_space<vmem>>, vector<1x64x64xf32>
    %285 = vector.shape_cast %284 : vector<1x64x64xf32> to vector<64x64xf32>
    %cst_125 = arith.constant dense<0.000000e+00> : vector<18x64xf32>
    %286 = tpu.matmul %283, %285, %cst_125 {dimension_numbers = #tpu.dot_dimension_numbers<[1], [0], [0], [1], [0, 0, 1, 1], [], []>} : vector<18x64xf32>, vector<64x64xf32>, vector<18x64xf32> -> vector<18x64xf32>
    %c1_126 = arith.constant 1 : index
    %c0_127 = arith.constant 0 : index
    %c0_128 = arith.constant 0 : index
    %287 = vector.load %arg10[%c1_126, %c0_127, %c0_128] : memref<2x1x64xf32, #tpu.memory_space<vmem>>, vector<1x1x64xf32>
    %288 = vector.shape_cast %287 : vector<1x1x64xf32> to vector<1x64xf32>
    %289 = vector.broadcast %288 : vector<1x64xf32> to vector<18x64xf32>
    %290 = arith.addf %286, %289 : vector<18x64xf32>
    %cst_129 = arith.constant 5.000000e-01 : f32
    %291 = vector.broadcast %cst_129 : f32 to vector<18x64xf32>
    %292 = arith.mulf %291, %290 : vector<18x64xf32>
    %cst_130 = arith.constant 0.707106769 : f32
    %293 = vector.broadcast %cst_130 : f32 to vector<18x64xf32>
    %294 = arith.mulf %290, %293 : vector<18x64xf32>
    %295 = math.erf %294 : vector<18x64xf32>
    %cst_131 = arith.constant 1.000000e+00 : f32
    %296 = vector.broadcast %cst_131 : f32 to vector<18x64xf32>
    %297 = arith.addf %296, %295 : vector<18x64xf32>
    %298 = arith.mulf %292, %297 : vector<18x64xf32>
    %c1_132 = arith.constant 1 : index
    %c0_133 = arith.constant 0 : index
    %c0_134 = arith.constant 0 : index
    %299 = vector.load %arg11[%c1_132, %c0_133, %c0_134] : memref<2x64x64xf32, #tpu.memory_space<vmem>>, vector<1x64x64xf32>
    %300 = vector.shape_cast %299 : vector<1x64x64xf32> to vector<64x64xf32>
    %cst_135 = arith.constant dense<0.000000e+00> : vector<18x64xf32>
    %301 = tpu.matmul %298, %300, %cst_135 {dimension_numbers = #tpu.dot_dimension_numbers<[1], [0], [0], [1], [0, 0, 1, 1], [], []>} : vector<18x64xf32>, vector<64x64xf32>, vector<18x64xf32> -> vector<18x64xf32>
    %302 = arith.addf %257, %301 : vector<18x64xf32>
    %c1_136 = arith.constant 1 : index
    %c0_137 = arith.constant 0 : index
    %c0_138 = arith.constant 0 : index
    %303 = vector.load %arg12[%c1_136, %c0_137, %c0_138] : memref<2x1x64xf32, #tpu.memory_space<vmem>>, vector<1x1x64xf32>
    %304 = vector.shape_cast %303 : vector<1x1x64xf32> to vector<1x64xf32>
    %305 = vector.broadcast %304 : vector<1x64xf32> to vector<18x64xf32>
    %306 = arith.addf %302, %305 : vector<18x64xf32>
    %c0_139 = arith.constant 0 : index
    %c0_140 = arith.constant 0 : index
    %307 = vector.load %arg13[%c0_139, %c0_140] : memref<1x64xf32, #tpu.memory_space<vmem>>, vector<1x64xf32>
    %c0_141 = arith.constant 0 : index
    %c0_142 = arith.constant 0 : index
    %308 = vector.load %arg14[%c0_141, %c0_142] : memref<1x64xf32, #tpu.memory_space<vmem>>, vector<1x64xf32>
    %cst_143 = arith.constant dense<0.000000e+00> : vector<18xf32>
    %309 = vector.multi_reduction <add>, %306, %cst_143 [1] : vector<18x64xf32> to vector<18xf32>
    %310 = vector.shape_cast %309 : vector<18xf32> to vector<18x1xf32>
    %cst_144 = arith.constant 6.400000e+01 : f32
    %311 = vector.broadcast %cst_144 : f32 to vector<18x1xf32>
    %312 = arith.divf %310, %311 : vector<18x1xf32>
    %313 = vector.broadcast %312 : vector<18x1xf32> to vector<18x64xf32>
    %314 = arith.subf %306, %313 : vector<18x64xf32>
    %315 = arith.mulf %314, %314 : vector<18x64xf32>
    %cst_145 = arith.constant dense<0.000000e+00> : vector<18xf32>
    %316 = vector.multi_reduction <add>, %315, %cst_145 [1] : vector<18x64xf32> to vector<18xf32>
    %317 = vector.shape_cast %316 : vector<18xf32> to vector<18x1xf32>
    %cst_146 = arith.constant 6.400000e+01 : f32
    %318 = vector.broadcast %cst_146 : f32 to vector<18x1xf32>
    %319 = arith.divf %317, %318 : vector<18x1xf32>
    %320 = vector.broadcast %312 : vector<18x1xf32> to vector<18x64xf32>
    %321 = arith.subf %306, %320 : vector<18x64xf32>
    %cst_147 = arith.constant 9.99999974E-6 : f32
    %322 = vector.broadcast %cst_147 : f32 to vector<18x1xf32>
    %323 = arith.addf %319, %322 : vector<18x1xf32>
    %324 = math.rsqrt %323 : vector<18x1xf32>
    %325 = vector.broadcast %324 : vector<18x1xf32> to vector<18x64xf32>
    %326 = arith.mulf %321, %325 : vector<18x64xf32>
    %327 = vector.broadcast %307 : vector<1x64xf32> to vector<18x64xf32>
    %328 = arith.mulf %326, %327 : vector<18x64xf32>
    %329 = vector.broadcast %308 : vector<1x64xf32> to vector<18x64xf32>
    %330 = arith.addf %328, %329 : vector<18x64xf32>
    %c0_148 = arith.constant 0 : index
    %c0_149 = arith.constant 0 : index
    %331 = vector.load %arg15[%c0_148, %c0_149] : memref<18x64xf32, #tpu.memory_space<vmem>>, vector<18x64xf32>
    tpu.vector_store %arg15[%c0_148, %c0_149], %330 {strides = array<i32>} : memref<18x64xf32, #tpu.memory_space<vmem>>, vector<18x64xf32>,
    return
  }
  func.func @transform_0(%arg0: i32) -> (i32, i32) {
    %c0_i32 = arith.constant 0 : i32
    %c0_i32_0 = arith.constant 0 : i32
    %c0_i32_1 = arith.constant 0 : i32
    return %c0_i32, %c0_i32_0 : i32, i32
  }
  func.func @transform_1(%arg0: i32) -> (i32, i32, i32) {
    %c0_i32 = arith.constant 0 : i32
    %c0_i32_0 = arith.constant 0 : i32
    %c0_i32_1 = arith.constant 0 : i32
    %c0_i32_2 = arith.constant 0 : i32
    return %c0_i32, %c0_i32_0, %c0_i32_1 : i32, i32, i32
  }
  func.func @transform_2(%arg0: i32) -> (i32, i32, i32) {
    %c0_i32 = arith.constant 0 : i32
    %c0_i32_0 = arith.constant 0 : i32
    %c0_i32_1 = arith.constant 0 : i32
    %c0_i32_2 = arith.constant 0 : i32
    return %c0_i32, %c0_i32_0, %c0_i32_1 : i32, i32, i32
  }
  func.func @transform_3(%arg0: i32) -> (i32, i32, i32) {
    %c0_i32 = arith.constant 0 : i32
    %c0_i32_0 = arith.constant 0 : i32
    %c0_i32_1 = arith.constant 0 : i32
    %c0_i32_2 = arith.constant 0 : i32
    return %c0_i32, %c0_i32_0, %c0_i32_1 : i32, i32, i32
  }
  func.func @transform_4(%arg0: i32) -> (i32, i32, i32) {
    %c0_i32 = arith.constant 0 : i32
    %c0_i32_0 = arith.constant 0 : i32
    %c0_i32_1 = arith.constant 0 : i32
    %c0_i32_2 = arith.constant 0 : i32
    return %c0_i32, %c0_i32_0, %c0_i32_1 : i32, i32, i32
  }
  func.func @transform_5(%arg0: i32) -> (i32, i32, i32) {
    %c0_i32 = arith.constant 0 : i32
    %c0_i32_0 = arith.constant 0 : i32
    %c0_i32_1 = arith.constant 0 : i32
    %c0_i32_2 = arith.constant 0 : i32
    return %c0_i32, %c0_i32_0, %c0_i32_1 : i32, i32, i32
  }
  func.func @transform_6(%arg0: i32) -> (i32, i32, i32) {
    %c0_i32 = arith.constant 0 : i32
    %c0_i32_0 = arith.constant 0 : i32
    %c0_i32_1 = arith.constant 0 : i32
    %c0_i32_2 = arith.constant 0 : i32
    return %c0_i32, %c0_i32_0, %c0_i32_1 : i32, i32, i32
  }
  func.func @transform_7(%arg0: i32) -> (i32, i32, i32) {
    %c0_i32 = arith.constant 0 : i32
    %c0_i32_0 = arith.constant 0 : i32
    %c0_i32_1 = arith.constant 0 : i32
    %c0_i32_2 = arith.constant 0 : i32
    return %c0_i32, %c0_i32_0, %c0_i32_1 : i32, i32, i32
  }
  func.func @transform_8(%arg0: i32) -> (i32, i32, i32) {
    %c0_i32 = arith.constant 0 : i32
    %c0_i32_0 = arith.constant 0 : i32
    %c0_i32_1 = arith.constant 0 : i32
    %c0_i32_2 = arith.constant 0 : i32
    return %c0_i32, %c0_i32_0, %c0_i32_1 : i32, i32, i32
  }
  func.func @transform_9(%arg0: i32) -> (i32, i32, i32) {
    %c0_i32 = arith.constant 0 : i32
    %c0_i32_0 = arith.constant 0 : i32
    %c0_i32_1 = arith.constant 0 : i32
    %c0_i32_2 = arith.constant 0 : i32
    return %c0_i32, %c0_i32_0, %c0_i32_1 : i32, i32, i32
  }
  func.func @transform_10(%arg0: i32) -> (i32, i32, i32) {
    %c0_i32 = arith.constant 0 : i32
    %c0_i32_0 = arith.constant 0 : i32
    %c0_i32_1 = arith.constant 0 : i32
    %c0_i32_2 = arith.constant 0 : i32
    return %c0_i32, %c0_i32_0, %c0_i32_1 : i32, i32, i32
  }
  func.func @transform_11(%arg0: i32) -> (i32, i32, i32) {
    %c0_i32 = arith.constant 0 : i32
    %c0_i32_0 = arith.constant 0 : i32
    %c0_i32_1 = arith.constant 0 : i32
    %c0_i32_2 = arith.constant 0 : i32
    return %c0_i32, %c0_i32_0, %c0_i32_1 : i32, i32, i32
  }
  func.func @transform_12(%arg0: i32) -> (i32, i32) {
    %c0_i32 = arith.constant 0 : i32
    %c0_i32_0 = arith.constant 0 : i32
    %c0_i32_1 = arith.constant 0 : i32
    return %c0_i32, %c0_i32_0 : i32, i32
  }
  func.func @transform_13(%arg0: i32) -> (i32, i32) {
    %c0_i32 = arith.constant 0 : i32
    %c0_i32_0 = arith.constant 0 : i32
    %c0_i32_1 = arith.constant 0 : i32
    return %c0_i32, %c0_i32_0 : i32, i32
  }
  func.func @transform_14(%arg0: i32) -> (i32, i32) {
    %c0_i32 = arith.constant 0 : i32
    %c0_i32_0 = arith.constant 0 : i32
    %c0_i32_1 = arith.constant 0 : i32
    return %c0_i32, %c0_i32_0 : i32, i32
  }
}

module attributes {stable_mosaic.version = 11 : i64} {
  func.func @_transformer_kernel(%arg0: i32, %arg1: memref<18x32xf32, #tpu.memory_space<vmem>>, %arg2: memref<2x1x32xf32, #tpu.memory_space<vmem>>, %arg3: memref<2x1x32xf32, #tpu.memory_space<vmem>>, %arg4: memref<2x32x96xf32, #tpu.memory_space<vmem>>, %arg5: memref<2x32x32xf32, #tpu.memory_space<vmem>>, %arg6: memref<2x1x32xf32, #tpu.memory_space<vmem>>, %arg7: memref<2x1x32xf32, #tpu.memory_space<vmem>>, %arg8: memref<2x1x32xf32, #tpu.memory_space<vmem>>, %arg9: memref<2x32x64xf32, #tpu.memory_space<vmem>>, %arg10: memref<2x1x64xf32, #tpu.memory_space<vmem>>, %arg11: memref<2x64x32xf32, #tpu.memory_space<vmem>>, %arg12: memref<2x1x32xf32, #tpu.memory_space<vmem>>, %arg13: memref<1x32xf32, #tpu.memory_space<vmem>>, %arg14: memref<1x32xf32, #tpu.memory_space<vmem>>, %arg15: memref<18x32xf32, #tpu.memory_space<vmem>>) attributes {dimension_semantics = [#tpu.dimension_semantics<arbitrary>], iteration_bounds = array<i64: 1>, scalar_prefetch = 0 : i64, scratch_operands = 0 : i64, tpu.core_type = #tpu.core_type<tc>, window_params = [{pipeline_mode = #tpu.pipeline_mode<synchronous>, transform_indices = @transform_0, window_bounds = array<i64: 18, 32>}, {pipeline_mode = #tpu.pipeline_mode<synchronous>, transform_indices = @transform_1, window_bounds = array<i64: 2, 1, 32>}, {pipeline_mode = #tpu.pipeline_mode<synchronous>, transform_indices = @transform_2, window_bounds = array<i64: 2, 1, 32>}, {pipeline_mode = #tpu.pipeline_mode<synchronous>, transform_indices = @transform_3, window_bounds = array<i64: 2, 32, 96>}, {pipeline_mode = #tpu.pipeline_mode<synchronous>, transform_indices = @transform_4, window_bounds = array<i64: 2, 32, 32>}, {pipeline_mode = #tpu.pipeline_mode<synchronous>, transform_indices = @transform_5, window_bounds = array<i64: 2, 1, 32>}, {pipeline_mode = #tpu.pipeline_mode<synchronous>, transform_indices = @transform_6, window_bounds = array<i64: 2, 1, 32>}, {pipeline_mode = #tpu.pipeline_mode<synchronous>, transform_indices = @transform_7, window_bounds = array<i64: 2, 1, 32>}, {pipeline_mode = #tpu.pipeline_mode<synchronous>, transform_indices = @transform_8, window_bounds = array<i64: 2, 32, 64>}, {pipeline_mode = #tpu.pipeline_mode<synchronous>, transform_indices = @transform_9, window_bounds = array<i64: 2, 1, 64>}, {pipeline_mode = #tpu.pipeline_mode<synchronous>, transform_indices = @transform_10, window_bounds = array<i64: 2, 64, 32>}, {pipeline_mode = #tpu.pipeline_mode<synchronous>, transform_indices = @transform_11, window_bounds = array<i64: 2, 1, 32>}, {pipeline_mode = #tpu.pipeline_mode<synchronous>, transform_indices = @transform_12, window_bounds = array<i64: 1, 32>}, {pipeline_mode = #tpu.pipeline_mode<synchronous>, transform_indices = @transform_13, window_bounds = array<i64: 1, 32>}, {pipeline_mode = #tpu.pipeline_mode<synchronous>, transform_indices = @transform_14, window_bounds = array<i64: 18, 32>}]} {
    %c0 = arith.constant 0 : index
    %c0_0 = arith.constant 0 : index
    %0 = vector.load %arg1[%c0, %c0_0] : memref<18x32xf32, #tpu.memory_space<vmem>>, vector<18x32xf32>
    %c0_1 = arith.constant 0 : index
    %c0_2 = arith.constant 0 : index
    %c0_3 = arith.constant 0 : index
    %1 = vector.load %arg2[%c0_1, %c0_2, %c0_3] : memref<2x1x32xf32, #tpu.memory_space<vmem>>, vector<1x1x32xf32>
    %2 = vector.shape_cast %1 : vector<1x1x32xf32> to vector<1x32xf32>
    %c0_4 = arith.constant 0 : index
    %c0_5 = arith.constant 0 : index
    %c0_6 = arith.constant 0 : index
    %3 = vector.load %arg3[%c0_4, %c0_5, %c0_6] : memref<2x1x32xf32, #tpu.memory_space<vmem>>, vector<1x1x32xf32>
    %4 = vector.shape_cast %3 : vector<1x1x32xf32> to vector<1x32xf32>
    %cst = arith.constant dense<0.000000e+00> : vector<18xf32>
    %5 = vector.multi_reduction <add>, %0, %cst [1] : vector<18x32xf32> to vector<18xf32>
    %6 = vector.shape_cast %5 : vector<18xf32> to vector<18x1xf32>
    %cst_7 = arith.constant 3.200000e+01 : f32
    %7 = vector.broadcast %cst_7 : f32 to vector<18x1xf32>
    %8 = arith.divf %6, %7 : vector<18x1xf32>
    %9 = vector.broadcast %8 : vector<18x1xf32> to vector<18x32xf32>
    %10 = arith.subf %0, %9 : vector<18x32xf32>
    %11 = arith.mulf %10, %10 : vector<18x32xf32>
    %cst_8 = arith.constant dense<0.000000e+00> : vector<18xf32>
    %12 = vector.multi_reduction <add>, %11, %cst_8 [1] : vector<18x32xf32> to vector<18xf32>
    %13 = vector.shape_cast %12 : vector<18xf32> to vector<18x1xf32>
    %cst_9 = arith.constant 3.200000e+01 : f32
    %14 = vector.broadcast %cst_9 : f32 to vector<18x1xf32>
    %15 = arith.divf %13, %14 : vector<18x1xf32>
    %16 = vector.broadcast %8 : vector<18x1xf32> to vector<18x32xf32>
    %17 = arith.subf %0, %16 : vector<18x32xf32>
    %cst_10 = arith.constant 9.99999974E-6 : f32
    %18 = vector.broadcast %cst_10 : f32 to vector<18x1xf32>
    %19 = arith.addf %15, %18 : vector<18x1xf32>
    %20 = math.rsqrt %19 : vector<18x1xf32>
    %21 = vector.broadcast %20 : vector<18x1xf32> to vector<18x32xf32>
    %22 = arith.mulf %17, %21 : vector<18x32xf32>
    %23 = vector.broadcast %2 : vector<1x32xf32> to vector<18x32xf32>
    %24 = arith.mulf %22, %23 : vector<18x32xf32>
    %25 = vector.broadcast %4 : vector<1x32xf32> to vector<18x32xf32>
    %26 = arith.addf %24, %25 : vector<18x32xf32>
    %c0_11 = arith.constant 0 : index
    %c0_12 = arith.constant 0 : index
    %c0_13 = arith.constant 0 : index
    %27 = vector.load %arg4[%c0_11, %c0_12, %c0_13] : memref<2x32x96xf32, #tpu.memory_space<vmem>>, vector<1x32x96xf32>
    %28 = vector.shape_cast %27 : vector<1x32x96xf32> to vector<32x96xf32>
    %cst_14 = arith.constant dense<0.000000e+00> : vector<18x96xf32>
    %29 = tpu.matmul %26, %28, %cst_14 {dimension_numbers = #tpu.dot_dimension_numbers<[1], [0], [0], [1], [0, 0, 1, 1], [], []>} : vector<18x32xf32>, vector<32x96xf32>, vector<18x96xf32> -> vector<18x96xf32>
    %30 = vector.extract_strided_slice %29 {offsets = [0, 0], sizes = [9, 16], strides = [1, 1]} : vector<18x96xf32> to vector<9x16xf32>
    %31 = vector.extract_strided_slice %29 {offsets = [0, 32], sizes = [9, 16], strides = [1, 1]} : vector<18x96xf32> to vector<9x16xf32>
    %32 = vector.extract_strided_slice %29 {offsets = [0, 64], sizes = [9, 16], strides = [1, 1]} : vector<18x96xf32> to vector<9x16xf32>
    %cst_15 = arith.constant dense<0.000000e+00> : vector<9x9xf32>
    %33 = tpu.matmul %30, %31, %cst_15 {dimension_numbers = #tpu.dot_dimension_numbers<[1], [1], [0], [0], [0, 0, 1, 0], [], []>} : vector<9x16xf32>, vector<9x16xf32>, vector<9x9xf32> -> vector<9x9xf32>
    %cst_16 = arith.constant 2.500000e-01 : f32
    %34 = vector.broadcast %cst_16 : f32 to vector<9x9xf32>
    %35 = arith.mulf %33, %34 : vector<9x9xf32>
    %cst_17 = arith.constant dense<0xFF800000> : vector<9xf32>
    %36 = vector.multi_reduction <maximumf>, %35, %cst_17 [1] : vector<9x9xf32> to vector<9xf32>
    %37 = vector.shape_cast %36 : vector<9xf32> to vector<9x1xf32>
    %38 = vector.broadcast %37 : vector<9x1xf32> to vector<9x9xf32>
    %39 = arith.subf %35, %38 : vector<9x9xf32>
    %40 = math.exp %39 : vector<9x9xf32>
    %cst_18 = arith.constant dense<0.000000e+00> : vector<9xf32>
    %41 = vector.multi_reduction <add>, %40, %cst_18 [1] : vector<9x9xf32> to vector<9xf32>
    %42 = vector.shape_cast %41 : vector<9xf32> to vector<9x1xf32>
    %43 = vector.broadcast %42 : vector<9x1xf32> to vector<9x9xf32>
    %44 = arith.divf %40, %43 : vector<9x9xf32>
    %cst_19 = arith.constant dense<0.000000e+00> : vector<9x16xf32>
    %45 = tpu.matmul %44, %32, %cst_19 {dimension_numbers = #tpu.dot_dimension_numbers<[1], [0], [0], [1], [0, 0, 1, 1], [], []>} : vector<9x9xf32>, vector<9x16xf32>, vector<9x16xf32> -> vector<9x16xf32>
    %46 = vector.extract_strided_slice %29 {offsets = [0, 16], sizes = [9, 16], strides = [1, 1]} : vector<18x96xf32> to vector<9x16xf32>
    %47 = vector.extract_strided_slice %29 {offsets = [0, 48], sizes = [9, 16], strides = [1, 1]} : vector<18x96xf32> to vector<9x16xf32>
    %48 = vector.extract_strided_slice %29 {offsets = [0, 80], sizes = [9, 16], strides = [1, 1]} : vector<18x96xf32> to vector<9x16xf32>
    %cst_20 = arith.constant dense<0.000000e+00> : vector<9x9xf32>
    %49 = tpu.matmul %46, %47, %cst_20 {dimension_numbers = #tpu.dot_dimension_numbers<[1], [1], [0], [0], [0, 0, 1, 0], [], []>} : vector<9x16xf32>, vector<9x16xf32>, vector<9x9xf32> -> vector<9x9xf32>
    %cst_21 = arith.constant 2.500000e-01 : f32
    %50 = vector.broadcast %cst_21 : f32 to vector<9x9xf32>
    %51 = arith.mulf %49, %50 : vector<9x9xf32>
    %cst_22 = arith.constant dense<0xFF800000> : vector<9xf32>
    %52 = vector.multi_reduction <maximumf>, %51, %cst_22 [1] : vector<9x9xf32> to vector<9xf32>
    %53 = vector.shape_cast %52 : vector<9xf32> to vector<9x1xf32>
    %54 = vector.broadcast %53 : vector<9x1xf32> to vector<9x9xf32>
    %55 = arith.subf %51, %54 : vector<9x9xf32>
    %56 = math.exp %55 : vector<9x9xf32>
    %cst_23 = arith.constant dense<0.000000e+00> : vector<9xf32>
    %57 = vector.multi_reduction <add>, %56, %cst_23 [1] : vector<9x9xf32> to vector<9xf32>
    %58 = vector.shape_cast %57 : vector<9xf32> to vector<9x1xf32>
    %59 = vector.broadcast %58 : vector<9x1xf32> to vector<9x9xf32>
    %60 = arith.divf %56, %59 : vector<9x9xf32>
    %cst_24 = arith.constant dense<0.000000e+00> : vector<9x16xf32>
    %61 = tpu.matmul %60, %48, %cst_24 {dimension_numbers = #tpu.dot_dimension_numbers<[1], [0], [0], [1], [0, 0, 1, 1], [], []>} : vector<9x9xf32>, vector<9x16xf32>, vector<9x16xf32> -> vector<9x16xf32>
    %62 = tpu.concatenate %45, %61 in 1 : vector<9x16xf32>, vector<9x16xf32> -> vector<9x32xf32>
    %63 = vector.extract_strided_slice %29 {offsets = [9, 0], sizes = [9, 16], strides = [1, 1]} : vector<18x96xf32> to vector<9x16xf32>
    %64 = vector.extract_strided_slice %29 {offsets = [9, 32], sizes = [9, 16], strides = [1, 1]} : vector<18x96xf32> to vector<9x16xf32>
    %65 = vector.extract_strided_slice %29 {offsets = [9, 64], sizes = [9, 16], strides = [1, 1]} : vector<18x96xf32> to vector<9x16xf32>
    %cst_25 = arith.constant dense<0.000000e+00> : vector<9x9xf32>
    %66 = tpu.matmul %63, %64, %cst_25 {dimension_numbers = #tpu.dot_dimension_numbers<[1], [1], [0], [0], [0, 0, 1, 0], [], []>} : vector<9x16xf32>, vector<9x16xf32>, vector<9x9xf32> -> vector<9x9xf32>
    %cst_26 = arith.constant 2.500000e-01 : f32
    %67 = vector.broadcast %cst_26 : f32 to vector<9x9xf32>
    %68 = arith.mulf %66, %67 : vector<9x9xf32>
    %cst_27 = arith.constant dense<0xFF800000> : vector<9xf32>
    %69 = vector.multi_reduction <maximumf>, %68, %cst_27 [1] : vector<9x9xf32> to vector<9xf32>
    %70 = vector.shape_cast %69 : vector<9xf32> to vector<9x1xf32>
    %71 = vector.broadcast %70 : vector<9x1xf32> to vector<9x9xf32>
    %72 = arith.subf %68, %71 : vector<9x9xf32>
    %73 = math.exp %72 : vector<9x9xf32>
    %cst_28 = arith.constant dense<0.000000e+00> : vector<9xf32>
    %74 = vector.multi_reduction <add>, %73, %cst_28 [1] : vector<9x9xf32> to vector<9xf32>
    %75 = vector.shape_cast %74 : vector<9xf32> to vector<9x1xf32>
    %76 = vector.broadcast %75 : vector<9x1xf32> to vector<9x9xf32>
    %77 = arith.divf %73, %76 : vector<9x9xf32>
    %cst_29 = arith.constant dense<0.000000e+00> : vector<9x16xf32>
    %78 = tpu.matmul %77, %65, %cst_29 {dimension_numbers = #tpu.dot_dimension_numbers<[1], [0], [0], [1], [0, 0, 1, 1], [], []>} : vector<9x9xf32>, vector<9x16xf32>, vector<9x16xf32> -> vector<9x16xf32>
    %79 = vector.extract_strided_slice %29 {offsets = [9, 16], sizes = [9, 16], strides = [1, 1]} : vector<18x96xf32> to vector<9x16xf32>
    %80 = vector.extract_strided_slice %29 {offsets = [9, 48], sizes = [9, 16], strides = [1, 1]} : vector<18x96xf32> to vector<9x16xf32>
    %81 = vector.extract_strided_slice %29 {offsets = [9, 80], sizes = [9, 16], strides = [1, 1]} : vector<18x96xf32> to vector<9x16xf32>
    %cst_30 = arith.constant dense<0.000000e+00> : vector<9x9xf32>
    %82 = tpu.matmul %79, %80, %cst_30 {dimension_numbers = #tpu.dot_dimension_numbers<[1], [1], [0], [0], [0, 0, 1, 0], [], []>} : vector<9x16xf32>, vector<9x16xf32>, vector<9x9xf32> -> vector<9x9xf32>
    %cst_31 = arith.constant 2.500000e-01 : f32
    %83 = vector.broadcast %cst_31 : f32 to vector<9x9xf32>
    %84 = arith.mulf %82, %83 : vector<9x9xf32>
    %cst_32 = arith.constant dense<0xFF800000> : vector<9xf32>
    %85 = vector.multi_reduction <maximumf>, %84, %cst_32 [1] : vector<9x9xf32> to vector<9xf32>
    %86 = vector.shape_cast %85 : vector<9xf32> to vector<9x1xf32>
    %87 = vector.broadcast %86 : vector<9x1xf32> to vector<9x9xf32>
    %88 = arith.subf %84, %87 : vector<9x9xf32>
    %89 = math.exp %88 : vector<9x9xf32>
    %cst_33 = arith.constant dense<0.000000e+00> : vector<9xf32>
    %90 = vector.multi_reduction <add>, %89, %cst_33 [1] : vector<9x9xf32> to vector<9xf32>
    %91 = vector.shape_cast %90 : vector<9xf32> to vector<9x1xf32>
    %92 = vector.broadcast %91 : vector<9x1xf32> to vector<9x9xf32>
    %93 = arith.divf %89, %92 : vector<9x9xf32>
    %cst_34 = arith.constant dense<0.000000e+00> : vector<9x16xf32>
    %94 = tpu.matmul %93, %81, %cst_34 {dimension_numbers = #tpu.dot_dimension_numbers<[1], [0], [0], [1], [0, 0, 1, 1], [], []>} : vector<9x9xf32>, vector<9x16xf32>, vector<9x16xf32> -> vector<9x16xf32>
    %95 = tpu.concatenate %78, %94 in 1 : vector<9x16xf32>, vector<9x16xf32> -> vector<9x32xf32>
    %96 = tpu.concatenate %62, %95 in 0 : vector<9x32xf32>, vector<9x32xf32> -> vector<18x32xf32>
    %c0_35 = arith.constant 0 : index
    %c0_36 = arith.constant 0 : index
    %c0_37 = arith.constant 0 : index
    %97 = vector.load %arg5[%c0_35, %c0_36, %c0_37] : memref<2x32x32xf32, #tpu.memory_space<vmem>>, vector<1x32x32xf32>
    %98 = vector.shape_cast %97 : vector<1x32x32xf32> to vector<32x32xf32>
    %cst_38 = arith.constant dense<0.000000e+00> : vector<18x32xf32>
    %99 = tpu.matmul %96, %98, %cst_38 {dimension_numbers = #tpu.dot_dimension_numbers<[1], [0], [0], [1], [0, 0, 1, 1], [], []>} : vector<18x32xf32>, vector<32x32xf32>, vector<18x32xf32> -> vector<18x32xf32>
    %100 = arith.addf %0, %99 : vector<18x32xf32>
    %c0_39 = arith.constant 0 : index
    %c0_40 = arith.constant 0 : index
    %c0_41 = arith.constant 0 : index
    %101 = vector.load %arg6[%c0_39, %c0_40, %c0_41] : memref<2x1x32xf32, #tpu.memory_space<vmem>>, vector<1x1x32xf32>
    %102 = vector.shape_cast %101 : vector<1x1x32xf32> to vector<1x32xf32>
    %103 = vector.broadcast %102 : vector<1x32xf32> to vector<18x32xf32>
    %104 = arith.addf %100, %103 : vector<18x32xf32>
    %c0_42 = arith.constant 0 : index
    %c0_43 = arith.constant 0 : index
    %c0_44 = arith.constant 0 : index
    %105 = vector.load %arg7[%c0_42, %c0_43, %c0_44] : memref<2x1x32xf32, #tpu.memory_space<vmem>>, vector<1x1x32xf32>
    %106 = vector.shape_cast %105 : vector<1x1x32xf32> to vector<1x32xf32>
    %c0_45 = arith.constant 0 : index
    %c0_46 = arith.constant 0 : index
    %c0_47 = arith.constant 0 : index
    %107 = vector.load %arg8[%c0_45, %c0_46, %c0_47] : memref<2x1x32xf32, #tpu.memory_space<vmem>>, vector<1x1x32xf32>
    %108 = vector.shape_cast %107 : vector<1x1x32xf32> to vector<1x32xf32>
    %cst_48 = arith.constant dense<0.000000e+00> : vector<18xf32>
    %109 = vector.multi_reduction <add>, %104, %cst_48 [1] : vector<18x32xf32> to vector<18xf32>
    %110 = vector.shape_cast %109 : vector<18xf32> to vector<18x1xf32>
    %cst_49 = arith.constant 3.200000e+01 : f32
    %111 = vector.broadcast %cst_49 : f32 to vector<18x1xf32>
    %112 = arith.divf %110, %111 : vector<18x1xf32>
    %113 = vector.broadcast %112 : vector<18x1xf32> to vector<18x32xf32>
    %114 = arith.subf %104, %113 : vector<18x32xf32>
    %115 = arith.mulf %114, %114 : vector<18x32xf32>
    %cst_50 = arith.constant dense<0.000000e+00> : vector<18xf32>
    %116 = vector.multi_reduction <add>, %115, %cst_50 [1] : vector<18x32xf32> to vector<18xf32>
    %117 = vector.shape_cast %116 : vector<18xf32> to vector<18x1xf32>
    %cst_51 = arith.constant 3.200000e+01 : f32
    %118 = vector.broadcast %cst_51 : f32 to vector<18x1xf32>
    %119 = arith.divf %117, %118 : vector<18x1xf32>
    %120 = vector.broadcast %112 : vector<18x1xf32> to vector<18x32xf32>
    %121 = arith.subf %104, %120 : vector<18x32xf32>
    %cst_52 = arith.constant 9.99999974E-6 : f32
    %122 = vector.broadcast %cst_52 : f32 to vector<18x1xf32>
    %123 = arith.addf %119, %122 : vector<18x1xf32>
    %124 = math.rsqrt %123 : vector<18x1xf32>
    %125 = vector.broadcast %124 : vector<18x1xf32> to vector<18x32xf32>
    %126 = arith.mulf %121, %125 : vector<18x32xf32>
    %127 = vector.broadcast %106 : vector<1x32xf32> to vector<18x32xf32>
    %128 = arith.mulf %126, %127 : vector<18x32xf32>
    %129 = vector.broadcast %108 : vector<1x32xf32> to vector<18x32xf32>
    %130 = arith.addf %128, %129 : vector<18x32xf32>
    %c0_53 = arith.constant 0 : index
    %c0_54 = arith.constant 0 : index
    %c0_55 = arith.constant 0 : index
    %131 = vector.load %arg9[%c0_53, %c0_54, %c0_55] : memref<2x32x64xf32, #tpu.memory_space<vmem>>, vector<1x32x64xf32>
    %132 = vector.shape_cast %131 : vector<1x32x64xf32> to vector<32x64xf32>
    %cst_56 = arith.constant dense<0.000000e+00> : vector<18x64xf32>
    %133 = tpu.matmul %130, %132, %cst_56 {dimension_numbers = #tpu.dot_dimension_numbers<[1], [0], [0], [1], [0, 0, 1, 1], [], []>} : vector<18x32xf32>, vector<32x64xf32>, vector<18x64xf32> -> vector<18x64xf32>
    %c0_57 = arith.constant 0 : index
    %c0_58 = arith.constant 0 : index
    %c0_59 = arith.constant 0 : index
    %134 = vector.load %arg10[%c0_57, %c0_58, %c0_59] : memref<2x1x64xf32, #tpu.memory_space<vmem>>, vector<1x1x64xf32>
    %135 = vector.shape_cast %134 : vector<1x1x64xf32> to vector<1x64xf32>
    %136 = vector.broadcast %135 : vector<1x64xf32> to vector<18x64xf32>
    %137 = arith.addf %133, %136 : vector<18x64xf32>
    %cst_60 = arith.constant 5.000000e-01 : f32
    %138 = vector.broadcast %cst_60 : f32 to vector<18x64xf32>
    %139 = arith.mulf %138, %137 : vector<18x64xf32>
    %cst_61 = arith.constant 0.707106769 : f32
    %140 = vector.broadcast %cst_61 : f32 to vector<18x64xf32>
    %141 = arith.mulf %137, %140 : vector<18x64xf32>
    %142 = math.erf %141 : vector<18x64xf32>
    %cst_62 = arith.constant 1.000000e+00 : f32
    %143 = vector.broadcast %cst_62 : f32 to vector<18x64xf32>
    %144 = arith.addf %143, %142 : vector<18x64xf32>
    %145 = arith.mulf %139, %144 : vector<18x64xf32>
    %c0_63 = arith.constant 0 : index
    %c0_64 = arith.constant 0 : index
    %c0_65 = arith.constant 0 : index
    %146 = vector.load %arg11[%c0_63, %c0_64, %c0_65] : memref<2x64x32xf32, #tpu.memory_space<vmem>>, vector<1x64x32xf32>
    %147 = vector.shape_cast %146 : vector<1x64x32xf32> to vector<64x32xf32>
    %cst_66 = arith.constant dense<0.000000e+00> : vector<18x32xf32>
    %148 = tpu.matmul %145, %147, %cst_66 {dimension_numbers = #tpu.dot_dimension_numbers<[1], [0], [0], [1], [0, 0, 1, 1], [], []>} : vector<18x64xf32>, vector<64x32xf32>, vector<18x32xf32> -> vector<18x32xf32>
    %149 = arith.addf %104, %148 : vector<18x32xf32>
    %c0_67 = arith.constant 0 : index
    %c0_68 = arith.constant 0 : index
    %c0_69 = arith.constant 0 : index
    %150 = vector.load %arg12[%c0_67, %c0_68, %c0_69] : memref<2x1x32xf32, #tpu.memory_space<vmem>>, vector<1x1x32xf32>
    %151 = vector.shape_cast %150 : vector<1x1x32xf32> to vector<1x32xf32>
    %152 = vector.broadcast %151 : vector<1x32xf32> to vector<18x32xf32>
    %153 = arith.addf %149, %152 : vector<18x32xf32>
    %c1 = arith.constant 1 : index
    %c0_70 = arith.constant 0 : index
    %c0_71 = arith.constant 0 : index
    %154 = vector.load %arg2[%c1, %c0_70, %c0_71] : memref<2x1x32xf32, #tpu.memory_space<vmem>>, vector<1x1x32xf32>
    %155 = vector.shape_cast %154 : vector<1x1x32xf32> to vector<1x32xf32>
    %c1_72 = arith.constant 1 : index
    %c0_73 = arith.constant 0 : index
    %c0_74 = arith.constant 0 : index
    %156 = vector.load %arg3[%c1_72, %c0_73, %c0_74] : memref<2x1x32xf32, #tpu.memory_space<vmem>>, vector<1x1x32xf32>
    %157 = vector.shape_cast %156 : vector<1x1x32xf32> to vector<1x32xf32>
    %cst_75 = arith.constant dense<0.000000e+00> : vector<18xf32>
    %158 = vector.multi_reduction <add>, %153, %cst_75 [1] : vector<18x32xf32> to vector<18xf32>
    %159 = vector.shape_cast %158 : vector<18xf32> to vector<18x1xf32>
    %cst_76 = arith.constant 3.200000e+01 : f32
    %160 = vector.broadcast %cst_76 : f32 to vector<18x1xf32>
    %161 = arith.divf %159, %160 : vector<18x1xf32>
    %162 = vector.broadcast %161 : vector<18x1xf32> to vector<18x32xf32>
    %163 = arith.subf %153, %162 : vector<18x32xf32>
    %164 = arith.mulf %163, %163 : vector<18x32xf32>
    %cst_77 = arith.constant dense<0.000000e+00> : vector<18xf32>
    %165 = vector.multi_reduction <add>, %164, %cst_77 [1] : vector<18x32xf32> to vector<18xf32>
    %166 = vector.shape_cast %165 : vector<18xf32> to vector<18x1xf32>
    %cst_78 = arith.constant 3.200000e+01 : f32
    %167 = vector.broadcast %cst_78 : f32 to vector<18x1xf32>
    %168 = arith.divf %166, %167 : vector<18x1xf32>
    %169 = vector.broadcast %161 : vector<18x1xf32> to vector<18x32xf32>
    %170 = arith.subf %153, %169 : vector<18x32xf32>
    %cst_79 = arith.constant 9.99999974E-6 : f32
    %171 = vector.broadcast %cst_79 : f32 to vector<18x1xf32>
    %172 = arith.addf %168, %171 : vector<18x1xf32>
    %173 = math.rsqrt %172 : vector<18x1xf32>
    %174 = vector.broadcast %173 : vector<18x1xf32> to vector<18x32xf32>
    %175 = arith.mulf %170, %174 : vector<18x32xf32>
    %176 = vector.broadcast %155 : vector<1x32xf32> to vector<18x32xf32>
    %177 = arith.mulf %175, %176 : vector<18x32xf32>
    %178 = vector.broadcast %157 : vector<1x32xf32> to vector<18x32xf32>
    %179 = arith.addf %177, %178 : vector<18x32xf32>
    %c1_80 = arith.constant 1 : index
    %c0_81 = arith.constant 0 : index
    %c0_82 = arith.constant 0 : index
    %180 = vector.load %arg4[%c1_80, %c0_81, %c0_82] : memref<2x32x96xf32, #tpu.memory_space<vmem>>, vector<1x32x96xf32>
    %181 = vector.shape_cast %180 : vector<1x32x96xf32> to vector<32x96xf32>
    %cst_83 = arith.constant dense<0.000000e+00> : vector<18x96xf32>
    %182 = tpu.matmul %179, %181, %cst_83 {dimension_numbers = #tpu.dot_dimension_numbers<[1], [0], [0], [1], [0, 0, 1, 1], [], []>} : vector<18x32xf32>, vector<32x96xf32>, vector<18x96xf32> -> vector<18x96xf32>
    %183 = vector.extract_strided_slice %182 {offsets = [0, 0], sizes = [9, 16], strides = [1, 1]} : vector<18x96xf32> to vector<9x16xf32>
    %184 = vector.extract_strided_slice %182 {offsets = [0, 32], sizes = [9, 16], strides = [1, 1]} : vector<18x96xf32> to vector<9x16xf32>
    %185 = vector.extract_strided_slice %182 {offsets = [0, 64], sizes = [9, 16], strides = [1, 1]} : vector<18x96xf32> to vector<9x16xf32>
    %cst_84 = arith.constant dense<0.000000e+00> : vector<9x9xf32>
    %186 = tpu.matmul %183, %184, %cst_84 {dimension_numbers = #tpu.dot_dimension_numbers<[1], [1], [0], [0], [0, 0, 1, 0], [], []>} : vector<9x16xf32>, vector<9x16xf32>, vector<9x9xf32> -> vector<9x9xf32>
    %cst_85 = arith.constant 2.500000e-01 : f32
    %187 = vector.broadcast %cst_85 : f32 to vector<9x9xf32>
    %188 = arith.mulf %186, %187 : vector<9x9xf32>
    %cst_86 = arith.constant dense<0xFF800000> : vector<9xf32>
    %189 = vector.multi_reduction <maximumf>, %188, %cst_86 [1] : vector<9x9xf32> to vector<9xf32>
    %190 = vector.shape_cast %189 : vector<9xf32> to vector<9x1xf32>
    %191 = vector.broadcast %190 : vector<9x1xf32> to vector<9x9xf32>
    %192 = arith.subf %188, %191 : vector<9x9xf32>
    %193 = math.exp %192 : vector<9x9xf32>
    %cst_87 = arith.constant dense<0.000000e+00> : vector<9xf32>
    %194 = vector.multi_reduction <add>, %193, %cst_87 [1] : vector<9x9xf32> to vector<9xf32>
    %195 = vector.shape_cast %194 : vector<9xf32> to vector<9x1xf32>
    %196 = vector.broadcast %195 : vector<9x1xf32> to vector<9x9xf32>
    %197 = arith.divf %193, %196 : vector<9x9xf32>
    %cst_88 = arith.constant dense<0.000000e+00> : vector<9x16xf32>
    %198 = tpu.matmul %197, %185, %cst_88 {dimension_numbers = #tpu.dot_dimension_numbers<[1], [0], [0], [1], [0, 0, 1, 1], [], []>} : vector<9x9xf32>, vector<9x16xf32>, vector<9x16xf32> -> vector<9x16xf32>
    %199 = vector.extract_strided_slice %182 {offsets = [0, 16], sizes = [9, 16], strides = [1, 1]} : vector<18x96xf32> to vector<9x16xf32>
    %200 = vector.extract_strided_slice %182 {offsets = [0, 48], sizes = [9, 16], strides = [1, 1]} : vector<18x96xf32> to vector<9x16xf32>
    %201 = vector.extract_strided_slice %182 {offsets = [0, 80], sizes = [9, 16], strides = [1, 1]} : vector<18x96xf32> to vector<9x16xf32>
    %cst_89 = arith.constant dense<0.000000e+00> : vector<9x9xf32>
    %202 = tpu.matmul %199, %200, %cst_89 {dimension_numbers = #tpu.dot_dimension_numbers<[1], [1], [0], [0], [0, 0, 1, 0], [], []>} : vector<9x16xf32>, vector<9x16xf32>, vector<9x9xf32> -> vector<9x9xf32>
    %cst_90 = arith.constant 2.500000e-01 : f32
    %203 = vector.broadcast %cst_90 : f32 to vector<9x9xf32>
    %204 = arith.mulf %202, %203 : vector<9x9xf32>
    %cst_91 = arith.constant dense<0xFF800000> : vector<9xf32>
    %205 = vector.multi_reduction <maximumf>, %204, %cst_91 [1] : vector<9x9xf32> to vector<9xf32>
    %206 = vector.shape_cast %205 : vector<9xf32> to vector<9x1xf32>
    %207 = vector.broadcast %206 : vector<9x1xf32> to vector<9x9xf32>
    %208 = arith.subf %204, %207 : vector<9x9xf32>
    %209 = math.exp %208 : vector<9x9xf32>
    %cst_92 = arith.constant dense<0.000000e+00> : vector<9xf32>
    %210 = vector.multi_reduction <add>, %209, %cst_92 [1] : vector<9x9xf32> to vector<9xf32>
    %211 = vector.shape_cast %210 : vector<9xf32> to vector<9x1xf32>
    %212 = vector.broadcast %211 : vector<9x1xf32> to vector<9x9xf32>
    %213 = arith.divf %209, %212 : vector<9x9xf32>
    %cst_93 = arith.constant dense<0.000000e+00> : vector<9x16xf32>
    %214 = tpu.matmul %213, %201, %cst_93 {dimension_numbers = #tpu.dot_dimension_numbers<[1], [0], [0], [1], [0, 0, 1, 1], [], []>} : vector<9x9xf32>, vector<9x16xf32>, vector<9x16xf32> -> vector<9x16xf32>
    %215 = tpu.concatenate %198, %214 in 1 : vector<9x16xf32>, vector<9x16xf32> -> vector<9x32xf32>
    %216 = vector.extract_strided_slice %182 {offsets = [9, 0], sizes = [9, 16], strides = [1, 1]} : vector<18x96xf32> to vector<9x16xf32>
    %217 = vector.extract_strided_slice %182 {offsets = [9, 32], sizes = [9, 16], strides = [1, 1]} : vector<18x96xf32> to vector<9x16xf32>
    %218 = vector.extract_strided_slice %182 {offsets = [9, 64], sizes = [9, 16], strides = [1, 1]} : vector<18x96xf32> to vector<9x16xf32>
    %cst_94 = arith.constant dense<0.000000e+00> : vector<9x9xf32>
    %219 = tpu.matmul %216, %217, %cst_94 {dimension_numbers = #tpu.dot_dimension_numbers<[1], [1], [0], [0], [0, 0, 1, 0], [], []>} : vector<9x16xf32>, vector<9x16xf32>, vector<9x9xf32> -> vector<9x9xf32>
    %cst_95 = arith.constant 2.500000e-01 : f32
    %220 = vector.broadcast %cst_95 : f32 to vector<9x9xf32>
    %221 = arith.mulf %219, %220 : vector<9x9xf32>
    %cst_96 = arith.constant dense<0xFF800000> : vector<9xf32>
    %222 = vector.multi_reduction <maximumf>, %221, %cst_96 [1] : vector<9x9xf32> to vector<9xf32>
    %223 = vector.shape_cast %222 : vector<9xf32> to vector<9x1xf32>
    %224 = vector.broadcast %223 : vector<9x1xf32> to vector<9x9xf32>
    %225 = arith.subf %221, %224 : vector<9x9xf32>
    %226 = math.exp %225 : vector<9x9xf32>
    %cst_97 = arith.constant dense<0.000000e+00> : vector<9xf32>
    %227 = vector.multi_reduction <add>, %226, %cst_97 [1] : vector<9x9xf32> to vector<9xf32>
    %228 = vector.shape_cast %227 : vector<9xf32> to vector<9x1xf32>
    %229 = vector.broadcast %228 : vector<9x1xf32> to vector<9x9xf32>
    %230 = arith.divf %226, %229 : vector<9x9xf32>
    %cst_98 = arith.constant dense<0.000000e+00> : vector<9x16xf32>
    %231 = tpu.matmul %230, %218, %cst_98 {dimension_numbers = #tpu.dot_dimension_numbers<[1], [0], [0], [1], [0, 0, 1, 1], [], []>} : vector<9x9xf32>, vector<9x16xf32>, vector<9x16xf32> -> vector<9x16xf32>
    %232 = vector.extract_strided_slice %182 {offsets = [9, 16], sizes = [9, 16], strides = [1, 1]} : vector<18x96xf32> to vector<9x16xf32>
    %233 = vector.extract_strided_slice %182 {offsets = [9, 48], sizes = [9, 16], strides = [1, 1]} : vector<18x96xf32> to vector<9x16xf32>
    %234 = vector.extract_strided_slice %182 {offsets = [9, 80], sizes = [9, 16], strides = [1, 1]} : vector<18x96xf32> to vector<9x16xf32>
    %cst_99 = arith.constant dense<0.000000e+00> : vector<9x9xf32>
    %235 = tpu.matmul %232, %233, %cst_99 {dimension_numbers = #tpu.dot_dimension_numbers<[1], [1], [0], [0], [0, 0, 1, 0], [], []>} : vector<9x16xf32>, vector<9x16xf32>, vector<9x9xf32> -> vector<9x9xf32>
    %cst_100 = arith.constant 2.500000e-01 : f32
    %236 = vector.broadcast %cst_100 : f32 to vector<9x9xf32>
    %237 = arith.mulf %235, %236 : vector<9x9xf32>
    %cst_101 = arith.constant dense<0xFF800000> : vector<9xf32>
    %238 = vector.multi_reduction <maximumf>, %237, %cst_101 [1] : vector<9x9xf32> to vector<9xf32>
    %239 = vector.shape_cast %238 : vector<9xf32> to vector<9x1xf32>
    %240 = vector.broadcast %239 : vector<9x1xf32> to vector<9x9xf32>
    %241 = arith.subf %237, %240 : vector<9x9xf32>
    %242 = math.exp %241 : vector<9x9xf32>
    %cst_102 = arith.constant dense<0.000000e+00> : vector<9xf32>
    %243 = vector.multi_reduction <add>, %242, %cst_102 [1] : vector<9x9xf32> to vector<9xf32>
    %244 = vector.shape_cast %243 : vector<9xf32> to vector<9x1xf32>
    %245 = vector.broadcast %244 : vector<9x1xf32> to vector<9x9xf32>
    %246 = arith.divf %242, %245 : vector<9x9xf32>
    %cst_103 = arith.constant dense<0.000000e+00> : vector<9x16xf32>
    %247 = tpu.matmul %246, %234, %cst_103 {dimension_numbers = #tpu.dot_dimension_numbers<[1], [0], [0], [1], [0, 0, 1, 1], [], []>} : vector<9x9xf32>, vector<9x16xf32>, vector<9x16xf32> -> vector<9x16xf32>
    %248 = tpu.concatenate %231, %247 in 1 : vector<9x16xf32>, vector<9x16xf32> -> vector<9x32xf32>
    %249 = tpu.concatenate %215, %248 in 0 : vector<9x32xf32>, vector<9x32xf32> -> vector<18x32xf32>
    %c1_104 = arith.constant 1 : index
    %c0_105 = arith.constant 0 : index
    %c0_106 = arith.constant 0 : index
    %250 = vector.load %arg5[%c1_104, %c0_105, %c0_106] : memref<2x32x32xf32, #tpu.memory_space<vmem>>, vector<1x32x32xf32>
    %251 = vector.shape_cast %250 : vector<1x32x32xf32> to vector<32x32xf32>
    %cst_107 = arith.constant dense<0.000000e+00> : vector<18x32xf32>
    %252 = tpu.matmul %249, %251, %cst_107 {dimension_numbers = #tpu.dot_dimension_numbers<[1], [0], [0], [1], [0, 0, 1, 1], [], []>} : vector<18x32xf32>, vector<32x32xf32>, vector<18x32xf32> -> vector<18x32xf32>
    %253 = arith.addf %153, %252 : vector<18x32xf32>
    %c1_108 = arith.constant 1 : index
    %c0_109 = arith.constant 0 : index
    %c0_110 = arith.constant 0 : index
    %254 = vector.load %arg6[%c1_108, %c0_109, %c0_110] : memref<2x1x32xf32, #tpu.memory_space<vmem>>, vector<1x1x32xf32>
    %255 = vector.shape_cast %254 : vector<1x1x32xf32> to vector<1x32xf32>
    %256 = vector.broadcast %255 : vector<1x32xf32> to vector<18x32xf32>
    %257 = arith.addf %253, %256 : vector<18x32xf32>
    %c1_111 = arith.constant 1 : index
    %c0_112 = arith.constant 0 : index
    %c0_113 = arith.constant 0 : index
    %258 = vector.load %arg7[%c1_111, %c0_112, %c0_113] : memref<2x1x32xf32, #tpu.memory_space<vmem>>, vector<1x1x32xf32>
    %259 = vector.shape_cast %258 : vector<1x1x32xf32> to vector<1x32xf32>
    %c1_114 = arith.constant 1 : index
    %c0_115 = arith.constant 0 : index
    %c0_116 = arith.constant 0 : index
    %260 = vector.load %arg8[%c1_114, %c0_115, %c0_116] : memref<2x1x32xf32, #tpu.memory_space<vmem>>, vector<1x1x32xf32>
    %261 = vector.shape_cast %260 : vector<1x1x32xf32> to vector<1x32xf32>
    %cst_117 = arith.constant dense<0.000000e+00> : vector<18xf32>
    %262 = vector.multi_reduction <add>, %257, %cst_117 [1] : vector<18x32xf32> to vector<18xf32>
    %263 = vector.shape_cast %262 : vector<18xf32> to vector<18x1xf32>
    %cst_118 = arith.constant 3.200000e+01 : f32
    %264 = vector.broadcast %cst_118 : f32 to vector<18x1xf32>
    %265 = arith.divf %263, %264 : vector<18x1xf32>
    %266 = vector.broadcast %265 : vector<18x1xf32> to vector<18x32xf32>
    %267 = arith.subf %257, %266 : vector<18x32xf32>
    %268 = arith.mulf %267, %267 : vector<18x32xf32>
    %cst_119 = arith.constant dense<0.000000e+00> : vector<18xf32>
    %269 = vector.multi_reduction <add>, %268, %cst_119 [1] : vector<18x32xf32> to vector<18xf32>
    %270 = vector.shape_cast %269 : vector<18xf32> to vector<18x1xf32>
    %cst_120 = arith.constant 3.200000e+01 : f32
    %271 = vector.broadcast %cst_120 : f32 to vector<18x1xf32>
    %272 = arith.divf %270, %271 : vector<18x1xf32>
    %273 = vector.broadcast %265 : vector<18x1xf32> to vector<18x32xf32>
    %274 = arith.subf %257, %273 : vector<18x32xf32>
    %cst_121 = arith.constant 9.99999974E-6 : f32
    %275 = vector.broadcast %cst_121 : f32 to vector<18x1xf32>
    %276 = arith.addf %272, %275 : vector<18x1xf32>
    %277 = math.rsqrt %276 : vector<18x1xf32>
    %278 = vector.broadcast %277 : vector<18x1xf32> to vector<18x32xf32>
    %279 = arith.mulf %274, %278 : vector<18x32xf32>
    %280 = vector.broadcast %259 : vector<1x32xf32> to vector<18x32xf32>
    %281 = arith.mulf %279, %280 : vector<18x32xf32>
    %282 = vector.broadcast %261 : vector<1x32xf32> to vector<18x32xf32>
    %283 = arith.addf %281, %282 : vector<18x32xf32>
    %c1_122 = arith.constant 1 : index
    %c0_123 = arith.constant 0 : index
    %c0_124 = arith.constant 0 : index
    %284 = vector.load %arg9[%c1_122, %c0_123, %c0_124] : memref<2x32x64xf32, #tpu.memory_space<vmem>>, vector<1x32x64xf32>
    %285 = vector.shape_cast %284 : vector<1x32x64xf32> to vector<32x64xf32>
    %cst_125 = arith.constant dense<0.000000e+00> : vector<18x64xf32>
    %286 = tpu.matmul %283, %285, %cst_125 {dimension_numbers = #tpu.dot_dimension_numbers<[1], [0], [0], [1], [0, 0, 1, 1], [], []>} : vector<18x32xf32>, vector<32x64xf32>, vector<18x64xf32> -> vector<18x64xf32>
    %c1_126 = arith.constant 1 : index
    %c0_127 = arith.constant 0 : index
    %c0_128 = arith.constant 0 : index
    %287 = vector.load %arg10[%c1_126, %c0_127, %c0_128] : memref<2x1x64xf32, #tpu.memory_space<vmem>>, vector<1x1x64xf32>
    %288 = vector.shape_cast %287 : vector<1x1x64xf32> to vector<1x64xf32>
    %289 = vector.broadcast %288 : vector<1x64xf32> to vector<18x64xf32>
    %290 = arith.addf %286, %289 : vector<18x64xf32>
    %cst_129 = arith.constant 5.000000e-01 : f32
    %291 = vector.broadcast %cst_129 : f32 to vector<18x64xf32>
    %292 = arith.mulf %291, %290 : vector<18x64xf32>
    %cst_130 = arith.constant 0.707106769 : f32
    %293 = vector.broadcast %cst_130 : f32 to vector<18x64xf32>
    %294 = arith.mulf %290, %293 : vector<18x64xf32>
    %295 = math.erf %294 : vector<18x64xf32>
    %cst_131 = arith.constant 1.000000e+00 : f32
    %296 = vector.broadcast %cst_131 : f32 to vector<18x64xf32>
    %297 = arith.addf %296, %295 : vector<18x64xf32>
    %298 = arith.mulf %292, %297 : vector<18x64xf32>
    %c1_132 = arith.constant 1 : index
    %c0_133 = arith.constant 0 : index
    %c0_134 = arith.constant 0 : index
    %299 = vector.load %arg11[%c1_132, %c0_133, %c0_134] : memref<2x64x32xf32, #tpu.memory_space<vmem>>, vector<1x64x32xf32>
    %300 = vector.shape_cast %299 : vector<1x64x32xf32> to vector<64x32xf32>
    %cst_135 = arith.constant dense<0.000000e+00> : vector<18x32xf32>
    %301 = tpu.matmul %298, %300, %cst_135 {dimension_numbers = #tpu.dot_dimension_numbers<[1], [0], [0], [1], [0, 0, 1, 1], [], []>} : vector<18x64xf32>, vector<64x32xf32>, vector<18x32xf32> -> vector<18x32xf32>
    %302 = arith.addf %257, %301 : vector<18x32xf32>
    %c1_136 = arith.constant 1 : index
    %c0_137 = arith.constant 0 : index
    %c0_138 = arith.constant 0 : index
    %303 = vector.load %arg12[%c1_136, %c0_137, %c0_138] : memref<2x1x32xf32, #tpu.memory_space<vmem>>, vector<1x1x32xf32>
    %304 = vector.shape_cast %303 : vector<1x1x32xf32> to vector<1x32xf32>
    %305 = vector.broadcast %304 : vector<1x32xf32> to vector<18x32xf32>
    %306 = arith.addf %302, %305 : vector<18x32xf32>
    %c0_139 = arith.constant 0 : index
    %c0_140 = arith.constant 0 : index
    %307 = vector.load %arg13[%c0_139, %c0_140] : memref<1x32xf32, #tpu.memory_space<vmem>>, vector<1x32xf32>
    %c0_141 = arith.constant 0 : index
    %c0_142 = arith.constant 0 : index
    %308 = vector.load %arg14[%c0_141, %c0_142] : memref<1x32xf32, #tpu.memory_space<vmem>>, vector<1x32xf32>
    %cst_143 = arith.constant dense<0.000000e+00> : vector<18xf32>
    %309 = vector.multi_reduction <add>, %306, %cst_143 [1] : vector<18x32xf32> to vector<18xf32>
    %310 = vector.shape_cast %309 : vector<18xf32> to vector<18x1xf32>
    %cst_144 = arith.constant 3.200000e+01 : f32
    %311 = vector.broadcast %cst_144 : f32 to vector<18x1xf32>
    %312 = arith.divf %310, %311 : vector<18x1xf32>
    %313 = vector.broadcast %312 : vector<18x1xf32> to vector<18x32xf32>
    %314 = arith.subf %306, %313 : vector<18x32xf32>
    %315 = arith.mulf %314, %314 : vector<18x32xf32>
    %cst_145 = arith.constant dense<0.000000e+00> : vector<18xf32>
    %316 = vector.multi_reduction <add>, %315, %cst_145 [1] : vector<18x32xf32> to vector<18xf32>
    %317 = vector.shape_cast %316 : vector<18xf32> to vector<18x1xf32>
    %cst_146 = arith.constant 3.200000e+01 : f32
    %318 = vector.broadcast %cst_146 : f32 to vector<18x1xf32>
    %319 = arith.divf %317, %318 : vector<18x1xf32>
    %320 = vector.broadcast %312 : vector<18x1xf32> to vector<18x32xf32>
    %321 = arith.subf %306, %320 : vector<18x32xf32>
    %cst_147 = arith.constant 9.99999974E-6 : f32
    %322 = vector.broadcast %cst_147 : f32 to vector<18x1xf32>
    %323 = arith.addf %319, %322 : vector<18x1xf32>
    %324 = math.rsqrt %323 : vector<18x1xf32>
    %325 = vector.broadcast %324 : vector<18x1xf32> to vector<18x32xf32>
    %326 = arith.mulf %321, %325 : vector<18x32xf32>
    %327 = vector.broadcast %307 : vector<1x32xf32> to vector<18x32xf32>
    %328 = arith.mulf %326, %327 : vector<18x32xf32>
    %329 = vector.broadcast %308 : vector<1x32xf32> to vector<18x32xf32>
    %330 = arith.addf %328, %329 : vector<18x32xf32>
    %c0_148 = arith.constant 0 : index
    %c0_149 = arith.constant 0 : index
    %331 = vector.load %arg15[%c0_148, %c0_149] : memref<18x32xf32, #tpu.memory_space<vmem>>, vector<18x32xf32>
    tpu.vector_store %arg15[%c0_148, %c0_149], %330 {strides = array<i32>} : memref<18x32xf32, #tpu.memory_space<vmem>>, vector<18x32xf32>,
    return
  }
  func.func @transform_0(%arg0: i32) -> (i32, i32) {
    %c0_i32 = arith.constant 0 : i32
    %c0_i32_0 = arith.constant 0 : i32
    %c0_i32_1 = arith.constant 0 : i32
    return %c0_i32, %c0_i32_0 : i32, i32
  }
  func.func @transform_1(%arg0: i32) -> (i32, i32, i32) {
    %c0_i32 = arith.constant 0 : i32
    %c0_i32_0 = arith.constant 0 : i32
    %c0_i32_1 = arith.constant 0 : i32
    %c0_i32_2 = arith.constant 0 : i32
    return %c0_i32, %c0_i32_0, %c0_i32_1 : i32, i32, i32
  }
  func.func @transform_2(%arg0: i32) -> (i32, i32, i32) {
    %c0_i32 = arith.constant 0 : i32
    %c0_i32_0 = arith.constant 0 : i32
    %c0_i32_1 = arith.constant 0 : i32
    %c0_i32_2 = arith.constant 0 : i32
    return %c0_i32, %c0_i32_0, %c0_i32_1 : i32, i32, i32
  }
  func.func @transform_3(%arg0: i32) -> (i32, i32, i32) {
    %c0_i32 = arith.constant 0 : i32
    %c0_i32_0 = arith.constant 0 : i32
    %c0_i32_1 = arith.constant 0 : i32
    %c0_i32_2 = arith.constant 0 : i32
    return %c0_i32, %c0_i32_0, %c0_i32_1 : i32, i32, i32
  }
  func.func @transform_4(%arg0: i32) -> (i32, i32, i32) {
    %c0_i32 = arith.constant 0 : i32
    %c0_i32_0 = arith.constant 0 : i32
    %c0_i32_1 = arith.constant 0 : i32
    %c0_i32_2 = arith.constant 0 : i32
    return %c0_i32, %c0_i32_0, %c0_i32_1 : i32, i32, i32
  }
  func.func @transform_5(%arg0: i32) -> (i32, i32, i32) {
    %c0_i32 = arith.constant 0 : i32
    %c0_i32_0 = arith.constant 0 : i32
    %c0_i32_1 = arith.constant 0 : i32
    %c0_i32_2 = arith.constant 0 : i32
    return %c0_i32, %c0_i32_0, %c0_i32_1 : i32, i32, i32
  }
  func.func @transform_6(%arg0: i32) -> (i32, i32, i32) {
    %c0_i32 = arith.constant 0 : i32
    %c0_i32_0 = arith.constant 0 : i32
    %c0_i32_1 = arith.constant 0 : i32
    %c0_i32_2 = arith.constant 0 : i32
    return %c0_i32, %c0_i32_0, %c0_i32_1 : i32, i32, i32
  }
  func.func @transform_7(%arg0: i32) -> (i32, i32, i32) {
    %c0_i32 = arith.constant 0 : i32
    %c0_i32_0 = arith.constant 0 : i32
    %c0_i32_1 = arith.constant 0 : i32
    %c0_i32_2 = arith.constant 0 : i32
    return %c0_i32, %c0_i32_0, %c0_i32_1 : i32, i32, i32
  }
  func.func @transform_8(%arg0: i32) -> (i32, i32, i32) {
    %c0_i32 = arith.constant 0 : i32
    %c0_i32_0 = arith.constant 0 : i32
    %c0_i32_1 = arith.constant 0 : i32
    %c0_i32_2 = arith.constant 0 : i32
    return %c0_i32, %c0_i32_0, %c0_i32_1 : i32, i32, i32
  }
  func.func @transform_9(%arg0: i32) -> (i32, i32, i32) {
    %c0_i32 = arith.constant 0 : i32
    %c0_i32_0 = arith.constant 0 : i32
    %c0_i32_1 = arith.constant 0 : i32
    %c0_i32_2 = arith.constant 0 : i32
    return %c0_i32, %c0_i32_0, %c0_i32_1 : i32, i32, i32
  }
  func.func @transform_10(%arg0: i32) -> (i32, i32, i32) {
    %c0_i32 = arith.constant 0 : i32
    %c0_i32_0 = arith.constant 0 : i32
    %c0_i32_1 = arith.constant 0 : i32
    %c0_i32_2 = arith.constant 0 : i32
    return %c0_i32, %c0_i32_0, %c0_i32_1 : i32, i32, i32
  }
  func.func @transform_11(%arg0: i32) -> (i32, i32, i32) {
    %c0_i32 = arith.constant 0 : i32
    %c0_i32_0 = arith.constant 0 : i32
    %c0_i32_1 = arith.constant 0 : i32
    %c0_i32_2 = arith.constant 0 : i32
    return %c0_i32, %c0_i32_0, %c0_i32_1 : i32, i32, i32
  }
  func.func @transform_12(%arg0: i32) -> (i32, i32) {
    %c0_i32 = arith.constant 0 : i32
    %c0_i32_0 = arith.constant 0 : i32
    %c0_i32_1 = arith.constant 0 : i32
    return %c0_i32, %c0_i32_0 : i32, i32
  }
  func.func @transform_13(%arg0: i32) -> (i32, i32) {
    %c0_i32 = arith.constant 0 : i32
    %c0_i32_0 = arith.constant 0 : i32
    %c0_i32_1 = arith.constant 0 : i32
    return %c0_i32, %c0_i32_0 : i32, i32
  }
  func.func @transform_14(%arg0: i32) -> (i32, i32) {
    %c0_i32 = arith.constant 0 : i32
    %c0_i32_0 = arith.constant 0 : i32
    %c0_i32_1 = arith.constant 0 : i32
    return %c0_i32, %c0_i32_0 : i32, i32
  }
}

module attributes {stable_mosaic.version = 11 : i64} {
  func.func @_cross_kernel(%arg0: i32, %arg1: memref<18x32xf32, #tpu.memory_space<vmem>>, %arg2: memref<18x64xf32, #tpu.memory_space<vmem>>, %arg3: memref<2x32x64xf32, #tpu.memory_space<vmem>>, %arg4: memref<2x1x64xf32, #tpu.memory_space<vmem>>, %arg5: memref<2x1x64xf32, #tpu.memory_space<vmem>>, %arg6: memref<2x1x64xf32, #tpu.memory_space<vmem>>, %arg7: memref<2x64x32xf32, #tpu.memory_space<vmem>>, %arg8: memref<2x64x64xf32, #tpu.memory_space<vmem>>, %arg9: memref<2x32x64xf32, #tpu.memory_space<vmem>>, %arg10: memref<2x1x64xf32, #tpu.memory_space<vmem>>, %arg11: memref<2x64x32xf32, #tpu.memory_space<vmem>>, %arg12: memref<2x1x32xf32, #tpu.memory_space<vmem>>, %arg13: memref<2x64x32xf32, #tpu.memory_space<vmem>>, %arg14: memref<2x1x32xf32, #tpu.memory_space<vmem>>, %arg15: memref<2x1x32xf32, #tpu.memory_space<vmem>>, %arg16: memref<2x1x32xf32, #tpu.memory_space<vmem>>, %arg17: memref<2x32x32xf32, #tpu.memory_space<vmem>>, %arg18: memref<2x32x64xf32, #tpu.memory_space<vmem>>, %arg19: memref<2x32x32xf32, #tpu.memory_space<vmem>>, %arg20: memref<2x1x32xf32, #tpu.memory_space<vmem>>, %arg21: memref<2x32x64xf32, #tpu.memory_space<vmem>>, %arg22: memref<2x1x64xf32, #tpu.memory_space<vmem>>, %arg23: memref<18x32xf32, #tpu.memory_space<vmem>>, %arg24: memref<18x64xf32, #tpu.memory_space<vmem>>) attributes {dimension_semantics = [#tpu.dimension_semantics<arbitrary>], iteration_bounds = array<i64: 1>, scalar_prefetch = 0 : i64, scratch_operands = 0 : i64, tpu.core_type = #tpu.core_type<tc>, window_params = [{pipeline_mode = #tpu.pipeline_mode<synchronous>, transform_indices = @transform_0, window_bounds = array<i64: 18, 32>}, {pipeline_mode = #tpu.pipeline_mode<synchronous>, transform_indices = @transform_1, window_bounds = array<i64: 18, 64>}, {pipeline_mode = #tpu.pipeline_mode<synchronous>, transform_indices = @transform_2, window_bounds = array<i64: 2, 32, 64>}, {pipeline_mode = #tpu.pipeline_mode<synchronous>, transform_indices = @transform_3, window_bounds = array<i64: 2, 1, 64>}, {pipeline_mode = #tpu.pipeline_mode<synchronous>, transform_indices = @transform_4, window_bounds = array<i64: 2, 1, 64>}, {pipeline_mode = #tpu.pipeline_mode<synchronous>, transform_indices = @transform_5, window_bounds = array<i64: 2, 1, 64>}, {pipeline_mode = #tpu.pipeline_mode<synchronous>, transform_indices = @transform_6, window_bounds = array<i64: 2, 64, 32>}, {pipeline_mode = #tpu.pipeline_mode<synchronous>, transform_indices = @transform_7, window_bounds = array<i64: 2, 64, 64>}, {pipeline_mode = #tpu.pipeline_mode<synchronous>, transform_indices = @transform_8, window_bounds = array<i64: 2, 32, 64>}, {pipeline_mode = #tpu.pipeline_mode<synchronous>, transform_indices = @transform_9, window_bounds = array<i64: 2, 1, 64>}, {pipeline_mode = #tpu.pipeline_mode<synchronous>, transform_indices = @transform_10, window_bounds = array<i64: 2, 64, 32>}, {pipeline_mode = #tpu.pipeline_mode<synchronous>, transform_indices = @transform_11, window_bounds = array<i64: 2, 1, 32>}, {pipeline_mode = #tpu.pipeline_mode<synchronous>, transform_indices = @transform_12, window_bounds = array<i64: 2, 64, 32>}, {pipeline_mode = #tpu.pipeline_mode<synchronous>, transform_indices = @transform_13, window_bounds = array<i64: 2, 1, 32>}, {pipeline_mode = #tpu.pipeline_mode<synchronous>, transform_indices = @transform_14, window_bounds = array<i64: 2, 1, 32>}, {pipeline_mode = #tpu.pipeline_mode<synchronous>, transform_indices = @transform_15, window_bounds = array<i64: 2, 1, 32>}, {pipeline_mode = #tpu.pipeline_mode<synchronous>, transform_indices = @transform_16, window_bounds = array<i64: 2, 32, 32>}, {pipeline_mode = #tpu.pipeline_mode<synchronous>, transform_indices = @transform_17, window_bounds = array<i64: 2, 32, 64>}, {pipeline_mode = #tpu.pipeline_mode<synchronous>, transform_indices = @transform_18, window_bounds = array<i64: 2, 32, 32>}, {pipeline_mode = #tpu.pipeline_mode<synchronous>, transform_indices = @transform_19, window_bounds = array<i64: 2, 1, 32>}, {pipeline_mode = #tpu.pipeline_mode<synchronous>, transform_indices = @transform_20, window_bounds = array<i64: 2, 32, 64>}, {pipeline_mode = #tpu.pipeline_mode<synchronous>, transform_indices = @transform_21, window_bounds = array<i64: 2, 1, 64>}, {pipeline_mode = #tpu.pipeline_mode<synchronous>, transform_indices = @transform_22, window_bounds = array<i64: 18, 32>}, {pipeline_mode = #tpu.pipeline_mode<synchronous>, transform_indices = @transform_23, window_bounds = array<i64: 18, 64>}]} {
    %c0 = arith.constant 0 : index
    %c0_0 = arith.constant 0 : index
    %0 = vector.load %arg1[%c0, %c0_0] : memref<18x32xf32, #tpu.memory_space<vmem>>, vector<18x32xf32>
    %c0_1 = arith.constant 0 : index
    %c0_2 = arith.constant 0 : index
    %1 = vector.load %arg2[%c0_1, %c0_2] : memref<18x64xf32, #tpu.memory_space<vmem>>, vector<18x64xf32>
    %2 = vector.extract_strided_slice %0 {offsets = [0, 0], sizes = [1, 32], strides = [1, 1]} : vector<18x32xf32> to vector<1x32xf32>
    %3 = vector.extract_strided_slice %0 {offsets = [9, 0], sizes = [1, 32], strides = [1, 1]} : vector<18x32xf32> to vector<1x32xf32>
    %4 = tpu.concatenate %2, %3 in 0 : vector<1x32xf32>, vector<1x32xf32> -> vector<2x32xf32>
    %5 = vector.extract_strided_slice %1 {offsets = [0, 0], sizes = [1, 64], strides = [1, 1]} : vector<18x64xf32> to vector<1x64xf32>
    %6 = vector.extract_strided_slice %1 {offsets = [9, 0], sizes = [1, 64], strides = [1, 1]} : vector<18x64xf32> to vector<1x64xf32>
    %7 = tpu.concatenate %5, %6 in 0 : vector<1x64xf32>, vector<1x64xf32> -> vector<2x64xf32>
    %8 = vector.extract_strided_slice %0 {offsets = [1, 0], sizes = [8, 32], strides = [1, 1]} : vector<18x32xf32> to vector<8x32xf32>
    %9 = vector.extract_strided_slice %0 {offsets = [10, 0], sizes = [8, 32], strides = [1, 1]} : vector<18x32xf32> to vector<8x32xf32>
    %10 = tpu.concatenate %8, %9 in 0 : vector<8x32xf32>, vector<8x32xf32> -> vector<16x32xf32>
    %11 = vector.extract_strided_slice %1 {offsets = [1, 0], sizes = [8, 64], strides = [1, 1]} : vector<18x64xf32> to vector<8x64xf32>
    %12 = vector.extract_strided_slice %1 {offsets = [10, 0], sizes = [8, 64], strides = [1, 1]} : vector<18x64xf32> to vector<8x64xf32>
    %13 = tpu.concatenate %11, %12 in 0 : vector<8x64xf32>, vector<8x64xf32> -> vector<16x64xf32>
    %c0_3 = arith.constant 0 : index
    %c0_4 = arith.constant 0 : index
    %c0_5 = arith.constant 0 : index
    %14 = vector.load %arg3[%c0_3, %c0_4, %c0_5] : memref<2x32x64xf32, #tpu.memory_space<vmem>>, vector<1x32x64xf32>
    %15 = vector.shape_cast %14 : vector<1x32x64xf32> to vector<32x64xf32>
    %cst = arith.constant dense<0.000000e+00> : vector<2x64xf32>
    %16 = tpu.matmul %4, %15, %cst {dimension_numbers = #tpu.dot_dimension_numbers<[1], [0], [0], [1], [0, 0, 1, 1], [], []>} : vector<2x32xf32>, vector<32x64xf32>, vector<2x64xf32> -> vector<2x64xf32>
    %c0_6 = arith.constant 0 : index
    %c0_7 = arith.constant 0 : index
    %c0_8 = arith.constant 0 : index
    %17 = vector.load %arg4[%c0_6, %c0_7, %c0_8] : memref<2x1x64xf32, #tpu.memory_space<vmem>>, vector<1x1x64xf32>
    %18 = vector.shape_cast %17 : vector<1x1x64xf32> to vector<1x64xf32>
    %19 = vector.broadcast %18 : vector<1x64xf32> to vector<2x64xf32>
    %20 = arith.addf %16, %19 : vector<2x64xf32>
    %c0_9 = arith.constant 0 : index
    %c0_10 = arith.constant 0 : index
    %c0_11 = arith.constant 0 : index
    %21 = vector.load %arg5[%c0_9, %c0_10, %c0_11] : memref<2x1x64xf32, #tpu.memory_space<vmem>>, vector<1x1x64xf32>
    %22 = vector.shape_cast %21 : vector<1x1x64xf32> to vector<1x64xf32>
    %c0_12 = arith.constant 0 : index
    %c0_13 = arith.constant 0 : index
    %c0_14 = arith.constant 0 : index
    %23 = vector.load %arg6[%c0_12, %c0_13, %c0_14] : memref<2x1x64xf32, #tpu.memory_space<vmem>>, vector<1x1x64xf32>
    %24 = vector.shape_cast %23 : vector<1x1x64xf32> to vector<1x64xf32>
    %cst_15 = arith.constant dense<0.000000e+00> : vector<2xf32>
    %25 = vector.multi_reduction <add>, %20, %cst_15 [1] : vector<2x64xf32> to vector<2xf32>
    %26 = vector.shape_cast %25 : vector<2xf32> to vector<2x1xf32>
    %cst_16 = arith.constant 6.400000e+01 : f32
    %27 = vector.broadcast %cst_16 : f32 to vector<2x1xf32>
    %28 = arith.divf %26, %27 : vector<2x1xf32>
    %29 = vector.broadcast %28 : vector<2x1xf32> to vector<2x64xf32>
    %30 = arith.subf %20, %29 : vector<2x64xf32>
    %31 = arith.mulf %30, %30 : vector<2x64xf32>
    %cst_17 = arith.constant dense<0.000000e+00> : vector<2xf32>
    %32 = vector.multi_reduction <add>, %31, %cst_17 [1] : vector<2x64xf32> to vector<2xf32>
    %33 = vector.shape_cast %32 : vector<2xf32> to vector<2x1xf32>
    %cst_18 = arith.constant 6.400000e+01 : f32
    %34 = vector.broadcast %cst_18 : f32 to vector<2x1xf32>
    %35 = arith.divf %33, %34 : vector<2x1xf32>
    %36 = vector.broadcast %28 : vector<2x1xf32> to vector<2x64xf32>
    %37 = arith.subf %20, %36 : vector<2x64xf32>
    %cst_19 = arith.constant 9.99999974E-6 : f32
    %38 = vector.broadcast %cst_19 : f32 to vector<2x1xf32>
    %39 = arith.addf %35, %38 : vector<2x1xf32>
    %40 = math.rsqrt %39 : vector<2x1xf32>
    %41 = vector.broadcast %40 : vector<2x1xf32> to vector<2x64xf32>
    %42 = arith.mulf %37, %41 : vector<2x64xf32>
    %43 = vector.broadcast %22 : vector<1x64xf32> to vector<2x64xf32>
    %44 = arith.mulf %42, %43 : vector<2x64xf32>
    %45 = vector.broadcast %24 : vector<1x64xf32> to vector<2x64xf32>
    %46 = arith.addf %44, %45 : vector<2x64xf32>
    %c0_20 = arith.constant 0 : index
    %c0_21 = arith.constant 0 : index
    %c0_22 = arith.constant 0 : index
    %47 = vector.load %arg7[%c0_20, %c0_21, %c0_22] : memref<2x64x32xf32, #tpu.memory_space<vmem>>, vector<1x64x32xf32>
    %48 = vector.shape_cast %47 : vector<1x64x32xf32> to vector<64x32xf32>
    %cst_23 = arith.constant dense<0.000000e+00> : vector<2x32xf32>
    %49 = tpu.matmul %46, %48, %cst_23 {dimension_numbers = #tpu.dot_dimension_numbers<[1], [0], [0], [1], [0, 0, 1, 1], [], []>} : vector<2x64xf32>, vector<64x32xf32>, vector<2x32xf32> -> vector<2x32xf32>
    %c0_24 = arith.constant 0 : index
    %c0_25 = arith.constant 0 : index
    %c0_26 = arith.constant 0 : index
    %50 = vector.load %arg8[%c0_24, %c0_25, %c0_26] : memref<2x64x64xf32, #tpu.memory_space<vmem>>, vector<1x64x64xf32>
    %51 = vector.shape_cast %50 : vector<1x64x64xf32> to vector<64x64xf32>
    %cst_27 = arith.constant dense<0.000000e+00> : vector<2x64xf32>
    %52 = tpu.matmul %46, %51, %cst_27 {dimension_numbers = #tpu.dot_dimension_numbers<[1], [0], [0], [1], [0, 0, 1, 1], [], []>} : vector<2x64xf32>, vector<64x64xf32>, vector<2x64xf32> -> vector<2x64xf32>
    %c0_28 = arith.constant 0 : index
    %c0_29 = arith.constant 0 : index
    %c0_30 = arith.constant 0 : index
    %53 = vector.load %arg8[%c0_28, %c0_29, %c0_30] : memref<2x64x64xf32, #tpu.memory_space<vmem>>, vector<1x64x64xf32>
    %54 = vector.shape_cast %53 : vector<1x64x64xf32> to vector<64x64xf32>
    %cst_31 = arith.constant dense<0.000000e+00> : vector<16x64xf32>
    %55 = tpu.matmul %13, %54, %cst_31 {dimension_numbers = #tpu.dot_dimension_numbers<[1], [0], [0], [1], [0, 0, 1, 1], [], []>} : vector<16x64xf32>, vector<64x64xf32>, vector<16x64xf32> -> vector<16x64xf32>
    %56 = vector.extract_strided_slice %52 {offsets = [0, 0], sizes = [1, 64], strides = [1, 1]} : vector<2x64xf32> to vector<1x64xf32>
    %57 = vector.extract_strided_slice %55 {offsets = [0, 0], sizes = [8, 64], strides = [1, 1]} : vector<16x64xf32> to vector<8x64xf32>
    %58 = tpu.concatenate %56, %57 in 0 : vector<1x64xf32>, vector<8x64xf32> -> vector<9x64xf32>
    %59 = vector.extract_strided_slice %49 {offsets = [0, 0], sizes = [1, 16], strides = [1, 1]} : vector<2x32xf32> to vector<1x16xf32>
    %60 = vector.extract_strided_slice %58 {offsets = [0, 0], sizes = [9, 16], strides = [1, 1]} : vector<9x64xf32> to vector<9x16xf32>
    %61 = vector.extract_strided_slice %58 {offsets = [0, 32], sizes = [9, 16], strides = [1, 1]} : vector<9x64xf32> to vector<9x16xf32>
    %cst_32 = arith.constant dense<0.000000e+00> : vector<1x9xf32>
    %62 = tpu.matmul %59, %60, %cst_32 {dimension_numbers = #tpu.dot_dimension_numbers<[1], [1], [0], [0], [0, 0, 1, 0], [], []>} : vector<1x16xf32>, vector<9x16xf32>, vector<1x9xf32> -> vector<1x9xf32>
    %cst_33 = arith.constant 2.500000e-01 : f32
    %63 = vector.broadcast %cst_33 : f32 to vector<1x9xf32>
    %64 = arith.mulf %62, %63 : vector<1x9xf32>
    %cst_34 = arith.constant dense<0xFF800000> : vector<1xf32>
    %65 = vector.multi_reduction <maximumf>, %64, %cst_34 [1] : vector<1x9xf32> to vector<1xf32>
    %66 = vector.shape_cast %65 : vector<1xf32> to vector<1x1xf32>
    %67 = vector.broadcast %66 : vector<1x1xf32> to vector<1x9xf32>
    %68 = arith.subf %64, %67 : vector<1x9xf32>
    %69 = math.exp %68 : vector<1x9xf32>
    %cst_35 = arith.constant dense<0.000000e+00> : vector<1xf32>
    %70 = vector.multi_reduction <add>, %69, %cst_35 [1] : vector<1x9xf32> to vector<1xf32>
    %71 = vector.shape_cast %70 : vector<1xf32> to vector<1x1xf32>
    %72 = vector.broadcast %71 : vector<1x1xf32> to vector<1x9xf32>
    %73 = arith.divf %69, %72 : vector<1x9xf32>
    %cst_36 = arith.constant dense<0.000000e+00> : vector<1x16xf32>
    %74 = tpu.matmul %73, %61, %cst_36 {dimension_numbers = #tpu.dot_dimension_numbers<[1], [0], [0], [1], [0, 0, 1, 1], [], []>} : vector<1x9xf32>, vector<9x16xf32>, vector<1x16xf32> -> vector<1x16xf32>
    %75 = vector.extract_strided_slice %49 {offsets = [0, 16], sizes = [1, 16], strides = [1, 1]} : vector<2x32xf32> to vector<1x16xf32>
    %76 = vector.extract_strided_slice %58 {offsets = [0, 16], sizes = [9, 16], strides = [1, 1]} : vector<9x64xf32> to vector<9x16xf32>
    %77 = vector.extract_strided_slice %58 {offsets = [0, 48], sizes = [9, 16], strides = [1, 1]} : vector<9x64xf32> to vector<9x16xf32>
    %cst_37 = arith.constant dense<0.000000e+00> : vector<1x9xf32>
    %78 = tpu.matmul %75, %76, %cst_37 {dimension_numbers = #tpu.dot_dimension_numbers<[1], [1], [0], [0], [0, 0, 1, 0], [], []>} : vector<1x16xf32>, vector<9x16xf32>, vector<1x9xf32> -> vector<1x9xf32>
    %cst_38 = arith.constant 2.500000e-01 : f32
    %79 = vector.broadcast %cst_38 : f32 to vector<1x9xf32>
    %80 = arith.mulf %78, %79 : vector<1x9xf32>
    %cst_39 = arith.constant dense<0xFF800000> : vector<1xf32>
    %81 = vector.multi_reduction <maximumf>, %80, %cst_39 [1] : vector<1x9xf32> to vector<1xf32>
    %82 = vector.shape_cast %81 : vector<1xf32> to vector<1x1xf32>
    %83 = vector.broadcast %82 : vector<1x1xf32> to vector<1x9xf32>
    %84 = arith.subf %80, %83 : vector<1x9xf32>
    %85 = math.exp %84 : vector<1x9xf32>
    %cst_40 = arith.constant dense<0.000000e+00> : vector<1xf32>
    %86 = vector.multi_reduction <add>, %85, %cst_40 [1] : vector<1x9xf32> to vector<1xf32>
    %87 = vector.shape_cast %86 : vector<1xf32> to vector<1x1xf32>
    %88 = vector.broadcast %87 : vector<1x1xf32> to vector<1x9xf32>
    %89 = arith.divf %85, %88 : vector<1x9xf32>
    %cst_41 = arith.constant dense<0.000000e+00> : vector<1x16xf32>
    %90 = tpu.matmul %89, %77, %cst_41 {dimension_numbers = #tpu.dot_dimension_numbers<[1], [0], [0], [1], [0, 0, 1, 1], [], []>} : vector<1x9xf32>, vector<9x16xf32>, vector<1x16xf32> -> vector<1x16xf32>
    %91 = tpu.concatenate %74, %90 in 1 : vector<1x16xf32>, vector<1x16xf32> -> vector<1x32xf32>
    %92 = vector.extract_strided_slice %52 {offsets = [1, 0], sizes = [1, 64], strides = [1, 1]} : vector<2x64xf32> to vector<1x64xf32>
    %93 = vector.extract_strided_slice %55 {offsets = [8, 0], sizes = [8, 64], strides = [1, 1]} : vector<16x64xf32> to vector<8x64xf32>
    %94 = tpu.concatenate %92, %93 in 0 : vector<1x64xf32>, vector<8x64xf32> -> vector<9x64xf32>
    %95 = vector.extract_strided_slice %49 {offsets = [1, 0], sizes = [1, 16], strides = [1, 1]} : vector<2x32xf32> to vector<1x16xf32>
    %96 = vector.extract_strided_slice %94 {offsets = [0, 0], sizes = [9, 16], strides = [1, 1]} : vector<9x64xf32> to vector<9x16xf32>
    %97 = vector.extract_strided_slice %94 {offsets = [0, 32], sizes = [9, 16], strides = [1, 1]} : vector<9x64xf32> to vector<9x16xf32>
    %cst_42 = arith.constant dense<0.000000e+00> : vector<1x9xf32>
    %98 = tpu.matmul %95, %96, %cst_42 {dimension_numbers = #tpu.dot_dimension_numbers<[1], [1], [0], [0], [0, 0, 1, 0], [], []>} : vector<1x16xf32>, vector<9x16xf32>, vector<1x9xf32> -> vector<1x9xf32>
    %cst_43 = arith.constant 2.500000e-01 : f32
    %99 = vector.broadcast %cst_43 : f32 to vector<1x9xf32>
    %100 = arith.mulf %98, %99 : vector<1x9xf32>
    %cst_44 = arith.constant dense<0xFF800000> : vector<1xf32>
    %101 = vector.multi_reduction <maximumf>, %100, %cst_44 [1] : vector<1x9xf32> to vector<1xf32>
    %102 = vector.shape_cast %101 : vector<1xf32> to vector<1x1xf32>
    %103 = vector.broadcast %102 : vector<1x1xf32> to vector<1x9xf32>
    %104 = arith.subf %100, %103 : vector<1x9xf32>
    %105 = math.exp %104 : vector<1x9xf32>
    %cst_45 = arith.constant dense<0.000000e+00> : vector<1xf32>
    %106 = vector.multi_reduction <add>, %105, %cst_45 [1] : vector<1x9xf32> to vector<1xf32>
    %107 = vector.shape_cast %106 : vector<1xf32> to vector<1x1xf32>
    %108 = vector.broadcast %107 : vector<1x1xf32> to vector<1x9xf32>
    %109 = arith.divf %105, %108 : vector<1x9xf32>
    %cst_46 = arith.constant dense<0.000000e+00> : vector<1x16xf32>
    %110 = tpu.matmul %109, %97, %cst_46 {dimension_numbers = #tpu.dot_dimension_numbers<[1], [0], [0], [1], [0, 0, 1, 1], [], []>} : vector<1x9xf32>, vector<9x16xf32>, vector<1x16xf32> -> vector<1x16xf32>
    %111 = vector.extract_strided_slice %49 {offsets = [1, 16], sizes = [1, 16], strides = [1, 1]} : vector<2x32xf32> to vector<1x16xf32>
    %112 = vector.extract_strided_slice %94 {offsets = [0, 16], sizes = [9, 16], strides = [1, 1]} : vector<9x64xf32> to vector<9x16xf32>
    %113 = vector.extract_strided_slice %94 {offsets = [0, 48], sizes = [9, 16], strides = [1, 1]} : vector<9x64xf32> to vector<9x16xf32>
    %cst_47 = arith.constant dense<0.000000e+00> : vector<1x9xf32>
    %114 = tpu.matmul %111, %112, %cst_47 {dimension_numbers = #tpu.dot_dimension_numbers<[1], [1], [0], [0], [0, 0, 1, 0], [], []>} : vector<1x16xf32>, vector<9x16xf32>, vector<1x9xf32> -> vector<1x9xf32>
    %cst_48 = arith.constant 2.500000e-01 : f32
    %115 = vector.broadcast %cst_48 : f32 to vector<1x9xf32>
    %116 = arith.mulf %114, %115 : vector<1x9xf32>
    %cst_49 = arith.constant dense<0xFF800000> : vector<1xf32>
    %117 = vector.multi_reduction <maximumf>, %116, %cst_49 [1] : vector<1x9xf32> to vector<1xf32>
    %118 = vector.shape_cast %117 : vector<1xf32> to vector<1x1xf32>
    %119 = vector.broadcast %118 : vector<1x1xf32> to vector<1x9xf32>
    %120 = arith.subf %116, %119 : vector<1x9xf32>
    %121 = math.exp %120 : vector<1x9xf32>
    %cst_50 = arith.constant dense<0.000000e+00> : vector<1xf32>
    %122 = vector.multi_reduction <add>, %121, %cst_50 [1] : vector<1x9xf32> to vector<1xf32>
    %123 = vector.shape_cast %122 : vector<1xf32> to vector<1x1xf32>
    %124 = vector.broadcast %123 : vector<1x1xf32> to vector<1x9xf32>
    %125 = arith.divf %121, %124 : vector<1x9xf32>
    %cst_51 = arith.constant dense<0.000000e+00> : vector<1x16xf32>
    %126 = tpu.matmul %125, %113, %cst_51 {dimension_numbers = #tpu.dot_dimension_numbers<[1], [0], [0], [1], [0, 0, 1, 1], [], []>} : vector<1x9xf32>, vector<9x16xf32>, vector<1x16xf32> -> vector<1x16xf32>
    %127 = tpu.concatenate %110, %126 in 1 : vector<1x16xf32>, vector<1x16xf32> -> vector<1x32xf32>
    %128 = tpu.concatenate %91, %127 in 0 : vector<1x32xf32>, vector<1x32xf32> -> vector<2x32xf32>
    %c0_52 = arith.constant 0 : index
    %c0_53 = arith.constant 0 : index
    %c0_54 = arith.constant 0 : index
    %129 = vector.load %arg9[%c0_52, %c0_53, %c0_54] : memref<2x32x64xf32, #tpu.memory_space<vmem>>, vector<1x32x64xf32>
    %130 = vector.shape_cast %129 : vector<1x32x64xf32> to vector<32x64xf32>
    %cst_55 = arith.constant dense<0.000000e+00> : vector<2x64xf32>
    %131 = tpu.matmul %128, %130, %cst_55 {dimension_numbers = #tpu.dot_dimension_numbers<[1], [0], [0], [1], [0, 0, 1, 1], [], []>} : vector<2x32xf32>, vector<32x64xf32>, vector<2x64xf32> -> vector<2x64xf32>
    %c0_56 = arith.constant 0 : index
    %c0_57 = arith.constant 0 : index
    %c0_58 = arith.constant 0 : index
    %132 = vector.load %arg10[%c0_56, %c0_57, %c0_58] : memref<2x1x64xf32, #tpu.memory_space<vmem>>, vector<1x1x64xf32>
    %133 = vector.shape_cast %132 : vector<1x1x64xf32> to vector<1x64xf32>
    %134 = vector.broadcast %133 : vector<1x64xf32> to vector<2x64xf32>
    %135 = arith.addf %131, %134 : vector<2x64xf32>
    %c0_59 = arith.constant 0 : index
    %c0_60 = arith.constant 0 : index
    %c0_61 = arith.constant 0 : index
    %136 = vector.load %arg11[%c0_59, %c0_60, %c0_61] : memref<2x64x32xf32, #tpu.memory_space<vmem>>, vector<1x64x32xf32>
    %137 = vector.shape_cast %136 : vector<1x64x32xf32> to vector<64x32xf32>
    %cst_62 = arith.constant dense<0.000000e+00> : vector<2x32xf32>
    %138 = tpu.matmul %135, %137, %cst_62 {dimension_numbers = #tpu.dot_dimension_numbers<[1], [0], [0], [1], [0, 0, 1, 1], [], []>} : vector<2x64xf32>, vector<64x32xf32>, vector<2x32xf32> -> vector<2x32xf32>
    %c0_63 = arith.constant 0 : index
    %c0_64 = arith.constant 0 : index
    %c0_65 = arith.constant 0 : index
    %139 = vector.load %arg12[%c0_63, %c0_64, %c0_65] : memref<2x1x32xf32, #tpu.memory_space<vmem>>, vector<1x1x32xf32>
    %140 = vector.shape_cast %139 : vector<1x1x32xf32> to vector<1x32xf32>
    %141 = vector.broadcast %140 : vector<1x32xf32> to vector<2x32xf32>
    %142 = arith.addf %138, %141 : vector<2x32xf32>
    %143 = arith.addf %4, %142 : vector<2x32xf32>
    %c0_66 = arith.constant 0 : index
    %c0_67 = arith.constant 0 : index
    %c0_68 = arith.constant 0 : index
    %144 = vector.load %arg13[%c0_66, %c0_67, %c0_68] : memref<2x64x32xf32, #tpu.memory_space<vmem>>, vector<1x64x32xf32>
    %145 = vector.shape_cast %144 : vector<1x64x32xf32> to vector<64x32xf32>
    %cst_69 = arith.constant dense<0.000000e+00> : vector<2x32xf32>
    %146 = tpu.matmul %7, %145, %cst_69 {dimension_numbers = #tpu.dot_dimension_numbers<[1], [0], [0], [1], [0, 0, 1, 1], [], []>} : vector<2x64xf32>, vector<64x32xf32>, vector<2x32xf32> -> vector<2x32xf32>
    %c0_70 = arith.constant 0 : index
    %c0_71 = arith.constant 0 : index
    %c0_72 = arith.constant 0 : index
    %147 = vector.load %arg14[%c0_70, %c0_71, %c0_72] : memref<2x1x32xf32, #tpu.memory_space<vmem>>, vector<1x1x32xf32>
    %148 = vector.shape_cast %147 : vector<1x1x32xf32> to vector<1x32xf32>
    %149 = vector.broadcast %148 : vector<1x32xf32> to vector<2x32xf32>
    %150 = arith.addf %146, %149 : vector<2x32xf32>
    %c0_73 = arith.constant 0 : index
    %c0_74 = arith.constant 0 : index
    %c0_75 = arith.constant 0 : index
    %151 = vector.load %arg15[%c0_73, %c0_74, %c0_75] : memref<2x1x32xf32, #tpu.memory_space<vmem>>, vector<1x1x32xf32>
    %152 = vector.shape_cast %151 : vector<1x1x32xf32> to vector<1x32xf32>
    %c0_76 = arith.constant 0 : index
    %c0_77 = arith.constant 0 : index
    %c0_78 = arith.constant 0 : index
    %153 = vector.load %arg16[%c0_76, %c0_77, %c0_78] : memref<2x1x32xf32, #tpu.memory_space<vmem>>, vector<1x1x32xf32>
    %154 = vector.shape_cast %153 : vector<1x1x32xf32> to vector<1x32xf32>
    %cst_79 = arith.constant dense<0.000000e+00> : vector<2xf32>
    %155 = vector.multi_reduction <add>, %150, %cst_79 [1] : vector<2x32xf32> to vector<2xf32>
    %156 = vector.shape_cast %155 : vector<2xf32> to vector<2x1xf32>
    %cst_80 = arith.constant 3.200000e+01 : f32
    %157 = vector.broadcast %cst_80 : f32 to vector<2x1xf32>
    %158 = arith.divf %156, %157 : vector<2x1xf32>
    %159 = vector.broadcast %158 : vector<2x1xf32> to vector<2x32xf32>
    %160 = arith.subf %150, %159 : vector<2x32xf32>
    %161 = arith.mulf %160, %160 : vector<2x32xf32>
    %cst_81 = arith.constant dense<0.000000e+00> : vector<2xf32>
    %162 = vector.multi_reduction <add>, %161, %cst_81 [1] : vector<2x32xf32> to vector<2xf32>
    %163 = vector.shape_cast %162 : vector<2xf32> to vector<2x1xf32>
    %cst_82 = arith.constant 3.200000e+01 : f32
    %164 = vector.broadcast %cst_82 : f32 to vector<2x1xf32>
    %165 = arith.divf %163, %164 : vector<2x1xf32>
    %166 = vector.broadcast %158 : vector<2x1xf32> to vector<2x32xf32>
    %167 = arith.subf %150, %166 : vector<2x32xf32>
    %cst_83 = arith.constant 9.99999974E-6 : f32
    %168 = vector.broadcast %cst_83 : f32 to vector<2x1xf32>
    %169 = arith.addf %165, %168 : vector<2x1xf32>
    %170 = math.rsqrt %169 : vector<2x1xf32>
    %171 = vector.broadcast %170 : vector<2x1xf32> to vector<2x32xf32>
    %172 = arith.mulf %167, %171 : vector<2x32xf32>
    %173 = vector.broadcast %152 : vector<1x32xf32> to vector<2x32xf32>
    %174 = arith.mulf %172, %173 : vector<2x32xf32>
    %175 = vector.broadcast %154 : vector<1x32xf32> to vector<2x32xf32>
    %176 = arith.addf %174, %175 : vector<2x32xf32>
    %c0_84 = arith.constant 0 : index
    %c0_85 = arith.constant 0 : index
    %c0_86 = arith.constant 0 : index
    %177 = vector.load %arg17[%c0_84, %c0_85, %c0_86] : memref<2x32x32xf32, #tpu.memory_space<vmem>>, vector<1x32x32xf32>
    %178 = vector.shape_cast %177 : vector<1x32x32xf32> to vector<32x32xf32>
    %cst_87 = arith.constant dense<0.000000e+00> : vector<2x32xf32>
    %179 = tpu.matmul %176, %178, %cst_87 {dimension_numbers = #tpu.dot_dimension_numbers<[1], [0], [0], [1], [0, 0, 1, 1], [], []>} : vector<2x32xf32>, vector<32x32xf32>, vector<2x32xf32> -> vector<2x32xf32>
    %c0_88 = arith.constant 0 : index
    %c0_89 = arith.constant 0 : index
    %c0_90 = arith.constant 0 : index
    %180 = vector.load %arg18[%c0_88, %c0_89, %c0_90] : memref<2x32x64xf32, #tpu.memory_space<vmem>>, vector<1x32x64xf32>
    %181 = vector.shape_cast %180 : vector<1x32x64xf32> to vector<32x64xf32>
    %cst_91 = arith.constant dense<0.000000e+00> : vector<2x64xf32>
    %182 = tpu.matmul %176, %181, %cst_91 {dimension_numbers = #tpu.dot_dimension_numbers<[1], [0], [0], [1], [0, 0, 1, 1], [], []>} : vector<2x32xf32>, vector<32x64xf32>, vector<2x64xf32> -> vector<2x64xf32>
    %c0_92 = arith.constant 0 : index
    %c0_93 = arith.constant 0 : index
    %c0_94 = arith.constant 0 : index
    %183 = vector.load %arg18[%c0_92, %c0_93, %c0_94] : memref<2x32x64xf32, #tpu.memory_space<vmem>>, vector<1x32x64xf32>
    %184 = vector.shape_cast %183 : vector<1x32x64xf32> to vector<32x64xf32>
    %cst_95 = arith.constant dense<0.000000e+00> : vector<16x64xf32>
    %185 = tpu.matmul %10, %184, %cst_95 {dimension_numbers = #tpu.dot_dimension_numbers<[1], [0], [0], [1], [0, 0, 1, 1], [], []>} : vector<16x32xf32>, vector<32x64xf32>, vector<16x64xf32> -> vector<16x64xf32>
    %186 = vector.extract_strided_slice %182 {offsets = [0, 0], sizes = [1, 64], strides = [1, 1]} : vector<2x64xf32> to vector<1x64xf32>
    %187 = vector.extract_strided_slice %185 {offsets = [0, 0], sizes = [8, 64], strides = [1, 1]} : vector<16x64xf32> to vector<8x64xf32>
    %188 = tpu.concatenate %186, %187 in 0 : vector<1x64xf32>, vector<8x64xf32> -> vector<9x64xf32>
    %189 = vector.extract_strided_slice %179 {offsets = [0, 0], sizes = [1, 16], strides = [1, 1]} : vector<2x32xf32> to vector<1x16xf32>
    %190 = vector.extract_strided_slice %188 {offsets = [0, 0], sizes = [9, 16], strides = [1, 1]} : vector<9x64xf32> to vector<9x16xf32>
    %191 = vector.extract_strided_slice %188 {offsets = [0, 32], sizes = [9, 16], strides = [1, 1]} : vector<9x64xf32> to vector<9x16xf32>
    %cst_96 = arith.constant dense<0.000000e+00> : vector<1x9xf32>
    %192 = tpu.matmul %189, %190, %cst_96 {dimension_numbers = #tpu.dot_dimension_numbers<[1], [1], [0], [0], [0, 0, 1, 0], [], []>} : vector<1x16xf32>, vector<9x16xf32>, vector<1x9xf32> -> vector<1x9xf32>
    %cst_97 = arith.constant 2.500000e-01 : f32
    %193 = vector.broadcast %cst_97 : f32 to vector<1x9xf32>
    %194 = arith.mulf %192, %193 : vector<1x9xf32>
    %cst_98 = arith.constant dense<0xFF800000> : vector<1xf32>
    %195 = vector.multi_reduction <maximumf>, %194, %cst_98 [1] : vector<1x9xf32> to vector<1xf32>
    %196 = vector.shape_cast %195 : vector<1xf32> to vector<1x1xf32>
    %197 = vector.broadcast %196 : vector<1x1xf32> to vector<1x9xf32>
    %198 = arith.subf %194, %197 : vector<1x9xf32>
    %199 = math.exp %198 : vector<1x9xf32>
    %cst_99 = arith.constant dense<0.000000e+00> : vector<1xf32>
    %200 = vector.multi_reduction <add>, %199, %cst_99 [1] : vector<1x9xf32> to vector<1xf32>
    %201 = vector.shape_cast %200 : vector<1xf32> to vector<1x1xf32>
    %202 = vector.broadcast %201 : vector<1x1xf32> to vector<1x9xf32>
    %203 = arith.divf %199, %202 : vector<1x9xf32>
    %cst_100 = arith.constant dense<0.000000e+00> : vector<1x16xf32>
    %204 = tpu.matmul %203, %191, %cst_100 {dimension_numbers = #tpu.dot_dimension_numbers<[1], [0], [0], [1], [0, 0, 1, 1], [], []>} : vector<1x9xf32>, vector<9x16xf32>, vector<1x16xf32> -> vector<1x16xf32>
    %205 = vector.extract_strided_slice %179 {offsets = [0, 16], sizes = [1, 16], strides = [1, 1]} : vector<2x32xf32> to vector<1x16xf32>
    %206 = vector.extract_strided_slice %188 {offsets = [0, 16], sizes = [9, 16], strides = [1, 1]} : vector<9x64xf32> to vector<9x16xf32>
    %207 = vector.extract_strided_slice %188 {offsets = [0, 48], sizes = [9, 16], strides = [1, 1]} : vector<9x64xf32> to vector<9x16xf32>
    %cst_101 = arith.constant dense<0.000000e+00> : vector<1x9xf32>
    %208 = tpu.matmul %205, %206, %cst_101 {dimension_numbers = #tpu.dot_dimension_numbers<[1], [1], [0], [0], [0, 0, 1, 0], [], []>} : vector<1x16xf32>, vector<9x16xf32>, vector<1x9xf32> -> vector<1x9xf32>
    %cst_102 = arith.constant 2.500000e-01 : f32
    %209 = vector.broadcast %cst_102 : f32 to vector<1x9xf32>
    %210 = arith.mulf %208, %209 : vector<1x9xf32>
    %cst_103 = arith.constant dense<0xFF800000> : vector<1xf32>
    %211 = vector.multi_reduction <maximumf>, %210, %cst_103 [1] : vector<1x9xf32> to vector<1xf32>
    %212 = vector.shape_cast %211 : vector<1xf32> to vector<1x1xf32>
    %213 = vector.broadcast %212 : vector<1x1xf32> to vector<1x9xf32>
    %214 = arith.subf %210, %213 : vector<1x9xf32>
    %215 = math.exp %214 : vector<1x9xf32>
    %cst_104 = arith.constant dense<0.000000e+00> : vector<1xf32>
    %216 = vector.multi_reduction <add>, %215, %cst_104 [1] : vector<1x9xf32> to vector<1xf32>
    %217 = vector.shape_cast %216 : vector<1xf32> to vector<1x1xf32>
    %218 = vector.broadcast %217 : vector<1x1xf32> to vector<1x9xf32>
    %219 = arith.divf %215, %218 : vector<1x9xf32>
    %cst_105 = arith.constant dense<0.000000e+00> : vector<1x16xf32>
    %220 = tpu.matmul %219, %207, %cst_105 {dimension_numbers = #tpu.dot_dimension_numbers<[1], [0], [0], [1], [0, 0, 1, 1], [], []>} : vector<1x9xf32>, vector<9x16xf32>, vector<1x16xf32> -> vector<1x16xf32>
    %221 = tpu.concatenate %204, %220 in 1 : vector<1x16xf32>, vector<1x16xf32> -> vector<1x32xf32>
    %222 = vector.extract_strided_slice %182 {offsets = [1, 0], sizes = [1, 64], strides = [1, 1]} : vector<2x64xf32> to vector<1x64xf32>
    %223 = vector.extract_strided_slice %185 {offsets = [8, 0], sizes = [8, 64], strides = [1, 1]} : vector<16x64xf32> to vector<8x64xf32>
    %224 = tpu.concatenate %222, %223 in 0 : vector<1x64xf32>, vector<8x64xf32> -> vector<9x64xf32>
    %225 = vector.extract_strided_slice %179 {offsets = [1, 0], sizes = [1, 16], strides = [1, 1]} : vector<2x32xf32> to vector<1x16xf32>
    %226 = vector.extract_strided_slice %224 {offsets = [0, 0], sizes = [9, 16], strides = [1, 1]} : vector<9x64xf32> to vector<9x16xf32>
    %227 = vector.extract_strided_slice %224 {offsets = [0, 32], sizes = [9, 16], strides = [1, 1]} : vector<9x64xf32> to vector<9x16xf32>
    %cst_106 = arith.constant dense<0.000000e+00> : vector<1x9xf32>
    %228 = tpu.matmul %225, %226, %cst_106 {dimension_numbers = #tpu.dot_dimension_numbers<[1], [1], [0], [0], [0, 0, 1, 0], [], []>} : vector<1x16xf32>, vector<9x16xf32>, vector<1x9xf32> -> vector<1x9xf32>
    %cst_107 = arith.constant 2.500000e-01 : f32
    %229 = vector.broadcast %cst_107 : f32 to vector<1x9xf32>
    %230 = arith.mulf %228, %229 : vector<1x9xf32>
    %cst_108 = arith.constant dense<0xFF800000> : vector<1xf32>
    %231 = vector.multi_reduction <maximumf>, %230, %cst_108 [1] : vector<1x9xf32> to vector<1xf32>
    %232 = vector.shape_cast %231 : vector<1xf32> to vector<1x1xf32>
    %233 = vector.broadcast %232 : vector<1x1xf32> to vector<1x9xf32>
    %234 = arith.subf %230, %233 : vector<1x9xf32>
    %235 = math.exp %234 : vector<1x9xf32>
    %cst_109 = arith.constant dense<0.000000e+00> : vector<1xf32>
    %236 = vector.multi_reduction <add>, %235, %cst_109 [1] : vector<1x9xf32> to vector<1xf32>
    %237 = vector.shape_cast %236 : vector<1xf32> to vector<1x1xf32>
    %238 = vector.broadcast %237 : vector<1x1xf32> to vector<1x9xf32>
    %239 = arith.divf %235, %238 : vector<1x9xf32>
    %cst_110 = arith.constant dense<0.000000e+00> : vector<1x16xf32>
    %240 = tpu.matmul %239, %227, %cst_110 {dimension_numbers = #tpu.dot_dimension_numbers<[1], [0], [0], [1], [0, 0, 1, 1], [], []>} : vector<1x9xf32>, vector<9x16xf32>, vector<1x16xf32> -> vector<1x16xf32>
    %241 = vector.extract_strided_slice %179 {offsets = [1, 16], sizes = [1, 16], strides = [1, 1]} : vector<2x32xf32> to vector<1x16xf32>
    %242 = vector.extract_strided_slice %224 {offsets = [0, 16], sizes = [9, 16], strides = [1, 1]} : vector<9x64xf32> to vector<9x16xf32>
    %243 = vector.extract_strided_slice %224 {offsets = [0, 48], sizes = [9, 16], strides = [1, 1]} : vector<9x64xf32> to vector<9x16xf32>
    %cst_111 = arith.constant dense<0.000000e+00> : vector<1x9xf32>
    %244 = tpu.matmul %241, %242, %cst_111 {dimension_numbers = #tpu.dot_dimension_numbers<[1], [1], [0], [0], [0, 0, 1, 0], [], []>} : vector<1x16xf32>, vector<9x16xf32>, vector<1x9xf32> -> vector<1x9xf32>
    %cst_112 = arith.constant 2.500000e-01 : f32
    %245 = vector.broadcast %cst_112 : f32 to vector<1x9xf32>
    %246 = arith.mulf %244, %245 : vector<1x9xf32>
    %cst_113 = arith.constant dense<0xFF800000> : vector<1xf32>
    %247 = vector.multi_reduction <maximumf>, %246, %cst_113 [1] : vector<1x9xf32> to vector<1xf32>
    %248 = vector.shape_cast %247 : vector<1xf32> to vector<1x1xf32>
    %249 = vector.broadcast %248 : vector<1x1xf32> to vector<1x9xf32>
    %250 = arith.subf %246, %249 : vector<1x9xf32>
    %251 = math.exp %250 : vector<1x9xf32>
    %cst_114 = arith.constant dense<0.000000e+00> : vector<1xf32>
    %252 = vector.multi_reduction <add>, %251, %cst_114 [1] : vector<1x9xf32> to vector<1xf32>
    %253 = vector.shape_cast %252 : vector<1xf32> to vector<1x1xf32>
    %254 = vector.broadcast %253 : vector<1x1xf32> to vector<1x9xf32>
    %255 = arith.divf %251, %254 : vector<1x9xf32>
    %cst_115 = arith.constant dense<0.000000e+00> : vector<1x16xf32>
    %256 = tpu.matmul %255, %243, %cst_115 {dimension_numbers = #tpu.dot_dimension_numbers<[1], [0], [0], [1], [0, 0, 1, 1], [], []>} : vector<1x9xf32>, vector<9x16xf32>, vector<1x16xf32> -> vector<1x16xf32>
    %257 = tpu.concatenate %240, %256 in 1 : vector<1x16xf32>, vector<1x16xf32> -> vector<1x32xf32>
    %258 = tpu.concatenate %221, %257 in 0 : vector<1x32xf32>, vector<1x32xf32> -> vector<2x32xf32>
    %c0_116 = arith.constant 0 : index
    %c0_117 = arith.constant 0 : index
    %c0_118 = arith.constant 0 : index
    %259 = vector.load %arg19[%c0_116, %c0_117, %c0_118] : memref<2x32x32xf32, #tpu.memory_space<vmem>>, vector<1x32x32xf32>
    %260 = vector.shape_cast %259 : vector<1x32x32xf32> to vector<32x32xf32>
    %cst_119 = arith.constant dense<0.000000e+00> : vector<2x32xf32>
    %261 = tpu.matmul %258, %260, %cst_119 {dimension_numbers = #tpu.dot_dimension_numbers<[1], [0], [0], [1], [0, 0, 1, 1], [], []>} : vector<2x32xf32>, vector<32x32xf32>, vector<2x32xf32> -> vector<2x32xf32>
    %c0_120 = arith.constant 0 : index
    %c0_121 = arith.constant 0 : index
    %c0_122 = arith.constant 0 : index
    %262 = vector.load %arg20[%c0_120, %c0_121, %c0_122] : memref<2x1x32xf32, #tpu.memory_space<vmem>>, vector<1x1x32xf32>
    %263 = vector.shape_cast %262 : vector<1x1x32xf32> to vector<1x32xf32>
    %264 = vector.broadcast %263 : vector<1x32xf32> to vector<2x32xf32>
    %265 = arith.addf %261, %264 : vector<2x32xf32>
    %c0_123 = arith.constant 0 : index
    %c0_124 = arith.constant 0 : index
    %c0_125 = arith.constant 0 : index
    %266 = vector.load %arg21[%c0_123, %c0_124, %c0_125] : memref<2x32x64xf32, #tpu.memory_space<vmem>>, vector<1x32x64xf32>
    %267 = vector.shape_cast %266 : vector<1x32x64xf32> to vector<32x64xf32>
    %cst_126 = arith.constant dense<0.000000e+00> : vector<2x64xf32>
    %268 = tpu.matmul %265, %267, %cst_126 {dimension_numbers = #tpu.dot_dimension_numbers<[1], [0], [0], [1], [0, 0, 1, 1], [], []>} : vector<2x32xf32>, vector<32x64xf32>, vector<2x64xf32> -> vector<2x64xf32>
    %c0_127 = arith.constant 0 : index
    %c0_128 = arith.constant 0 : index
    %c0_129 = arith.constant 0 : index
    %269 = vector.load %arg22[%c0_127, %c0_128, %c0_129] : memref<2x1x64xf32, #tpu.memory_space<vmem>>, vector<1x1x64xf32>
    %270 = vector.shape_cast %269 : vector<1x1x64xf32> to vector<1x64xf32>
    %271 = vector.broadcast %270 : vector<1x64xf32> to vector<2x64xf32>
    %272 = arith.addf %268, %271 : vector<2x64xf32>
    %273 = arith.addf %7, %272 : vector<2x64xf32>
    %c1 = arith.constant 1 : index
    %c0_130 = arith.constant 0 : index
    %c0_131 = arith.constant 0 : index
    %274 = vector.load %arg3[%c1, %c0_130, %c0_131] : memref<2x32x64xf32, #tpu.memory_space<vmem>>, vector<1x32x64xf32>
    %275 = vector.shape_cast %274 : vector<1x32x64xf32> to vector<32x64xf32>
    %cst_132 = arith.constant dense<0.000000e+00> : vector<2x64xf32>
    %276 = tpu.matmul %143, %275, %cst_132 {dimension_numbers = #tpu.dot_dimension_numbers<[1], [0], [0], [1], [0, 0, 1, 1], [], []>} : vector<2x32xf32>, vector<32x64xf32>, vector<2x64xf32> -> vector<2x64xf32>
    %c1_133 = arith.constant 1 : index
    %c0_134 = arith.constant 0 : index
    %c0_135 = arith.constant 0 : index
    %277 = vector.load %arg4[%c1_133, %c0_134, %c0_135] : memref<2x1x64xf32, #tpu.memory_space<vmem>>, vector<1x1x64xf32>
    %278 = vector.shape_cast %277 : vector<1x1x64xf32> to vector<1x64xf32>
    %279 = vector.broadcast %278 : vector<1x64xf32> to vector<2x64xf32>
    %280 = arith.addf %276, %279 : vector<2x64xf32>
    %c1_136 = arith.constant 1 : index
    %c0_137 = arith.constant 0 : index
    %c0_138 = arith.constant 0 : index
    %281 = vector.load %arg5[%c1_136, %c0_137, %c0_138] : memref<2x1x64xf32, #tpu.memory_space<vmem>>, vector<1x1x64xf32>
    %282 = vector.shape_cast %281 : vector<1x1x64xf32> to vector<1x64xf32>
    %c1_139 = arith.constant 1 : index
    %c0_140 = arith.constant 0 : index
    %c0_141 = arith.constant 0 : index
    %283 = vector.load %arg6[%c1_139, %c0_140, %c0_141] : memref<2x1x64xf32, #tpu.memory_space<vmem>>, vector<1x1x64xf32>
    %284 = vector.shape_cast %283 : vector<1x1x64xf32> to vector<1x64xf32>
    %cst_142 = arith.constant dense<0.000000e+00> : vector<2xf32>
    %285 = vector.multi_reduction <add>, %280, %cst_142 [1] : vector<2x64xf32> to vector<2xf32>
    %286 = vector.shape_cast %285 : vector<2xf32> to vector<2x1xf32>
    %cst_143 = arith.constant 6.400000e+01 : f32
    %287 = vector.broadcast %cst_143 : f32 to vector<2x1xf32>
    %288 = arith.divf %286, %287 : vector<2x1xf32>
    %289 = vector.broadcast %288 : vector<2x1xf32> to vector<2x64xf32>
    %290 = arith.subf %280, %289 : vector<2x64xf32>
    %291 = arith.mulf %290, %290 : vector<2x64xf32>
    %cst_144 = arith.constant dense<0.000000e+00> : vector<2xf32>
    %292 = vector.multi_reduction <add>, %291, %cst_144 [1] : vector<2x64xf32> to vector<2xf32>
    %293 = vector.shape_cast %292 : vector<2xf32> to vector<2x1xf32>
    %cst_145 = arith.constant 6.400000e+01 : f32
    %294 = vector.broadcast %cst_145 : f32 to vector<2x1xf32>
    %295 = arith.divf %293, %294 : vector<2x1xf32>
    %296 = vector.broadcast %288 : vector<2x1xf32> to vector<2x64xf32>
    %297 = arith.subf %280, %296 : vector<2x64xf32>
    %cst_146 = arith.constant 9.99999974E-6 : f32
    %298 = vector.broadcast %cst_146 : f32 to vector<2x1xf32>
    %299 = arith.addf %295, %298 : vector<2x1xf32>
    %300 = math.rsqrt %299 : vector<2x1xf32>
    %301 = vector.broadcast %300 : vector<2x1xf32> to vector<2x64xf32>
    %302 = arith.mulf %297, %301 : vector<2x64xf32>
    %303 = vector.broadcast %282 : vector<1x64xf32> to vector<2x64xf32>
    %304 = arith.mulf %302, %303 : vector<2x64xf32>
    %305 = vector.broadcast %284 : vector<1x64xf32> to vector<2x64xf32>
    %306 = arith.addf %304, %305 : vector<2x64xf32>
    %c1_147 = arith.constant 1 : index
    %c0_148 = arith.constant 0 : index
    %c0_149 = arith.constant 0 : index
    %307 = vector.load %arg7[%c1_147, %c0_148, %c0_149] : memref<2x64x32xf32, #tpu.memory_space<vmem>>, vector<1x64x32xf32>
    %308 = vector.shape_cast %307 : vector<1x64x32xf32> to vector<64x32xf32>
    %cst_150 = arith.constant dense<0.000000e+00> : vector<2x32xf32>
    %309 = tpu.matmul %306, %308, %cst_150 {dimension_numbers = #tpu.dot_dimension_numbers<[1], [0], [0], [1], [0, 0, 1, 1], [], []>} : vector<2x64xf32>, vector<64x32xf32>, vector<2x32xf32> -> vector<2x32xf32>
    %c1_151 = arith.constant 1 : index
    %c0_152 = arith.constant 0 : index
    %c0_153 = arith.constant 0 : index
    %310 = vector.load %arg8[%c1_151, %c0_152, %c0_153] : memref<2x64x64xf32, #tpu.memory_space<vmem>>, vector<1x64x64xf32>
    %311 = vector.shape_cast %310 : vector<1x64x64xf32> to vector<64x64xf32>
    %cst_154 = arith.constant dense<0.000000e+00> : vector<2x64xf32>
    %312 = tpu.matmul %306, %311, %cst_154 {dimension_numbers = #tpu.dot_dimension_numbers<[1], [0], [0], [1], [0, 0, 1, 1], [], []>} : vector<2x64xf32>, vector<64x64xf32>, vector<2x64xf32> -> vector<2x64xf32>
    %c1_155 = arith.constant 1 : index
    %c0_156 = arith.constant 0 : index
    %c0_157 = arith.constant 0 : index
    %313 = vector.load %arg8[%c1_155, %c0_156, %c0_157] : memref<2x64x64xf32, #tpu.memory_space<vmem>>, vector<1x64x64xf32>
    %314 = vector.shape_cast %313 : vector<1x64x64xf32> to vector<64x64xf32>
    %cst_158 = arith.constant dense<0.000000e+00> : vector<16x64xf32>
    %315 = tpu.matmul %13, %314, %cst_158 {dimension_numbers = #tpu.dot_dimension_numbers<[1], [0], [0], [1], [0, 0, 1, 1], [], []>} : vector<16x64xf32>, vector<64x64xf32>, vector<16x64xf32> -> vector<16x64xf32>
    %316 = vector.extract_strided_slice %312 {offsets = [0, 0], sizes = [1, 64], strides = [1, 1]} : vector<2x64xf32> to vector<1x64xf32>
    %317 = vector.extract_strided_slice %315 {offsets = [0, 0], sizes = [8, 64], strides = [1, 1]} : vector<16x64xf32> to vector<8x64xf32>
    %318 = tpu.concatenate %316, %317 in 0 : vector<1x64xf32>, vector<8x64xf32> -> vector<9x64xf32>
    %319 = vector.extract_strided_slice %309 {offsets = [0, 0], sizes = [1, 16], strides = [1, 1]} : vector<2x32xf32> to vector<1x16xf32>
    %320 = vector.extract_strided_slice %318 {offsets = [0, 0], sizes = [9, 16], strides = [1, 1]} : vector<9x64xf32> to vector<9x16xf32>
    %321 = vector.extract_strided_slice %318 {offsets = [0, 32], sizes = [9, 16], strides = [1, 1]} : vector<9x64xf32> to vector<9x16xf32>
    %cst_159 = arith.constant dense<0.000000e+00> : vector<1x9xf32>
    %322 = tpu.matmul %319, %320, %cst_159 {dimension_numbers = #tpu.dot_dimension_numbers<[1], [1], [0], [0], [0, 0, 1, 0], [], []>} : vector<1x16xf32>, vector<9x16xf32>, vector<1x9xf32> -> vector<1x9xf32>
    %cst_160 = arith.constant 2.500000e-01 : f32
    %323 = vector.broadcast %cst_160 : f32 to vector<1x9xf32>
    %324 = arith.mulf %322, %323 : vector<1x9xf32>
    %cst_161 = arith.constant dense<0xFF800000> : vector<1xf32>
    %325 = vector.multi_reduction <maximumf>, %324, %cst_161 [1] : vector<1x9xf32> to vector<1xf32>
    %326 = vector.shape_cast %325 : vector<1xf32> to vector<1x1xf32>
    %327 = vector.broadcast %326 : vector<1x1xf32> to vector<1x9xf32>
    %328 = arith.subf %324, %327 : vector<1x9xf32>
    %329 = math.exp %328 : vector<1x9xf32>
    %cst_162 = arith.constant dense<0.000000e+00> : vector<1xf32>
    %330 = vector.multi_reduction <add>, %329, %cst_162 [1] : vector<1x9xf32> to vector<1xf32>
    %331 = vector.shape_cast %330 : vector<1xf32> to vector<1x1xf32>
    %332 = vector.broadcast %331 : vector<1x1xf32> to vector<1x9xf32>
    %333 = arith.divf %329, %332 : vector<1x9xf32>
    %cst_163 = arith.constant dense<0.000000e+00> : vector<1x16xf32>
    %334 = tpu.matmul %333, %321, %cst_163 {dimension_numbers = #tpu.dot_dimension_numbers<[1], [0], [0], [1], [0, 0, 1, 1], [], []>} : vector<1x9xf32>, vector<9x16xf32>, vector<1x16xf32> -> vector<1x16xf32>
    %335 = vector.extract_strided_slice %309 {offsets = [0, 16], sizes = [1, 16], strides = [1, 1]} : vector<2x32xf32> to vector<1x16xf32>
    %336 = vector.extract_strided_slice %318 {offsets = [0, 16], sizes = [9, 16], strides = [1, 1]} : vector<9x64xf32> to vector<9x16xf32>
    %337 = vector.extract_strided_slice %318 {offsets = [0, 48], sizes = [9, 16], strides = [1, 1]} : vector<9x64xf32> to vector<9x16xf32>
    %cst_164 = arith.constant dense<0.000000e+00> : vector<1x9xf32>
    %338 = tpu.matmul %335, %336, %cst_164 {dimension_numbers = #tpu.dot_dimension_numbers<[1], [1], [0], [0], [0, 0, 1, 0], [], []>} : vector<1x16xf32>, vector<9x16xf32>, vector<1x9xf32> -> vector<1x9xf32>
    %cst_165 = arith.constant 2.500000e-01 : f32
    %339 = vector.broadcast %cst_165 : f32 to vector<1x9xf32>
    %340 = arith.mulf %338, %339 : vector<1x9xf32>
    %cst_166 = arith.constant dense<0xFF800000> : vector<1xf32>
    %341 = vector.multi_reduction <maximumf>, %340, %cst_166 [1] : vector<1x9xf32> to vector<1xf32>
    %342 = vector.shape_cast %341 : vector<1xf32> to vector<1x1xf32>
    %343 = vector.broadcast %342 : vector<1x1xf32> to vector<1x9xf32>
    %344 = arith.subf %340, %343 : vector<1x9xf32>
    %345 = math.exp %344 : vector<1x9xf32>
    %cst_167 = arith.constant dense<0.000000e+00> : vector<1xf32>
    %346 = vector.multi_reduction <add>, %345, %cst_167 [1] : vector<1x9xf32> to vector<1xf32>
    %347 = vector.shape_cast %346 : vector<1xf32> to vector<1x1xf32>
    %348 = vector.broadcast %347 : vector<1x1xf32> to vector<1x9xf32>
    %349 = arith.divf %345, %348 : vector<1x9xf32>
    %cst_168 = arith.constant dense<0.000000e+00> : vector<1x16xf32>
    %350 = tpu.matmul %349, %337, %cst_168 {dimension_numbers = #tpu.dot_dimension_numbers<[1], [0], [0], [1], [0, 0, 1, 1], [], []>} : vector<1x9xf32>, vector<9x16xf32>, vector<1x16xf32> -> vector<1x16xf32>
    %351 = tpu.concatenate %334, %350 in 1 : vector<1x16xf32>, vector<1x16xf32> -> vector<1x32xf32>
    %352 = vector.extract_strided_slice %312 {offsets = [1, 0], sizes = [1, 64], strides = [1, 1]} : vector<2x64xf32> to vector<1x64xf32>
    %353 = vector.extract_strided_slice %315 {offsets = [8, 0], sizes = [8, 64], strides = [1, 1]} : vector<16x64xf32> to vector<8x64xf32>
    %354 = tpu.concatenate %352, %353 in 0 : vector<1x64xf32>, vector<8x64xf32> -> vector<9x64xf32>
    %355 = vector.extract_strided_slice %309 {offsets = [1, 0], sizes = [1, 16], strides = [1, 1]} : vector<2x32xf32> to vector<1x16xf32>
    %356 = vector.extract_strided_slice %354 {offsets = [0, 0], sizes = [9, 16], strides = [1, 1]} : vector<9x64xf32> to vector<9x16xf32>
    %357 = vector.extract_strided_slice %354 {offsets = [0, 32], sizes = [9, 16], strides = [1, 1]} : vector<9x64xf32> to vector<9x16xf32>
    %cst_169 = arith.constant dense<0.000000e+00> : vector<1x9xf32>
    %358 = tpu.matmul %355, %356, %cst_169 {dimension_numbers = #tpu.dot_dimension_numbers<[1], [1], [0], [0], [0, 0, 1, 0], [], []>} : vector<1x16xf32>, vector<9x16xf32>, vector<1x9xf32> -> vector<1x9xf32>
    %cst_170 = arith.constant 2.500000e-01 : f32
    %359 = vector.broadcast %cst_170 : f32 to vector<1x9xf32>
    %360 = arith.mulf %358, %359 : vector<1x9xf32>
    %cst_171 = arith.constant dense<0xFF800000> : vector<1xf32>
    %361 = vector.multi_reduction <maximumf>, %360, %cst_171 [1] : vector<1x9xf32> to vector<1xf32>
    %362 = vector.shape_cast %361 : vector<1xf32> to vector<1x1xf32>
    %363 = vector.broadcast %362 : vector<1x1xf32> to vector<1x9xf32>
    %364 = arith.subf %360, %363 : vector<1x9xf32>
    %365 = math.exp %364 : vector<1x9xf32>
    %cst_172 = arith.constant dense<0.000000e+00> : vector<1xf32>
    %366 = vector.multi_reduction <add>, %365, %cst_172 [1] : vector<1x9xf32> to vector<1xf32>
    %367 = vector.shape_cast %366 : vector<1xf32> to vector<1x1xf32>
    %368 = vector.broadcast %367 : vector<1x1xf32> to vector<1x9xf32>
    %369 = arith.divf %365, %368 : vector<1x9xf32>
    %cst_173 = arith.constant dense<0.000000e+00> : vector<1x16xf32>
    %370 = tpu.matmul %369, %357, %cst_173 {dimension_numbers = #tpu.dot_dimension_numbers<[1], [0], [0], [1], [0, 0, 1, 1], [], []>} : vector<1x9xf32>, vector<9x16xf32>, vector<1x16xf32> -> vector<1x16xf32>
    %371 = vector.extract_strided_slice %309 {offsets = [1, 16], sizes = [1, 16], strides = [1, 1]} : vector<2x32xf32> to vector<1x16xf32>
    %372 = vector.extract_strided_slice %354 {offsets = [0, 16], sizes = [9, 16], strides = [1, 1]} : vector<9x64xf32> to vector<9x16xf32>
    %373 = vector.extract_strided_slice %354 {offsets = [0, 48], sizes = [9, 16], strides = [1, 1]} : vector<9x64xf32> to vector<9x16xf32>
    %cst_174 = arith.constant dense<0.000000e+00> : vector<1x9xf32>
    %374 = tpu.matmul %371, %372, %cst_174 {dimension_numbers = #tpu.dot_dimension_numbers<[1], [1], [0], [0], [0, 0, 1, 0], [], []>} : vector<1x16xf32>, vector<9x16xf32>, vector<1x9xf32> -> vector<1x9xf32>
    %cst_175 = arith.constant 2.500000e-01 : f32
    %375 = vector.broadcast %cst_175 : f32 to vector<1x9xf32>
    %376 = arith.mulf %374, %375 : vector<1x9xf32>
    %cst_176 = arith.constant dense<0xFF800000> : vector<1xf32>
    %377 = vector.multi_reduction <maximumf>, %376, %cst_176 [1] : vector<1x9xf32> to vector<1xf32>
    %378 = vector.shape_cast %377 : vector<1xf32> to vector<1x1xf32>
    %379 = vector.broadcast %378 : vector<1x1xf32> to vector<1x9xf32>
    %380 = arith.subf %376, %379 : vector<1x9xf32>
    %381 = math.exp %380 : vector<1x9xf32>
    %cst_177 = arith.constant dense<0.000000e+00> : vector<1xf32>
    %382 = vector.multi_reduction <add>, %381, %cst_177 [1] : vector<1x9xf32> to vector<1xf32>
    %383 = vector.shape_cast %382 : vector<1xf32> to vector<1x1xf32>
    %384 = vector.broadcast %383 : vector<1x1xf32> to vector<1x9xf32>
    %385 = arith.divf %381, %384 : vector<1x9xf32>
    %cst_178 = arith.constant dense<0.000000e+00> : vector<1x16xf32>
    %386 = tpu.matmul %385, %373, %cst_178 {dimension_numbers = #tpu.dot_dimension_numbers<[1], [0], [0], [1], [0, 0, 1, 1], [], []>} : vector<1x9xf32>, vector<9x16xf32>, vector<1x16xf32> -> vector<1x16xf32>
    %387 = tpu.concatenate %370, %386 in 1 : vector<1x16xf32>, vector<1x16xf32> -> vector<1x32xf32>
    %388 = tpu.concatenate %351, %387 in 0 : vector<1x32xf32>, vector<1x32xf32> -> vector<2x32xf32>
    %c1_179 = arith.constant 1 : index
    %c0_180 = arith.constant 0 : index
    %c0_181 = arith.constant 0 : index
    %389 = vector.load %arg9[%c1_179, %c0_180, %c0_181] : memref<2x32x64xf32, #tpu.memory_space<vmem>>, vector<1x32x64xf32>
    %390 = vector.shape_cast %389 : vector<1x32x64xf32> to vector<32x64xf32>
    %cst_182 = arith.constant dense<0.000000e+00> : vector<2x64xf32>
    %391 = tpu.matmul %388, %390, %cst_182 {dimension_numbers = #tpu.dot_dimension_numbers<[1], [0], [0], [1], [0, 0, 1, 1], [], []>} : vector<2x32xf32>, vector<32x64xf32>, vector<2x64xf32> -> vector<2x64xf32>
    %c1_183 = arith.constant 1 : index
    %c0_184 = arith.constant 0 : index
    %c0_185 = arith.constant 0 : index
    %392 = vector.load %arg10[%c1_183, %c0_184, %c0_185] : memref<2x1x64xf32, #tpu.memory_space<vmem>>, vector<1x1x64xf32>
    %393 = vector.shape_cast %392 : vector<1x1x64xf32> to vector<1x64xf32>
    %394 = vector.broadcast %393 : vector<1x64xf32> to vector<2x64xf32>
    %395 = arith.addf %391, %394 : vector<2x64xf32>
    %c1_186 = arith.constant 1 : index
    %c0_187 = arith.constant 0 : index
    %c0_188 = arith.constant 0 : index
    %396 = vector.load %arg11[%c1_186, %c0_187, %c0_188] : memref<2x64x32xf32, #tpu.memory_space<vmem>>, vector<1x64x32xf32>
    %397 = vector.shape_cast %396 : vector<1x64x32xf32> to vector<64x32xf32>
    %cst_189 = arith.constant dense<0.000000e+00> : vector<2x32xf32>
    %398 = tpu.matmul %395, %397, %cst_189 {dimension_numbers = #tpu.dot_dimension_numbers<[1], [0], [0], [1], [0, 0, 1, 1], [], []>} : vector<2x64xf32>, vector<64x32xf32>, vector<2x32xf32> -> vector<2x32xf32>
    %c1_190 = arith.constant 1 : index
    %c0_191 = arith.constant 0 : index
    %c0_192 = arith.constant 0 : index
    %399 = vector.load %arg12[%c1_190, %c0_191, %c0_192] : memref<2x1x32xf32, #tpu.memory_space<vmem>>, vector<1x1x32xf32>
    %400 = vector.shape_cast %399 : vector<1x1x32xf32> to vector<1x32xf32>
    %401 = vector.broadcast %400 : vector<1x32xf32> to vector<2x32xf32>
    %402 = arith.addf %398, %401 : vector<2x32xf32>
    %403 = arith.addf %143, %402 : vector<2x32xf32>
    %c1_193 = arith.constant 1 : index
    %c0_194 = arith.constant 0 : index
    %c0_195 = arith.constant 0 : index
    %404 = vector.load %arg13[%c1_193, %c0_194, %c0_195] : memref<2x64x32xf32, #tpu.memory_space<vmem>>, vector<1x64x32xf32>
    %405 = vector.shape_cast %404 : vector<1x64x32xf32> to vector<64x32xf32>
    %cst_196 = arith.constant dense<0.000000e+00> : vector<2x32xf32>
    %406 = tpu.matmul %273, %405, %cst_196 {dimension_numbers = #tpu.dot_dimension_numbers<[1], [0], [0], [1], [0, 0, 1, 1], [], []>} : vector<2x64xf32>, vector<64x32xf32>, vector<2x32xf32> -> vector<2x32xf32>
    %c1_197 = arith.constant 1 : index
    %c0_198 = arith.constant 0 : index
    %c0_199 = arith.constant 0 : index
    %407 = vector.load %arg14[%c1_197, %c0_198, %c0_199] : memref<2x1x32xf32, #tpu.memory_space<vmem>>, vector<1x1x32xf32>
    %408 = vector.shape_cast %407 : vector<1x1x32xf32> to vector<1x32xf32>
    %409 = vector.broadcast %408 : vector<1x32xf32> to vector<2x32xf32>
    %410 = arith.addf %406, %409 : vector<2x32xf32>
    %c1_200 = arith.constant 1 : index
    %c0_201 = arith.constant 0 : index
    %c0_202 = arith.constant 0 : index
    %411 = vector.load %arg15[%c1_200, %c0_201, %c0_202] : memref<2x1x32xf32, #tpu.memory_space<vmem>>, vector<1x1x32xf32>
    %412 = vector.shape_cast %411 : vector<1x1x32xf32> to vector<1x32xf32>
    %c1_203 = arith.constant 1 : index
    %c0_204 = arith.constant 0 : index
    %c0_205 = arith.constant 0 : index
    %413 = vector.load %arg16[%c1_203, %c0_204, %c0_205] : memref<2x1x32xf32, #tpu.memory_space<vmem>>, vector<1x1x32xf32>
    %414 = vector.shape_cast %413 : vector<1x1x32xf32> to vector<1x32xf32>
    %cst_206 = arith.constant dense<0.000000e+00> : vector<2xf32>
    %415 = vector.multi_reduction <add>, %410, %cst_206 [1] : vector<2x32xf32> to vector<2xf32>
    %416 = vector.shape_cast %415 : vector<2xf32> to vector<2x1xf32>
    %cst_207 = arith.constant 3.200000e+01 : f32
    %417 = vector.broadcast %cst_207 : f32 to vector<2x1xf32>
    %418 = arith.divf %416, %417 : vector<2x1xf32>
    %419 = vector.broadcast %418 : vector<2x1xf32> to vector<2x32xf32>
    %420 = arith.subf %410, %419 : vector<2x32xf32>
    %421 = arith.mulf %420, %420 : vector<2x32xf32>
    %cst_208 = arith.constant dense<0.000000e+00> : vector<2xf32>
    %422 = vector.multi_reduction <add>, %421, %cst_208 [1] : vector<2x32xf32> to vector<2xf32>
    %423 = vector.shape_cast %422 : vector<2xf32> to vector<2x1xf32>
    %cst_209 = arith.constant 3.200000e+01 : f32
    %424 = vector.broadcast %cst_209 : f32 to vector<2x1xf32>
    %425 = arith.divf %423, %424 : vector<2x1xf32>
    %426 = vector.broadcast %418 : vector<2x1xf32> to vector<2x32xf32>
    %427 = arith.subf %410, %426 : vector<2x32xf32>
    %cst_210 = arith.constant 9.99999974E-6 : f32
    %428 = vector.broadcast %cst_210 : f32 to vector<2x1xf32>
    %429 = arith.addf %425, %428 : vector<2x1xf32>
    %430 = math.rsqrt %429 : vector<2x1xf32>
    %431 = vector.broadcast %430 : vector<2x1xf32> to vector<2x32xf32>
    %432 = arith.mulf %427, %431 : vector<2x32xf32>
    %433 = vector.broadcast %412 : vector<1x32xf32> to vector<2x32xf32>
    %434 = arith.mulf %432, %433 : vector<2x32xf32>
    %435 = vector.broadcast %414 : vector<1x32xf32> to vector<2x32xf32>
    %436 = arith.addf %434, %435 : vector<2x32xf32>
    %c1_211 = arith.constant 1 : index
    %c0_212 = arith.constant 0 : index
    %c0_213 = arith.constant 0 : index
    %437 = vector.load %arg17[%c1_211, %c0_212, %c0_213] : memref<2x32x32xf32, #tpu.memory_space<vmem>>, vector<1x32x32xf32>
    %438 = vector.shape_cast %437 : vector<1x32x32xf32> to vector<32x32xf32>
    %cst_214 = arith.constant dense<0.000000e+00> : vector<2x32xf32>
    %439 = tpu.matmul %436, %438, %cst_214 {dimension_numbers = #tpu.dot_dimension_numbers<[1], [0], [0], [1], [0, 0, 1, 1], [], []>} : vector<2x32xf32>, vector<32x32xf32>, vector<2x32xf32> -> vector<2x32xf32>
    %c1_215 = arith.constant 1 : index
    %c0_216 = arith.constant 0 : index
    %c0_217 = arith.constant 0 : index
    %440 = vector.load %arg18[%c1_215, %c0_216, %c0_217] : memref<2x32x64xf32, #tpu.memory_space<vmem>>, vector<1x32x64xf32>
    %441 = vector.shape_cast %440 : vector<1x32x64xf32> to vector<32x64xf32>
    %cst_218 = arith.constant dense<0.000000e+00> : vector<2x64xf32>
    %442 = tpu.matmul %436, %441, %cst_218 {dimension_numbers = #tpu.dot_dimension_numbers<[1], [0], [0], [1], [0, 0, 1, 1], [], []>} : vector<2x32xf32>, vector<32x64xf32>, vector<2x64xf32> -> vector<2x64xf32>
    %c1_219 = arith.constant 1 : index
    %c0_220 = arith.constant 0 : index
    %c0_221 = arith.constant 0 : index
    %443 = vector.load %arg18[%c1_219, %c0_220, %c0_221] : memref<2x32x64xf32, #tpu.memory_space<vmem>>, vector<1x32x64xf32>
    %444 = vector.shape_cast %443 : vector<1x32x64xf32> to vector<32x64xf32>
    %cst_222 = arith.constant dense<0.000000e+00> : vector<16x64xf32>
    %445 = tpu.matmul %10, %444, %cst_222 {dimension_numbers = #tpu.dot_dimension_numbers<[1], [0], [0], [1], [0, 0, 1, 1], [], []>} : vector<16x32xf32>, vector<32x64xf32>, vector<16x64xf32> -> vector<16x64xf32>
    %446 = vector.extract_strided_slice %442 {offsets = [0, 0], sizes = [1, 64], strides = [1, 1]} : vector<2x64xf32> to vector<1x64xf32>
    %447 = vector.extract_strided_slice %445 {offsets = [0, 0], sizes = [8, 64], strides = [1, 1]} : vector<16x64xf32> to vector<8x64xf32>
    %448 = tpu.concatenate %446, %447 in 0 : vector<1x64xf32>, vector<8x64xf32> -> vector<9x64xf32>
    %449 = vector.extract_strided_slice %439 {offsets = [0, 0], sizes = [1, 16], strides = [1, 1]} : vector<2x32xf32> to vector<1x16xf32>
    %450 = vector.extract_strided_slice %448 {offsets = [0, 0], sizes = [9, 16], strides = [1, 1]} : vector<9x64xf32> to vector<9x16xf32>
    %451 = vector.extract_strided_slice %448 {offsets = [0, 32], sizes = [9, 16], strides = [1, 1]} : vector<9x64xf32> to vector<9x16xf32>
    %cst_223 = arith.constant dense<0.000000e+00> : vector<1x9xf32>
    %452 = tpu.matmul %449, %450, %cst_223 {dimension_numbers = #tpu.dot_dimension_numbers<[1], [1], [0], [0], [0, 0, 1, 0], [], []>} : vector<1x16xf32>, vector<9x16xf32>, vector<1x9xf32> -> vector<1x9xf32>
    %cst_224 = arith.constant 2.500000e-01 : f32
    %453 = vector.broadcast %cst_224 : f32 to vector<1x9xf32>
    %454 = arith.mulf %452, %453 : vector<1x9xf32>
    %cst_225 = arith.constant dense<0xFF800000> : vector<1xf32>
    %455 = vector.multi_reduction <maximumf>, %454, %cst_225 [1] : vector<1x9xf32> to vector<1xf32>
    %456 = vector.shape_cast %455 : vector<1xf32> to vector<1x1xf32>
    %457 = vector.broadcast %456 : vector<1x1xf32> to vector<1x9xf32>
    %458 = arith.subf %454, %457 : vector<1x9xf32>
    %459 = math.exp %458 : vector<1x9xf32>
    %cst_226 = arith.constant dense<0.000000e+00> : vector<1xf32>
    %460 = vector.multi_reduction <add>, %459, %cst_226 [1] : vector<1x9xf32> to vector<1xf32>
    %461 = vector.shape_cast %460 : vector<1xf32> to vector<1x1xf32>
    %462 = vector.broadcast %461 : vector<1x1xf32> to vector<1x9xf32>
    %463 = arith.divf %459, %462 : vector<1x9xf32>
    %cst_227 = arith.constant dense<0.000000e+00> : vector<1x16xf32>
    %464 = tpu.matmul %463, %451, %cst_227 {dimension_numbers = #tpu.dot_dimension_numbers<[1], [0], [0], [1], [0, 0, 1, 1], [], []>} : vector<1x9xf32>, vector<9x16xf32>, vector<1x16xf32> -> vector<1x16xf32>
    %465 = vector.extract_strided_slice %439 {offsets = [0, 16], sizes = [1, 16], strides = [1, 1]} : vector<2x32xf32> to vector<1x16xf32>
    %466 = vector.extract_strided_slice %448 {offsets = [0, 16], sizes = [9, 16], strides = [1, 1]} : vector<9x64xf32> to vector<9x16xf32>
    %467 = vector.extract_strided_slice %448 {offsets = [0, 48], sizes = [9, 16], strides = [1, 1]} : vector<9x64xf32> to vector<9x16xf32>
    %cst_228 = arith.constant dense<0.000000e+00> : vector<1x9xf32>
    %468 = tpu.matmul %465, %466, %cst_228 {dimension_numbers = #tpu.dot_dimension_numbers<[1], [1], [0], [0], [0, 0, 1, 0], [], []>} : vector<1x16xf32>, vector<9x16xf32>, vector<1x9xf32> -> vector<1x9xf32>
    %cst_229 = arith.constant 2.500000e-01 : f32
    %469 = vector.broadcast %cst_229 : f32 to vector<1x9xf32>
    %470 = arith.mulf %468, %469 : vector<1x9xf32>
    %cst_230 = arith.constant dense<0xFF800000> : vector<1xf32>
    %471 = vector.multi_reduction <maximumf>, %470, %cst_230 [1] : vector<1x9xf32> to vector<1xf32>
    %472 = vector.shape_cast %471 : vector<1xf32> to vector<1x1xf32>
    %473 = vector.broadcast %472 : vector<1x1xf32> to vector<1x9xf32>
    %474 = arith.subf %470, %473 : vector<1x9xf32>
    %475 = math.exp %474 : vector<1x9xf32>
    %cst_231 = arith.constant dense<0.000000e+00> : vector<1xf32>
    %476 = vector.multi_reduction <add>, %475, %cst_231 [1] : vector<1x9xf32> to vector<1xf32>
    %477 = vector.shape_cast %476 : vector<1xf32> to vector<1x1xf32>
    %478 = vector.broadcast %477 : vector<1x1xf32> to vector<1x9xf32>
    %479 = arith.divf %475, %478 : vector<1x9xf32>
    %cst_232 = arith.constant dense<0.000000e+00> : vector<1x16xf32>
    %480 = tpu.matmul %479, %467, %cst_232 {dimension_numbers = #tpu.dot_dimension_numbers<[1], [0], [0], [1], [0, 0, 1, 1], [], []>} : vector<1x9xf32>, vector<9x16xf32>, vector<1x16xf32> -> vector<1x16xf32>
    %481 = tpu.concatenate %464, %480 in 1 : vector<1x16xf32>, vector<1x16xf32> -> vector<1x32xf32>
    %482 = vector.extract_strided_slice %442 {offsets = [1, 0], sizes = [1, 64], strides = [1, 1]} : vector<2x64xf32> to vector<1x64xf32>
    %483 = vector.extract_strided_slice %445 {offsets = [8, 0], sizes = [8, 64], strides = [1, 1]} : vector<16x64xf32> to vector<8x64xf32>
    %484 = tpu.concatenate %482, %483 in 0 : vector<1x64xf32>, vector<8x64xf32> -> vector<9x64xf32>
    %485 = vector.extract_strided_slice %439 {offsets = [1, 0], sizes = [1, 16], strides = [1, 1]} : vector<2x32xf32> to vector<1x16xf32>
    %486 = vector.extract_strided_slice %484 {offsets = [0, 0], sizes = [9, 16], strides = [1, 1]} : vector<9x64xf32> to vector<9x16xf32>
    %487 = vector.extract_strided_slice %484 {offsets = [0, 32], sizes = [9, 16], strides = [1, 1]} : vector<9x64xf32> to vector<9x16xf32>
    %cst_233 = arith.constant dense<0.000000e+00> : vector<1x9xf32>
    %488 = tpu.matmul %485, %486, %cst_233 {dimension_numbers = #tpu.dot_dimension_numbers<[1], [1], [0], [0], [0, 0, 1, 0], [], []>} : vector<1x16xf32>, vector<9x16xf32>, vector<1x9xf32> -> vector<1x9xf32>
    %cst_234 = arith.constant 2.500000e-01 : f32
    %489 = vector.broadcast %cst_234 : f32 to vector<1x9xf32>
    %490 = arith.mulf %488, %489 : vector<1x9xf32>
    %cst_235 = arith.constant dense<0xFF800000> : vector<1xf32>
    %491 = vector.multi_reduction <maximumf>, %490, %cst_235 [1] : vector<1x9xf32> to vector<1xf32>
    %492 = vector.shape_cast %491 : vector<1xf32> to vector<1x1xf32>
    %493 = vector.broadcast %492 : vector<1x1xf32> to vector<1x9xf32>
    %494 = arith.subf %490, %493 : vector<1x9xf32>
    %495 = math.exp %494 : vector<1x9xf32>
    %cst_236 = arith.constant dense<0.000000e+00> : vector<1xf32>
    %496 = vector.multi_reduction <add>, %495, %cst_236 [1] : vector<1x9xf32> to vector<1xf32>
    %497 = vector.shape_cast %496 : vector<1xf32> to vector<1x1xf32>
    %498 = vector.broadcast %497 : vector<1x1xf32> to vector<1x9xf32>
    %499 = arith.divf %495, %498 : vector<1x9xf32>
    %cst_237 = arith.constant dense<0.000000e+00> : vector<1x16xf32>
    %500 = tpu.matmul %499, %487, %cst_237 {dimension_numbers = #tpu.dot_dimension_numbers<[1], [0], [0], [1], [0, 0, 1, 1], [], []>} : vector<1x9xf32>, vector<9x16xf32>, vector<1x16xf32> -> vector<1x16xf32>
    %501 = vector.extract_strided_slice %439 {offsets = [1, 16], sizes = [1, 16], strides = [1, 1]} : vector<2x32xf32> to vector<1x16xf32>
    %502 = vector.extract_strided_slice %484 {offsets = [0, 16], sizes = [9, 16], strides = [1, 1]} : vector<9x64xf32> to vector<9x16xf32>
    %503 = vector.extract_strided_slice %484 {offsets = [0, 48], sizes = [9, 16], strides = [1, 1]} : vector<9x64xf32> to vector<9x16xf32>
    %cst_238 = arith.constant dense<0.000000e+00> : vector<1x9xf32>
    %504 = tpu.matmul %501, %502, %cst_238 {dimension_numbers = #tpu.dot_dimension_numbers<[1], [1], [0], [0], [0, 0, 1, 0], [], []>} : vector<1x16xf32>, vector<9x16xf32>, vector<1x9xf32> -> vector<1x9xf32>
    %cst_239 = arith.constant 2.500000e-01 : f32
    %505 = vector.broadcast %cst_239 : f32 to vector<1x9xf32>
    %506 = arith.mulf %504, %505 : vector<1x9xf32>
    %cst_240 = arith.constant dense<0xFF800000> : vector<1xf32>
    %507 = vector.multi_reduction <maximumf>, %506, %cst_240 [1] : vector<1x9xf32> to vector<1xf32>
    %508 = vector.shape_cast %507 : vector<1xf32> to vector<1x1xf32>
    %509 = vector.broadcast %508 : vector<1x1xf32> to vector<1x9xf32>
    %510 = arith.subf %506, %509 : vector<1x9xf32>
    %511 = math.exp %510 : vector<1x9xf32>
    %cst_241 = arith.constant dense<0.000000e+00> : vector<1xf32>
    %512 = vector.multi_reduction <add>, %511, %cst_241 [1] : vector<1x9xf32> to vector<1xf32>
    %513 = vector.shape_cast %512 : vector<1xf32> to vector<1x1xf32>
    %514 = vector.broadcast %513 : vector<1x1xf32> to vector<1x9xf32>
    %515 = arith.divf %511, %514 : vector<1x9xf32>
    %cst_242 = arith.constant dense<0.000000e+00> : vector<1x16xf32>
    %516 = tpu.matmul %515, %503, %cst_242 {dimension_numbers = #tpu.dot_dimension_numbers<[1], [0], [0], [1], [0, 0, 1, 1], [], []>} : vector<1x9xf32>, vector<9x16xf32>, vector<1x16xf32> -> vector<1x16xf32>
    %517 = tpu.concatenate %500, %516 in 1 : vector<1x16xf32>, vector<1x16xf32> -> vector<1x32xf32>
    %518 = tpu.concatenate %481, %517 in 0 : vector<1x32xf32>, vector<1x32xf32> -> vector<2x32xf32>
    %c1_243 = arith.constant 1 : index
    %c0_244 = arith.constant 0 : index
    %c0_245 = arith.constant 0 : index
    %519 = vector.load %arg19[%c1_243, %c0_244, %c0_245] : memref<2x32x32xf32, #tpu.memory_space<vmem>>, vector<1x32x32xf32>
    %520 = vector.shape_cast %519 : vector<1x32x32xf32> to vector<32x32xf32>
    %cst_246 = arith.constant dense<0.000000e+00> : vector<2x32xf32>
    %521 = tpu.matmul %518, %520, %cst_246 {dimension_numbers = #tpu.dot_dimension_numbers<[1], [0], [0], [1], [0, 0, 1, 1], [], []>} : vector<2x32xf32>, vector<32x32xf32>, vector<2x32xf32> -> vector<2x32xf32>
    %c1_247 = arith.constant 1 : index
    %c0_248 = arith.constant 0 : index
    %c0_249 = arith.constant 0 : index
    %522 = vector.load %arg20[%c1_247, %c0_248, %c0_249] : memref<2x1x32xf32, #tpu.memory_space<vmem>>, vector<1x1x32xf32>
    %523 = vector.shape_cast %522 : vector<1x1x32xf32> to vector<1x32xf32>
    %524 = vector.broadcast %523 : vector<1x32xf32> to vector<2x32xf32>
    %525 = arith.addf %521, %524 : vector<2x32xf32>
    %c1_250 = arith.constant 1 : index
    %c0_251 = arith.constant 0 : index
    %c0_252 = arith.constant 0 : index
    %526 = vector.load %arg21[%c1_250, %c0_251, %c0_252] : memref<2x32x64xf32, #tpu.memory_space<vmem>>, vector<1x32x64xf32>
    %527 = vector.shape_cast %526 : vector<1x32x64xf32> to vector<32x64xf32>
    %cst_253 = arith.constant dense<0.000000e+00> : vector<2x64xf32>
    %528 = tpu.matmul %525, %527, %cst_253 {dimension_numbers = #tpu.dot_dimension_numbers<[1], [0], [0], [1], [0, 0, 1, 1], [], []>} : vector<2x32xf32>, vector<32x64xf32>, vector<2x64xf32> -> vector<2x64xf32>
    %c1_254 = arith.constant 1 : index
    %c0_255 = arith.constant 0 : index
    %c0_256 = arith.constant 0 : index
    %529 = vector.load %arg22[%c1_254, %c0_255, %c0_256] : memref<2x1x64xf32, #tpu.memory_space<vmem>>, vector<1x1x64xf32>
    %530 = vector.shape_cast %529 : vector<1x1x64xf32> to vector<1x64xf32>
    %531 = vector.broadcast %530 : vector<1x64xf32> to vector<2x64xf32>
    %532 = arith.addf %528, %531 : vector<2x64xf32>
    %533 = arith.addf %273, %532 : vector<2x64xf32>
    %534 = vector.extract_strided_slice %403 {offsets = [0, 0], sizes = [1, 32], strides = [1, 1]} : vector<2x32xf32> to vector<1x32xf32>
    %535 = vector.extract_strided_slice %0 {offsets = [1, 0], sizes = [8, 32], strides = [1, 1]} : vector<18x32xf32> to vector<8x32xf32>
    %536 = tpu.concatenate %534, %535 in 0 : vector<1x32xf32>, vector<8x32xf32> -> vector<9x32xf32>
    %537 = vector.extract_strided_slice %403 {offsets = [1, 0], sizes = [1, 32], strides = [1, 1]} : vector<2x32xf32> to vector<1x32xf32>
    %538 = vector.extract_strided_slice %0 {offsets = [10, 0], sizes = [8, 32], strides = [1, 1]} : vector<18x32xf32> to vector<8x32xf32>
    %539 = tpu.concatenate %537, %538 in 0 : vector<1x32xf32>, vector<8x32xf32> -> vector<9x32xf32>
    %540 = tpu.concatenate %536, %539 in 0 : vector<9x32xf32>, vector<9x32xf32> -> vector<18x32xf32>
    %541 = vector.extract_strided_slice %533 {offsets = [0, 0], sizes = [1, 64], strides = [1, 1]} : vector<2x64xf32> to vector<1x64xf32>
    %542 = vector.extract_strided_slice %1 {offsets = [1, 0], sizes = [8, 64], strides = [1, 1]} : vector<18x64xf32> to vector<8x64xf32>
    %543 = tpu.concatenate %541, %542 in 0 : vector<1x64xf32>, vector<8x64xf32> -> vector<9x64xf32>
    %544 = vector.extract_strided_slice %533 {offsets = [1, 0], sizes = [1, 64], strides = [1, 1]} : vector<2x64xf32> to vector<1x64xf32>
    %545 = vector.extract_strided_slice %1 {offsets = [10, 0], sizes = [8, 64], strides = [1, 1]} : vector<18x64xf32> to vector<8x64xf32>
    %546 = tpu.concatenate %544, %545 in 0 : vector<1x64xf32>, vector<8x64xf32> -> vector<9x64xf32>
    %547 = tpu.concatenate %543, %546 in 0 : vector<9x64xf32>, vector<9x64xf32> -> vector<18x64xf32>
    %c0_257 = arith.constant 0 : index
    %c0_258 = arith.constant 0 : index
    %548 = vector.load %arg23[%c0_257, %c0_258] : memref<18x32xf32, #tpu.memory_space<vmem>>, vector<18x32xf32>
    tpu.vector_store %arg23[%c0_257, %c0_258], %540 {strides = array<i32>} : memref<18x32xf32, #tpu.memory_space<vmem>>, vector<18x32xf32>,
    %c0_259 = arith.constant 0 : index
    %c0_260 = arith.constant 0 : index
    %549 = vector.load %arg24[%c0_259, %c0_260] : memref<18x64xf32, #tpu.memory_space<vmem>>, vector<18x64xf32>
    tpu.vector_store %arg24[%c0_259, %c0_260], %547 {strides = array<i32>} : memref<18x64xf32, #tpu.memory_space<vmem>>, vector<18x64xf32>,
    return
  }
  func.func @transform_0(%arg0: i32) -> (i32, i32) {
    %c0_i32 = arith.constant 0 : i32
    %c0_i32_0 = arith.constant 0 : i32
    %c0_i32_1 = arith.constant 0 : i32
    return %c0_i32, %c0_i32_0 : i32, i32
  }
  func.func @transform_1(%arg0: i32) -> (i32, i32) {
    %c0_i32 = arith.constant 0 : i32
    %c0_i32_0 = arith.constant 0 : i32
    %c0_i32_1 = arith.constant 0 : i32
    return %c0_i32, %c0_i32_0 : i32, i32
  }
  func.func @transform_2(%arg0: i32) -> (i32, i32, i32) {
    %c0_i32 = arith.constant 0 : i32
    %c0_i32_0 = arith.constant 0 : i32
    %c0_i32_1 = arith.constant 0 : i32
    %c0_i32_2 = arith.constant 0 : i32
    return %c0_i32, %c0_i32_0, %c0_i32_1 : i32, i32, i32
  }
  func.func @transform_3(%arg0: i32) -> (i32, i32, i32) {
    %c0_i32 = arith.constant 0 : i32
    %c0_i32_0 = arith.constant 0 : i32
    %c0_i32_1 = arith.constant 0 : i32
    %c0_i32_2 = arith.constant 0 : i32
    return %c0_i32, %c0_i32_0, %c0_i32_1 : i32, i32, i32
  }
  func.func @transform_4(%arg0: i32) -> (i32, i32, i32) {
    %c0_i32 = arith.constant 0 : i32
    %c0_i32_0 = arith.constant 0 : i32
    %c0_i32_1 = arith.constant 0 : i32
    %c0_i32_2 = arith.constant 0 : i32
    return %c0_i32, %c0_i32_0, %c0_i32_1 : i32, i32, i32
  }
  func.func @transform_5(%arg0: i32) -> (i32, i32, i32) {
    %c0_i32 = arith.constant 0 : i32
    %c0_i32_0 = arith.constant 0 : i32
    %c0_i32_1 = arith.constant 0 : i32
    %c0_i32_2 = arith.constant 0 : i32
    return %c0_i32, %c0_i32_0, %c0_i32_1 : i32, i32, i32
  }
  func.func @transform_6(%arg0: i32) -> (i32, i32, i32) {
    %c0_i32 = arith.constant 0 : i32
    %c0_i32_0 = arith.constant 0 : i32
    %c0_i32_1 = arith.constant 0 : i32
    %c0_i32_2 = arith.constant 0 : i32
    return %c0_i32, %c0_i32_0, %c0_i32_1 : i32, i32, i32
  }
  func.func @transform_7(%arg0: i32) -> (i32, i32, i32) {
    %c0_i32 = arith.constant 0 : i32
    %c0_i32_0 = arith.constant 0 : i32
    %c0_i32_1 = arith.constant 0 : i32
    %c0_i32_2 = arith.constant 0 : i32
    return %c0_i32, %c0_i32_0, %c0_i32_1 : i32, i32, i32
  }
  func.func @transform_8(%arg0: i32) -> (i32, i32, i32) {
    %c0_i32 = arith.constant 0 : i32
    %c0_i32_0 = arith.constant 0 : i32
    %c0_i32_1 = arith.constant 0 : i32
    %c0_i32_2 = arith.constant 0 : i32
    return %c0_i32, %c0_i32_0, %c0_i32_1 : i32, i32, i32
  }
  func.func @transform_9(%arg0: i32) -> (i32, i32, i32) {
    %c0_i32 = arith.constant 0 : i32
    %c0_i32_0 = arith.constant 0 : i32
    %c0_i32_1 = arith.constant 0 : i32
    %c0_i32_2 = arith.constant 0 : i32
    return %c0_i32, %c0_i32_0, %c0_i32_1 : i32, i32, i32
  }
  func.func @transform_10(%arg0: i32) -> (i32, i32, i32) {
    %c0_i32 = arith.constant 0 : i32
    %c0_i32_0 = arith.constant 0 : i32
    %c0_i32_1 = arith.constant 0 : i32
    %c0_i32_2 = arith.constant 0 : i32
    return %c0_i32, %c0_i32_0, %c0_i32_1 : i32, i32, i32
  }
  func.func @transform_11(%arg0: i32) -> (i32, i32, i32) {
    %c0_i32 = arith.constant 0 : i32
    %c0_i32_0 = arith.constant 0 : i32
    %c0_i32_1 = arith.constant 0 : i32
    %c0_i32_2 = arith.constant 0 : i32
    return %c0_i32, %c0_i32_0, %c0_i32_1 : i32, i32, i32
  }
  func.func @transform_12(%arg0: i32) -> (i32, i32, i32) {
    %c0_i32 = arith.constant 0 : i32
    %c0_i32_0 = arith.constant 0 : i32
    %c0_i32_1 = arith.constant 0 : i32
    %c0_i32_2 = arith.constant 0 : i32
    return %c0_i32, %c0_i32_0, %c0_i32_1 : i32, i32, i32
  }
  func.func @transform_13(%arg0: i32) -> (i32, i32, i32) {
    %c0_i32 = arith.constant 0 : i32
    %c0_i32_0 = arith.constant 0 : i32
    %c0_i32_1 = arith.constant 0 : i32
    %c0_i32_2 = arith.constant 0 : i32
    return %c0_i32, %c0_i32_0, %c0_i32_1 : i32, i32, i32
  }
  func.func @transform_14(%arg0: i32) -> (i32, i32, i32) {
    %c0_i32 = arith.constant 0 : i32
    %c0_i32_0 = arith.constant 0 : i32
    %c0_i32_1 = arith.constant 0 : i32
    %c0_i32_2 = arith.constant 0 : i32
    return %c0_i32, %c0_i32_0, %c0_i32_1 : i32, i32, i32
  }
  func.func @transform_15(%arg0: i32) -> (i32, i32, i32) {
    %c0_i32 = arith.constant 0 : i32
    %c0_i32_0 = arith.constant 0 : i32
    %c0_i32_1 = arith.constant 0 : i32
    %c0_i32_2 = arith.constant 0 : i32
    return %c0_i32, %c0_i32_0, %c0_i32_1 : i32, i32, i32
  }
  func.func @transform_16(%arg0: i32) -> (i32, i32, i32) {
    %c0_i32 = arith.constant 0 : i32
    %c0_i32_0 = arith.constant 0 : i32
    %c0_i32_1 = arith.constant 0 : i32
    %c0_i32_2 = arith.constant 0 : i32
    return %c0_i32, %c0_i32_0, %c0_i32_1 : i32, i32, i32
  }
  func.func @transform_17(%arg0: i32) -> (i32, i32, i32) {
    %c0_i32 = arith.constant 0 : i32
    %c0_i32_0 = arith.constant 0 : i32
    %c0_i32_1 = arith.constant 0 : i32
    %c0_i32_2 = arith.constant 0 : i32
    return %c0_i32, %c0_i32_0, %c0_i32_1 : i32, i32, i32
  }
  func.func @transform_18(%arg0: i32) -> (i32, i32, i32) {
    %c0_i32 = arith.constant 0 : i32
    %c0_i32_0 = arith.constant 0 : i32
    %c0_i32_1 = arith.constant 0 : i32
    %c0_i32_2 = arith.constant 0 : i32
    return %c0_i32, %c0_i32_0, %c0_i32_1 : i32, i32, i32
  }
  func.func @transform_19(%arg0: i32) -> (i32, i32, i32) {
    %c0_i32 = arith.constant 0 : i32
    %c0_i32_0 = arith.constant 0 : i32
    %c0_i32_1 = arith.constant 0 : i32
    %c0_i32_2 = arith.constant 0 : i32
    return %c0_i32, %c0_i32_0, %c0_i32_1 : i32, i32, i32
  }
  func.func @transform_20(%arg0: i32) -> (i32, i32, i32) {
    %c0_i32 = arith.constant 0 : i32
    %c0_i32_0 = arith.constant 0 : i32
    %c0_i32_1 = arith.constant 0 : i32
    %c0_i32_2 = arith.constant 0 : i32
    return %c0_i32, %c0_i32_0, %c0_i32_1 : i32, i32, i32
  }
  func.func @transform_21(%arg0: i32) -> (i32, i32, i32) {
    %c0_i32 = arith.constant 0 : i32
    %c0_i32_0 = arith.constant 0 : i32
    %c0_i32_1 = arith.constant 0 : i32
    %c0_i32_2 = arith.constant 0 : i32
    return %c0_i32, %c0_i32_0, %c0_i32_1 : i32, i32, i32
  }
  func.func @transform_22(%arg0: i32) -> (i32, i32) {
    %c0_i32 = arith.constant 0 : i32
    %c0_i32_0 = arith.constant 0 : i32
    %c0_i32_1 = arith.constant 0 : i32
    return %c0_i32, %c0_i32_0 : i32, i32
  }
  func.func @transform_23(%arg0: i32) -> (i32, i32) {
    %c0_i32 = arith.constant 0 : i32
    %c0_i32_0 = arith.constant 0 : i32
    %c0_i32_1 = arith.constant 0 : i32
    return %c0_i32, %c0_i32_0 : i32, i32
  }
}

</mosaic_0001>

<llo_original>
// kernel: multiscale_encoder_fwd.3
$region0: #{multiscale_encoder_fwd.3}
  #allocation0 [shape = 'u32[]', space=smem, size = 0x4, offset = 0x4, fixed_abs, tag = 'smem constant byte address 0x4 - core index']
  #allocation1 [shape = 'u32[72,128]{1,0:T(1,128)}', space=vmem, size = 0x9000, scoped, tag = 'internal scratch']
  %s0 = inlined_call_operand.vmem [shape: f32[18,32], index: 0, kind: input, shape index: {}]
  %s1 = inlined_call_operand.vmem [shape: f32[2,1,32], index: 1, kind: input, shape index: {}, may-alias: {1,6}]
  %s2 = inlined_call_operand.vmem [shape: f32[2,1,32], index: 2, kind: input, shape index: {}, may-alias: {2,5,7,11}]
  %s3 = inlined_call_operand.hbm [shape: f32[2,32,96], index: 3, kind: input, shape index: {}]
  %s4 = inlined_call_operand.hbm [shape: f32[2,32,32], index: 4, kind: input, shape index: {}]
  %s5 = inlined_call_operand.vmem [shape: f32[2,1,32], index: 5, kind: input, shape index: {}, may-alias: {2,5,7,11}]
  %s6 = inlined_call_operand.vmem [shape: f32[2,1,32], index: 6, kind: input, shape index: {}, may-alias: {1,6}]
  %s7 = inlined_call_operand.vmem [shape: f32[2,1,32], index: 7, kind: input, shape index: {}, may-alias: {2,5,7,11}]
  %s8 = inlined_call_operand.hbm [shape: f32[2,32,64], index: 8, kind: input, shape index: {}]
  %s9 = inlined_call_operand.vmem [shape: f32[2,1,64], index: 9, kind: input, shape index: {}]
  %s10 = inlined_call_operand.hbm [shape: f32[2,64,32], index: 10, kind: input, shape index: {}]
  %s11 = inlined_call_operand.vmem [shape: f32[2,1,32], index: 11, kind: input, shape index: {}, may-alias: {2,5,7,11}]
  %s12 = inlined_call_operand.vmem [shape: f32[1,32], index: 12, kind: input, shape index: {}]
  %s13 = inlined_call_operand.vmem [shape: f32[1,32], index: 13, kind: input, shape index: {}]
  %s14 = inlined_call_operand.vmem [shape: f32[18,32], index: 14, kind: output, shape index: {}]
  %s15 = sld [smem:[#allocation0]]
  $region82: #{multiscale_encoder_fwd.3} parent=0
    _
  %s17 = ssub.s32 1, %s15
  %s18 = scalar_select 0, %s17, %s15
  $region1: #{multiscale_encoder_fwd.3} parent=0
    #allocation2 [shape = 'u8[32768]{0}', space=vmem, size = 0x8000, scoped, tag = 'input window, operand 3, single buffered']
    #allocation3 [shape = 's32[1]{0}', space=sflag, size = 0x4, scoped, tag = 'scoped memory for multiscale_encoder_fwd.3']
    #allocation4 [shape = 'u8[32768]{0}', space=vmem, size = 0x8000, scoped, tag = 'input window, operand 4, single buffered']
    #allocation5 [shape = 's32[1]{0}', space=sflag, size = 0x4, scoped, tag = 'scoped memory for multiscale_encoder_fwd.3']
    #allocation6 [shape = 'u8[32768]{0}', space=vmem, size = 0x8000, scoped, tag = 'input window, operand 8, single buffered']
    #allocation7 [shape = 'u8[65536]{0}', space=vmem, size = 0x10000, scoped, tag = 'input window, operand 10, single buffered']
    #allocation8 [shape = 's32[1]{0}', space=sflag, size = 0x4, scoped, tag = 'scoped memory for multiscale_encoder_fwd.3']
    %19 = vsyncpa [#allocation3], 0
    %20 = vsyncpa [#allocation5], 0
    %21 = vsyncpa [#allocation8], 0
    // Predicated region
    $region2: #{multiscale_encoder_fwd.3} parent=1 // pred_check
      _
    $region3: #{multiscale_encoder_fwd.3} parent=1 // pred_check_branch
      %23 = sbr.rel (0) target = $region5
    $region4: #{multiscale_encoder_fwd.3} parent=1 // pred_region
      _
    $region5: #{multiscale_encoder_fwd.3} parent=1 // pred_fallthru
      _
    // Predicated region
    $region6: #{multiscale_encoder_fwd.3} parent=1 // pred_check
      _
    $region7: #{multiscale_encoder_fwd.3} parent=1 // pred_check_branch
      %25 = sbr.rel (0) target = $region9
    $region8: #{multiscale_encoder_fwd.3} parent=1 // pred_region
      _
    $region9: #{multiscale_encoder_fwd.3} parent=1 // pred_fallthru
      _
    // Predicated region
    $region10: #{multiscale_encoder_fwd.3} parent=1 // pred_check
      _
    $region11: #{multiscale_encoder_fwd.3} parent=1 // pred_check_branch
      %27 = sbr.rel (0) target = $region13
    $region12: #{multiscale_encoder_fwd.3} parent=1 // pred_region
      _
    $region13: #{multiscale_encoder_fwd.3} parent=1 // pred_fallthru
      _
    // Predicated region
    $region14: #{multiscale_encoder_fwd.3} parent=1 // pred_check
      _
    $region15: #{multiscale_encoder_fwd.3} parent=1 // pred_check_branch
      %29 = sbr.rel (0) target = $region17
    $region16: #{multiscale_encoder_fwd.3} parent=1 // pred_region
      %31 = vsyncadd [#allocation3], 0
      %s32 = sshll.u32 %s3, 4
      %s33 = int_to_ptr.hbm [resolvable:$true] %s32
      %s34 = sshll.u32 [#allocation2], 4
      %s35 = int_to_ptr.vmem [resolvable:$true] %s34
      %40 = dma.hbm_to_vmem [thread:$0]  %s33, 1024, %s35, [#allocation3], 128, 128, 8
    $region17: #{multiscale_encoder_fwd.3} parent=1 // pred_fallthru
      _
    // Predicated region
    $region18: #{multiscale_encoder_fwd.3} parent=1 // pred_check
      _
    $region19: #{multiscale_encoder_fwd.3} parent=1 // pred_check_branch
      %42 = sbr.rel (0) target = $region21
    $region20: #{multiscale_encoder_fwd.3} parent=1 // pred_region
      %44 = vsyncadd [#allocation5], 0
      %s45 = sshll.u32 %s4, 4
      %s46 = int_to_ptr.hbm [resolvable:$true] %s45
      %s47 = sshll.u32 [#allocation4], 4
      %s48 = int_to_ptr.vmem [resolvable:$true] %s47
      %53 = dma.hbm_to_vmem [thread:$0]  %s46, 1024, %s48, [#allocation5], 128, 128, 8
    $region21: #{multiscale_encoder_fwd.3} parent=1 // pred_fallthru
      _
    // Predicated region
    $region22: #{multiscale_encoder_fwd.3} parent=1 // pred_check
      _
    $region23: #{multiscale_encoder_fwd.3} parent=1 // pred_check_branch
      %55 = sbr.rel (0) target = $region25
    $region24: #{multiscale_encoder_fwd.3} parent=1 // pred_region
      _
    $region25: #{multiscale_encoder_fwd.3} parent=1 // pred_fallthru
      _
    // Predicated region
    $region26: #{multiscale_encoder_fwd.3} parent=1 // pred_check
      _
    $region27: #{multiscale_encoder_fwd.3} parent=1 // pred_check_branch
      %57 = sbr.rel (0) target = $region29
    $region28: #{multiscale_encoder_fwd.3} parent=1 // pred_region
      _
    $region29: #{multiscale_encoder_fwd.3} parent=1 // pred_fallthru
      _
    // Predicated region
    $region30: #{multiscale_encoder_fwd.3} parent=1 // pred_check
      _
    $region31: #{multiscale_encoder_fwd.3} parent=1 // pred_check_branch
      %59 = sbr.rel (0) target = $region33
    $region32: #{multiscale_encoder_fwd.3} parent=1 // pred_region
      _
    $region33: #{multiscale_encoder_fwd.3} parent=1 // pred_fallthru
      _
    // Predicated region
    $region34: #{multiscale_encoder_fwd.3} parent=1 // pred_check
      _
    $region35: #{multiscale_encoder_fwd.3} parent=1 // pred_check_branch
      %61 = sbr.rel (0) target = $region37
    $region36: #{multiscale_encoder_fwd.3} parent=1 // pred_region
      %63 = vsyncadd [#allocation5], 0
      %s64 = sshll.u32 %s8, 4
      %s65 = int_to_ptr.hbm [resolvable:$true] %s64
      %s66 = sshll.u32 [#allocation6], 4
      %s67 = int_to_ptr.vmem [resolvable:$true] %s66
      %72 = dma.hbm_to_vmem [thread:$0]  %s65, 1024, %s67, [#allocation5], 128, 128, 8
    $region37: #{multiscale_encoder_fwd.3} parent=1 // pred_fallthru
      _
    // Predicated region
    $region38: #{multiscale_encoder_fwd.3} parent=1 // pred_check
      _
    $region39: #{multiscale_encoder_fwd.3} parent=1 // pred_check_branch
      %74 = sbr.rel (0) target = $region41
    $region40: #{multiscale_encoder_fwd.3} parent=1 // pred_region
      _
    $region41: #{multiscale_encoder_fwd.3} parent=1 // pred_fallthru
      _
    // Predicated region
    $region42: #{multiscale_encoder_fwd.3} parent=1 // pred_check
      _
    $region43: #{multiscale_encoder_fwd.3} parent=1 // pred_check_branch
      %76 = sbr.rel (0) target = $region45
    $region44: #{multiscale_encoder_fwd.3} parent=1 // pred_region
      %78 = vsyncadd [#allocation8], 0
      %s79 = sshll.u32 %s10, 4
      %s80 = int_to_ptr.hbm [resolvable:$true] %s79
      %s81 = sshll.u32 [#allocation7], 4
      %s82 = int_to_ptr.vmem [resolvable:$true] %s81
      %87 = dma.hbm_to_vmem [thread:$0]  %s80, 2048, %s82, [#allocation8], 128, 128, 8
    $region45: #{multiscale_encoder_fwd.3} parent=1 // pred_fallthru
      _
    // Predicated region
    $region46: #{multiscale_encoder_fwd.3} parent=1 // pred_check
      _
    $region47: #{multiscale_encoder_fwd.3} parent=1 // pred_check_branch
      %89 = sbr.rel (0) target = $region49
    $region48: #{multiscale_encoder_fwd.3} parent=1 // pred_region
      _
    $region49: #{multiscale_encoder_fwd.3} parent=1 // pred_fallthru
      _
    // Predicated region
    $region50: #{multiscale_encoder_fwd.3} parent=1 // pred_check
      _
    $region51: #{multiscale_encoder_fwd.3} parent=1 // pred_check_branch
      %91 = sbr.rel (0) target = $region53
    $region52: #{multiscale_encoder_fwd.3} parent=1 // pred_region
      _
    $region53: #{multiscale_encoder_fwd.3} parent=1 // pred_fallthru
      _
    // Predicated region
    $region54: #{multiscale_encoder_fwd.3} parent=1 // pred_check
      _
    $region55: #{multiscale_encoder_fwd.3} parent=1 // pred_check_branch
      %93 = sbr.rel (0) target = $region57
    $region56: #{multiscale_encoder_fwd.3} parent=1 // pred_region
      _
    $region57: #{multiscale_encoder_fwd.3} parent=1 // pred_fallthru
      _
    // Predicated region
    $region58: #{multiscale_encoder_fwd.3} parent=1 // pred_check
      _
    $region59: #{multiscale_encoder_fwd.3} parent=1 // pred_check_branch
      %95 = sbr.rel (0) target = $region61
    $region60: #{multiscale_encoder_fwd.3} parent=1 // pred_region
      %97 = dma.done [#allocation3], 1024
    $region61: #{multiscale_encoder_fwd.3} parent=1 // pred_fallthru
      _
    // Predicated region
    $region62: #{multiscale_encoder_fwd.3} parent=1 // pred_check
      _
    $region63: #{multiscale_encoder_fwd.3} parent=1 // pred_check_branch
      %99 = sbr.rel (0) target = $region65
    $region64: #{multiscale_encoder_fwd.3} parent=1 // pred_region
      %101 = dma.done [#allocation5], 1024
    $region65: #{multiscale_encoder_fwd.3} parent=1 // pred_fallthru
      _
    // Predicated region
    $region66: #{multiscale_encoder_fwd.3} parent=1 // pred_check
      _
    $region67: #{multiscale_encoder_fwd.3} parent=1 // pred_check_branch
      %103 = sbr.rel (0) target = $region69
    $region68: #{multiscale_encoder_fwd.3} parent=1 // pred_region
      %105 = dma.done [#allocation5], 1024
    $region69: #{multiscale_encoder_fwd.3} parent=1 // pred_fallthru
      _
    // Predicated region
    $region70: #{multiscale_encoder_fwd.3} parent=1 // pred_check
      _
    $region71: #{multiscale_encoder_fwd.3} parent=1 // pred_check_branch
      %107 = sbr.rel (0) target = $region73
    $region72: #{multiscale_encoder_fwd.3} parent=1 // pred_region
      %109 = dma.done [#allocation8], 2048
    $region73: #{multiscale_encoder_fwd.3} parent=1 // pred_fallthru
      _
    %v110 = vld [vmem:[%s0] sm:$0xff]
    %v111 = vld [vmem:[%s0 + $0x8] sm:$0xff]
    %v112 = vld [vmem:[%s0 + $0x10] sm:$0x3]
    %v113 = vld [vmem:[%s1] sm:$0x1]
    %v114 = vld [vmem:[%s2] sm:$0x1]
    %vm115 = vcmask 261120
    %v116 = vsel %vm115, %v110, 0.0
    %117 = vadd.xlane.f32.xlu0 %v116
    %v118 = vpop.xlane.xlu0 %117
    %v119 = vsel %vm115, %v111, 0.0
    %120 = vadd.xlane.f32.xlu0 %v119
    %v121 = vpop.xlane.xlu0 %120
    %vm122 = vcmask 254976
    %v123 = vsel %vm122, %v112, 0.0
    %124 = vadd.xlane.f32.xlu0 %v123
    %v125 = vpop.xlane.xlu0 %124
    %v126 = vrcp.pop 32.0
    %v127 = vmul.f32 32.0, %v126
    %v128 = vsub.f32 1.0, %v127
    %v129 = vmul.f32 %v126, %v128
    %v130 = vadd.f32 %v126, %v129
    %vm131 = vweird.f32 %v126
    %v132 = vsel %vm131, %v126, %v130
    %v133 = vmul.f32 %v118, %v132
    %v134 = vmul.f32 %v121, %v132
    %v135 = vmul.f32 %v125, %v132
    %v136 = vsub.f32 %v110, %v133
    %v137 = vsub.f32 %v111, %v134
    %v138 = vsub.f32 %v112, %v135
    %v139 = vmul.f32 %v136, %v136
    %v140 = vmul.f32 %v137, %v137
    %v141 = vmul.f32 %v138, %v138
    %v142 = vsel %vm115, %v139, 0.0
    %143 = vadd.xlane.f32.xlu0 %v142
    %v144 = vpop.xlane.xlu0 %143
    %v145 = vsel %vm115, %v140, 0.0
    %146 = vadd.xlane.f32.xlu0 %v145
    %v147 = vpop.xlane.xlu0 %146
    %v148 = vsel %vm122, %v141, 0.0
    %149 = vadd.xlane.f32.xlu0 %v148
    %v150 = vpop.xlane.xlu0 %149
    %v151 = vmul.f32 %v144, %v132
    %v152 = vmul.f32 %v147, %v132
    %v153 = vmul.f32 %v150, %v132
    %v154 = vadd.f32 %v151, 1e-05
    %v155 = vadd.f32 %v152, 1e-05
    %v156 = vadd.f32 %v153, 1e-05
    %v157 = vrsqrt.pop %v154
    %v158 = vmul.f32 %v157, %v154
    %v159 = vmul.f32 %v158, %v157
    %v160 = vmul.f32 0.5, %v159
    %v161 = vsub.f32 1.5, %v160
    %v162 = vmul.f32 %v157, %v161
    %vm163 = vweird.f32 %v154
    %vm164 = vweird.f32 %v157
    %vm165 = vmor %vm163, %vm164
    %v166 = vsel %vm165, %v157, %v162
    %v167 = vrsqrt.pop %v155
    %v168 = vmul.f32 %v167, %v155
    %v169 = vmul.f32 %v168, %v167
    %v170 = vmul.f32 0.5, %v169
    %v171 = vsub.f32 1.5, %v170
    %v172 = vmul.f32 %v167, %v171
    %vm173 = vweird.f32 %v155
    %vm174 = vweird.f32 %v167
    %vm175 = vmor %vm173, %vm174
    %v176 = vsel %vm175, %v167, %v172
    %v177 = vrsqrt.pop %v156
    %v178 = vmul.f32 %v177, %v156
    %v179 = vmul.f32 %v178, %v177
    %v180 = vmul.f32 0.5, %v179
    %v181 = vsub.f32 1.5, %v180
    %v182 = vmul.f32 %v177, %v181
    %vm183 = vweird.f32 %v156
    %vm184 = vweird.f32 %v177
    %vm185 = vmor %vm183, %vm184
    %v186 = vsel %vm185, %v177, %v182
    %v187 = vmul.f32 %v136, %v166
    %v188 = vmul.f32 %v137, %v176
    %v189 = vmul.f32 %v138, %v186
    %v191 = vperm.slane %v113, 0
    %v193 = vmul.f32 %v187, %v191
    %v194 = vmul.f32 %v188, %v191
    %v195 = vmul.f32 %v189, %v191
    %v197 = vperm.slane %v114, 0
    %v199 = vadd.f32 %v193, %v197
    %v200 = vadd.f32 %v194, %v197
    %v201 = vadd.f32 %v195, %v197
    %v202 = vld [vmem:[#allocation2] sm:$0xff]
    %v203 = vld [vmem:[#allocation2 + $0x8] sm:$0xff]
    %v204 = vld [vmem:[#allocation2 + $0x10] sm:$0xff]
    %v205 = vld [vmem:[#allocation2 + $0x18] sm:$0xff]
    %v207 = vsel %vm115, %v199, 0
    %v210 = vsel %vm115, %v200, 0
    %v213 = vsel %vm115, %v201, 0
    %215 = vmatpush.msra.mxu0 0.0
    %216 = vmatpush.msra.mxu0 0.0
    %217 = vmatpush.msra.mxu0 0.0
    %218 = vmatpush.msra.mxu0 0.0
    %219 = vmatpush.msra.mxu0 0.0
    %220 = vmatpush.msra.mxu0 0.0
    %221 = vmatpush.msra.mxu0 0.0
    %222 = vmatpush.msra.mxu0 0.0
    %223 = vmatpush.msra.mxu0 0.0
    %224 = vmatpush.msra.mxu0 0.0
    %225 = vmatpush.msra.mxu0 0.0
    %226 = vmatpush.msra.mxu0 0.0
    %227 = vmatpush.msra.mxu0 %v205
    %228 = vmatpush.msra.mxu0 %v204
    %229 = vmatpush.msra.mxu0 %v203
    %230 = vmatpush.msra.mxu0 %v202
    %231 = vmatmul.f32.gmra.mxu0 %v207
    %v232 = vpop.f32.mrf.mxu0
    %v233 = vadd.f32 0.0, %v232
    %234 = vmatmul.f32.gmra.mxu0 %v210
    %v235 = vpop.f32.mrf.mxu0
    %v236 = vadd.f32 0.0, %v235
    %237 = vmatmul.f32.gmra.mxu0 %v213
    %v238 = vpop.f32.mrf.mxu0
    %v239 = vadd.f32 0.0, %v238
    %240 = vdwg.mxu0
    %243 = vrot.lane.b32.xlu0 %v233, 96
    %v244 = vpop.permute.xlu0 %243
    %245 = vrot.lane.b32.xlu0 %v236, 96
    %v246 = vpop.permute.xlu0 %245
    %vm247 = vcmask 130048
    %v248 = vsel %vm247, %v233, 0
    %v250 = vsel %vm247, %v236, 0
    %v252 = vsel %vm247, %v244, 0
    %v254 = vsel %vm247, %v246, 0
    %256 = vmatpush.xpose.msra.mxu0 0.0
    %257 = vmatpush.xpose.msra.mxu0 0.0
    %258 = vmatpush.xpose.msra.mxu0 0.0
    %259 = vmatpush.xpose.msra.mxu0 0.0
    %260 = vmatpush.xpose.msra.mxu0 0.0
    %261 = vmatpush.xpose.msra.mxu0 0.0
    %262 = vmatpush.xpose.msra.mxu0 0.0
    %263 = vmatpush.xpose.msra.mxu0 0.0
    %264 = vmatpush.xpose.msra.mxu0 0.0
    %265 = vmatpush.xpose.msra.mxu0 0.0
    %266 = vmatpush.xpose.msra.mxu0 0.0
    %267 = vmatpush.xpose.msra.mxu0 0.0
    %268 = vmatpush.xpose.msra.mxu0 0.0
    %269 = vmatpush.xpose.msra.mxu0 0.0
    %270 = vmatpush.xpose.msra.mxu0 %v254
    %271 = vmatpush.xpose.msra.mxu0 %v252
    %272 = vmatmul.f32.gmra.mxu0 %v248
    %v273 = vpop.f32.mrf.mxu0
    %v274 = vadd.f32 0.0, %v273
    %275 = vmatmul.f32.gmra.mxu0 %v250
    %v276 = vpop.f32.mrf.mxu0
    %v277 = vadd.f32 0.0, %v276
    %278 = vdwg.mxu0
    %v279 = vmul.f32 %v274, 0.25
    %v280 = vmul.f32 %v277, 0.25
    %vm281 = vcmask 72704
    %v282 = vsel %vm281, %v279, -inf
    %283 = vmax.xlane.f32.xlu0 %v282
    %v284 = vpop.xlane.xlu0 %283
    %vm285 = vcmask 65536
    %v286 = vsel %vm285, %v280, -inf
    %287 = vmax.xlane.f32.xlu0 %v286
    %v288 = vpop.xlane.xlu0 %287
    %v289 = vsub.f32 %v279, %v284
    %v290 = vsub.f32 %v280, %v288
    %v291 = vmul.f32 %v289, 1.442695
    %v292 = vpow.pop %v291
    %v293 = vmul.f32 %v290, 1.442695
    %v294 = vpow.pop %v293
    %v295 = vsel %vm281, %v292, 0.0
    %296 = vadd.xlane.f32.xlu0 %v295
    %v297 = vpop.xlane.xlu0 %296
    %v298 = vsel %vm285, %v294, 0.0
    %299 = vadd.xlane.f32.xlu0 %v298
    %v300 = vpop.xlane.xlu0 %299
    %v301 = vrcp.pop %v297
    %v302 = vmul.f32 %v297, %v301
    %v303 = vsub.f32 1.0, %v302
    %v304 = vmul.f32 %v301, %v303
    %v305 = vadd.f32 %v301, %v304
    %vm306 = vweird.f32 %v297
    %vm307 = vweird.f32 %v301
    %vm308 = vmor %vm306, %vm307
    %v309 = vsel %vm308, %v301, %v305
    %v310 = vand.u32 2147483647, %v297
    %vm311 = vcmp.eq.f32.partialorder %v310, 8.507059e+37
    %v312 = vand.u32 %v297, 2147483648
    %v313 = vor.u32 1.1754944e-38, %v312
    %v314 = vsel %vm311, %v313, %v309
    %v315 = vmul.f32 %v292, %v314
    %v316 = vrcp.pop %v300
    %v317 = vmul.f32 %v300, %v316
    %v318 = vsub.f32 1.0, %v317
    %v319 = vmul.f32 %v316, %v318
    %v320 = vadd.f32 %v316, %v319
    %vm321 = vweird.f32 %v300
    %vm322 = vweird.f32 %v316
    %vm323 = vmor %vm321, %vm322
    %v324 = vsel %vm323, %v316, %v320
    %v325 = vand.u32 2147483647, %v300
    %vm326 = vcmp.eq.f32.partialorder %v325, 8.507059e+37
    %v327 = vand.u32 %v300, 2147483648
    %v328 = vor.u32 1.1754944e-38, %v327
    %v329 = vsel %vm326, %v328, %v324
    %v330 = vmul.f32 %v294, %v329
    %331 = vrot.lane.b32.xlu0 %v233, 64
    %v332 = vpop.permute.xlu0 %331
    %333 = vrot.lane.b32.xlu0 %v236, 64
    %v334 = vpop.permute.xlu0 %333
    %v337 = vsel %vm281, %v315, 0
    %v340 = vsel %vm281, %v330, 0
    %vm342 = vcmask 1040384
    %v343 = vsel %vm342, %v334, 0
    %345 = vmatpush.msra.mxu0 0.0
    %346 = vmatpush.msra.mxu0 0.0
    %347 = vmatpush.msra.mxu0 0.0
    %348 = vmatpush.msra.mxu0 0.0
    %349 = vmatpush.msra.mxu0 0.0
    %350 = vmatpush.msra.mxu0 0.0
    %351 = vmatpush.msra.mxu0 0.0
    %352 = vmatpush.msra.mxu0 0.0
    %353 = vmatpush.msra.mxu0 0.0
    %354 = vmatpush.msra.mxu0 0.0
    %355 = vmatpush.msra.mxu0 0.0
    %356 = vmatpush.msra.mxu0 0.0
    %357 = vmatpush.msra.mxu0 0.0
    %358 = vmatpush.msra.mxu0 0.0
    %359 = vmatpush.msra.mxu0 %v343
    %360 = vmatpush.msra.mxu0 %v332
    %361 = vmatmul.f32.gmra.mxu0 %v337
    %v362 = vpop.f32.mrf.mxu0
    %v363 = vadd.f32 0.0, %v362
    %364 = vmatmul.f32.gmra.mxu0 %v340
    %v365 = vpop.f32.mrf.mxu0
    %v366 = vadd.f32 0.0, %v365
    %367 = vdwg.mxu0
    %368 = vrot.lane.b32.xlu0 %v233, 112
    %v369 = vpop.permute.xlu0 %368
    %370 = vrot.lane.b32.xlu0 %v236, 112
    %v371 = vpop.permute.xlu0 %370
    %372 = vrot.lane.b32.xlu0 %v233, 80
    %v373 = vpop.permute.xlu0 %372
    %374 = vrot.lane.b32.xlu0 %v236, 80
    %v375 = vpop.permute.xlu0 %374
    %v376 = vsel %vm247, %v369, 0
    %v378 = vsel %vm247, %v371, 0
    %v380 = vsel %vm247, %v373, 0
    %v382 = vsel %vm247, %v375, 0
    %384 = vmatpush.xpose.msra.mxu0 0.0
    %385 = vmatpush.xpose.msra.mxu0 0.0
    %386 = vmatpush.xpose.msra.mxu0 0.0
    %387 = vmatpush.xpose.msra.mxu0 0.0
    %388 = vmatpush.xpose.msra.mxu0 0.0
    %389 = vmatpush.xpose.msra.mxu0 0.0
    %390 = vmatpush.xpose.msra.mxu0 0.0
    %391 = vmatpush.xpose.msra.mxu0 0.0
    %392 = vmatpush.xpose.msra.mxu0 0.0
    %393 = vmatpush.xpose.msra.mxu0 0.0
    %394 = vmatpush.xpose.msra.mxu0 0.0
    %395 = vmatpush.xpose.msra.mxu0 0.0
    %396 = vmatpush.xpose.msra.mxu0 0.0
    %397 = vmatpush.xpose.msra.mxu0 0.0
    %398 = vmatpush.xpose.msra.mxu0 %v382
    %399 = vmatpush.xpose.msra.mxu0 %v380
    %400 = vmatmul.f32.gmra.mxu0 %v376
    %v401 = vpop.f32.mrf.mxu0
    %v402 = vadd.f32 0.0, %v401
    %403 = vmatmul.f32.gmra.mxu0 %v378
    %v404 = vpop.f32.mrf.mxu0
    %v405 = vadd.f32 0.0, %v404
    %406 = vdwg.mxu0
    %v407 = vmul.f32 %v402, 0.25
    %v408 = vmul.f32 %v405, 0.25
    %v409 = vsel %vm281, %v407, -inf
    %410 = vmax.xlane.f32.xlu0 %v409
    %v411 = vpop.xlane.xlu0 %410
    %v412 = vsel %vm285, %v408, -inf
    %413 = vmax.xlane.f32.xlu0 %v412
    %v414 = vpop.xlane.xlu0 %413
    %v415 = vsub.f32 %v407, %v411
    %v416 = vsub.f32 %v408, %v414
    %v417 = vmul.f32 %v415, 1.442695
    %v418 = vpow.pop %v417
    %v419 = vmul.f32 %v416, 1.442695
    %v420 = vpow.pop %v419
    %v421 = vsel %vm281, %v418, 0.0
    %422 = vadd.xlane.f32.xlu0 %v421
    %v423 = vpop.xlane.xlu0 %422
    %v424 = vsel %vm285, %v420, 0.0
    %425 = vadd.xlane.f32.xlu0 %v424
    %v426 = vpop.xlane.xlu0 %425
    %v427 = vrcp.pop %v423
    %v428 = vmul.f32 %v423, %v427
    %v429 = vsub.f32 1.0, %v428
    %v430 = vmul.f32 %v427, %v429
    %v431 = vadd.f32 %v427, %v430
    %vm432 = vweird.f32 %v423
    %vm433 = vweird.f32 %v427
    %vm434 = vmor %vm432, %vm433
    %v435 = vsel %vm434, %v427, %v431
    %v436 = vand.u32 2147483647, %v423
    %vm437 = vcmp.eq.f32.partialorder %v436, 8.507059e+37
    %v438 = vand.u32 %v423, 2147483648
    %v439 = vor.u32 1.1754944e-38, %v438
    %v440 = vsel %vm437, %v439, %v435
    %v441 = vmul.f32 %v418, %v440
    %v442 = vrcp.pop %v426
    %v443 = vmul.f32 %v426, %v442
    %v444 = vsub.f32 1.0, %v443
    %v445 = vmul.f32 %v442, %v444
    %v446 = vadd.f32 %v442, %v445
    %vm447 = vweird.f32 %v426
    %vm448 = vweird.f32 %v442
    %vm449 = vmor %vm447, %vm448
    %v450 = vsel %vm449, %v442, %v446
    %v451 = vand.u32 2147483647, %v426
    %vm452 = vcmp.eq.f32.partialorder %v451, 8.507059e+37
    %v453 = vand.u32 %v426, 2147483648
    %v454 = vor.u32 1.1754944e-38, %v453
    %v455 = vsel %vm452, %v454, %v450
    %v456 = vmul.f32 %v420, %v455
    %457 = vrot.lane.b32.xlu0 %v233, 48
    %v458 = vpop.permute.xlu0 %457
    %459 = vrot.lane.b32.xlu0 %v236, 48
    %v460 = vpop.permute.xlu0 %459
    %v463 = vsel %vm281, %v441, 0
    %v466 = vsel %vm281, %v456, 0
    %v468 = vsel %vm342, %v460, 0
    %470 = vmatpush.msra.mxu0 0.0
    %471 = vmatpush.msra.mxu0 0.0
    %472 = vmatpush.msra.mxu0 0.0
    %473 = vmatpush.msra.mxu0 0.0
    %474 = vmatpush.msra.mxu0 0.0
    %475 = vmatpush.msra.mxu0 0.0
    %476 = vmatpush.msra.mxu0 0.0
    %477 = vmatpush.msra.mxu0 0.0
    %478 = vmatpush.msra.mxu0 0.0
    %479 = vmatpush.msra.mxu0 0.0
    %480 = vmatpush.msra.mxu0 0.0
    %481 = vmatpush.msra.mxu0 0.0
    %482 = vmatpush.msra.mxu0 0.0
    %483 = vmatpush.msra.mxu0 0.0
    %484 = vmatpush.msra.mxu0 %v468
    %485 = vmatpush.msra.mxu0 %v458
    %486 = vmatmul.f32.gmra.mxu0 %v463
    %v487 = vpop.f32.mrf.mxu0
    %v488 = vadd.f32 0.0, %v487
    %489 = vmatmul.f32.gmra.mxu0 %v466
    %v490 = vpop.f32.mrf.mxu0
    %v491 = vadd.f32 0.0, %v490
    %492 = vdwg.mxu0
    %495 = vrot.lane.b32.xlu0 %v488, 16
    %v496 = vpop.permute.xlu0 %495
    %497 = vrot.lane.b32.xlu0 %v491, 16
    %v498 = vpop.permute.xlu0 %497
    %v501 = vsel %vm247, %v363, %v496
    %v502 = vsel %vm247, %v366, %v498
    %vm504 = vcmask 1046528
    %v505 = vrot.slane %v236, 1
    %v506 = vrot.slane %v239, 1
    %v507 = vsel %vm504, %v505, %v506
    %508 = vrot.lane.b32.xlu0 %v507, 96
    %v509 = vpop.permute.xlu0 %508
    %510 = vrot.lane.b32.xlu0 %v506, 96
    %v511 = vpop.permute.xlu0 %510
    %v512 = vsel %vm247, %v507, 0
    %v514 = vsel %vm247, %v506, 0
    %v516 = vsel %vm247, %v509, 0
    %v518 = vsel %vm247, %v511, 0
    %520 = vmatpush.xpose.msra.mxu0 0.0
    %521 = vmatpush.xpose.msra.mxu0 0.0
    %522 = vmatpush.xpose.msra.mxu0 0.0
    %523 = vmatpush.xpose.msra.mxu0 0.0
    %524 = vmatpush.xpose.msra.mxu0 0.0
    %525 = vmatpush.xpose.msra.mxu0 0.0
    %526 = vmatpush.xpose.msra.mxu0 0.0
    %527 = vmatpush.xpose.msra.mxu0 0.0
    %528 = vmatpush.xpose.msra.mxu0 0.0
    %529 = vmatpush.xpose.msra.mxu0 0.0
    %530 = vmatpush.xpose.msra.mxu0 0.0
    %531 = vmatpush.xpose.msra.mxu0 0.0
    %532 = vmatpush.xpose.msra.mxu0 0.0
    %533 = vmatpush.xpose.msra.mxu0 0.0
    %534 = vmatpush.xpose.msra.mxu0 %v518
    %535 = vmatpush.xpose.msra.mxu0 %v516
    %536 = vmatmul.f32.gmra.mxu0 %v512
    %v537 = vpop.f32.mrf.mxu0
    %v538 = vadd.f32 0.0, %v537
    %539 = vmatmul.f32.gmra.mxu0 %v514
    %v540 = vpop.f32.mrf.mxu0
    %v541 = vadd.f32 0.0, %v540
    %542 = vdwg.mxu0
    %v543 = vmul.f32 %v538, 0.25
    %v544 = vmul.f32 %v541, 0.25
    %v545 = vsel %vm281, %v543, -inf
    %546 = vmax.xlane.f32.xlu0 %v545
    %v547 = vpop.xlane.xlu0 %546
    %v548 = vsel %vm285, %v544, -inf
    %549 = vmax.xlane.f32.xlu0 %v548
    %v550 = vpop.xlane.xlu0 %549
    %v551 = vsub.f32 %v543, %v547
    %v552 = vsub.f32 %v544, %v550
    %v553 = vmul.f32 %v551, 1.442695
    %v554 = vpow.pop %v553
    %v555 = vmul.f32 %v552, 1.442695
    %v556 = vpow.pop %v555
    %v557 = vsel %vm281, %v554, 0.0
    %558 = vadd.xlane.f32.xlu0 %v557
    %v559 = vpop.xlane.xlu0 %558
    %v560 = vsel %vm285, %v556, 0.0
    %561 = vadd.xlane.f32.xlu0 %v560
    %v562 = vpop.xlane.xlu0 %561
    %v563 = vrcp.pop %v559
    %v564 = vmul.f32 %v559, %v563
    %v565 = vsub.f32 1.0, %v564
    %v566 = vmul.f32 %v563, %v565
    %v567 = vadd.f32 %v563, %v566
    %vm568 = vweird.f32 %v559
    %vm569 = vweird.f32 %v563
    %vm570 = vmor %vm568, %vm569
    %v571 = vsel %vm570, %v563, %v567
    %v572 = vand.u32 2147483647, %v559
    %vm573 = vcmp.eq.f32.partialorder %v572, 8.507059e+37
    %v574 = vand.u32 %v559, 2147483648
    %v575 = vor.u32 1.1754944e-38, %v574
    %v576 = vsel %vm573, %v575, %v571
    %v577 = vmul.f32 %v554, %v576
    %v578 = vrcp.pop %v562
    %v579 = vmul.f32 %v562, %v578
    %v580 = vsub.f32 1.0, %v579
    %v581 = vmul.f32 %v578, %v580
    %v582 = vadd.f32 %v578, %v581
    %vm583 = vweird.f32 %v562
    %vm584 = vweird.f32 %v578
    %vm585 = vmor %vm583, %vm584
    %v586 = vsel %vm585, %v578, %v582
    %v587 = vand.u32 2147483647, %v562
    %vm588 = vcmp.eq.f32.partialorder %v587, 8.507059e+37
    %v589 = vand.u32 %v562, 2147483648
    %v590 = vor.u32 1.1754944e-38, %v589
    %v591 = vsel %vm588, %v590, %v586
    %v592 = vmul.f32 %v556, %v591
    %593 = vrot.lane.b32.xlu0 %v507, 64
    %v594 = vpop.permute.xlu0 %593
    %595 = vrot.lane.b32.xlu0 %v506, 64
    %v596 = vpop.permute.xlu0 %595
    %v599 = vsel %vm281, %v577, 0
    %v602 = vsel %vm281, %v592, 0
    %v604 = vsel %vm342, %v596, 0
    %606 = vmatpush.msra.mxu0 0.0
    %607 = vmatpush.msra.mxu0 0.0
    %608 = vmatpush.msra.mxu0 0.0
    %609 = vmatpush.msra.mxu0 0.0
    %610 = vmatpush.msra.mxu0 0.0
    %611 = vmatpush.msra.mxu0 0.0
    %612 = vmatpush.msra.mxu0 0.0
    %613 = vmatpush.msra.mxu0 0.0
    %614 = vmatpush.msra.mxu0 0.0
    %615 = vmatpush.msra.mxu0 0.0
    %616 = vmatpush.msra.mxu0 0.0
    %617 = vmatpush.msra.mxu0 0.0
    %618 = vmatpush.msra.mxu0 0.0
    %619 = vmatpush.msra.mxu0 0.0
    %620 = vmatpush.msra.mxu0 %v604
    %621 = vmatpush.msra.mxu0 %v594
    %622 = vmatmul.f32.gmra.mxu0 %v599
    %v623 = vpop.f32.mrf.mxu0
    %v624 = vadd.f32 0.0, %v623
    %625 = vmatmul.f32.gmra.mxu0 %v602
    %v626 = vpop.f32.mrf.mxu0
    %v627 = vadd.f32 0.0, %v626
    %628 = vdwg.mxu0
    %629 = vrot.lane.b32.xlu0 %v507, 112
    %v630 = vpop.permute.xlu0 %629
    %631 = vrot.lane.b32.xlu0 %v506, 112
    %v632 = vpop.permute.xlu0 %631
    %633 = vrot.lane.b32.xlu0 %v507, 80
    %v634 = vpop.permute.xlu0 %633
    %635 = vrot.lane.b32.xlu0 %v506, 80
    %v636 = vpop.permute.xlu0 %635
    %v637 = vsel %vm247, %v630, 0
    %v639 = vsel %vm247, %v632, 0
    %v641 = vsel %vm247, %v634, 0
    %v643 = vsel %vm247, %v636, 0
    %645 = vmatpush.xpose.msra.mxu0 0.0
    %646 = vmatpush.xpose.msra.mxu0 0.0
    %647 = vmatpush.xpose.msra.mxu0 0.0
    %648 = vmatpush.xpose.msra.mxu0 0.0
    %649 = vmatpush.xpose.msra.mxu0 0.0
    %650 = vmatpush.xpose.msra.mxu0 0.0
    %651 = vmatpush.xpose.msra.mxu0 0.0
    %652 = vmatpush.xpose.msra.mxu0 0.0
    %653 = vmatpush.xpose.msra.mxu0 0.0
    %654 = vmatpush.xpose.msra.mxu0 0.0
    %655 = vmatpush.xpose.msra.mxu0 0.0
    %656 = vmatpush.xpose.msra.mxu0 0.0
    %657 = vmatpush.xpose.msra.mxu0 0.0
    %658 = vmatpush.xpose.msra.mxu0 0.0
    %659 = vmatpush.xpose.msra.mxu0 %v643
    %660 = vmatpush.xpose.msra.mxu0 %v641
    %661 = vmatmul.f32.gmra.mxu0 %v637
    %v662 = vpop.f32.mrf.mxu0
    %v663 = vadd.f32 0.0, %v662
    %664 = vmatmul.f32.gmra.mxu0 %v639
    %v665 = vpop.f32.mrf.mxu0
    %v666 = vadd.f32 0.0, %v665
    %667 = vdwg.mxu0
    %v668 = vmul.f32 %v663, 0.25
    %v669 = vmul.f32 %v666, 0.25
    %v670 = vsel %vm281, %v668, -inf
    %671 = vmax.xlane.f32.xlu0 %v670
    %v672 = vpop.xlane.xlu0 %671
    %v673 = vsel %vm285, %v669, -inf
    %674 = vmax.xlane.f32.xlu0 %v673
    %v675 = vpop.xlane.xlu0 %674
    %v676 = vsub.f32 %v668, %v672
    %v677 = vsub.f32 %v669, %v675
    %v678 = vmul.f32 %v676, 1.442695
    %v679 = vpow.pop %v678
    %v680 = vmul.f32 %v677, 1.442695
    %v681 = vpow.pop %v680
    %v682 = vsel %vm281, %v679, 0.0
    %683 = vadd.xlane.f32.xlu0 %v682
    %v684 = vpop.xlane.xlu0 %683
    %v685 = vsel %vm285, %v681, 0.0
    %686 = vadd.xlane.f32.xlu0 %v685
    %v687 = vpop.xlane.xlu0 %686
    %v688 = vrcp.pop %v684
    %v689 = vmul.f32 %v684, %v688
    %v690 = vsub.f32 1.0, %v689
    %v691 = vmul.f32 %v688, %v690
    %v692 = vadd.f32 %v688, %v691
    %vm693 = vweird.f32 %v684
    %vm694 = vweird.f32 %v688
    %vm695 = vmor %vm693, %vm694
    %v696 = vsel %vm695, %v688, %v692
    %v697 = vand.u32 2147483647, %v684
    %vm698 = vcmp.eq.f32.partialorder %v697, 8.507059e+37
    %v699 = vand.u32 %v684, 2147483648
    %v700 = vor.u32 1.1754944e-38, %v699
    %v701 = vsel %vm698, %v700, %v696
    %v702 = vmul.f32 %v679, %v701
    %v703 = vrcp.pop %v687
    %v704 = vmul.f32 %v687, %v703
    %v705 = vsub.f32 1.0, %v704
    %v706 = vmul.f32 %v703, %v705
    %v707 = vadd.f32 %v703, %v706
    %vm708 = vweird.f32 %v687
    %vm709 = vweird.f32 %v703
    %vm710 = vmor %vm708, %vm709
    %v711 = vsel %vm710, %v703, %v707
    %v712 = vand.u32 2147483647, %v687
    %vm713 = vcmp.eq.f32.partialorder %v712, 8.507059e+37
    %v714 = vand.u32 %v687, 2147483648
    %v715 = vor.u32 1.1754944e-38, %v714
    %v716 = vsel %vm713, %v715, %v711
    %v717 = vmul.f32 %v681, %v716
    %718 = vrot.lane.b32.xlu0 %v507, 48
    %v719 = vpop.permute.xlu0 %718
    %720 = vrot.lane.b32.xlu0 %v506, 48
    %v721 = vpop.permute.xlu0 %720
    %v724 = vsel %vm281, %v702, 0
    %v727 = vsel %vm281, %v717, 0
    %v729 = vsel %vm342, %v721, 0
    %731 = vmatpush.msra.mxu0 0.0
    %732 = vmatpush.msra.mxu0 0.0
    %733 = vmatpush.msra.mxu0 0.0
    %734 = vmatpush.msra.mxu0 0.0
    %735 = vmatpush.msra.mxu0 0.0
    %736 = vmatpush.msra.mxu0 0.0
    %737 = vmatpush.msra.mxu0 0.0
    %738 = vmatpush.msra.mxu0 0.0
    %739 = vmatpush.msra.mxu0 0.0
    %740 = vmatpush.msra.mxu0 0.0
    %741 = vmatpush.msra.mxu0 0.0
    %742 = vmatpush.msra.mxu0 0.0
    %743 = vmatpush.msra.mxu0 0.0
    %744 = vmatpush.msra.mxu0 0.0
    %745 = vmatpush.msra.mxu0 %v729
    %746 = vmatpush.msra.mxu0 %v719
    %747 = vmatmul.f32.gmra.mxu0 %v724
    %v748 = vpop.f32.mrf.mxu0
    %v749 = vadd.f32 0.0, %v748
    %750 = vmatmul.f32.gmra.mxu0 %v727
    %v751 = vpop.f32.mrf.mxu0
    %v752 = vadd.f32 0.0, %v751
    %753 = vdwg.mxu0
    %756 = vrot.lane.b32.xlu0 %v749, 16
    %v757 = vpop.permute.xlu0 %756
    %758 = vrot.lane.b32.xlu0 %v752, 16
    %v759 = vpop.permute.xlu0 %758
    %v762 = vsel %vm247, %v624, %v757
    %v763 = vsel %vm247, %v627, %v759
    %v766 = vrot.slane %v762, 7
    %v767 = vrot.slane %v763, 7
    %v768 = vsel %vm342, %v766, %v767
    %v770 = vsel %vm342, %v502, %v766
    %v771 = vld [vmem:[#allocation4] sm:$0xff]
    %v772 = vld [vmem:[#allocation4 + $0x8] sm:$0xff]
    %v773 = vld [vmem:[#allocation4 + $0x10] sm:$0xff]
    %v774 = vld [vmem:[#allocation4 + $0x18] sm:$0xff]
    %v776 = vsel %vm115, %v501, 0
    %v779 = vsel %vm115, %v770, 0
    %v781 = vsel %vm115, %v768, 0
    %783 = vmatpush.msra.mxu0 0.0
    %784 = vmatpush.msra.mxu0 0.0
    %785 = vmatpush.msra.mxu0 0.0
    %786 = vmatpush.msra.mxu0 0.0
    %787 = vmatpush.msra.mxu0 0.0
    %788 = vmatpush.msra.mxu0 0.0
    %789 = vmatpush.msra.mxu0 0.0
    %790 = vmatpush.msra.mxu0 0.0
    %791 = vmatpush.msra.mxu0 0.0
    %792 = vmatpush.msra.mxu0 0.0
    %793 = vmatpush.msra.mxu0 0.0
    %794 = vmatpush.msra.mxu0 0.0
    %795 = vmatpush.msra.mxu0 %v774
    %796 = vmatpush.msra.mxu0 %v773
    %797 = vmatpush.msra.mxu0 %v772
    %798 = vmatpush.msra.mxu0 %v771
    %799 = vmatmul.f32.gmra.mxu0 %v776
    %v800 = vpop.f32.mrf.mxu0
    %v801 = vadd.f32 0.0, %v800
    %802 = vmatmul.f32.gmra.mxu0 %v779
    %v803 = vpop.f32.mrf.mxu0
    %v804 = vadd.f32 0.0, %v803
    %805 = vmatmul.f32.gmra.mxu0 %v781
    %v806 = vpop.f32.mrf.mxu0
    %v807 = vadd.f32 0.0, %v806
    %808 = vdwg.mxu0
    %v809 = vadd.f32 %v110, %v801
    %v810 = vadd.f32 %v111, %v804
    %v811 = vadd.f32 %v112, %v807
    %v812 = vld [vmem:[%s5] sm:$0x1]
    %v814 = vperm.slane %v812, 0
    %v816 = vadd.f32 %v809, %v814
    %v817 = vadd.f32 %v810, %v814
    %v818 = vadd.f32 %v811, %v814
    %v819 = vld [vmem:[%s6] sm:$0x1]
    %v820 = vld [vmem:[%s7] sm:$0x1]
    %v821 = vsel %vm115, %v816, 0.0
    %822 = vadd.xlane.f32.xlu0 %v821
    %v823 = vpop.xlane.xlu0 %822
    %v824 = vsel %vm115, %v817, 0.0
    %825 = vadd.xlane.f32.xlu0 %v824
    %v826 = vpop.xlane.xlu0 %825
    %v827 = vsel %vm122, %v818, 0.0
    %828 = vadd.xlane.f32.xlu0 %v827
    %v829 = vpop.xlane.xlu0 %828
    %v830 = vmul.f32 %v823, %v132
    %v831 = vmul.f32 %v826, %v132
    %v832 = vmul.f32 %v829, %v132
    %v833 = vsub.f32 %v816, %v830
    %v834 = vsub.f32 %v817, %v831
    %v835 = vsub.f32 %v818, %v832
    %v836 = vmul.f32 %v833, %v833
    %v837 = vmul.f32 %v834, %v834
    %v838 = vmul.f32 %v835, %v835
    %v839 = vsel %vm115, %v836, 0.0
    %840 = vadd.xlane.f32.xlu0 %v839
    %v841 = vpop.xlane.xlu0 %840
    %v842 = vsel %vm115, %v837, 0.0
    %843 = vadd.xlane.f32.xlu0 %v842
    %v844 = vpop.xlane.xlu0 %843
    %v845 = vsel %vm122, %v838, 0.0
    %846 = vadd.xlane.f32.xlu0 %v845
    %v847 = vpop.xlane.xlu0 %846
    %v848 = vmul.f32 %v841, %v132
    %v849 = vmul.f32 %v844, %v132
    %v850 = vmul.f32 %v847, %v132
    %v851 = vadd.f32 %v848, 1e-05
    %v852 = vadd.f32 %v849, 1e-05
    %v853 = vadd.f32 %v850, 1e-05
    %v854 = vrsqrt.pop %v851
    %v855 = vmul.f32 %v854, %v851
    %v856 = vmul.f32 %v855, %v854
    %v857 = vmul.f32 0.5, %v856
    %v858 = vsub.f32 1.5, %v857
    %v859 = vmul.f32 %v854, %v858
    %vm860 = vweird.f32 %v851
    %vm861 = vweird.f32 %v854
    %vm862 = vmor %vm860, %vm861
    %v863 = vsel %vm862, %v854, %v859
    %v864 = vrsqrt.pop %v852
    %v865 = vmul.f32 %v864, %v852
    %v866 = vmul.f32 %v865, %v864
    %v867 = vmul.f32 0.5, %v866
    %v868 = vsub.f32 1.5, %v867
    %v869 = vmul.f32 %v864, %v868
    %vm870 = vweird.f32 %v852
    %vm871 = vweird.f32 %v864
    %vm872 = vmor %vm870, %vm871
    %v873 = vsel %vm872, %v864, %v869
    %v874 = vrsqrt.pop %v853
    %v875 = vmul.f32 %v874, %v853
    %v876 = vmul.f32 %v875, %v874
    %v877 = vmul.f32 0.5, %v876
    %v878 = vsub.f32 1.5, %v877
    %v879 = vmul.f32 %v874, %v878
    %vm880 = vweird.f32 %v853
    %vm881 = vweird.f32 %v874
    %vm882 = vmor %vm880, %vm881
    %v883 = vsel %vm882, %v874, %v879
    %v884 = vmul.f32 %v833, %v863
    %v885 = vmul.f32 %v834, %v873
    %v886 = vmul.f32 %v835, %v883
    %v888 = vperm.slane %v819, 0
    %v890 = vmul.f32 %v884, %v888
    %v891 = vmul.f32 %v885, %v888
    %v892 = vmul.f32 %v886, %v888
    %v894 = vperm.slane %v820, 0
    %v896 = vadd.f32 %v890, %v894
    %v897 = vadd.f32 %v891, %v894
    %v898 = vadd.f32 %v892, %v894
    %v899 = vld [vmem:[#allocation6] sm:$0xff]
    %v900 = vld [vmem:[#allocation6 + $0x8] sm:$0xff]
    %v901 = vld [vmem:[#allocation6 + $0x10] sm:$0xff]
    %v902 = vld [vmem:[#allocation6 + $0x18] sm:$0xff]
    %v903 = vld [vmem:[%s9] sm:$0x1]
    %v905 = vperm.slane %v903, 0
    %v908 = vsel %vm115, %v896, 0
    %v911 = vsel %vm115, %v897, 0
    %v914 = vsel %vm115, %v898, 0
    %916 = vmatpush.msra.mxu0 0.0
    %917 = vmatpush.msra.mxu0 0.0
    %918 = vmatpush.msra.mxu0 0.0
    %919 = vmatpush.msra.mxu0 0.0
    %920 = vmatpush.msra.mxu0 0.0
    %921 = vmatpush.msra.mxu0 0.0
    %922 = vmatpush.msra.mxu0 0.0
    %923 = vmatpush.msra.mxu0 0.0
    %924 = vmatpush.msra.mxu0 0.0
    %925 = vmatpush.msra.mxu0 0.0
    %926 = vmatpush.msra.mxu0 0.0
    %927 = vmatpush.msra.mxu0 0.0
    %928 = vmatpush.msra.mxu0 %v902
    %929 = vmatpush.msra.mxu0 %v901
    %930 = vmatpush.msra.mxu0 %v900
    %931 = vmatpush.msra.mxu0 %v899
    %932 = vmatmul.f32.gmra.mxu0 %v908
    %v933 = vpop.f32.mrf.mxu0
    %v934 = vadd.f32 %v905, %v933
    %935 = vmatmul.f32.gmra.mxu0 %v911
    %v936 = vpop.f32.mrf.mxu0
    %v937 = vadd.f32 %v905, %v936
    %938 = vmatmul.f32.gmra.mxu0 %v914
    %v939 = vpop.f32.mrf.mxu0
    %v940 = vadd.f32 %v905, %v939
    %941 = vdwg.mxu0
    %v942 = vmul.f32 %v934, 0.5
    %v943 = vmul.f32 %v937, 0.5
    %v944 = vmul.f32 %v940, 0.5
    %v945 = vmul.f32 %v934, 0.70710677
    %v946 = vmul.f32 %v937, 0.70710677
    %v947 = vmul.f32 %v940, 0.70710677
    %v948 = vmul.f32 %v945, %v945
    %v949 = vmin.f32 16.0, %v948
    %v950 = vmul.f32 %v949, 2.1237322e-06
    %v951 = vadd.f32 %v950, 0.00028619796
    %v952 = vmul.f32 %v949, %v951
    %v953 = vadd.f32 %v952, 0.0036580483
    %v954 = vmul.f32 %v949, %v953
    %v955 = vadd.f32 %v954, 0.05243302
    %v956 = vmul.f32 %v949, %v955
    %v957 = vadd.f32 %v956, 0.18741608
    %v958 = vmul.f32 %v949, %v957
    %v959 = vadd.f32 %v958, 1.1283791
    %v960 = vmul.f32 %v945, %v959
    %v961 = vmul.f32 %v949, 3.8918573e-05
    %v962 = vadd.f32 %v961, 0.001143296
    %v963 = vmul.f32 %v949, %v962
    %v964 = vadd.f32 %v963, 0.014752088
    %v965 = vmul.f32 %v949, %v964
    %v966 = vadd.f32 %v965, 0.112945676
    %v967 = vmul.f32 %v949, %v966
    %v968 = vadd.f32 %v967, 0.4994258
    %v969 = vmul.f32 %v949, %v968
    %v970 = vadd.f32 %v969, 1.0
    %v971 = vrcp.pop %v970
    %v972 = vmul.f32 %v970, %v971
    %v973 = vsub.f32 1.0, %v972
    %v974 = vmul.f32 %v971, %v973
    %v975 = vadd.f32 %v971, %v974
    %vm976 = vweird.f32 %v970
    %vm977 = vweird.f32 %v971
    %vm978 = vmor %vm976, %vm977
    %v979 = vsel %vm978, %v971, %v975
    %v980 = vand.u32 2147483647, %v970
    %vm981 = vcmp.eq.f32.partialorder %v980, 8.507059e+37
    %v982 = vand.u32 %v970, 2147483648
    %v983 = vor.u32 1.1754944e-38, %v982
    %v984 = vsel %vm981, %v983, %v979
    %v985 = vmul.f32 %v960, %v984
    %v986 = vmin.f32 %v985, 1.0
    %v987 = vmax.f32 %v986, -1.0
    %v988 = vmul.f32 %v946, %v946
    %v989 = vmin.f32 16.0, %v988
    %v990 = vmul.f32 %v989, 2.1237322e-06
    %v991 = vadd.f32 %v990, 0.00028619796
    %v992 = vmul.f32 %v989, %v991
    %v993 = vadd.f32 %v992, 0.0036580483
    %v994 = vmul.f32 %v989, %v993
    %v995 = vadd.f32 %v994, 0.05243302
    %v996 = vmul.f32 %v989, %v995
    %v997 = vadd.f32 %v996, 0.18741608
    %v998 = vmul.f32 %v989, %v997
    %v999 = vadd.f32 %v998, 1.1283791
    %v1000 = vmul.f32 %v946, %v999
    %v1001 = vmul.f32 %v989, 3.8918573e-05
    %v1002 = vadd.f32 %v1001, 0.001143296
    %v1003 = vmul.f32 %v989, %v1002
    %v1004 = vadd.f32 %v1003, 0.014752088
    %v1005 = vmul.f32 %v989, %v1004
    %v1006 = vadd.f32 %v1005, 0.112945676
    %v1007 = vmul.f32 %v989, %v1006
    %v1008 = vadd.f32 %v1007, 0.4994258
    %v1009 = vmul.f32 %v989, %v1008
    %v1010 = vadd.f32 %v1009, 1.0
    %v1011 = vrcp.pop %v1010
    %v1012 = vmul.f32 %v1010, %v1011
    %v1013 = vsub.f32 1.0, %v1012
    %v1014 = vmul.f32 %v1011, %v1013
    %v1015 = vadd.f32 %v1011, %v1014
    %vm1016 = vweird.f32 %v1010
    %vm1017 = vweird.f32 %v1011
    %vm1018 = vmor %vm1016, %vm1017
    %v1019 = vsel %vm1018, %v1011, %v1015
    %v1020 = vand.u32 2147483647, %v1010
    %vm1021 = vcmp.eq.f32.partialorder %v1020, 8.507059e+37
    %v1022 = vand.u32 %v1010, 2147483648
    %v1023 = vor.u32 1.1754944e-38, %v1022
    %v1024 = vsel %vm1021, %v1023, %v1019
    %v1025 = vmul.f32 %v1000, %v1024
    %v1026 = vmin.f32 %v1025, 1.0
    %v1027 = vmax.f32 %v1026, -1.0
    %v1028 = vmul.f32 %v947, %v947
    %v1029 = vmin.f32 16.0, %v1028
    %v1030 = vmul.f32 %v1029, 2.1237322e-06
    %v1031 = vadd.f32 %v1030, 0.00028619796
    %v1032 = vmul.f32 %v1029, %v1031
    %v1033 = vadd.f32 %v1032, 0.0036580483
    %v1034 = vmul.f32 %v1029, %v1033
    %v1035 = vadd.f32 %v1034, 0.05243302
    %v1036 = vmul.f32 %v1029, %v1035
    %v1037 = vadd.f32 %v1036, 0.18741608
    %v1038 = vmul.f32 %v1029, %v1037
    %v1039 = vadd.f32 %v1038, 1.1283791
    %v1040 = vmul.f32 %v947, %v1039
    %v1041 = vmul.f32 %v1029, 3.8918573e-05
    %v1042 = vadd.f32 %v1041, 0.001143296
    %v1043 = vmul.f32 %v1029, %v1042
    %v1044 = vadd.f32 %v1043, 0.014752088
    %v1045 = vmul.f32 %v1029, %v1044
    %v1046 = vadd.f32 %v1045, 0.112945676
    %v1047 = vmul.f32 %v1029, %v1046
    %v1048 = vadd.f32 %v1047, 0.4994258
    %v1049 = vmul.f32 %v1029, %v1048
    %v1050 = vadd.f32 %v1049, 1.0
    %v1051 = vrcp.pop %v1050
    %v1052 = vmul.f32 %v1050, %v1051
    %v1053 = vsub.f32 1.0, %v1052
    %v1054 = vmul.f32 %v1051, %v1053
    %v1055 = vadd.f32 %v1051, %v1054
    %vm1056 = vweird.f32 %v1050
    %vm1057 = vweird.f32 %v1051
    %vm1058 = vmor %vm1056, %vm1057
    %v1059 = vsel %vm1058, %v1051, %v1055
    %v1060 = vand.u32 2147483647, %v1050
    %vm1061 = vcmp.eq.f32.partialorder %v1060, 8.507059e+37
    %v1062 = vand.u32 %v1050, 2147483648
    %v1063 = vor.u32 1.1754944e-38, %v1062
    %v1064 = vsel %vm1061, %v1063, %v1059
    %v1065 = vmul.f32 %v1040, %v1064
    %v1066 = vmin.f32 %v1065, 1.0
    %v1067 = vmax.f32 %v1066, -1.0
    %v1068 = vadd.f32 %v987, 1.0
    %v1069 = vadd.f32 %v1027, 1.0
    %v1070 = vadd.f32 %v1067, 1.0
    %v1071 = vmul.f32 %v942, %v1068
    %v1072 = vmul.f32 %v943, %v1069
    %v1073 = vmul.f32 %v944, %v1070
    %v1074 = vld [vmem:[#allocation7] sm:$0xff]
    %v1075 = vld [vmem:[#allocation7 + $0x8] sm:$0xff]
    %v1076 = vld [vmem:[#allocation7 + $0x10] sm:$0xff]
    %v1077 = vld [vmem:[#allocation7 + $0x18] sm:$0xff]
    %v1078 = vld [vmem:[#allocation7 + $0x20] sm:$0xff]
    %v1079 = vld [vmem:[#allocation7 + $0x28] sm:$0xff]
    %v1080 = vld [vmem:[#allocation7 + $0x30] sm:$0xff]
    %v1081 = vld [vmem:[#allocation7 + $0x38] sm:$0xff]
    %vm1082 = vcmask 523264
    %v1084 = vsel %vm1082, %v1071, 0
    %v1087 = vsel %vm1082, %v1072, 0
    %v1090 = vsel %vm1082, %v1073, 0
    %1092 = vmatpush.msra.mxu0 0.0
    %1093 = vmatpush.msra.mxu0 0.0
    %1094 = vmatpush.msra.mxu0 0.0
    %1095 = vmatpush.msra.mxu0 0.0
    %1096 = vmatpush.msra.mxu0 0.0
    %1097 = vmatpush.msra.mxu0 0.0
    %1098 = vmatpush.msra.mxu0 0.0
    %1099 = vmatpush.msra.mxu0 0.0
    %1100 = vmatpush.msra.mxu0 %v1081
    %1101 = vmatpush.msra.mxu0 %v1080
    %1102 = vmatpush.msra.mxu0 %v1079
    %1103 = vmatpush.msra.mxu0 %v1078
    %1104 = vmatpush.msra.mxu0 %v1077
    %1105 = vmatpush.msra.mxu0 %v1076
    %1106 = vmatpush.msra.mxu0 %v1075
    %1107 = vmatpush.msra.mxu0 %v1074
    %1108 = vmatmul.f32.gmra.mxu0 %v1084
    %v1109 = vpop.f32.mrf.mxu0
    %v1110 = vadd.f32 0.0, %v1109
    %1111 = vmatmul.f32.gmra.mxu0 %v1087
    %v1112 = vpop.f32.mrf.mxu0
    %v1113 = vadd.f32 0.0, %v1112
    %1114 = vmatmul.f32.gmra.mxu0 %v1090
    %v1115 = vpop.f32.mrf.mxu0
    %v1116 = vadd.f32 0.0, %v1115
    %1117 = vdwg.mxu0
    %v1118 = vadd.f32 %v816, %v1110
    %v1119 = vadd.f32 %v817, %v1113
    %v1120 = vadd.f32 %v818, %v1116
    %v1121 = vld [vmem:[%s11] sm:$0x1]
    %v1123 = vperm.slane %v1121, 0
    %v1125 = vadd.f32 %v1118, %v1123
    %v1126 = vadd.f32 %v1119, %v1123
    %v1127 = vadd.f32 %v1120, %v1123
    %s1128 = scalar_lea.vmem %s1, 1
    %v1129 = vld [vmem:[%s1128] sm:$0x1]
    %s1130 = scalar_lea.vmem %s2, 1
    %v1131 = vld [vmem:[%s1130] sm:$0x1]
    %v1132 = vsel %vm115, %v1125, 0.0
    %1133 = vadd.xlane.f32.xlu0 %v1132
    %v1134 = vpop.xlane.xlu0 %1133
    %v1135 = vsel %vm115, %v1126, 0.0
    %1136 = vadd.xlane.f32.xlu0 %v1135
    %v1137 = vpop.xlane.xlu0 %1136
    %v1138 = vsel %vm122, %v1127, 0.0
    %1139 = vadd.xlane.f32.xlu0 %v1138
    %v1140 = vpop.xlane.xlu0 %1139
    %v1141 = vmul.f32 %v1134, %v132
    %v1142 = vmul.f32 %v1137, %v132
    %v1143 = vmul.f32 %v1140, %v132
    %v1144 = vsub.f32 %v1125, %v1141
    %v1145 = vsub.f32 %v1126, %v1142
    %v1146 = vsub.f32 %v1127, %v1143
    %v1147 = vmul.f32 %v1144, %v1144
    %v1148 = vmul.f32 %v1145, %v1145
    %v1149 = vmul.f32 %v1146, %v1146
    %v1150 = vsel %vm115, %v1147, 0.0
    %1151 = vadd.xlane.f32.xlu0 %v1150
    %v1152 = vpop.xlane.xlu0 %1151
    %v1153 = vsel %vm115, %v1148, 0.0
    %1154 = vadd.xlane.f32.xlu0 %v1153
    %v1155 = vpop.xlane.xlu0 %1154
    %v1156 = vsel %vm122, %v1149, 0.0
    %1157 = vadd.xlane.f32.xlu0 %v1156
    %v1158 = vpop.xlane.xlu0 %1157
    %v1159 = vmul.f32 %v1152, %v132
    %v1160 = vmul.f32 %v1155, %v132
    %v1161 = vmul.f32 %v1158, %v132
    %v1162 = vadd.f32 %v1159, 1e-05
    %v1163 = vadd.f32 %v1160, 1e-05
    %v1164 = vadd.f32 %v1161, 1e-05
    %v1165 = vrsqrt.pop %v1162
    %v1166 = vmul.f32 %v1165, %v1162
    %v1167 = vmul.f32 %v1166, %v1165
    %v1168 = vmul.f32 0.5, %v1167
    %v1169 = vsub.f32 1.5, %v1168
    %v1170 = vmul.f32 %v1165, %v1169
    %vm1171 = vweird.f32 %v1162
    %vm1172 = vweird.f32 %v1165
    %vm1173 = vmor %vm1171, %vm1172
    %v1174 = vsel %vm1173, %v1165, %v1170
    %v1175 = vrsqrt.pop %v1163
    %v1176 = vmul.f32 %v1175, %v1163
    %v1177 = vmul.f32 %v1176, %v1175
    %v1178 = vmul.f32 0.5, %v1177
    %v1179 = vsub.f32 1.5, %v1178
    %v1180 = vmul.f32 %v1175, %v1179
    %vm1181 = vweird.f32 %v1163
    %vm1182 = vweird.f32 %v1175
    %vm1183 = vmor %vm1181, %vm1182
    %v1184 = vsel %vm1183, %v1175, %v1180
    %v1185 = vrsqrt.pop %v1164
    %v1186 = vmul.f32 %v1185, %v1164
    %v1187 = vmul.f32 %v1186, %v1185
    %v1188 = vmul.f32 0.5, %v1187
    %v1189 = vsub.f32 1.5, %v1188
    %v1190 = vmul.f32 %v1185, %v1189
    %vm1191 = vweird.f32 %v1164
    %vm1192 = vweird.f32 %v1185
    %vm1193 = vmor %vm1191, %vm1192
    %v1194 = vsel %vm1193, %v1185, %v1190
    %v1195 = vmul.f32 %v1144, %v1174
    %v1196 = vmul.f32 %v1145, %v1184
    %v1197 = vmul.f32 %v1146, %v1194
    %v1199 = vperm.slane %v1129, 0
    %v1201 = vmul.f32 %v1195, %v1199
    %v1202 = vmul.f32 %v1196, %v1199
    %v1203 = vmul.f32 %v1197, %v1199
    %v1205 = vperm.slane %v1131, 0
    %v1207 = vadd.f32 %v1201, %v1205
    %v1208 = vadd.f32 %v1202, %v1205
    %v1209 = vadd.f32 %v1203, %v1205
    %s1210 = scalar_lea.vmem [#allocation2], 32
    %v1211 = vld [vmem:[%s1210] sm:$0xff]
    %v1212 = vld [vmem:[%s1210 + $0x8] sm:$0xff]
    %v1213 = vld [vmem:[%s1210 + $0x10] sm:$0xff]
    %v1214 = vld [vmem:[%s1210 + $0x18] sm:$0xff]
    %v1216 = vsel %vm115, %v1207, 0
    %v1219 = vsel %vm115, %v1208, 0
    %v1222 = vsel %vm115, %v1209, 0
    %1224 = vmatpush.msra.mxu0 0.0
    %1225 = vmatpush.msra.mxu0 0.0
    %1226 = vmatpush.msra.mxu0 0.0
    %1227 = vmatpush.msra.mxu0 0.0
    %1228 = vmatpush.msra.mxu0 0.0
    %1229 = vmatpush.msra.mxu0 0.0
    %1230 = vmatpush.msra.mxu0 0.0
    %1231 = vmatpush.msra.mxu0 0.0
    %1232 = vmatpush.msra.mxu0 0.0
    %1233 = vmatpush.msra.mxu0 0.0
    %1234 = vmatpush.msra.mxu0 0.0
    %1235 = vmatpush.msra.mxu0 0.0
    %1236 = vmatpush.msra.mxu0 %v1214
    %1237 = vmatpush.msra.mxu0 %v1213
    %1238 = vmatpush.msra.mxu0 %v1212
    %1239 = vmatpush.msra.mxu0 %v1211
    %1240 = vmatmul.f32.gmra.mxu0 %v1216
    %v1241 = vpop.f32.mrf.mxu0
    %v1242 = vadd.f32 0.0, %v1241
    %1243 = vmatmul.f32.gmra.mxu0 %v1219
    %v1244 = vpop.f32.mrf.mxu0
    %v1245 = vadd.f32 0.0, %v1244
    %1246 = vmatmul.f32.gmra.mxu0 %v1222
    %v1247 = vpop.f32.mrf.mxu0
    %v1248 = vadd.f32 0.0, %v1247
    %1249 = vdwg.mxu0
    %1252 = vrot.lane.b32.xlu0 %v1242, 96
    %v1253 = vpop.permute.xlu0 %1252
    %1254 = vrot.lane.b32.xlu0 %v1245, 96
    %v1255 = vpop.permute.xlu0 %1254
    %v1256 = vsel %vm247, %v1242, 0
    %v1258 = vsel %vm247, %v1245, 0
    %v1260 = vsel %vm247, %v1253, 0
    %v1262 = vsel %vm247, %v1255, 0
    %1264 = vmatpush.xpose.msra.mxu0 0.0
    %1265 = vmatpush.xpose.msra.mxu0 0.0
    %1266 = vmatpush.xpose.msra.mxu0 0.0
    %1267 = vmatpush.xpose.msra.mxu0 0.0
    %1268 = vmatpush.xpose.msra.mxu0 0.0
    %1269 = vmatpush.xpose.msra.mxu0 0.0
    %1270 = vmatpush.xpose.msra.mxu0 0.0
    %1271 = vmatpush.xpose.msra.mxu0 0.0
    %1272 = vmatpush.xpose.msra.mxu0 0.0
    %1273 = vmatpush.xpose.msra.mxu0 0.0
    %1274 = vmatpush.xpose.msra.mxu0 0.0
    %1275 = vmatpush.xpose.msra.mxu0 0.0
    %1276 = vmatpush.xpose.msra.mxu0 0.0
    %1277 = vmatpush.xpose.msra.mxu0 0.0
    %1278 = vmatpush.xpose.msra.mxu0 %v1262
    %1279 = vmatpush.xpose.msra.mxu0 %v1260
    %1280 = vmatmul.f32.gmra.mxu0 %v1256
    %v1281 = vpop.f32.mrf.mxu0
    %v1282 = vadd.f32 0.0, %v1281
    %1283 = vmatmul.f32.gmra.mxu0 %v1258
    %v1284 = vpop.f32.mrf.mxu0
    %v1285 = vadd.f32 0.0, %v1284
    %1286 = vdwg.mxu0
    %v1287 = vmul.f32 %v1282, 0.25
    %v1288 = vmul.f32 %v1285, 0.25
    %v1289 = vsel %vm281, %v1287, -inf
    %1290 = vmax.xlane.f32.xlu0 %v1289
    %v1291 = vpop.xlane.xlu0 %1290
    %v1292 = vsel %vm285, %v1288, -inf
    %1293 = vmax.xlane.f32.xlu0 %v1292
    %v1294 = vpop.xlane.xlu0 %1293
    %v1295 = vsub.f32 %v1287, %v1291
    %v1296 = vsub.f32 %v1288, %v1294
    %v1297 = vmul.f32 %v1295, 1.442695
    %v1298 = vpow.pop %v1297
    %v1299 = vmul.f32 %v1296, 1.442695
    %v1300 = vpow.pop %v1299
    %v1301 = vsel %vm281, %v1298, 0.0
    %1302 = vadd.xlane.f32.xlu0 %v1301
    %v1303 = vpop.xlane.xlu0 %1302
    %v1304 = vsel %vm285, %v1300, 0.0
    %1305 = vadd.xlane.f32.xlu0 %v1304
    %v1306 = vpop.xlane.xlu0 %1305
    %v1307 = vrcp.pop %v1303
    %v1308 = vmul.f32 %v1303, %v1307
    %v1309 = vsub.f32 1.0, %v1308
    %v1310 = vmul.f32 %v1307, %v1309
    %v1311 = vadd.f32 %v1307, %v1310
    %vm1312 = vweird.f32 %v1303
    %vm1313 = vweird.f32 %v1307
    %vm1314 = vmor %vm1312, %vm1313
    %v1315 = vsel %vm1314, %v1307, %v1311
    %v1316 = vand.u32 2147483647, %v1303
    %vm1317 = vcmp.eq.f32.partialorder %v1316, 8.507059e+37
    %v1318 = vand.u32 %v1303, 2147483648
    %v1319 = vor.u32 1.1754944e-38, %v1318
    %v1320 = vsel %vm1317, %v1319, %v1315
    %v1321 = vmul.f32 %v1298, %v1320
    %v1322 = vrcp.pop %v1306
    %v1323 = vmul.f32 %v1306, %v1322
    %v1324 = vsub.f32 1.0, %v1323
    %v1325 = vmul.f32 %v1322, %v1324
    %v1326 = vadd.f32 %v1322, %v1325
    %vm1327 = vweird.f32 %v1306
    %vm1328 = vweird.f32 %v1322
    %vm1329 = vmor %vm1327, %vm1328
    %v1330 = vsel %vm1329, %v1322, %v1326
    %v1331 = vand.u32 2147483647, %v1306
    %vm1332 = vcmp.eq.f32.partialorder %v1331, 8.507059e+37
    %v1333 = vand.u32 %v1306, 2147483648
    %v1334 = vor.u32 1.1754944e-38, %v1333
    %v1335 = vsel %vm1332, %v1334, %v1330
    %v1336 = vmul.f32 %v1300, %v1335
    %1337 = vrot.lane.b32.xlu0 %v1242, 64
    %v1338 = vpop.permute.xlu0 %1337
    %1339 = vrot.lane.b32.xlu0 %v1245, 64
    %v1340 = vpop.permute.xlu0 %1339
    %v1343 = vsel %vm281, %v1321, 0
    %v1346 = vsel %vm281, %v1336, 0
    %v1348 = vsel %vm342, %v1340, 0
    %1350 = vmatpush.msra.mxu0 0.0
    %1351 = vmatpush.msra.mxu0 0.0
    %1352 = vmatpush.msra.mxu0 0.0
    %1353 = vmatpush.msra.mxu0 0.0
    %1354 = vmatpush.msra.mxu0 0.0
    %1355 = vmatpush.msra.mxu0 0.0
    %1356 = vmatpush.msra.mxu0 0.0
    %1357 = vmatpush.msra.mxu0 0.0
    %1358 = vmatpush.msra.mxu0 0.0
    %1359 = vmatpush.msra.mxu0 0.0
    %1360 = vmatpush.msra.mxu0 0.0
    %1361 = vmatpush.msra.mxu0 0.0
    %1362 = vmatpush.msra.mxu0 0.0
    %1363 = vmatpush.msra.mxu0 0.0
    %1364 = vmatpush.msra.mxu0 %v1348
    %1365 = vmatpush.msra.mxu0 %v1338
    %1366 = vmatmul.f32.gmra.mxu0 %v1343
    %v1367 = vpop.f32.mrf.mxu0
    %v1368 = vadd.f32 0.0, %v1367
    %1369 = vmatmul.f32.gmra.mxu0 %v1346
    %v1370 = vpop.f32.mrf.mxu0
    %v1371 = vadd.f32 0.0, %v1370
    %1372 = vdwg.mxu0
    %1373 = vrot.lane.b32.xlu0 %v1242, 112
    %v1374 = vpop.permute.xlu0 %1373
    %1375 = vrot.lane.b32.xlu0 %v1245, 112
    %v1376 = vpop.permute.xlu0 %1375
    %1377 = vrot.lane.b32.xlu0 %v1242, 80
    %v1378 = vpop.permute.xlu0 %1377
    %1379 = vrot.lane.b32.xlu0 %v1245, 80
    %v1380 = vpop.permute.xlu0 %1379
    %v1381 = vsel %vm247, %v1374, 0
    %v1383 = vsel %vm247, %v1376, 0
    %v1385 = vsel %vm247, %v1378, 0
    %v1387 = vsel %vm247, %v1380, 0
    %1389 = vmatpush.xpose.msra.mxu0 0.0
    %1390 = vmatpush.xpose.msra.mxu0 0.0
    %1391 = vmatpush.xpose.msra.mxu0 0.0
    %1392 = vmatpush.xpose.msra.mxu0 0.0
    %1393 = vmatpush.xpose.msra.mxu0 0.0
    %1394 = vmatpush.xpose.msra.mxu0 0.0
    %1395 = vmatpush.xpose.msra.mxu0 0.0
    %1396 = vmatpush.xpose.msra.mxu0 0.0
    %1397 = vmatpush.xpose.msra.mxu0 0.0
    %1398 = vmatpush.xpose.msra.mxu0 0.0
    %1399 = vmatpush.xpose.msra.mxu0 0.0
    %1400 = vmatpush.xpose.msra.mxu0 0.0
    %1401 = vmatpush.xpose.msra.mxu0 0.0
    %1402 = vmatpush.xpose.msra.mxu0 0.0
    %1403 = vmatpush.xpose.msra.mxu0 %v1387
    %1404 = vmatpush.xpose.msra.mxu0 %v1385
    %1405 = vmatmul.f32.gmra.mxu0 %v1381
    %v1406 = vpop.f32.mrf.mxu0
    %v1407 = vadd.f32 0.0, %v1406
    %1408 = vmatmul.f32.gmra.mxu0 %v1383
    %v1409 = vpop.f32.mrf.mxu0
    %v1410 = vadd.f32 0.0, %v1409
    %1411 = vdwg.mxu0
    %v1412 = vmul.f32 %v1407, 0.25
    %v1413 = vmul.f32 %v1410, 0.25
    %v1414 = vsel %vm281, %v1412, -inf
    %1415 = vmax.xlane.f32.xlu0 %v1414
    %v1416 = vpop.xlane.xlu0 %1415
    %v1417 = vsel %vm285, %v1413, -inf
    %1418 = vmax.xlane.f32.xlu0 %v1417
    %v1419 = vpop.xlane.xlu0 %1418
    %v1420 = vsub.f32 %v1412, %v1416
    %v1421 = vsub.f32 %v1413, %v1419
    %v1422 = vmul.f32 %v1420, 1.442695
    %v1423 = vpow.pop %v1422
    %v1424 = vmul.f32 %v1421, 1.442695
    %v1425 = vpow.pop %v1424
    %v1426 = vsel %vm281, %v1423, 0.0
    %1427 = vadd.xlane.f32.xlu0 %v1426
    %v1428 = vpop.xlane.xlu0 %1427
    %v1429 = vsel %vm285, %v1425, 0.0
    %1430 = vadd.xlane.f32.xlu0 %v1429
    %v1431 = vpop.xlane.xlu0 %1430
    %v1432 = vrcp.pop %v1428
    %v1433 = vmul.f32 %v1428, %v1432
    %v1434 = vsub.f32 1.0, %v1433
    %v1435 = vmul.f32 %v1432, %v1434
    %v1436 = vadd.f32 %v1432, %v1435
    %vm1437 = vweird.f32 %v1428
    %vm1438 = vweird.f32 %v1432
    %vm1439 = vmor %vm1437, %vm1438
    %v1440 = vsel %vm1439, %v1432, %v1436
    %v1441 = vand.u32 2147483647, %v1428
    %vm1442 = vcmp.eq.f32.partialorder %v1441, 8.507059e+37
    %v1443 = vand.u32 %v1428, 2147483648
    %v1444 = vor.u32 1.1754944e-38, %v1443
    %v1445 = vsel %vm1442, %v1444, %v1440
    %v1446 = vmul.f32 %v1423, %v1445
    %v1447 = vrcp.pop %v1431
    %v1448 = vmul.f32 %v1431, %v1447
    %v1449 = vsub.f32 1.0, %v1448
    %v1450 = vmul.f32 %v1447, %v1449
    %v1451 = vadd.f32 %v1447, %v1450
    %vm1452 = vweird.f32 %v1431
    %vm1453 = vweird.f32 %v1447
    %vm1454 = vmor %vm1452, %vm1453
    %v1455 = vsel %vm1454, %v1447, %v1451
    %v1456 = vand.u32 2147483647, %v1431
    %vm1457 = vcmp.eq.f32.partialorder %v1456, 8.507059e+37
    %v1458 = vand.u32 %v1431, 2147483648
    %v1459 = vor.u32 1.1754944e-38, %v1458
    %v1460 = vsel %vm1457, %v1459, %v1455
    %v1461 = vmul.f32 %v1425, %v1460
    %1462 = vrot.lane.b32.xlu0 %v1242, 48
    %v1463 = vpop.permute.xlu0 %1462
    %1464 = vrot.lane.b32.xlu0 %v1245, 48
    %v1465 = vpop.permute.xlu0 %1464
    %v1468 = vsel %vm281, %v1446, 0
    %v1471 = vsel %vm281, %v1461, 0
    %v1473 = vsel %vm342, %v1465, 0
    %1475 = vmatpush.msra.mxu0 0.0
    %1476 = vmatpush.msra.mxu0 0.0
    %1477 = vmatpush.msra.mxu0 0.0
    %1478 = vmatpush.msra.mxu0 0.0
    %1479 = vmatpush.msra.mxu0 0.0
    %1480 = vmatpush.msra.mxu0 0.0
    %1481 = vmatpush.msra.mxu0 0.0
    %1482 = vmatpush.msra.mxu0 0.0
    %1483 = vmatpush.msra.mxu0 0.0
    %1484 = vmatpush.msra.mxu0 0.0
    %1485 = vmatpush.msra.mxu0 0.0
    %1486 = vmatpush.msra.mxu0 0.0
    %1487 = vmatpush.msra.mxu0 0.0
    %1488 = vmatpush.msra.mxu0 0.0
    %1489 = vmatpush.msra.mxu0 %v1473
    %1490 = vmatpush.msra.mxu0 %v1463
    %1491 = vmatmul.f32.gmra.mxu0 %v1468
    %v1492 = vpop.f32.mrf.mxu0
    %v1493 = vadd.f32 0.0, %v1492
    %1494 = vmatmul.f32.gmra.mxu0 %v1471
    %v1495 = vpop.f32.mrf.mxu0
    %v1496 = vadd.f32 0.0, %v1495
    %1497 = vdwg.mxu0
    %1500 = vrot.lane.b32.xlu0 %v1493, 16
    %v1501 = vpop.permute.xlu0 %1500
    %1502 = vrot.lane.b32.xlu0 %v1496, 16
    %v1503 = vpop.permute.xlu0 %1502
    %v1506 = vsel %vm247, %v1368, %v1501
    %v1507 = vsel %vm247, %v1371, %v1503
    %v1509 = vrot.slane %v1245, 1
    %v1510 = vrot.slane %v1248, 1
    %v1511 = vsel %vm504, %v1509, %v1510
    %1512 = vrot.lane.b32.xlu0 %v1511, 96
    %v1513 = vpop.permute.xlu0 %1512
    %1514 = vrot.lane.b32.xlu0 %v1510, 96
    %v1515 = vpop.permute.xlu0 %1514
    %v1516 = vsel %vm247, %v1511, 0
    %v1518 = vsel %vm247, %v1510, 0
    %v1520 = vsel %vm247, %v1513, 0
    %v1522 = vsel %vm247, %v1515, 0
    %1524 = vmatpush.xpose.msra.mxu0 0.0
    %1525 = vmatpush.xpose.msra.mxu0 0.0
    %1526 = vmatpush.xpose.msra.mxu0 0.0
    %1527 = vmatpush.xpose.msra.mxu0 0.0
    %1528 = vmatpush.xpose.msra.mxu0 0.0
    %1529 = vmatpush.xpose.msra.mxu0 0.0
    %1530 = vmatpush.xpose.msra.mxu0 0.0
    %1531 = vmatpush.xpose.msra.mxu0 0.0
    %1532 = vmatpush.xpose.msra.mxu0 0.0
    %1533 = vmatpush.xpose.msra.mxu0 0.0
    %1534 = vmatpush.xpose.msra.mxu0 0.0
    %1535 = vmatpush.xpose.msra.mxu0 0.0
    %1536 = vmatpush.xpose.msra.mxu0 0.0
    %1537 = vmatpush.xpose.msra.mxu0 0.0
    %1538 = vmatpush.xpose.msra.mxu0 %v1522
    %1539 = vmatpush.xpose.msra.mxu0 %v1520
    %1540 = vmatmul.f32.gmra.mxu0 %v1516
    %v1541 = vpop.f32.mrf.mxu0
    %v1542 = vadd.f32 0.0, %v1541
    %1543 = vmatmul.f32.gmra.mxu0 %v1518
    %v1544 = vpop.f32.mrf.mxu0
    %v1545 = vadd.f32 0.0, %v1544
    %1546 = vdwg.mxu0
    %v1547 = vmul.f32 %v1542, 0.25
    %v1548 = vmul.f32 %v1545, 0.25
    %v1549 = vsel %vm281, %v1547, -inf
    %1550 = vmax.xlane.f32.xlu0 %v1549
    %v1551 = vpop.xlane.xlu0 %1550
    %v1552 = vsel %vm285, %v1548, -inf
    %1553 = vmax.xlane.f32.xlu0 %v1552
    %v1554 = vpop.xlane.xlu0 %1553
    %v1555 = vsub.f32 %v1547, %v1551
    %v1556 = vsub.f32 %v1548, %v1554
    %v1557 = vmul.f32 %v1555, 1.442695
    %v1558 = vpow.pop %v1557
    %v1559 = vmul.f32 %v1556, 1.442695
    %v1560 = vpow.pop %v1559
    %v1561 = vsel %vm281, %v1558, 0.0
    %1562 = vadd.xlane.f32.xlu0 %v1561
    %v1563 = vpop.xlane.xlu0 %1562
    %v1564 = vsel %vm285, %v1560, 0.0
    %1565 = vadd.xlane.f32.xlu0 %v1564
    %v1566 = vpop.xlane.xlu0 %1565
    %v1567 = vrcp.pop %v1563
    %v1568 = vmul.f32 %v1563, %v1567
    %v1569 = vsub.f32 1.0, %v1568
    %v1570 = vmul.f32 %v1567, %v1569
    %v1571 = vadd.f32 %v1567, %v1570
    %vm1572 = vweird.f32 %v1563
    %vm1573 = vweird.f32 %v1567
    %vm1574 = vmor %vm1572, %vm1573
    %v1575 = vsel %vm1574, %v1567, %v1571
    %v1576 = vand.u32 2147483647, %v1563
    %vm1577 = vcmp.eq.f32.partialorder %v1576, 8.507059e+37
    %v1578 = vand.u32 %v1563, 2147483648
    %v1579 = vor.u32 1.1754944e-38, %v1578
    %v1580 = vsel %vm1577, %v1579, %v1575
    %v1581 = vmul.f32 %v1558, %v1580
    %v1582 = vrcp.pop %v1566
    %v1583 = vmul.f32 %v1566, %v1582
    %v1584 = vsub.f32 1.0, %v1583
    %v1585 = vmul.f32 %v1582, %v1584
    %v1586 = vadd.f32 %v1582, %v1585
    %vm1587 = vweird.f32 %v1566
    %vm1588 = vweird.f32 %v1582
    %vm1589 = vmor %vm1587, %vm1588
    %v1590 = vsel %vm1589, %v1582, %v1586
    %v1591 = vand.u32 2147483647, %v1566
    %vm1592 = vcmp.eq.f32.partialorder %v1591, 8.507059e+37
    %v1593 = vand.u32 %v1566, 2147483648
    %v1594 = vor.u32 1.1754944e-38, %v1593
    %v1595 = vsel %vm1592, %v1594, %v1590
    %v1596 = vmul.f32 %v1560, %v1595
    %1597 = vrot.lane.b32.xlu0 %v1511, 64
    %v1598 = vpop.permute.xlu0 %1597
    %1599 = vrot.lane.b32.xlu0 %v1510, 64
    %v1600 = vpop.permute.xlu0 %1599
    %v1603 = vsel %vm281, %v1581, 0
    %v1606 = vsel %vm281, %v1596, 0
    %v1608 = vsel %vm342, %v1600, 0
    %1610 = vmatpush.msra.mxu0 0.0
    %1611 = vmatpush.msra.mxu0 0.0
    %1612 = vmatpush.msra.mxu0 0.0
    %1613 = vmatpush.msra.mxu0 0.0
    %1614 = vmatpush.msra.mxu0 0.0
    %1615 = vmatpush.msra.mxu0 0.0
    %1616 = vmatpush.msra.mxu0 0.0
    %1617 = vmatpush.msra.mxu0 0.0
    %1618 = vmatpush.msra.mxu0 0.0
    %1619 = vmatpush.msra.mxu0 0.0
    %1620 = vmatpush.msra.mxu0 0.0
    %1621 = vmatpush.msra.mxu0 0.0
    %1622 = vmatpush.msra.mxu0 0.0
    %1623 = vmatpush.msra.mxu0 0.0
    %1624 = vmatpush.msra.mxu0 %v1608
    %1625 = vmatpush.msra.mxu0 %v1598
    %1626 = vmatmul.f32.gmra.mxu0 %v1603
    %v1627 = vpop.f32.mrf.mxu0
    %v1628 = vadd.f32 0.0, %v1627
    %1629 = vmatmul.f32.gmra.mxu0 %v1606
    %v1630 = vpop.f32.mrf.mxu0
    %v1631 = vadd.f32 0.0, %v1630
    %1632 = vdwg.mxu0
    %1633 = vrot.lane.b32.xlu0 %v1511, 112
    %v1634 = vpop.permute.xlu0 %1633
    %1635 = vrot.lane.b32.xlu0 %v1510, 112
    %v1636 = vpop.permute.xlu0 %1635
    %1637 = vrot.lane.b32.xlu0 %v1511, 80
    %v1638 = vpop.permute.xlu0 %1637
    %1639 = vrot.lane.b32.xlu0 %v1510, 80
    %v1640 = vpop.permute.xlu0 %1639
    %v1641 = vsel %vm247, %v1634, 0
    %v1643 = vsel %vm247, %v1636, 0
    %v1645 = vsel %vm247, %v1638, 0
    %v1647 = vsel %vm247, %v1640, 0
    %1649 = vmatpush.xpose.msra.mxu0 0.0
    %1650 = vmatpush.xpose.msra.mxu0 0.0
    %1651 = vmatpush.xpose.msra.mxu0 0.0
    %1652 = vmatpush.xpose.msra.mxu0 0.0
    %1653 = vmatpush.xpose.msra.mxu0 0.0
    %1654 = vmatpush.xpose.msra.mxu0 0.0
    %1655 = vmatpush.xpose.msra.mxu0 0.0
    %1656 = vmatpush.xpose.msra.mxu0 0.0
    %1657 = vmatpush.xpose.msra.mxu0 0.0
    %1658 = vmatpush.xpose.msra.mxu0 0.0
    %1659 = vmatpush.xpose.msra.mxu0 0.0
    %1660 = vmatpush.xpose.msra.mxu0 0.0
    %1661 = vmatpush.xpose.msra.mxu0 0.0
    %1662 = vmatpush.xpose.msra.mxu0 0.0
    %1663 = vmatpush.xpose.msra.mxu0 %v1647
    %1664 = vmatpush.xpose.msra.mxu0 %v1645
    %1665 = vmatmul.f32.gmra.mxu0 %v1641
    %v1666 = vpop.f32.mrf.mxu0
    %v1667 = vadd.f32 0.0, %v1666
    %1668 = vmatmul.f32.gmra.mxu0 %v1643
    %v1669 = vpop.f32.mrf.mxu0
    %v1670 = vadd.f32 0.0, %v1669
    %1671 = vdwg.mxu0
    %v1672 = vmul.f32 %v1667, 0.25
    %v1673 = vmul.f32 %v1670, 0.25
    %v1674 = vsel %vm281, %v1672, -inf
    %1675 = vmax.xlane.f32.xlu0 %v1674
    %v1676 = vpop.xlane.xlu0 %1675
    %v1677 = vsel %vm285, %v1673, -inf
    %1678 = vmax.xlane.f32.xlu0 %v1677
    %v1679 = vpop.xlane.xlu0 %1678
    %v1680 = vsub.f32 %v1672, %v1676
    %v1681 = vsub.f32 %v1673, %v1679
    %v1682 = vmul.f32 %v1680, 1.442695
    %v1683 = vpow.pop %v1682
    %v1684 = vmul.f32 %v1681, 1.442695
    %v1685 = vpow.pop %v1684
    %v1686 = vsel %vm281, %v1683, 0.0
    %1687 = vadd.xlane.f32.xlu0 %v1686
    %v1688 = vpop.xlane.xlu0 %1687
    %v1689 = vsel %vm285, %v1685, 0.0
    %1690 = vadd.xlane.f32.xlu0 %v1689
    %v1691 = vpop.xlane.xlu0 %1690
    %v1692 = vrcp.pop %v1688
    %v1693 = vmul.f32 %v1688, %v1692
    %v1694 = vsub.f32 1.0, %v1693
    %v1695 = vmul.f32 %v1692, %v1694
    %v1696 = vadd.f32 %v1692, %v1695
    %vm1697 = vweird.f32 %v1688
    %vm1698 = vweird.f32 %v1692
    %vm1699 = vmor %vm1697, %vm1698
    %v1700 = vsel %vm1699, %v1692, %v1696
    %v1701 = vand.u32 2147483647, %v1688
    %vm1702 = vcmp.eq.f32.partialorder %v1701, 8.507059e+37
    %v1703 = vand.u32 %v1688, 2147483648
    %v1704 = vor.u32 1.1754944e-38, %v1703
    %v1705 = vsel %vm1702, %v1704, %v1700
    %v1706 = vmul.f32 %v1683, %v1705
    %v1707 = vrcp.pop %v1691
    %v1708 = vmul.f32 %v1691, %v1707
    %v1709 = vsub.f32 1.0, %v1708
    %v1710 = vmul.f32 %v1707, %v1709
    %v1711 = vadd.f32 %v1707, %v1710
    %vm1712 = vweird.f32 %v1691
    %vm1713 = vweird.f32 %v1707
    %vm1714 = vmor %vm1712, %vm1713
    %v1715 = vsel %vm1714, %v1707, %v1711
    %v1716 = vand.u32 2147483647, %v1691
    %vm1717 = vcmp.eq.f32.partialorder %v1716, 8.507059e+37
    %v1718 = vand.u32 %v1691, 2147483648
    %v1719 = vor.u32 1.1754944e-38, %v1718
    %v1720 = vsel %vm1717, %v1719, %v1715
    %v1721 = vmul.f32 %v1685, %v1720
    %1722 = vrot.lane.b32.xlu0 %v1511, 48
    %v1723 = vpop.permute.xlu0 %1722
    %1724 = vrot.lane.b32.xlu0 %v1510, 48
    %v1725 = vpop.permute.xlu0 %1724
    %v1728 = vsel %vm281, %v1706, 0
    %v1731 = vsel %vm281, %v1721, 0
    %v1733 = vsel %vm342, %v1725, 0
    %1735 = vmatpush.msra.mxu0 0.0
    %1736 = vmatpush.msra.mxu0 0.0
    %1737 = vmatpush.msra.mxu0 0.0
    %1738 = vmatpush.msra.mxu0 0.0
    %1739 = vmatpush.msra.mxu0 0.0
    %1740 = vmatpush.msra.mxu0 0.0
    %1741 = vmatpush.msra.mxu0 0.0
    %1742 = vmatpush.msra.mxu0 0.0
    %1743 = vmatpush.msra.mxu0 0.0
    %1744 = vmatpush.msra.mxu0 0.0
    %1745 = vmatpush.msra.mxu0 0.0
    %1746 = vmatpush.msra.mxu0 0.0
    %1747 = vmatpush.msra.mxu0 0.0
    %1748 = vmatpush.msra.mxu0 0.0
    %1749 = vmatpush.msra.mxu0 %v1733
    %1750 = vmatpush.msra.mxu0 %v1723
    %1751 = vmatmul.f32.gmra.mxu0 %v1728
    %v1752 = vpop.f32.mrf.mxu0
    %v1753 = vadd.f32 0.0, %v1752
    %1754 = vmatmul.f32.gmra.mxu0 %v1731
    %v1755 = vpop.f32.mrf.mxu0
    %v1756 = vadd.f32 0.0, %v1755
    %1757 = vdwg.mxu0
    %1760 = vrot.lane.b32.xlu0 %v1753, 16
    %v1761 = vpop.permute.xlu0 %1760
    %1762 = vrot.lane.b32.xlu0 %v1756, 16
    %v1763 = vpop.permute.xlu0 %1762
    %v1766 = vsel %vm247, %v1628, %v1761
    %v1767 = vsel %vm247, %v1631, %v1763
    %v1770 = vrot.slane %v1766, 7
    %v1771 = vrot.slane %v1767, 7
    %v1772 = vsel %vm342, %v1770, %v1771
    %v1774 = vsel %vm342, %v1507, %v1770
    %s1775 = scalar_lea.vmem [#allocation4], 32
    %v1776 = vld [vmem:[%s1775] sm:$0xff]
    %v1777 = vld [vmem:[%s1775 + $0x8] sm:$0xff]
    %v1778 = vld [vmem:[%s1775 + $0x10] sm:$0xff]
    %v1779 = vld [vmem:[%s1775 + $0x18] sm:$0xff]
    %v1781 = vsel %vm115, %v1506, 0
    %v1784 = vsel %vm115, %v1774, 0
    %v1786 = vsel %vm115, %v1772, 0
    %1788 = vmatpush.msra.mxu0 0.0
    %1789 = vmatpush.msra.mxu0 0.0
    %1790 = vmatpush.msra.mxu0 0.0
    %1791 = vmatpush.msra.mxu0 0.0
    %1792 = vmatpush.msra.mxu0 0.0
    %1793 = vmatpush.msra.mxu0 0.0
    %1794 = vmatpush.msra.mxu0 0.0
    %1795 = vmatpush.msra.mxu0 0.0
    %1796 = vmatpush.msra.mxu0 0.0
    %1797 = vmatpush.msra.mxu0 0.0
    %1798 = vmatpush.msra.mxu0 0.0
    %1799 = vmatpush.msra.mxu0 0.0
    %1800 = vmatpush.msra.mxu0 %v1779
    %1801 = vmatpush.msra.mxu0 %v1778
    %1802 = vmatpush.msra.mxu0 %v1777
    %1803 = vmatpush.msra.mxu0 %v1776
    %1804 = vmatmul.f32.gmra.mxu0 %v1781
    %v1805 = vpop.f32.mrf.mxu0
    %v1806 = vadd.f32 0.0, %v1805
    %1807 = vmatmul.f32.gmra.mxu0 %v1784
    %v1808 = vpop.f32.mrf.mxu0
    %v1809 = vadd.f32 0.0, %v1808
    %1810 = vmatmul.f32.gmra.mxu0 %v1786
    %v1811 = vpop.f32.mrf.mxu0
    %v1812 = vadd.f32 0.0, %v1811
    %1813 = vdwg.mxu0
    %v1814 = vadd.f32 %v1125, %v1806
    %v1815 = vadd.f32 %v1126, %v1809
    %v1816 = vadd.f32 %v1127, %v1812
    %s1817 = scalar_lea.vmem %s5, 1
    %v1818 = vld [vmem:[%s1817] sm:$0x1]
    %v1820 = vperm.slane %v1818, 0
    %v1822 = vadd.f32 %v1814, %v1820
    %v1823 = vadd.f32 %v1815, %v1820
    %v1824 = vadd.f32 %v1816, %v1820
    %s1825 = scalar_lea.vmem %s6, 1
    %v1826 = vld [vmem:[%s1825] sm:$0x1]
    %s1827 = scalar_lea.vmem %s7, 1
    %v1828 = vld [vmem:[%s1827] sm:$0x1]
    %v1829 = vsel %vm115, %v1822, 0.0
    %1830 = vadd.xlane.f32.xlu0 %v1829
    %v1831 = vpop.xlane.xlu0 %1830
    %v1832 = vsel %vm115, %v1823, 0.0
    %1833 = vadd.xlane.f32.xlu0 %v1832
    %v1834 = vpop.xlane.xlu0 %1833
    %v1835 = vsel %vm122, %v1824, 0.0
    %1836 = vadd.xlane.f32.xlu0 %v1835
    %v1837 = vpop.xlane.xlu0 %1836
    %v1838 = vmul.f32 %v1831, %v132
    %v1839 = vmul.f32 %v1834, %v132
    %v1840 = vmul.f32 %v1837, %v132
    %v1841 = vsub.f32 %v1822, %v1838
    %v1842 = vsub.f32 %v1823, %v1839
    %v1843 = vsub.f32 %v1824, %v1840
    %v1844 = vmul.f32 %v1841, %v1841
    %v1845 = vmul.f32 %v1842, %v1842
    %v1846 = vmul.f32 %v1843, %v1843
    %v1847 = vsel %vm115, %v1844, 0.0
    %1848 = vadd.xlane.f32.xlu0 %v1847
    %v1849 = vpop.xlane.xlu0 %1848
    %v1850 = vsel %vm115, %v1845, 0.0
    %1851 = vadd.xlane.f32.xlu0 %v1850
    %v1852 = vpop.xlane.xlu0 %1851
    %v1853 = vsel %vm122, %v1846, 0.0
    %1854 = vadd.xlane.f32.xlu0 %v1853
    %v1855 = vpop.xlane.xlu0 %1854
    %v1856 = vmul.f32 %v1849, %v132
    %v1857 = vmul.f32 %v1852, %v132
    %v1858 = vmul.f32 %v1855, %v132
    %v1859 = vadd.f32 %v1856, 1e-05
    %v1860 = vadd.f32 %v1857, 1e-05
    %v1861 = vadd.f32 %v1858, 1e-05
    %v1862 = vrsqrt.pop %v1859
    %v1863 = vmul.f32 %v1862, %v1859
    %v1864 = vmul.f32 %v1863, %v1862
    %v1865 = vmul.f32 0.5, %v1864
    %v1866 = vsub.f32 1.5, %v1865
    %v1867 = vmul.f32 %v1862, %v1866
    %vm1868 = vweird.f32 %v1859
    %vm1869 = vweird.f32 %v1862
    %vm1870 = vmor %vm1868, %vm1869
    %v1871 = vsel %vm1870, %v1862, %v1867
    %v1872 = vrsqrt.pop %v1860
    %v1873 = vmul.f32 %v1872, %v1860
    %v1874 = vmul.f32 %v1873, %v1872
    %v1875 = vmul.f32 0.5, %v1874
    %v1876 = vsub.f32 1.5, %v1875
    %v1877 = vmul.f32 %v1872, %v1876
    %vm1878 = vweird.f32 %v1860
    %vm1879 = vweird.f32 %v1872
    %vm1880 = vmor %vm1878, %vm1879
    %v1881 = vsel %vm1880, %v1872, %v1877
    %v1882 = vrsqrt.pop %v1861
    %v1883 = vmul.f32 %v1882, %v1861
    %v1884 = vmul.f32 %v1883, %v1882
    %v1885 = vmul.f32 0.5, %v1884
    %v1886 = vsub.f32 1.5, %v1885
    %v1887 = vmul.f32 %v1882, %v1886
    %vm1888 = vweird.f32 %v1861
    %vm1889 = vweird.f32 %v1882
    %vm1890 = vmor %vm1888, %vm1889
    %v1891 = vsel %vm1890, %v1882, %v1887
    %v1892 = vmul.f32 %v1841, %v1871
    %v1893 = vmul.f32 %v1842, %v1881
    %v1894 = vmul.f32 %v1843, %v1891
    %v1896 = vperm.slane %v1826, 0
    %v1898 = vmul.f32 %v1892, %v1896
    %v1899 = vmul.f32 %v1893, %v1896
    %v1900 = vmul.f32 %v1894, %v1896
    %v1902 = vperm.slane %v1828, 0
    %v1904 = vadd.f32 %v1898, %v1902
    %v1905 = vadd.f32 %v1899, %v1902
    %v1906 = vadd.f32 %v1900, %v1902
    %s1907 = scalar_lea.vmem [#allocation6], 32
    %v1908 = vld [vmem:[%s1907] sm:$0xff]
    %v1909 = vld [vmem:[%s1907 + $0x8] sm:$0xff]
    %v1910 = vld [vmem:[%s1907 + $0x10] sm:$0xff]
    %v1911 = vld [vmem:[%s1907 + $0x18] sm:$0xff]
    %s1912 = scalar_lea.vmem %s9, 1
    %v1913 = vld [vmem:[%s1912] sm:$0x1]
    %v1915 = vperm.slane %v1913, 0
    %v1918 = vsel %vm115, %v1904, 0
    %v1921 = vsel %vm115, %v1905, 0
    %v1924 = vsel %vm115, %v1906, 0
    %1926 = vmatpush.msra.mxu0 0.0
    %1927 = vmatpush.msra.mxu0 0.0
    %1928 = vmatpush.msra.mxu0 0.0
    %1929 = vmatpush.msra.mxu0 0.0
    %1930 = vmatpush.msra.mxu0 0.0
    %1931 = vmatpush.msra.mxu0 0.0
    %1932 = vmatpush.msra.mxu0 0.0
    %1933 = vmatpush.msra.mxu0 0.0
    %1934 = vmatpush.msra.mxu0 0.0
    %1935 = vmatpush.msra.mxu0 0.0
    %1936 = vmatpush.msra.mxu0 0.0
    %1937 = vmatpush.msra.mxu0 0.0
    %1938 = vmatpush.msra.mxu0 %v1911
    %1939 = vmatpush.msra.mxu0 %v1910
    %1940 = vmatpush.msra.mxu0 %v1909
    %1941 = vmatpush.msra.mxu0 %v1908
    %1942 = vmatmul.f32.gmra.mxu0 %v1918
    %v1943 = vpop.f32.mrf.mxu0
    %v1944 = vadd.f32 %v1915, %v1943
    %1945 = vmatmul.f32.gmra.mxu0 %v1921
    %v1946 = vpop.f32.mrf.mxu0
    %v1947 = vadd.f32 %v1915, %v1946
    %1948 = vmatmul.f32.gmra.mxu0 %v1924
    %v1949 = vpop.f32.mrf.mxu0
    %v1950 = vadd.f32 %v1915, %v1949
    %1951 = vdwg.mxu0
    %v1952 = vmul.f32 %v1944, 0.5
    %v1953 = vmul.f32 %v1947, 0.5
    %v1954 = vmul.f32 %v1950, 0.5
    %v1955 = vmul.f32 %v1944, 0.70710677
    %v1956 = vmul.f32 %v1947, 0.70710677
    %v1957 = vmul.f32 %v1950, 0.70710677
    %v1958 = vmul.f32 %v1955, %v1955
    %v1959 = vmin.f32 16.0, %v1958
    %v1960 = vmul.f32 %v1959, 2.1237322e-06
    %v1961 = vadd.f32 %v1960, 0.00028619796
    %v1962 = vmul.f32 %v1959, %v1961
    %v1963 = vadd.f32 %v1962, 0.0036580483
    %v1964 = vmul.f32 %v1959, %v1963
    %v1965 = vadd.f32 %v1964, 0.05243302
    %v1966 = vmul.f32 %v1959, %v1965
    %v1967 = vadd.f32 %v1966, 0.18741608
    %v1968 = vmul.f32 %v1959, %v1967
    %v1969 = vadd.f32 %v1968, 1.1283791
    %v1970 = vmul.f32 %v1955, %v1969
    %v1971 = vmul.f32 %v1959, 3.8918573e-05
    %v1972 = vadd.f32 %v1971, 0.001143296
    %v1973 = vmul.f32 %v1959, %v1972
    %v1974 = vadd.f32 %v1973, 0.014752088
    %v1975 = vmul.f32 %v1959, %v1974
    %v1976 = vadd.f32 %v1975, 0.112945676
    %v1977 = vmul.f32 %v1959, %v1976
    %v1978 = vadd.f32 %v1977, 0.4994258
    %v1979 = vmul.f32 %v1959, %v1978
    %v1980 = vadd.f32 %v1979, 1.0
    %v1981 = vrcp.pop %v1980
    %v1982 = vmul.f32 %v1980, %v1981
    %v1983 = vsub.f32 1.0, %v1982
    %v1984 = vmul.f32 %v1981, %v1983
    %v1985 = vadd.f32 %v1981, %v1984
    %vm1986 = vweird.f32 %v1980
    %vm1987 = vweird.f32 %v1981
    %vm1988 = vmor %vm1986, %vm1987
    %v1989 = vsel %vm1988, %v1981, %v1985
    %v1990 = vand.u32 2147483647, %v1980
    %vm1991 = vcmp.eq.f32.partialorder %v1990, 8.507059e+37
    %v1992 = vand.u32 %v1980, 2147483648
    %v1993 = vor.u32 1.1754944e-38, %v1992
    %v1994 = vsel %vm1991, %v1993, %v1989
    %v1995 = vmul.f32 %v1970, %v1994
    %v1996 = vmin.f32 %v1995, 1.0
    %v1997 = vmax.f32 %v1996, -1.0
    %v1998 = vmul.f32 %v1956, %v1956
    %v1999 = vmin.f32 16.0, %v1998
    %v2000 = vmul.f32 %v1999, 2.1237322e-06
    %v2001 = vadd.f32 %v2000, 0.00028619796
    %v2002 = vmul.f32 %v1999, %v2001
    %v2003 = vadd.f32 %v2002, 0.0036580483
    %v2004 = vmul.f32 %v1999, %v2003
    %v2005 = vadd.f32 %v2004, 0.05243302
    %v2006 = vmul.f32 %v1999, %v2005
    %v2007 = vadd.f32 %v2006, 0.18741608
    %v2008 = vmul.f32 %v1999, %v2007
    %v2009 = vadd.f32 %v2008, 1.1283791
    %v2010 = vmul.f32 %v1956, %v2009
    %v2011 = vmul.f32 %v1999, 3.8918573e-05
    %v2012 = vadd.f32 %v2011, 0.001143296
    %v2013 = vmul.f32 %v1999, %v2012
    %v2014 = vadd.f32 %v2013, 0.014752088
    %v2015 = vmul.f32 %v1999, %v2014
    %v2016 = vadd.f32 %v2015, 0.112945676
    %v2017 = vmul.f32 %v1999, %v2016
    %v2018 = vadd.f32 %v2017, 0.4994258
    %v2019 = vmul.f32 %v1999, %v2018
    %v2020 = vadd.f32 %v2019, 1.0
    %v2021 = vrcp.pop %v2020
    %v2022 = vmul.f32 %v2020, %v2021
    %v2023 = vsub.f32 1.0, %v2022
    %v2024 = vmul.f32 %v2021, %v2023
    %v2025 = vadd.f32 %v2021, %v2024
    %vm2026 = vweird.f32 %v2020
    %vm2027 = vweird.f32 %v2021
    %vm2028 = vmor %vm2026, %vm2027
    %v2029 = vsel %vm2028, %v2021, %v2025
    %v2030 = vand.u32 2147483647, %v2020
    %vm2031 = vcmp.eq.f32.partialorder %v2030, 8.507059e+37
    %v2032 = vand.u32 %v2020, 2147483648
    %v2033 = vor.u32 1.1754944e-38, %v2032
    %v2034 = vsel %vm2031, %v2033, %v2029
    %v2035 = vmul.f32 %v2010, %v2034
    %v2036 = vmin.f32 %v2035, 1.0
    %v2037 = vmax.f32 %v2036, -1.0
    %v2038 = vmul.f32 %v1957, %v1957
    %v2039 = vmin.f32 16.0, %v2038
    %v2040 = vmul.f32 %v2039, 2.1237322e-06
    %v2041 = vadd.f32 %v2040, 0.00028619796
    %v2042 = vmul.f32 %v2039, %v2041
    %v2043 = vadd.f32 %v2042, 0.0036580483
    %v2044 = vmul.f32 %v2039, %v2043
    %v2045 = vadd.f32 %v2044, 0.05243302
    %v2046 = vmul.f32 %v2039, %v2045
    %v2047 = vadd.f32 %v2046, 0.18741608
    %v2048 = vmul.f32 %v2039, %v2047
    %v2049 = vadd.f32 %v2048, 1.1283791
    %v2050 = vmul.f32 %v1957, %v2049
    %v2051 = vmul.f32 %v2039, 3.8918573e-05
    %v2052 = vadd.f32 %v2051, 0.001143296
    %v2053 = vmul.f32 %v2039, %v2052
    %v2054 = vadd.f32 %v2053, 0.014752088
    %v2055 = vmul.f32 %v2039, %v2054
    %v2056 = vadd.f32 %v2055, 0.112945676
    %v2057 = vmul.f32 %v2039, %v2056
    %v2058 = vadd.f32 %v2057, 0.4994258
    %v2059 = vmul.f32 %v2039, %v2058
    %v2060 = vadd.f32 %v2059, 1.0
    %v2061 = vrcp.pop %v2060
    %v2062 = vmul.f32 %v2060, %v2061
    %v2063 = vsub.f32 1.0, %v2062
    %v2064 = vmul.f32 %v2061, %v2063
    %v2065 = vadd.f32 %v2061, %v2064
    %vm2066 = vweird.f32 %v2060
    %vm2067 = vweird.f32 %v2061
    %vm2068 = vmor %vm2066, %vm2067
    %v2069 = vsel %vm2068, %v2061, %v2065
    %v2070 = vand.u32 2147483647, %v2060
    %vm2071 = vcmp.eq.f32.partialorder %v2070, 8.507059e+37
    %v2072 = vand.u32 %v2060, 2147483648
    %v2073 = vor.u32 1.1754944e-38, %v2072
    %v2074 = vsel %vm2071, %v2073, %v2069
    %v2075 = vmul.f32 %v2050, %v2074
    %v2076 = vmin.f32 %v2075, 1.0
    %v2077 = vmax.f32 %v2076, -1.0
    %v2078 = vadd.f32 %v1997, 1.0
    %v2079 = vadd.f32 %v2037, 1.0
    %v2080 = vadd.f32 %v2077, 1.0
    %v2081 = vmul.f32 %v1952, %v2078
    %v2082 = vmul.f32 %v1953, %v2079
    %v2083 = vmul.f32 %v1954, %v2080
    %s2084 = scalar_lea.vmem [#allocation7], 64
    %v2085 = vld [vmem:[%s2084] sm:$0xff]
    %v2086 = vld [vmem:[%s2084 + $0x8] sm:$0xff]
    %v2087 = vld [vmem:[%s2084 + $0x10] sm:$0xff]
    %v2088 = vld [vmem:[%s2084 + $0x18] sm:$0xff]
    %v2089 = vld [vmem:[%s2084 + $0x20] sm:$0xff]
    %v2090 = vld [vmem:[%s2084 + $0x28] sm:$0xff]
    %v2091 = vld [vmem:[%s2084 + $0x30] sm:$0xff]
    %v2092 = vld [vmem:[%s2084 + $0x38] sm:$0xff]
    %v2094 = vsel %vm1082, %v2081, 0
    %v2097 = vsel %vm1082, %v2082, 0
    %v2100 = vsel %vm1082, %v2083, 0
    %2102 = vmatpush.msra.mxu0 0.0
    %2103 = vmatpush.msra.mxu0 0.0
    %2104 = vmatpush.msra.mxu0 0.0
    %2105 = vmatpush.msra.mxu0 0.0
    %2106 = vmatpush.msra.mxu0 0.0
    %2107 = vmatpush.msra.mxu0 0.0
    %2108 = vmatpush.msra.mxu0 0.0
    %2109 = vmatpush.msra.mxu0 0.0
    %2110 = vmatpush.msra.mxu0 %v2092
    %2111 = vmatpush.msra.mxu0 %v2091
    %2112 = vmatpush.msra.mxu0 %v2090
    %2113 = vmatpush.msra.mxu0 %v2089
    %2114 = vmatpush.msra.mxu0 %v2088
    %2115 = vmatpush.msra.mxu0 %v2087
    %2116 = vmatpush.msra.mxu0 %v2086
    %2117 = vmatpush.msra.mxu0 %v2085
    %2118 = vmatmul.f32.gmra.mxu0 %v2094
    %v2119 = vpop.f32.mrf.mxu0
    %v2120 = vadd.f32 0.0, %v2119
    %2121 = vmatmul.f32.gmra.mxu0 %v2097
    %v2122 = vpop.f32.mrf.mxu0
    %v2123 = vadd.f32 0.0, %v2122
    %2124 = vmatmul.f32.gmra.mxu0 %v2100
    %v2125 = vpop.f32.mrf.mxu0
    %v2126 = vadd.f32 0.0, %v2125
    %2127 = vdwg.mxu0
    %v2128 = vadd.f32 %v1822, %v2120
    %v2129 = vadd.f32 %v1823, %v2123
    %v2130 = vadd.f32 %v1824, %v2126
    %s2131 = scalar_lea.vmem %s11, 1
    %v2132 = vld [vmem:[%s2131] sm:$0x1]
    %v2134 = vperm.slane %v2132, 0
    %v2136 = vadd.f32 %v2128, %v2134
    %v2137 = vadd.f32 %v2129, %v2134
    %v2138 = vadd.f32 %v2130, %v2134
    %v2139 = vld [vmem:[%s12] sm:$0x1]
    %v2140 = vld [vmem:[%s13] sm:$0x1]
    %v2141 = vsel %vm115, %v2136, 0.0
    %2142 = vadd.xlane.f32.xlu0 %v2141
    %v2143 = vpop.xlane.xlu0 %2142
    %v2144 = vsel %vm115, %v2137, 0.0
    %2145 = vadd.xlane.f32.xlu0 %v2144
    %v2146 = vpop.xlane.xlu0 %2145
    %v2147 = vsel %vm122, %v2138, 0.0
    %2148 = vadd.xlane.f32.xlu0 %v2147
    %v2149 = vpop.xlane.xlu0 %2148
    %v2150 = vmul.f32 %v2143, %v132
    %v2151 = vmul.f32 %v2146, %v132
    %v2152 = vmul.f32 %v2149, %v132
    %v2153 = vsub.f32 %v2136, %v2150
    %v2154 = vsub.f32 %v2137, %v2151
    %v2155 = vsub.f32 %v2138, %v2152
    %v2156 = vmul.f32 %v2153, %v2153
    %v2157 = vmul.f32 %v2154, %v2154
    %v2158 = vmul.f32 %v2155, %v2155
    %v2159 = vsel %vm115, %v2156, 0.0
    %2160 = vadd.xlane.f32.xlu0 %v2159
    %v2161 = vpop.xlane.xlu0 %2160
    %v2162 = vsel %vm115, %v2157, 0.0
    %2163 = vadd.xlane.f32.xlu0 %v2162
    %v2164 = vpop.xlane.xlu0 %2163
    %v2165 = vsel %vm122, %v2158, 0.0
    %2166 = vadd.xlane.f32.xlu0 %v2165
    %v2167 = vpop.xlane.xlu0 %2166
    %v2168 = vmul.f32 %v2161, %v132
    %v2169 = vmul.f32 %v2164, %v132
    %v2170 = vmul.f32 %v2167, %v132
    %v2171 = vadd.f32 %v2168, 1e-05
    %v2172 = vadd.f32 %v2169, 1e-05
    %v2173 = vadd.f32 %v2170, 1e-05
    %v2174 = vrsqrt.pop %v2171
    %v2175 = vmul.f32 %v2174, %v2171
    %v2176 = vmul.f32 %v2175, %v2174
    %v2177 = vmul.f32 0.5, %v2176
    %v2178 = vsub.f32 1.5, %v2177
    %v2179 = vmul.f32 %v2174, %v2178
    %vm2180 = vweird.f32 %v2171
    %vm2181 = vweird.f32 %v2174
    %vm2182 = vmor %vm2180, %vm2181
    %v2183 = vsel %vm2182, %v2174, %v2179
    %v2184 = vrsqrt.pop %v2172
    %v2185 = vmul.f32 %v2184, %v2172
    %v2186 = vmul.f32 %v2185, %v2184
    %v2187 = vmul.f32 0.5, %v2186
    %v2188 = vsub.f32 1.5, %v2187
    %v2189 = vmul.f32 %v2184, %v2188
    %vm2190 = vweird.f32 %v2172
    %vm2191 = vweird.f32 %v2184
    %vm2192 = vmor %vm2190, %vm2191
    %v2193 = vsel %vm2192, %v2184, %v2189
    %v2194 = vrsqrt.pop %v2173
    %v2195 = vmul.f32 %v2194, %v2173
    %v2196 = vmul.f32 %v2195, %v2194
    %v2197 = vmul.f32 0.5, %v2196
    %v2198 = vsub.f32 1.5, %v2197
    %v2199 = vmul.f32 %v2194, %v2198
    %vm2200 = vweird.f32 %v2173
    %vm2201 = vweird.f32 %v2194
    %vm2202 = vmor %vm2200, %vm2201
    %v2203 = vsel %vm2202, %v2194, %v2199
    %v2204 = vmul.f32 %v2153, %v2183
    %v2205 = vmul.f32 %v2154, %v2193
    %v2206 = vmul.f32 %v2155, %v2203
    %v2208 = vperm.slane %v2139, 0
    %v2210 = vmul.f32 %v2204, %v2208
    %v2211 = vmul.f32 %v2205, %v2208
    %v2212 = vmul.f32 %v2206, %v2208
    %v2214 = vperm.slane %v2140, 0
    %v2216 = vadd.f32 %v2210, %v2214
    %v2217 = vadd.f32 %v2211, %v2214
    %v2218 = vadd.f32 %v2212, %v2214
    %2219 = vst.msk [vmem:[%s14] sm:$0xff] %vm115, %v2216
    %2220 = vst.msk [vmem:[%s14 + $0x8] sm:$0xff] %vm115, %v2217
    %2221 = vst.msk [vmem:[%s14 + $0x10] sm:$0x3] %vm122, %v2218
    // Predicated region
    $region74: #{multiscale_encoder_fwd.3} parent=1 // pred_check
      _
    $region75: #{multiscale_encoder_fwd.3} parent=1 // pred_check_branch
      %2223 = sbr.rel (0) target = $region77
    $region76: #{multiscale_encoder_fwd.3} parent=1 // pred_region
      _
    $region77: #{multiscale_encoder_fwd.3} parent=1 // pred_fallthru
      _
    // Predicated region
    $region78: #{multiscale_encoder_fwd.3} parent=1 // pred_check
      _
    $region79: #{multiscale_encoder_fwd.3} parent=1 // pred_check_branch
      %2225 = sbr.rel (0) target = $region81
    $region80: #{multiscale_encoder_fwd.3} parent=1 // pred_region
      _
    $region81: #{multiscale_encoder_fwd.3} parent=1 // pred_fallthru
      _
    %2226 = vsyncpa [#allocation3], 1
    %2227 = vsyncpa [#allocation5], 1
    %2228 = vsyncpa [#allocation8], 1

// kernel: multiscale_encoder_fwd.4
$region0: #{multiscale_encoder_fwd.4}
  #allocation0 [shape = 'u32[]', space=smem, size = 0x4, offset = 0x4, fixed_abs, tag = 'smem constant byte address 0x4 - core index']
  #allocation1 [shape = 'u32[72,128]{1,0:T(1,128)}', space=vmem, size = 0x9000, scoped, tag = 'internal scratch']
  %s0 = inlined_call_operand.vmem [shape: f32[18,64], index: 0, kind: input, shape index: {}]
  %s1 = inlined_call_operand.vmem [shape: f32[2,1,64], index: 1, kind: input, shape index: {}, may-alias: {1,6}]
  %s2 = inlined_call_operand.vmem [shape: f32[2,1,64], index: 2, kind: input, shape index: {}, may-alias: {2,5,7,9,11}]
  %s3 = inlined_call_operand.hbm [shape: f32[2,64,96], index: 3, kind: input, shape index: {}]
  %s4 = inlined_call_operand.hbm [shape: f32[2,32,64], index: 4, kind: input, shape index: {}]
  %s5 = inlined_call_operand.vmem [shape: f32[2,1,64], index: 5, kind: input, shape index: {}, may-alias: {2,5,7,9,11}]
  %s6 = inlined_call_operand.vmem [shape: f32[2,1,64], index: 6, kind: input, shape index: {}, may-alias: {1,6}]
  %s7 = inlined_call_operand.vmem [shape: f32[2,1,64], index: 7, kind: input, shape index: {}, may-alias: {2,5,7,9,11}]
  %s8 = inlined_call_operand.hbm [shape: f32[2,64,64], index: 8, kind: input, shape index: {}]
  %s9 = inlined_call_operand.vmem [shape: f32[2,1,64], index: 9, kind: input, shape index: {}, may-alias: {2,5,7,9,11}]
  %s10 = inlined_call_operand.hbm [shape: f32[2,64,64], index: 10, kind: input, shape index: {}]
  %s11 = inlined_call_operand.vmem [shape: f32[2,1,64], index: 11, kind: input, shape index: {}, may-alias: {2,5,7,9,11}]
  %s12 = inlined_call_operand.vmem [shape: f32[1,64], index: 12, kind: input, shape index: {}]
  %s13 = inlined_call_operand.vmem [shape: f32[1,64], index: 13, kind: input, shape index: {}]
  %s14 = inlined_call_operand.vmem [shape: f32[18,64], index: 14, kind: output, shape index: {}]
  %s15 = sld [smem:[#allocation0]]
  $region82: #{multiscale_encoder_fwd.4} parent=0
    _
  %s17 = ssub.s32 1, %s15
  %s18 = scalar_select 0, %s17, %s15
  $region1: #{multiscale_encoder_fwd.4} parent=0
    #allocation2 [shape = 'u8[65536]{0}', space=vmem, size = 0x10000, scoped, tag = 'input window, operand 3, single buffered']
    #allocation3 [shape = 's32[1]{0}', space=sflag, size = 0x4, scoped, tag = 'scoped memory for multiscale_encoder_fwd.4']
    #allocation4 [shape = 'u8[32768]{0}', space=vmem, size = 0x8000, scoped, tag = 'input window, operand 4, single buffered']
    #allocation5 [shape = 's32[1]{0}', space=sflag, size = 0x4, scoped, tag = 'scoped memory for multiscale_encoder_fwd.4']
    #allocation6 [shape = 'u8[65536]{0}', space=vmem, size = 0x10000, scoped, tag = 'input window, operand 8, single buffered']
    #allocation7 [shape = 'u8[65536]{0}', space=vmem, size = 0x10000, scoped, tag = 'input window, operand 10, single buffered']
    #allocation8 [shape = 's32[1]{0}', space=sflag, size = 0x4, scoped, tag = 'scoped memory for multiscale_encoder_fwd.4']
    %19 = vsyncpa [#allocation3], 0
    %20 = vsyncpa [#allocation5], 0
    %21 = vsyncpa [#allocation8], 0
    // Predicated region
    $region2: #{multiscale_encoder_fwd.4} parent=1 // pred_check
      _
    $region3: #{multiscale_encoder_fwd.4} parent=1 // pred_check_branch
      %23 = sbr.rel (0) target = $region5
    $region4: #{multiscale_encoder_fwd.4} parent=1 // pred_region
      _
    $region5: #{multiscale_encoder_fwd.4} parent=1 // pred_fallthru
      _
    // Predicated region
    $region6: #{multiscale_encoder_fwd.4} parent=1 // pred_check
      _
    $region7: #{multiscale_encoder_fwd.4} parent=1 // pred_check_branch
      %25 = sbr.rel (0) target = $region9
    $region8: #{multiscale_encoder_fwd.4} parent=1 // pred_region
      _
    $region9: #{multiscale_encoder_fwd.4} parent=1 // pred_fallthru
      _
    // Predicated region
    $region10: #{multiscale_encoder_fwd.4} parent=1 // pred_check
      _
    $region11: #{multiscale_encoder_fwd.4} parent=1 // pred_check_branch
      %27 = sbr.rel (0) target = $region13
    $region12: #{multiscale_encoder_fwd.4} parent=1 // pred_region
      _
    $region13: #{multiscale_encoder_fwd.4} parent=1 // pred_fallthru
      _
    // Predicated region
    $region14: #{multiscale_encoder_fwd.4} parent=1 // pred_check
      _
    $region15: #{multiscale_encoder_fwd.4} parent=1 // pred_check_branch
      %29 = sbr.rel (0) target = $region17
    $region16: #{multiscale_encoder_fwd.4} parent=1 // pred_region
      %31 = vsyncadd [#allocation3], 0
      %s32 = sshll.u32 %s3, 4
      %s33 = int_to_ptr.hbm [resolvable:$true] %s32
      %s34 = sshll.u32 [#allocation2], 4
      %s35 = int_to_ptr.vmem [resolvable:$true] %s34
      %40 = dma.hbm_to_vmem [thread:$0]  %s33, 2048, %s35, [#allocation3], 128, 128, 8
    $region17: #{multiscale_encoder_fwd.4} parent=1 // pred_fallthru
      _
    // Predicated region
    $region18: #{multiscale_encoder_fwd.4} parent=1 // pred_check
      _
    $region19: #{multiscale_encoder_fwd.4} parent=1 // pred_check_branch
      %42 = sbr.rel (0) target = $region21
    $region20: #{multiscale_encoder_fwd.4} parent=1 // pred_region
      %44 = vsyncadd [#allocation5], 0
      %s45 = sshll.u32 %s4, 4
      %s46 = int_to_ptr.hbm [resolvable:$true] %s45
      %s47 = sshll.u32 [#allocation4], 4
      %s48 = int_to_ptr.vmem [resolvable:$true] %s47
      %53 = dma.hbm_to_vmem [thread:$0]  %s46, 1024, %s48, [#allocation5], 128, 128, 8
    $region21: #{multiscale_encoder_fwd.4} parent=1 // pred_fallthru
      _
    // Predicated region
    $region22: #{multiscale_encoder_fwd.4} parent=1 // pred_check
      _
    $region23: #{multiscale_encoder_fwd.4} parent=1 // pred_check_branch
      %55 = sbr.rel (0) target = $region25
    $region24: #{multiscale_encoder_fwd.4} parent=1 // pred_region
      _
    $region25: #{multiscale_encoder_fwd.4} parent=1 // pred_fallthru
      _
    // Predicated region
    $region26: #{multiscale_encoder_fwd.4} parent=1 // pred_check
      _
    $region27: #{multiscale_encoder_fwd.4} parent=1 // pred_check_branch
      %57 = sbr.rel (0) target = $region29
    $region28: #{multiscale_encoder_fwd.4} parent=1 // pred_region
      _
    $region29: #{multiscale_encoder_fwd.4} parent=1 // pred_fallthru
      _
    // Predicated region
    $region30: #{multiscale_encoder_fwd.4} parent=1 // pred_check
      _
    $region31: #{multiscale_encoder_fwd.4} parent=1 // pred_check_branch
      %59 = sbr.rel (0) target = $region33
    $region32: #{multiscale_encoder_fwd.4} parent=1 // pred_region
      _
    $region33: #{multiscale_encoder_fwd.4} parent=1 // pred_fallthru
      _
    // Predicated region
    $region34: #{multiscale_encoder_fwd.4} parent=1 // pred_check
      _
    $region35: #{multiscale_encoder_fwd.4} parent=1 // pred_check_branch
      %61 = sbr.rel (0) target = $region37
    $region36: #{multiscale_encoder_fwd.4} parent=1 // pred_region
      %63 = vsyncadd [#allocation5], 0
      %s64 = sshll.u32 %s8, 4
      %s65 = int_to_ptr.hbm [resolvable:$true] %s64
      %s66 = sshll.u32 [#allocation6], 4
      %s67 = int_to_ptr.vmem [resolvable:$true] %s66
      %72 = dma.hbm_to_vmem [thread:$0]  %s65, 2048, %s67, [#allocation5], 128, 128, 8
    $region37: #{multiscale_encoder_fwd.4} parent=1 // pred_fallthru
      _
    // Predicated region
    $region38: #{multiscale_encoder_fwd.4} parent=1 // pred_check
      _
    $region39: #{multiscale_encoder_fwd.4} parent=1 // pred_check_branch
      %74 = sbr.rel (0) target = $region41
    $region40: #{multiscale_encoder_fwd.4} parent=1 // pred_region
      _
    $region41: #{multiscale_encoder_fwd.4} parent=1 // pred_fallthru
      _
    // Predicated region
    $region42: #{multiscale_encoder_fwd.4} parent=1 // pred_check
      _
    $region43: #{multiscale_encoder_fwd.4} parent=1 // pred_check_branch
      %76 = sbr.rel (0) target = $region45
    $region44: #{multiscale_encoder_fwd.4} parent=1 // pred_region
      %78 = vsyncadd [#allocation8], 0
      %s79 = sshll.u32 %s10, 4
      %s80 = int_to_ptr.hbm [resolvable:$true] %s79
      %s81 = sshll.u32 [#allocation7], 4
      %s82 = int_to_ptr.vmem [resolvable:$true] %s81
      %87 = dma.hbm_to_vmem [thread:$0]  %s80, 2048, %s82, [#allocation8], 128, 128, 8
    $region45: #{multiscale_encoder_fwd.4} parent=1 // pred_fallthru
      _
    // Predicated region
    $region46: #{multiscale_encoder_fwd.4} parent=1 // pred_check
      _
    $region47: #{multiscale_encoder_fwd.4} parent=1 // pred_check_branch
      %89 = sbr.rel (0) target = $region49
    $region48: #{multiscale_encoder_fwd.4} parent=1 // pred_region
      _
    $region49: #{multiscale_encoder_fwd.4} parent=1 // pred_fallthru
      _
    // Predicated region
    $region50: #{multiscale_encoder_fwd.4} parent=1 // pred_check
      _
    $region51: #{multiscale_encoder_fwd.4} parent=1 // pred_check_branch
      %91 = sbr.rel (0) target = $region53
    $region52: #{multiscale_encoder_fwd.4} parent=1 // pred_region
      _
    $region53: #{multiscale_encoder_fwd.4} parent=1 // pred_fallthru
      _
    // Predicated region
    $region54: #{multiscale_encoder_fwd.4} parent=1 // pred_check
      _
    $region55: #{multiscale_encoder_fwd.4} parent=1 // pred_check_branch
      %93 = sbr.rel (0) target = $region57
    $region56: #{multiscale_encoder_fwd.4} parent=1 // pred_region
      _
    $region57: #{multiscale_encoder_fwd.4} parent=1 // pred_fallthru
      _
    // Predicated region
    $region58: #{multiscale_encoder_fwd.4} parent=1 // pred_check
      _
    $region59: #{multiscale_encoder_fwd.4} parent=1 // pred_check_branch
      %95 = sbr.rel (0) target = $region61
    $region60: #{multiscale_encoder_fwd.4} parent=1 // pred_region
      %97 = dma.done [#allocation3], 2048
    $region61: #{multiscale_encoder_fwd.4} parent=1 // pred_fallthru
      _
    // Predicated region
    $region62: #{multiscale_encoder_fwd.4} parent=1 // pred_check
      _
    $region63: #{multiscale_encoder_fwd.4} parent=1 // pred_check_branch
      %99 = sbr.rel (0) target = $region65
    $region64: #{multiscale_encoder_fwd.4} parent=1 // pred_region
      %101 = dma.done [#allocation5], 1024
    $region65: #{multiscale_encoder_fwd.4} parent=1 // pred_fallthru
      _
    // Predicated region
    $region66: #{multiscale_encoder_fwd.4} parent=1 // pred_check
      _
    $region67: #{multiscale_encoder_fwd.4} parent=1 // pred_check_branch
      %103 = sbr.rel (0) target = $region69
    $region68: #{multiscale_encoder_fwd.4} parent=1 // pred_region
      %105 = dma.done [#allocation5], 2048
    $region69: #{multiscale_encoder_fwd.4} parent=1 // pred_fallthru
      _
    // Predicated region
    $region70: #{multiscale_encoder_fwd.4} parent=1 // pred_check
      _
    $region71: #{multiscale_encoder_fwd.4} parent=1 // pred_check_branch
      %107 = sbr.rel (0) target = $region73
    $region72: #{multiscale_encoder_fwd.4} parent=1 // pred_region
      %109 = dma.done [#allocation8], 2048
    $region73: #{multiscale_encoder_fwd.4} parent=1 // pred_fallthru
      _
    %v110 = vld [vmem:[%s0] sm:$0xff]
    %v111 = vld [vmem:[%s0 + $0x8] sm:$0xff]
    %v112 = vld [vmem:[%s0 + $0x10] sm:$0x3]
    %v113 = vld [vmem:[%s1] sm:$0x1]
    %v114 = vld [vmem:[%s2] sm:$0x1]
    %vm115 = vcmask 523264
    %v116 = vsel %vm115, %v110, 0.0
    %117 = vadd.xlane.f32.xlu0 %v116
    %v118 = vpop.xlane.xlu0 %117
    %v119 = vsel %vm115, %v111, 0.0
    %120 = vadd.xlane.f32.xlu0 %v119
    %v121 = vpop.xlane.xlu0 %120
    %vm122 = vcmask 517120
    %v123 = vsel %vm122, %v112, 0.0
    %124 = vadd.xlane.f32.xlu0 %v123
    %v125 = vpop.xlane.xlu0 %124
    %v126 = vrcp.pop 64.0
    %v127 = vmul.f32 64.0, %v126
    %v128 = vsub.f32 1.0, %v127
    %v129 = vmul.f32 %v126, %v128
    %v130 = vadd.f32 %v126, %v129
    %vm131 = vweird.f32 %v126
    %v132 = vsel %vm131, %v126, %v130
    %v133 = vmul.f32 %v118, %v132
    %v134 = vmul.f32 %v121, %v132
    %v135 = vmul.f32 %v125, %v132
    %v136 = vsub.f32 %v110, %v133
    %v137 = vsub.f32 %v111, %v134
    %v138 = vsub.f32 %v112, %v135
    %v139 = vmul.f32 %v136, %v136
    %v140 = vmul.f32 %v137, %v137
    %v141 = vmul.f32 %v138, %v138
    %v142 = vsel %vm115, %v139, 0.0
    %143 = vadd.xlane.f32.xlu0 %v142
    %v144 = vpop.xlane.xlu0 %143
    %v145 = vsel %vm115, %v140, 0.0
    %146 = vadd.xlane.f32.xlu0 %v145
    %v147 = vpop.xlane.xlu0 %146
    %v148 = vsel %vm122, %v141, 0.0
    %149 = vadd.xlane.f32.xlu0 %v148
    %v150 = vpop.xlane.xlu0 %149
    %v151 = vmul.f32 %v144, %v132
    %v152 = vmul.f32 %v147, %v132
    %v153 = vmul.f32 %v150, %v132
    %v154 = vadd.f32 %v151, 1e-05
    %v155 = vadd.f32 %v152, 1e-05
    %v156 = vadd.f32 %v153, 1e-05
    %v157 = vrsqrt.pop %v154
    %v158 = vmul.f32 %v157, %v154
    %v159 = vmul.f32 %v158, %v157
    %v160 = vmul.f32 0.5, %v159
    %v161 = vsub.f32 1.5, %v160
    %v162 = vmul.f32 %v157, %v161
    %vm163 = vweird.f32 %v154
    %vm164 = vweird.f32 %v157
    %vm165 = vmor %vm163, %vm164
    %v166 = vsel %vm165, %v157, %v162
    %v167 = vrsqrt.pop %v155
    %v168 = vmul.f32 %v167, %v155
    %v169 = vmul.f32 %v168, %v167
    %v170 = vmul.f32 0.5, %v169
    %v171 = vsub.f32 1.5, %v170
    %v172 = vmul.f32 %v167, %v171
    %vm173 = vweird.f32 %v155
    %vm174 = vweird.f32 %v167
    %vm175 = vmor %vm173, %vm174
    %v176 = vsel %vm175, %v167, %v172
    %v177 = vrsqrt.pop %v156
    %v178 = vmul.f32 %v177, %v156
    %v179 = vmul.f32 %v178, %v177
    %v180 = vmul.f32 0.5, %v179
    %v181 = vsub.f32 1.5, %v180
    %v182 = vmul.f32 %v177, %v181
    %vm183 = vweird.f32 %v156
    %vm184 = vweird.f32 %v177
    %vm185 = vmor %vm183, %vm184
    %v186 = vsel %vm185, %v177, %v182
    %v187 = vmul.f32 %v136, %v166
    %v188 = vmul.f32 %v137, %v176
    %v189 = vmul.f32 %v138, %v186
    %v191 = vperm.slane %v113, 0
    %v193 = vmul.f32 %v187, %v191
    %v194 = vmul.f32 %v188, %v191
    %v195 = vmul.f32 %v189, %v191
    %v197 = vperm.slane %v114, 0
    %v199 = vadd.f32 %v193, %v197
    %v200 = vadd.f32 %v194, %v197
    %v201 = vadd.f32 %v195, %v197
    %v202 = vld [vmem:[#allocation2] sm:$0xff]
    %v203 = vld [vmem:[#allocation2 + $0x8] sm:$0xff]
    %v204 = vld [vmem:[#allocation2 + $0x10] sm:$0xff]
    %v205 = vld [vmem:[#allocation2 + $0x18] sm:$0xff]
    %v206 = vld [vmem:[#allocation2 + $0x20] sm:$0xff]
    %v207 = vld [vmem:[#allocation2 + $0x28] sm:$0xff]
    %v208 = vld [vmem:[#allocation2 + $0x30] sm:$0xff]
    %v209 = vld [vmem:[#allocation2 + $0x38] sm:$0xff]
    %v211 = vsel %vm115, %v199, 0
    %v214 = vsel %vm115, %v200, 0
    %v217 = vsel %vm115, %v201, 0
    %219 = vmatpush.msra.mxu0 0.0
    %220 = vmatpush.msra.mxu0 0.0
    %221 = vmatpush.msra.mxu0 0.0
    %222 = vmatpush.msra.mxu0 0.0
    %223 = vmatpush.msra.mxu0 0.0
    %224 = vmatpush.msra.mxu0 0.0
    %225 = vmatpush.msra.mxu0 0.0
    %226 = vmatpush.msra.mxu0 0.0
    %227 = vmatpush.msra.mxu0 %v209
    %228 = vmatpush.msra.mxu0 %v208
    %229 = vmatpush.msra.mxu0 %v207
    %230 = vmatpush.msra.mxu0 %v206
    %231 = vmatpush.msra.mxu0 %v205
    %232 = vmatpush.msra.mxu0 %v204
    %233 = vmatpush.msra.mxu0 %v203
    %234 = vmatpush.msra.mxu0 %v202
    %235 = vmatmul.f32.gmra.mxu0 %v211
    %v236 = vpop.f32.mrf.mxu0
    %v237 = vadd.f32 0.0, %v236
    %238 = vmatmul.f32.gmra.mxu0 %v214
    %v239 = vpop.f32.mrf.mxu0
    %v240 = vadd.f32 0.0, %v239
    %241 = vmatmul.f32.gmra.mxu0 %v217
    %v242 = vpop.f32.mrf.mxu0
    %v243 = vadd.f32 0.0, %v242
    %244 = vdwg.mxu0
    %247 = vrot.lane.b32.xlu0 %v237, 96
    %v248 = vpop.permute.xlu0 %247
    %249 = vrot.lane.b32.xlu0 %v240, 96
    %v250 = vpop.permute.xlu0 %249
    %vm251 = vcmask 130048
    %v252 = vsel %vm251, %v237, 0
    %v254 = vsel %vm251, %v240, 0
    %v256 = vsel %vm251, %v248, 0
    %v258 = vsel %vm251, %v250, 0
    %260 = vmatpush.xpose.msra.mxu0 0.0
    %261 = vmatpush.xpose.msra.mxu0 0.0
    %262 = vmatpush.xpose.msra.mxu0 0.0
    %263 = vmatpush.xpose.msra.mxu0 0.0
    %264 = vmatpush.xpose.msra.mxu0 0.0
    %265 = vmatpush.xpose.msra.mxu0 0.0
    %266 = vmatpush.xpose.msra.mxu0 0.0
    %267 = vmatpush.xpose.msra.mxu0 0.0
    %268 = vmatpush.xpose.msra.mxu0 0.0
    %269 = vmatpush.xpose.msra.mxu0 0.0
    %270 = vmatpush.xpose.msra.mxu0 0.0
    %271 = vmatpush.xpose.msra.mxu0 0.0
    %272 = vmatpush.xpose.msra.mxu0 0.0
    %273 = vmatpush.xpose.msra.mxu0 0.0
    %274 = vmatpush.xpose.msra.mxu0 %v258
    %275 = vmatpush.xpose.msra.mxu0 %v256
    %276 = vmatmul.f32.gmra.mxu0 %v252
    %v277 = vpop.f32.mrf.mxu0
    %v278 = vadd.f32 0.0, %v277
    %279 = vmatmul.f32.gmra.mxu0 %v254
    %v280 = vpop.f32.mrf.mxu0
    %v281 = vadd.f32 0.0, %v280
    %282 = vdwg.mxu0
    %v283 = vmul.f32 %v278, 0.25
    %v284 = vmul.f32 %v281, 0.25
    %vm285 = vcmask 72704
    %v286 = vsel %vm285, %v283, -inf
    %287 = vmax.xlane.f32.xlu0 %v286
    %v288 = vpop.xlane.xlu0 %287
    %vm289 = vcmask 65536
    %v290 = vsel %vm289, %v284, -inf
    %291 = vmax.xlane.f32.xlu0 %v290
    %v292 = vpop.xlane.xlu0 %291
    %v293 = vsub.f32 %v283, %v288
    %v294 = vsub.f32 %v284, %v292
    %v295 = vmul.f32 %v293, 1.442695
    %v296 = vpow.pop %v295
    %v297 = vmul.f32 %v294, 1.442695
    %v298 = vpow.pop %v297
    %v299 = vsel %vm285, %v296, 0.0
    %300 = vadd.xlane.f32.xlu0 %v299
    %v301 = vpop.xlane.xlu0 %300
    %v302 = vsel %vm289, %v298, 0.0
    %303 = vadd.xlane.f32.xlu0 %v302
    %v304 = vpop.xlane.xlu0 %303
    %v305 = vrcp.pop %v301
    %v306 = vmul.f32 %v301, %v305
    %v307 = vsub.f32 1.0, %v306
    %v308 = vmul.f32 %v305, %v307
    %v309 = vadd.f32 %v305, %v308
    %vm310 = vweird.f32 %v301
    %vm311 = vweird.f32 %v305
    %vm312 = vmor %vm310, %vm311
    %v313 = vsel %vm312, %v305, %v309
    %v314 = vand.u32 2147483647, %v301
    %vm315 = vcmp.eq.f32.partialorder %v314, 8.507059e+37
    %v316 = vand.u32 %v301, 2147483648
    %v317 = vor.u32 1.1754944e-38, %v316
    %v318 = vsel %vm315, %v317, %v313
    %v319 = vmul.f32 %v296, %v318
    %v320 = vrcp.pop %v304
    %v321 = vmul.f32 %v304, %v320
    %v322 = vsub.f32 1.0, %v321
    %v323 = vmul.f32 %v320, %v322
    %v324 = vadd.f32 %v320, %v323
    %vm325 = vweird.f32 %v304
    %vm326 = vweird.f32 %v320
    %vm327 = vmor %vm325, %vm326
    %v328 = vsel %vm327, %v320, %v324
    %v329 = vand.u32 2147483647, %v304
    %vm330 = vcmp.eq.f32.partialorder %v329, 8.507059e+37
    %v331 = vand.u32 %v304, 2147483648
    %v332 = vor.u32 1.1754944e-38, %v331
    %v333 = vsel %vm330, %v332, %v328
    %v334 = vmul.f32 %v298, %v333
    %335 = vrot.lane.b32.xlu0 %v237, 64
    %v336 = vpop.permute.xlu0 %335
    %337 = vrot.lane.b32.xlu0 %v240, 64
    %v338 = vpop.permute.xlu0 %337
    %v341 = vsel %vm285, %v319, 0
    %v344 = vsel %vm285, %v334, 0
    %vm346 = vcmask 1040384
    %v347 = vsel %vm346, %v338, 0
    %349 = vmatpush.msra.mxu0 0.0
    %350 = vmatpush.msra.mxu0 0.0
    %351 = vmatpush.msra.mxu0 0.0
    %352 = vmatpush.msra.mxu0 0.0
    %353 = vmatpush.msra.mxu0 0.0
    %354 = vmatpush.msra.mxu0 0.0
    %355 = vmatpush.msra.mxu0 0.0
    %356 = vmatpush.msra.mxu0 0.0
    %357 = vmatpush.msra.mxu0 0.0
    %358 = vmatpush.msra.mxu0 0.0
    %359 = vmatpush.msra.mxu0 0.0
    %360 = vmatpush.msra.mxu0 0.0
    %361 = vmatpush.msra.mxu0 0.0
    %362 = vmatpush.msra.mxu0 0.0
    %363 = vmatpush.msra.mxu0 %v347
    %364 = vmatpush.msra.mxu0 %v336
    %365 = vmatmul.f32.gmra.mxu0 %v341
    %v366 = vpop.f32.mrf.mxu0
    %v367 = vadd.f32 0.0, %v366
    %368 = vmatmul.f32.gmra.mxu0 %v344
    %v369 = vpop.f32.mrf.mxu0
    %v370 = vadd.f32 0.0, %v369
    %371 = vdwg.mxu0
    %372 = vrot.lane.b32.xlu0 %v237, 112
    %v373 = vpop.permute.xlu0 %372
    %374 = vrot.lane.b32.xlu0 %v240, 112
    %v375 = vpop.permute.xlu0 %374
    %376 = vrot.lane.b32.xlu0 %v237, 80
    %v377 = vpop.permute.xlu0 %376
    %378 = vrot.lane.b32.xlu0 %v240, 80
    %v379 = vpop.permute.xlu0 %378
    %v380 = vsel %vm251, %v373, 0
    %v382 = vsel %vm251, %v375, 0
    %v384 = vsel %vm251, %v377, 0
    %v386 = vsel %vm251, %v379, 0
    %388 = vmatpush.xpose.msra.mxu0 0.0
    %389 = vmatpush.xpose.msra.mxu0 0.0
    %390 = vmatpush.xpose.msra.mxu0 0.0
    %391 = vmatpush.xpose.msra.mxu0 0.0
    %392 = vmatpush.xpose.msra.mxu0 0.0
    %393 = vmatpush.xpose.msra.mxu0 0.0
    %394 = vmatpush.xpose.msra.mxu0 0.0
    %395 = vmatpush.xpose.msra.mxu0 0.0
    %396 = vmatpush.xpose.msra.mxu0 0.0
    %397 = vmatpush.xpose.msra.mxu0 0.0
    %398 = vmatpush.xpose.msra.mxu0 0.0
    %399 = vmatpush.xpose.msra.mxu0 0.0
    %400 = vmatpush.xpose.msra.mxu0 0.0
    %401 = vmatpush.xpose.msra.mxu0 0.0
    %402 = vmatpush.xpose.msra.mxu0 %v386
    %403 = vmatpush.xpose.msra.mxu0 %v384
    %404 = vmatmul.f32.gmra.mxu0 %v380
    %v405 = vpop.f32.mrf.mxu0
    %v406 = vadd.f32 0.0, %v405
    %407 = vmatmul.f32.gmra.mxu0 %v382
    %v408 = vpop.f32.mrf.mxu0
    %v409 = vadd.f32 0.0, %v408
    %410 = vdwg.mxu0
    %v411 = vmul.f32 %v406, 0.25
    %v412 = vmul.f32 %v409, 0.25
    %v413 = vsel %vm285, %v411, -inf
    %414 = vmax.xlane.f32.xlu0 %v413
    %v415 = vpop.xlane.xlu0 %414
    %v416 = vsel %vm289, %v412, -inf
    %417 = vmax.xlane.f32.xlu0 %v416
    %v418 = vpop.xlane.xlu0 %417
    %v419 = vsub.f32 %v411, %v415
    %v420 = vsub.f32 %v412, %v418
    %v421 = vmul.f32 %v419, 1.442695
    %v422 = vpow.pop %v421
    %v423 = vmul.f32 %v420, 1.442695
    %v424 = vpow.pop %v423
    %v425 = vsel %vm285, %v422, 0.0
    %426 = vadd.xlane.f32.xlu0 %v425
    %v427 = vpop.xlane.xlu0 %426
    %v428 = vsel %vm289, %v424, 0.0
    %429 = vadd.xlane.f32.xlu0 %v428
    %v430 = vpop.xlane.xlu0 %429
    %v431 = vrcp.pop %v427
    %v432 = vmul.f32 %v427, %v431
    %v433 = vsub.f32 1.0, %v432
    %v434 = vmul.f32 %v431, %v433
    %v435 = vadd.f32 %v431, %v434
    %vm436 = vweird.f32 %v427
    %vm437 = vweird.f32 %v431
    %vm438 = vmor %vm436, %vm437
    %v439 = vsel %vm438, %v431, %v435
    %v440 = vand.u32 2147483647, %v427
    %vm441 = vcmp.eq.f32.partialorder %v440, 8.507059e+37
    %v442 = vand.u32 %v427, 2147483648
    %v443 = vor.u32 1.1754944e-38, %v442
    %v444 = vsel %vm441, %v443, %v439
    %v445 = vmul.f32 %v422, %v444
    %v446 = vrcp.pop %v430
    %v447 = vmul.f32 %v430, %v446
    %v448 = vsub.f32 1.0, %v447
    %v449 = vmul.f32 %v446, %v448
    %v450 = vadd.f32 %v446, %v449
    %vm451 = vweird.f32 %v430
    %vm452 = vweird.f32 %v446
    %vm453 = vmor %vm451, %vm452
    %v454 = vsel %vm453, %v446, %v450
    %v455 = vand.u32 2147483647, %v430
    %vm456 = vcmp.eq.f32.partialorder %v455, 8.507059e+37
    %v457 = vand.u32 %v430, 2147483648
    %v458 = vor.u32 1.1754944e-38, %v457
    %v459 = vsel %vm456, %v458, %v454
    %v460 = vmul.f32 %v424, %v459
    %461 = vrot.lane.b32.xlu0 %v237, 48
    %v462 = vpop.permute.xlu0 %461
    %463 = vrot.lane.b32.xlu0 %v240, 48
    %v464 = vpop.permute.xlu0 %463
    %v467 = vsel %vm285, %v445, 0
    %v470 = vsel %vm285, %v460, 0
    %v472 = vsel %vm346, %v464, 0
    %474 = vmatpush.msra.mxu0 0.0
    %475 = vmatpush.msra.mxu0 0.0
    %476 = vmatpush.msra.mxu0 0.0
    %477 = vmatpush.msra.mxu0 0.0
    %478 = vmatpush.msra.mxu0 0.0
    %479 = vmatpush.msra.mxu0 0.0
    %480 = vmatpush.msra.mxu0 0.0
    %481 = vmatpush.msra.mxu0 0.0
    %482 = vmatpush.msra.mxu0 0.0
    %483 = vmatpush.msra.mxu0 0.0
    %484 = vmatpush.msra.mxu0 0.0
    %485 = vmatpush.msra.mxu0 0.0
    %486 = vmatpush.msra.mxu0 0.0
    %487 = vmatpush.msra.mxu0 0.0
    %488 = vmatpush.msra.mxu0 %v472
    %489 = vmatpush.msra.mxu0 %v462
    %490 = vmatmul.f32.gmra.mxu0 %v467
    %v491 = vpop.f32.mrf.mxu0
    %v492 = vadd.f32 0.0, %v491
    %493 = vmatmul.f32.gmra.mxu0 %v470
    %v494 = vpop.f32.mrf.mxu0
    %v495 = vadd.f32 0.0, %v494
    %496 = vdwg.mxu0
    %499 = vrot.lane.b32.xlu0 %v492, 16
    %v500 = vpop.permute.xlu0 %499
    %501 = vrot.lane.b32.xlu0 %v495, 16
    %v502 = vpop.permute.xlu0 %501
    %v505 = vsel %vm251, %v367, %v500
    %v506 = vsel %vm251, %v370, %v502
    %vm508 = vcmask 1046528
    %v509 = vrot.slane %v240, 1
    %v510 = vrot.slane %v243, 1
    %v511 = vsel %vm508, %v509, %v510
    %512 = vrot.lane.b32.xlu0 %v511, 96
    %v513 = vpop.permute.xlu0 %512
    %514 = vrot.lane.b32.xlu0 %v510, 96
    %v515 = vpop.permute.xlu0 %514
    %v516 = vsel %vm251, %v511, 0
    %v518 = vsel %vm251, %v510, 0
    %v520 = vsel %vm251, %v513, 0
    %v522 = vsel %vm251, %v515, 0
    %524 = vmatpush.xpose.msra.mxu0 0.0
    %525 = vmatpush.xpose.msra.mxu0 0.0
    %526 = vmatpush.xpose.msra.mxu0 0.0
    %527 = vmatpush.xpose.msra.mxu0 0.0
    %528 = vmatpush.xpose.msra.mxu0 0.0
    %529 = vmatpush.xpose.msra.mxu0 0.0
    %530 = vmatpush.xpose.msra.mxu0 0.0
    %531 = vmatpush.xpose.msra.mxu0 0.0
    %532 = vmatpush.xpose.msra.mxu0 0.0
    %533 = vmatpush.xpose.msra.mxu0 0.0
    %534 = vmatpush.xpose.msra.mxu0 0.0
    %535 = vmatpush.xpose.msra.mxu0 0.0
    %536 = vmatpush.xpose.msra.mxu0 0.0
    %537 = vmatpush.xpose.msra.mxu0 0.0
    %538 = vmatpush.xpose.msra.mxu0 %v522
    %539 = vmatpush.xpose.msra.mxu0 %v520
    %540 = vmatmul.f32.gmra.mxu0 %v516
    %v541 = vpop.f32.mrf.mxu0
    %v542 = vadd.f32 0.0, %v541
    %543 = vmatmul.f32.gmra.mxu0 %v518
    %v544 = vpop.f32.mrf.mxu0
    %v545 = vadd.f32 0.0, %v544
    %546 = vdwg.mxu0
    %v547 = vmul.f32 %v542, 0.25
    %v548 = vmul.f32 %v545, 0.25
    %v549 = vsel %vm285, %v547, -inf
    %550 = vmax.xlane.f32.xlu0 %v549
    %v551 = vpop.xlane.xlu0 %550
    %v552 = vsel %vm289, %v548, -inf
    %553 = vmax.xlane.f32.xlu0 %v552
    %v554 = vpop.xlane.xlu0 %553
    %v555 = vsub.f32 %v547, %v551
    %v556 = vsub.f32 %v548, %v554
    %v557 = vmul.f32 %v555, 1.442695
    %v558 = vpow.pop %v557
    %v559 = vmul.f32 %v556, 1.442695
    %v560 = vpow.pop %v559
    %v561 = vsel %vm285, %v558, 0.0
    %562 = vadd.xlane.f32.xlu0 %v561
    %v563 = vpop.xlane.xlu0 %562
    %v564 = vsel %vm289, %v560, 0.0
    %565 = vadd.xlane.f32.xlu0 %v564
    %v566 = vpop.xlane.xlu0 %565
    %v567 = vrcp.pop %v563
    %v568 = vmul.f32 %v563, %v567
    %v569 = vsub.f32 1.0, %v568
    %v570 = vmul.f32 %v567, %v569
    %v571 = vadd.f32 %v567, %v570
    %vm572 = vweird.f32 %v563
    %vm573 = vweird.f32 %v567
    %vm574 = vmor %vm572, %vm573
    %v575 = vsel %vm574, %v567, %v571
    %v576 = vand.u32 2147483647, %v563
    %vm577 = vcmp.eq.f32.partialorder %v576, 8.507059e+37
    %v578 = vand.u32 %v563, 2147483648
    %v579 = vor.u32 1.1754944e-38, %v578
    %v580 = vsel %vm577, %v579, %v575
    %v581 = vmul.f32 %v558, %v580
    %v582 = vrcp.pop %v566
    %v583 = vmul.f32 %v566, %v582
    %v584 = vsub.f32 1.0, %v583
    %v585 = vmul.f32 %v582, %v584
    %v586 = vadd.f32 %v582, %v585
    %vm587 = vweird.f32 %v566
    %vm588 = vweird.f32 %v582
    %vm589 = vmor %vm587, %vm588
    %v590 = vsel %vm589, %v582, %v586
    %v591 = vand.u32 2147483647, %v566
    %vm592 = vcmp.eq.f32.partialorder %v591, 8.507059e+37
    %v593 = vand.u32 %v566, 2147483648
    %v594 = vor.u32 1.1754944e-38, %v593
    %v595 = vsel %vm592, %v594, %v590
    %v596 = vmul.f32 %v560, %v595
    %597 = vrot.lane.b32.xlu0 %v511, 64
    %v598 = vpop.permute.xlu0 %597
    %599 = vrot.lane.b32.xlu0 %v510, 64
    %v600 = vpop.permute.xlu0 %599
    %v603 = vsel %vm285, %v581, 0
    %v606 = vsel %vm285, %v596, 0
    %v608 = vsel %vm346, %v600, 0
    %610 = vmatpush.msra.mxu0 0.0
    %611 = vmatpush.msra.mxu0 0.0
    %612 = vmatpush.msra.mxu0 0.0
    %613 = vmatpush.msra.mxu0 0.0
    %614 = vmatpush.msra.mxu0 0.0
    %615 = vmatpush.msra.mxu0 0.0
    %616 = vmatpush.msra.mxu0 0.0
    %617 = vmatpush.msra.mxu0 0.0
    %618 = vmatpush.msra.mxu0 0.0
    %619 = vmatpush.msra.mxu0 0.0
    %620 = vmatpush.msra.mxu0 0.0
    %621 = vmatpush.msra.mxu0 0.0
    %622 = vmatpush.msra.mxu0 0.0
    %623 = vmatpush.msra.mxu0 0.0
    %624 = vmatpush.msra.mxu0 %v608
    %625 = vmatpush.msra.mxu0 %v598
    %626 = vmatmul.f32.gmra.mxu0 %v603
    %v627 = vpop.f32.mrf.mxu0
    %v628 = vadd.f32 0.0, %v627
    %629 = vmatmul.f32.gmra.mxu0 %v606
    %v630 = vpop.f32.mrf.mxu0
    %v631 = vadd.f32 0.0, %v630
    %632 = vdwg.mxu0
    %633 = vrot.lane.b32.xlu0 %v511, 112
    %v634 = vpop.permute.xlu0 %633
    %635 = vrot.lane.b32.xlu0 %v510, 112
    %v636 = vpop.permute.xlu0 %635
    %637 = vrot.lane.b32.xlu0 %v511, 80
    %v638 = vpop.permute.xlu0 %637
    %639 = vrot.lane.b32.xlu0 %v510, 80
    %v640 = vpop.permute.xlu0 %639
    %v641 = vsel %vm251, %v634, 0
    %v643 = vsel %vm251, %v636, 0
    %v645 = vsel %vm251, %v638, 0
    %v647 = vsel %vm251, %v640, 0
    %649 = vmatpush.xpose.msra.mxu0 0.0
    %650 = vmatpush.xpose.msra.mxu0 0.0
    %651 = vmatpush.xpose.msra.mxu0 0.0
    %652 = vmatpush.xpose.msra.mxu0 0.0
    %653 = vmatpush.xpose.msra.mxu0 0.0
    %654 = vmatpush.xpose.msra.mxu0 0.0
    %655 = vmatpush.xpose.msra.mxu0 0.0
    %656 = vmatpush.xpose.msra.mxu0 0.0
    %657 = vmatpush.xpose.msra.mxu0 0.0
    %658 = vmatpush.xpose.msra.mxu0 0.0
    %659 = vmatpush.xpose.msra.mxu0 0.0
    %660 = vmatpush.xpose.msra.mxu0 0.0
    %661 = vmatpush.xpose.msra.mxu0 0.0
    %662 = vmatpush.xpose.msra.mxu0 0.0
    %663 = vmatpush.xpose.msra.mxu0 %v647
    %664 = vmatpush.xpose.msra.mxu0 %v645
    %665 = vmatmul.f32.gmra.mxu0 %v641
    %v666 = vpop.f32.mrf.mxu0
    %v667 = vadd.f32 0.0, %v666
    %668 = vmatmul.f32.gmra.mxu0 %v643
    %v669 = vpop.f32.mrf.mxu0
    %v670 = vadd.f32 0.0, %v669
    %671 = vdwg.mxu0
    %v672 = vmul.f32 %v667, 0.25
    %v673 = vmul.f32 %v670, 0.25
    %v674 = vsel %vm285, %v672, -inf
    %675 = vmax.xlane.f32.xlu0 %v674
    %v676 = vpop.xlane.xlu0 %675
    %v677 = vsel %vm289, %v673, -inf
    %678 = vmax.xlane.f32.xlu0 %v677
    %v679 = vpop.xlane.xlu0 %678
    %v680 = vsub.f32 %v672, %v676
    %v681 = vsub.f32 %v673, %v679
    %v682 = vmul.f32 %v680, 1.442695
    %v683 = vpow.pop %v682
    %v684 = vmul.f32 %v681, 1.442695
    %v685 = vpow.pop %v684
    %v686 = vsel %vm285, %v683, 0.0
    %687 = vadd.xlane.f32.xlu0 %v686
    %v688 = vpop.xlane.xlu0 %687
    %v689 = vsel %vm289, %v685, 0.0
    %690 = vadd.xlane.f32.xlu0 %v689
    %v691 = vpop.xlane.xlu0 %690
    %v692 = vrcp.pop %v688
    %v693 = vmul.f32 %v688, %v692
    %v694 = vsub.f32 1.0, %v693
    %v695 = vmul.f32 %v692, %v694
    %v696 = vadd.f32 %v692, %v695
    %vm697 = vweird.f32 %v688
    %vm698 = vweird.f32 %v692
    %vm699 = vmor %vm697, %vm698
    %v700 = vsel %vm699, %v692, %v696
    %v701 = vand.u32 2147483647, %v688
    %vm702 = vcmp.eq.f32.partialorder %v701, 8.507059e+37
    %v703 = vand.u32 %v688, 2147483648
    %v704 = vor.u32 1.1754944e-38, %v703
    %v705 = vsel %vm702, %v704, %v700
    %v706 = vmul.f32 %v683, %v705
    %v707 = vrcp.pop %v691
    %v708 = vmul.f32 %v691, %v707
    %v709 = vsub.f32 1.0, %v708
    %v710 = vmul.f32 %v707, %v709
    %v711 = vadd.f32 %v707, %v710
    %vm712 = vweird.f32 %v691
    %vm713 = vweird.f32 %v707
    %vm714 = vmor %vm712, %vm713
    %v715 = vsel %vm714, %v707, %v711
    %v716 = vand.u32 2147483647, %v691
    %vm717 = vcmp.eq.f32.partialorder %v716, 8.507059e+37
    %v718 = vand.u32 %v691, 2147483648
    %v719 = vor.u32 1.1754944e-38, %v718
    %v720 = vsel %vm717, %v719, %v715
    %v721 = vmul.f32 %v685, %v720
    %722 = vrot.lane.b32.xlu0 %v511, 48
    %v723 = vpop.permute.xlu0 %722
    %724 = vrot.lane.b32.xlu0 %v510, 48
    %v725 = vpop.permute.xlu0 %724
    %v728 = vsel %vm285, %v706, 0
    %v731 = vsel %vm285, %v721, 0
    %v733 = vsel %vm346, %v725, 0
    %735 = vmatpush.msra.mxu0 0.0
    %736 = vmatpush.msra.mxu0 0.0
    %737 = vmatpush.msra.mxu0 0.0
    %738 = vmatpush.msra.mxu0 0.0
    %739 = vmatpush.msra.mxu0 0.0
    %740 = vmatpush.msra.mxu0 0.0
    %741 = vmatpush.msra.mxu0 0.0
    %742 = vmatpush.msra.mxu0 0.0
    %743 = vmatpush.msra.mxu0 0.0
    %744 = vmatpush.msra.mxu0 0.0
    %745 = vmatpush.msra.mxu0 0.0
    %746 = vmatpush.msra.mxu0 0.0
    %747 = vmatpush.msra.mxu0 0.0
    %748 = vmatpush.msra.mxu0 0.0
    %749 = vmatpush.msra.mxu0 %v733
    %750 = vmatpush.msra.mxu0 %v723
    %751 = vmatmul.f32.gmra.mxu0 %v728
    %v752 = vpop.f32.mrf.mxu0
    %v753 = vadd.f32 0.0, %v752
    %754 = vmatmul.f32.gmra.mxu0 %v731
    %v755 = vpop.f32.mrf.mxu0
    %v756 = vadd.f32 0.0, %v755
    %757 = vdwg.mxu0
    %760 = vrot.lane.b32.xlu0 %v753, 16
    %v761 = vpop.permute.xlu0 %760
    %762 = vrot.lane.b32.xlu0 %v756, 16
    %v763 = vpop.permute.xlu0 %762
    %v766 = vsel %vm251, %v628, %v761
    %v767 = vsel %vm251, %v631, %v763
    %v770 = vrot.slane %v766, 7
    %v771 = vrot.slane %v767, 7
    %v772 = vsel %vm346, %v770, %v771
    %v774 = vsel %vm346, %v506, %v770
    %v775 = vld [vmem:[#allocation4] sm:$0xff]
    %v776 = vld [vmem:[#allocation4 + $0x8] sm:$0xff]
    %v777 = vld [vmem:[#allocation4 + $0x10] sm:$0xff]
    %v778 = vld [vmem:[#allocation4 + $0x18] sm:$0xff]
    %vm779 = vcmask 261120
    %v781 = vsel %vm779, %v505, 0
    %v784 = vsel %vm779, %v774, 0
    %v786 = vsel %vm779, %v772, 0
    %788 = vmatpush.msra.mxu0 0.0
    %789 = vmatpush.msra.mxu0 0.0
    %790 = vmatpush.msra.mxu0 0.0
    %791 = vmatpush.msra.mxu0 0.0
    %792 = vmatpush.msra.mxu0 0.0
    %793 = vmatpush.msra.mxu0 0.0
    %794 = vmatpush.msra.mxu0 0.0
    %795 = vmatpush.msra.mxu0 0.0
    %796 = vmatpush.msra.mxu0 0.0
    %797 = vmatpush.msra.mxu0 0.0
    %798 = vmatpush.msra.mxu0 0.0
    %799 = vmatpush.msra.mxu0 0.0
    %800 = vmatpush.msra.mxu0 %v778
    %801 = vmatpush.msra.mxu0 %v777
    %802 = vmatpush.msra.mxu0 %v776
    %803 = vmatpush.msra.mxu0 %v775
    %804 = vmatmul.f32.gmra.mxu0 %v781
    %v805 = vpop.f32.mrf.mxu0
    %v806 = vadd.f32 0.0, %v805
    %807 = vmatmul.f32.gmra.mxu0 %v784
    %v808 = vpop.f32.mrf.mxu0
    %v809 = vadd.f32 0.0, %v808
    %810 = vmatmul.f32.gmra.mxu0 %v786
    %v811 = vpop.f32.mrf.mxu0
    %v812 = vadd.f32 0.0, %v811
    %813 = vdwg.mxu0
    %v814 = vadd.f32 %v110, %v806
    %v815 = vadd.f32 %v111, %v809
    %v816 = vadd.f32 %v112, %v812
    %v817 = vld [vmem:[%s5] sm:$0x1]
    %v819 = vperm.slane %v817, 0
    %v821 = vadd.f32 %v814, %v819
    %v822 = vadd.f32 %v815, %v819
    %v823 = vadd.f32 %v816, %v819
    %v824 = vld [vmem:[%s6] sm:$0x1]
    %v825 = vld [vmem:[%s7] sm:$0x1]
    %v826 = vsel %vm115, %v821, 0.0
    %827 = vadd.xlane.f32.xlu0 %v826
    %v828 = vpop.xlane.xlu0 %827
    %v829 = vsel %vm115, %v822, 0.0
    %830 = vadd.xlane.f32.xlu0 %v829
    %v831 = vpop.xlane.xlu0 %830
    %v832 = vsel %vm122, %v823, 0.0
    %833 = vadd.xlane.f32.xlu0 %v832
    %v834 = vpop.xlane.xlu0 %833
    %v835 = vmul.f32 %v828, %v132
    %v836 = vmul.f32 %v831, %v132
    %v837 = vmul.f32 %v834, %v132
    %v838 = vsub.f32 %v821, %v835
    %v839 = vsub.f32 %v822, %v836
    %v840 = vsub.f32 %v823, %v837
    %v841 = vmul.f32 %v838, %v838
    %v842 = vmul.f32 %v839, %v839
    %v843 = vmul.f32 %v840, %v840
    %v844 = vsel %vm115, %v841, 0.0
    %845 = vadd.xlane.f32.xlu0 %v844
    %v846 = vpop.xlane.xlu0 %845
    %v847 = vsel %vm115, %v842, 0.0
    %848 = vadd.xlane.f32.xlu0 %v847
    %v849 = vpop.xlane.xlu0 %848
    %v850 = vsel %vm122, %v843, 0.0
    %851 = vadd.xlane.f32.xlu0 %v850
    %v852 = vpop.xlane.xlu0 %851
    %v853 = vmul.f32 %v846, %v132
    %v854 = vmul.f32 %v849, %v132
    %v855 = vmul.f32 %v852, %v132
    %v856 = vadd.f32 %v853, 1e-05
    %v857 = vadd.f32 %v854, 1e-05
    %v858 = vadd.f32 %v855, 1e-05
    %v859 = vrsqrt.pop %v856
    %v860 = vmul.f32 %v859, %v856
    %v861 = vmul.f32 %v860, %v859
    %v862 = vmul.f32 0.5, %v861
    %v863 = vsub.f32 1.5, %v862
    %v864 = vmul.f32 %v859, %v863
    %vm865 = vweird.f32 %v856
    %vm866 = vweird.f32 %v859
    %vm867 = vmor %vm865, %vm866
    %v868 = vsel %vm867, %v859, %v864
    %v869 = vrsqrt.pop %v857
    %v870 = vmul.f32 %v869, %v857
    %v871 = vmul.f32 %v870, %v869
    %v872 = vmul.f32 0.5, %v871
    %v873 = vsub.f32 1.5, %v872
    %v874 = vmul.f32 %v869, %v873
    %vm875 = vweird.f32 %v857
    %vm876 = vweird.f32 %v869
    %vm877 = vmor %vm875, %vm876
    %v878 = vsel %vm877, %v869, %v874
    %v879 = vrsqrt.pop %v858
    %v880 = vmul.f32 %v879, %v858
    %v881 = vmul.f32 %v880, %v879
    %v882 = vmul.f32 0.5, %v881
    %v883 = vsub.f32 1.5, %v882
    %v884 = vmul.f32 %v879, %v883
    %vm885 = vweird.f32 %v858
    %vm886 = vweird.f32 %v879
    %vm887 = vmor %vm885, %vm886
    %v888 = vsel %vm887, %v879, %v884
    %v889 = vmul.f32 %v838, %v868
    %v890 = vmul.f32 %v839, %v878
    %v891 = vmul.f32 %v840, %v888
    %v893 = vperm.slane %v824, 0
    %v895 = vmul.f32 %v889, %v893
    %v896 = vmul.f32 %v890, %v893
    %v897 = vmul.f32 %v891, %v893
    %v899 = vperm.slane %v825, 0
    %v901 = vadd.f32 %v895, %v899
    %v902 = vadd.f32 %v896, %v899
    %v903 = vadd.f32 %v897, %v899
    %v904 = vld [vmem:[#allocation6] sm:$0xff]
    %v905 = vld [vmem:[#allocation6 + $0x8] sm:$0xff]
    %v906 = vld [vmem:[#allocation6 + $0x10] sm:$0xff]
    %v907 = vld [vmem:[#allocation6 + $0x18] sm:$0xff]
    %v908 = vld [vmem:[#allocation6 + $0x20] sm:$0xff]
    %v909 = vld [vmem:[#allocation6 + $0x28] sm:$0xff]
    %v910 = vld [vmem:[#allocation6 + $0x30] sm:$0xff]
    %v911 = vld [vmem:[#allocation6 + $0x38] sm:$0xff]
    %v912 = vld [vmem:[%s9] sm:$0x1]
    %v914 = vperm.slane %v912, 0
    %v917 = vsel %vm115, %v901, 0
    %v920 = vsel %vm115, %v902, 0
    %v923 = vsel %vm115, %v903, 0
    %925 = vmatpush.msra.mxu0 0.0
    %926 = vmatpush.msra.mxu0 0.0
    %927 = vmatpush.msra.mxu0 0.0
    %928 = vmatpush.msra.mxu0 0.0
    %929 = vmatpush.msra.mxu0 0.0
    %930 = vmatpush.msra.mxu0 0.0
    %931 = vmatpush.msra.mxu0 0.0
    %932 = vmatpush.msra.mxu0 0.0
    %933 = vmatpush.msra.mxu0 %v911
    %934 = vmatpush.msra.mxu0 %v910
    %935 = vmatpush.msra.mxu0 %v909
    %936 = vmatpush.msra.mxu0 %v908
    %937 = vmatpush.msra.mxu0 %v907
    %938 = vmatpush.msra.mxu0 %v906
    %939 = vmatpush.msra.mxu0 %v905
    %940 = vmatpush.msra.mxu0 %v904
    %941 = vmatmul.f32.gmra.mxu0 %v917
    %v942 = vpop.f32.mrf.mxu0
    %v943 = vadd.f32 %v914, %v942
    %944 = vmatmul.f32.gmra.mxu0 %v920
    %v945 = vpop.f32.mrf.mxu0
    %v946 = vadd.f32 %v914, %v945
    %947 = vmatmul.f32.gmra.mxu0 %v923
    %v948 = vpop.f32.mrf.mxu0
    %v949 = vadd.f32 %v914, %v948
    %950 = vdwg.mxu0
    %v951 = vmul.f32 %v943, 0.5
    %v952 = vmul.f32 %v946, 0.5
    %v953 = vmul.f32 %v949, 0.5
    %v954 = vmul.f32 %v943, 0.70710677
    %v955 = vmul.f32 %v946, 0.70710677
    %v956 = vmul.f32 %v949, 0.70710677
    %v957 = vmul.f32 %v954, %v954
    %v958 = vmin.f32 16.0, %v957
    %v959 = vmul.f32 %v958, 2.1237322e-06
    %v960 = vadd.f32 %v959, 0.00028619796
    %v961 = vmul.f32 %v958, %v960
    %v962 = vadd.f32 %v961, 0.0036580483
    %v963 = vmul.f32 %v958, %v962
    %v964 = vadd.f32 %v963, 0.05243302
    %v965 = vmul.f32 %v958, %v964
    %v966 = vadd.f32 %v965, 0.18741608
    %v967 = vmul.f32 %v958, %v966
    %v968 = vadd.f32 %v967, 1.1283791
    %v969 = vmul.f32 %v954, %v968
    %v970 = vmul.f32 %v958, 3.8918573e-05
    %v971 = vadd.f32 %v970, 0.001143296
    %v972 = vmul.f32 %v958, %v971
    %v973 = vadd.f32 %v972, 0.014752088
    %v974 = vmul.f32 %v958, %v973
    %v975 = vadd.f32 %v974, 0.112945676
    %v976 = vmul.f32 %v958, %v975
    %v977 = vadd.f32 %v976, 0.4994258
    %v978 = vmul.f32 %v958, %v977
    %v979 = vadd.f32 %v978, 1.0
    %v980 = vrcp.pop %v979
    %v981 = vmul.f32 %v979, %v980
    %v982 = vsub.f32 1.0, %v981
    %v983 = vmul.f32 %v980, %v982
    %v984 = vadd.f32 %v980, %v983
    %vm985 = vweird.f32 %v979
    %vm986 = vweird.f32 %v980
    %vm987 = vmor %vm985, %vm986
    %v988 = vsel %vm987, %v980, %v984
    %v989 = vand.u32 2147483647, %v979
    %vm990 = vcmp.eq.f32.partialorder %v989, 8.507059e+37
    %v991 = vand.u32 %v979, 2147483648
    %v992 = vor.u32 1.1754944e-38, %v991
    %v993 = vsel %vm990, %v992, %v988
    %v994 = vmul.f32 %v969, %v993
    %v995 = vmin.f32 %v994, 1.0
    %v996 = vmax.f32 %v995, -1.0
    %v997 = vmul.f32 %v955, %v955
    %v998 = vmin.f32 16.0, %v997
    %v999 = vmul.f32 %v998, 2.1237322e-06
    %v1000 = vadd.f32 %v999, 0.00028619796
    %v1001 = vmul.f32 %v998, %v1000
    %v1002 = vadd.f32 %v1001, 0.0036580483
    %v1003 = vmul.f32 %v998, %v1002
    %v1004 = vadd.f32 %v1003, 0.05243302
    %v1005 = vmul.f32 %v998, %v1004
    %v1006 = vadd.f32 %v1005, 0.18741608
    %v1007 = vmul.f32 %v998, %v1006
    %v1008 = vadd.f32 %v1007, 1.1283791
    %v1009 = vmul.f32 %v955, %v1008
    %v1010 = vmul.f32 %v998, 3.8918573e-05
    %v1011 = vadd.f32 %v1010, 0.001143296
    %v1012 = vmul.f32 %v998, %v1011
    %v1013 = vadd.f32 %v1012, 0.014752088
    %v1014 = vmul.f32 %v998, %v1013
    %v1015 = vadd.f32 %v1014, 0.112945676
    %v1016 = vmul.f32 %v998, %v1015
    %v1017 = vadd.f32 %v1016, 0.4994258
    %v1018 = vmul.f32 %v998, %v1017
    %v1019 = vadd.f32 %v1018, 1.0
    %v1020 = vrcp.pop %v1019
    %v1021 = vmul.f32 %v1019, %v1020
    %v1022 = vsub.f32 1.0, %v1021
    %v1023 = vmul.f32 %v1020, %v1022
    %v1024 = vadd.f32 %v1020, %v1023
    %vm1025 = vweird.f32 %v1019
    %vm1026 = vweird.f32 %v1020
    %vm1027 = vmor %vm1025, %vm1026
    %v1028 = vsel %vm1027, %v1020, %v1024
    %v1029 = vand.u32 2147483647, %v1019
    %vm1030 = vcmp.eq.f32.partialorder %v1029, 8.507059e+37
    %v1031 = vand.u32 %v1019, 2147483648
    %v1032 = vor.u32 1.1754944e-38, %v1031
    %v1033 = vsel %vm1030, %v1032, %v1028
    %v1034 = vmul.f32 %v1009, %v1033
    %v1035 = vmin.f32 %v1034, 1.0
    %v1036 = vmax.f32 %v1035, -1.0
    %v1037 = vmul.f32 %v956, %v956
    %v1038 = vmin.f32 16.0, %v1037
    %v1039 = vmul.f32 %v1038, 2.1237322e-06
    %v1040 = vadd.f32 %v1039, 0.00028619796
    %v1041 = vmul.f32 %v1038, %v1040
    %v1042 = vadd.f32 %v1041, 0.0036580483
    %v1043 = vmul.f32 %v1038, %v1042
    %v1044 = vadd.f32 %v1043, 0.05243302
    %v1045 = vmul.f32 %v1038, %v1044
    %v1046 = vadd.f32 %v1045, 0.18741608
    %v1047 = vmul.f32 %v1038, %v1046
    %v1048 = vadd.f32 %v1047, 1.1283791
    %v1049 = vmul.f32 %v956, %v1048
    %v1050 = vmul.f32 %v1038, 3.8918573e-05
    %v1051 = vadd.f32 %v1050, 0.001143296
    %v1052 = vmul.f32 %v1038, %v1051
    %v1053 = vadd.f32 %v1052, 0.014752088
    %v1054 = vmul.f32 %v1038, %v1053
    %v1055 = vadd.f32 %v1054, 0.112945676
    %v1056 = vmul.f32 %v1038, %v1055
    %v1057 = vadd.f32 %v1056, 0.4994258
    %v1058 = vmul.f32 %v1038, %v1057
    %v1059 = vadd.f32 %v1058, 1.0
    %v1060 = vrcp.pop %v1059
    %v1061 = vmul.f32 %v1059, %v1060
    %v1062 = vsub.f32 1.0, %v1061
    %v1063 = vmul.f32 %v1060, %v1062
    %v1064 = vadd.f32 %v1060, %v1063
    %vm1065 = vweird.f32 %v1059
    %vm1066 = vweird.f32 %v1060
    %vm1067 = vmor %vm1065, %vm1066
    %v1068 = vsel %vm1067, %v1060, %v1064
    %v1069 = vand.u32 2147483647, %v1059
    %vm1070 = vcmp.eq.f32.partialorder %v1069, 8.507059e+37
    %v1071 = vand.u32 %v1059, 2147483648
    %v1072 = vor.u32 1.1754944e-38, %v1071
    %v1073 = vsel %vm1070, %v1072, %v1068
    %v1074 = vmul.f32 %v1049, %v1073
    %v1075 = vmin.f32 %v1074, 1.0
    %v1076 = vmax.f32 %v1075, -1.0
    %v1077 = vadd.f32 %v996, 1.0
    %v1078 = vadd.f32 %v1036, 1.0
    %v1079 = vadd.f32 %v1076, 1.0
    %v1080 = vmul.f32 %v951, %v1077
    %v1081 = vmul.f32 %v952, %v1078
    %v1082 = vmul.f32 %v953, %v1079
    %v1083 = vld [vmem:[#allocation7] sm:$0xff]
    %v1084 = vld [vmem:[#allocation7 + $0x8] sm:$0xff]
    %v1085 = vld [vmem:[#allocation7 + $0x10] sm:$0xff]
    %v1086 = vld [vmem:[#allocation7 + $0x18] sm:$0xff]
    %v1087 = vld [vmem:[#allocation7 + $0x20] sm:$0xff]
    %v1088 = vld [vmem:[#allocation7 + $0x28] sm:$0xff]
    %v1089 = vld [vmem:[#allocation7 + $0x30] sm:$0xff]
    %v1090 = vld [vmem:[#allocation7 + $0x38] sm:$0xff]
    %v1092 = vsel %vm115, %v1080, 0
    %v1095 = vsel %vm115, %v1081, 0
    %v1098 = vsel %vm115, %v1082, 0
    %1100 = vmatpush.msra.mxu0 0.0
    %1101 = vmatpush.msra.mxu0 0.0
    %1102 = vmatpush.msra.mxu0 0.0
    %1103 = vmatpush.msra.mxu0 0.0
    %1104 = vmatpush.msra.mxu0 0.0
    %1105 = vmatpush.msra.mxu0 0.0
    %1106 = vmatpush.msra.mxu0 0.0
    %1107 = vmatpush.msra.mxu0 0.0
    %1108 = vmatpush.msra.mxu0 %v1090
    %1109 = vmatpush.msra.mxu0 %v1089
    %1110 = vmatpush.msra.mxu0 %v1088
    %1111 = vmatpush.msra.mxu0 %v1087
    %1112 = vmatpush.msra.mxu0 %v1086
    %1113 = vmatpush.msra.mxu0 %v1085
    %1114 = vmatpush.msra.mxu0 %v1084
    %1115 = vmatpush.msra.mxu0 %v1083
    %1116 = vmatmul.f32.gmra.mxu0 %v1092
    %v1117 = vpop.f32.mrf.mxu0
    %v1118 = vadd.f32 0.0, %v1117
    %1119 = vmatmul.f32.gmra.mxu0 %v1095
    %v1120 = vpop.f32.mrf.mxu0
    %v1121 = vadd.f32 0.0, %v1120
    %1122 = vmatmul.f32.gmra.mxu0 %v1098
    %v1123 = vpop.f32.mrf.mxu0
    %v1124 = vadd.f32 0.0, %v1123
    %1125 = vdwg.mxu0
    %v1126 = vadd.f32 %v821, %v1118
    %v1127 = vadd.f32 %v822, %v1121
    %v1128 = vadd.f32 %v823, %v1124
    %v1129 = vld [vmem:[%s11] sm:$0x1]
    %v1131 = vperm.slane %v1129, 0
    %v1133 = vadd.f32 %v1126, %v1131
    %v1134 = vadd.f32 %v1127, %v1131
    %v1135 = vadd.f32 %v1128, %v1131
    %s1136 = scalar_lea.vmem %s1, 1
    %v1137 = vld [vmem:[%s1136] sm:$0x1]
    %s1138 = scalar_lea.vmem %s2, 1
    %v1139 = vld [vmem:[%s1138] sm:$0x1]
    %v1140 = vsel %vm115, %v1133, 0.0
    %1141 = vadd.xlane.f32.xlu0 %v1140
    %v1142 = vpop.xlane.xlu0 %1141
    %v1143 = vsel %vm115, %v1134, 0.0
    %1144 = vadd.xlane.f32.xlu0 %v1143
    %v1145 = vpop.xlane.xlu0 %1144
    %v1146 = vsel %vm122, %v1135, 0.0
    %1147 = vadd.xlane.f32.xlu0 %v1146
    %v1148 = vpop.xlane.xlu0 %1147
    %v1149 = vmul.f32 %v1142, %v132
    %v1150 = vmul.f32 %v1145, %v132
    %v1151 = vmul.f32 %v1148, %v132
    %v1152 = vsub.f32 %v1133, %v1149
    %v1153 = vsub.f32 %v1134, %v1150
    %v1154 = vsub.f32 %v1135, %v1151
    %v1155 = vmul.f32 %v1152, %v1152
    %v1156 = vmul.f32 %v1153, %v1153
    %v1157 = vmul.f32 %v1154, %v1154
    %v1158 = vsel %vm115, %v1155, 0.0
    %1159 = vadd.xlane.f32.xlu0 %v1158
    %v1160 = vpop.xlane.xlu0 %1159
    %v1161 = vsel %vm115, %v1156, 0.0
    %1162 = vadd.xlane.f32.xlu0 %v1161
    %v1163 = vpop.xlane.xlu0 %1162
    %v1164 = vsel %vm122, %v1157, 0.0
    %1165 = vadd.xlane.f32.xlu0 %v1164
    %v1166 = vpop.xlane.xlu0 %1165
    %v1167 = vmul.f32 %v1160, %v132
    %v1168 = vmul.f32 %v1163, %v132
    %v1169 = vmul.f32 %v1166, %v132
    %v1170 = vadd.f32 %v1167, 1e-05
    %v1171 = vadd.f32 %v1168, 1e-05
    %v1172 = vadd.f32 %v1169, 1e-05
    %v1173 = vrsqrt.pop %v1170
    %v1174 = vmul.f32 %v1173, %v1170
    %v1175 = vmul.f32 %v1174, %v1173
    %v1176 = vmul.f32 0.5, %v1175
    %v1177 = vsub.f32 1.5, %v1176
    %v1178 = vmul.f32 %v1173, %v1177
    %vm1179 = vweird.f32 %v1170
    %vm1180 = vweird.f32 %v1173
    %vm1181 = vmor %vm1179, %vm1180
    %v1182 = vsel %vm1181, %v1173, %v1178
    %v1183 = vrsqrt.pop %v1171
    %v1184 = vmul.f32 %v1183, %v1171
    %v1185 = vmul.f32 %v1184, %v1183
    %v1186 = vmul.f32 0.5, %v1185
    %v1187 = vsub.f32 1.5, %v1186
    %v1188 = vmul.f32 %v1183, %v1187
    %vm1189 = vweird.f32 %v1171
    %vm1190 = vweird.f32 %v1183
    %vm1191 = vmor %vm1189, %vm1190
    %v1192 = vsel %vm1191, %v1183, %v1188
    %v1193 = vrsqrt.pop %v1172
    %v1194 = vmul.f32 %v1193, %v1172
    %v1195 = vmul.f32 %v1194, %v1193
    %v1196 = vmul.f32 0.5, %v1195
    %v1197 = vsub.f32 1.5, %v1196
    %v1198 = vmul.f32 %v1193, %v1197
    %vm1199 = vweird.f32 %v1172
    %vm1200 = vweird.f32 %v1193
    %vm1201 = vmor %vm1199, %vm1200
    %v1202 = vsel %vm1201, %v1193, %v1198
    %v1203 = vmul.f32 %v1152, %v1182
    %v1204 = vmul.f32 %v1153, %v1192
    %v1205 = vmul.f32 %v1154, %v1202
    %v1207 = vperm.slane %v1137, 0
    %v1209 = vmul.f32 %v1203, %v1207
    %v1210 = vmul.f32 %v1204, %v1207
    %v1211 = vmul.f32 %v1205, %v1207
    %v1213 = vperm.slane %v1139, 0
    %v1215 = vadd.f32 %v1209, %v1213
    %v1216 = vadd.f32 %v1210, %v1213
    %v1217 = vadd.f32 %v1211, %v1213
    %s1218 = scalar_lea.vmem [#allocation2], 64
    %v1219 = vld [vmem:[%s1218] sm:$0xff]
    %v1220 = vld [vmem:[%s1218 + $0x8] sm:$0xff]
    %v1221 = vld [vmem:[%s1218 + $0x10] sm:$0xff]
    %v1222 = vld [vmem:[%s1218 + $0x18] sm:$0xff]
    %v1223 = vld [vmem:[%s1218 + $0x20] sm:$0xff]
    %v1224 = vld [vmem:[%s1218 + $0x28] sm:$0xff]
    %v1225 = vld [vmem:[%s1218 + $0x30] sm:$0xff]
    %v1226 = vld [vmem:[%s1218 + $0x38] sm:$0xff]
    %v1228 = vsel %vm115, %v1215, 0
    %v1231 = vsel %vm115, %v1216, 0
    %v1234 = vsel %vm115, %v1217, 0
    %1236 = vmatpush.msra.mxu0 0.0
    %1237 = vmatpush.msra.mxu0 0.0
    %1238 = vmatpush.msra.mxu0 0.0
    %1239 = vmatpush.msra.mxu0 0.0
    %1240 = vmatpush.msra.mxu0 0.0
    %1241 = vmatpush.msra.mxu0 0.0
    %1242 = vmatpush.msra.mxu0 0.0
    %1243 = vmatpush.msra.mxu0 0.0
    %1244 = vmatpush.msra.mxu0 %v1226
    %1245 = vmatpush.msra.mxu0 %v1225
    %1246 = vmatpush.msra.mxu0 %v1224
    %1247 = vmatpush.msra.mxu0 %v1223
    %1248 = vmatpush.msra.mxu0 %v1222
    %1249 = vmatpush.msra.mxu0 %v1221
    %1250 = vmatpush.msra.mxu0 %v1220
    %1251 = vmatpush.msra.mxu0 %v1219
    %1252 = vmatmul.f32.gmra.mxu0 %v1228
    %v1253 = vpop.f32.mrf.mxu0
    %v1254 = vadd.f32 0.0, %v1253
    %1255 = vmatmul.f32.gmra.mxu0 %v1231
    %v1256 = vpop.f32.mrf.mxu0
    %v1257 = vadd.f32 0.0, %v1256
    %1258 = vmatmul.f32.gmra.mxu0 %v1234
    %v1259 = vpop.f32.mrf.mxu0
    %v1260 = vadd.f32 0.0, %v1259
    %1261 = vdwg.mxu0
    %1264 = vrot.lane.b32.xlu0 %v1254, 96
    %v1265 = vpop.permute.xlu0 %1264
    %1266 = vrot.lane.b32.xlu0 %v1257, 96
    %v1267 = vpop.permute.xlu0 %1266
    %v1268 = vsel %vm251, %v1254, 0
    %v1270 = vsel %vm251, %v1257, 0
    %v1272 = vsel %vm251, %v1265, 0
    %v1274 = vsel %vm251, %v1267, 0
    %1276 = vmatpush.xpose.msra.mxu0 0.0
    %1277 = vmatpush.xpose.msra.mxu0 0.0
    %1278 = vmatpush.xpose.msra.mxu0 0.0
    %1279 = vmatpush.xpose.msra.mxu0 0.0
    %1280 = vmatpush.xpose.msra.mxu0 0.0
    %1281 = vmatpush.xpose.msra.mxu0 0.0
    %1282 = vmatpush.xpose.msra.mxu0 0.0
    %1283 = vmatpush.xpose.msra.mxu0 0.0
    %1284 = vmatpush.xpose.msra.mxu0 0.0
    %1285 = vmatpush.xpose.msra.mxu0 0.0
    %1286 = vmatpush.xpose.msra.mxu0 0.0
    %1287 = vmatpush.xpose.msra.mxu0 0.0
    %1288 = vmatpush.xpose.msra.mxu0 0.0
    %1289 = vmatpush.xpose.msra.mxu0 0.0
    %1290 = vmatpush.xpose.msra.mxu0 %v1274
    %1291 = vmatpush.xpose.msra.mxu0 %v1272
    %1292 = vmatmul.f32.gmra.mxu0 %v1268
    %v1293 = vpop.f32.mrf.mxu0
    %v1294 = vadd.f32 0.0, %v1293
    %1295 = vmatmul.f32.gmra.mxu0 %v1270
    %v1296 = vpop.f32.mrf.mxu0
    %v1297 = vadd.f32 0.0, %v1296
    %1298 = vdwg.mxu0
    %v1299 = vmul.f32 %v1294, 0.25
    %v1300 = vmul.f32 %v1297, 0.25
    %v1301 = vsel %vm285, %v1299, -inf
    %1302 = vmax.xlane.f32.xlu0 %v1301
    %v1303 = vpop.xlane.xlu0 %1302
    %v1304 = vsel %vm289, %v1300, -inf
    %1305 = vmax.xlane.f32.xlu0 %v1304
    %v1306 = vpop.xlane.xlu0 %1305
    %v1307 = vsub.f32 %v1299, %v1303
    %v1308 = vsub.f32 %v1300, %v1306
    %v1309 = vmul.f32 %v1307, 1.442695
    %v1310 = vpow.pop %v1309
    %v1311 = vmul.f32 %v1308, 1.442695
    %v1312 = vpow.pop %v1311
    %v1313 = vsel %vm285, %v1310, 0.0
    %1314 = vadd.xlane.f32.xlu0 %v1313
    %v1315 = vpop.xlane.xlu0 %1314
    %v1316 = vsel %vm289, %v1312, 0.0
    %1317 = vadd.xlane.f32.xlu0 %v1316
    %v1318 = vpop.xlane.xlu0 %1317
    %v1319 = vrcp.pop %v1315
    %v1320 = vmul.f32 %v1315, %v1319
    %v1321 = vsub.f32 1.0, %v1320
    %v1322 = vmul.f32 %v1319, %v1321
    %v1323 = vadd.f32 %v1319, %v1322
    %vm1324 = vweird.f32 %v1315
    %vm1325 = vweird.f32 %v1319
    %vm1326 = vmor %vm1324, %vm1325
    %v1327 = vsel %vm1326, %v1319, %v1323
    %v1328 = vand.u32 2147483647, %v1315
    %vm1329 = vcmp.eq.f32.partialorder %v1328, 8.507059e+37
    %v1330 = vand.u32 %v1315, 2147483648
    %v1331 = vor.u32 1.1754944e-38, %v1330
    %v1332 = vsel %vm1329, %v1331, %v1327
    %v1333 = vmul.f32 %v1310, %v1332
    %v1334 = vrcp.pop %v1318
    %v1335 = vmul.f32 %v1318, %v1334
    %v1336 = vsub.f32 1.0, %v1335
    %v1337 = vmul.f32 %v1334, %v1336
    %v1338 = vadd.f32 %v1334, %v1337
    %vm1339 = vweird.f32 %v1318
    %vm1340 = vweird.f32 %v1334
    %vm1341 = vmor %vm1339, %vm1340
    %v1342 = vsel %vm1341, %v1334, %v1338
    %v1343 = vand.u32 2147483647, %v1318
    %vm1344 = vcmp.eq.f32.partialorder %v1343, 8.507059e+37
    %v1345 = vand.u32 %v1318, 2147483648
    %v1346 = vor.u32 1.1754944e-38, %v1345
    %v1347 = vsel %vm1344, %v1346, %v1342
    %v1348 = vmul.f32 %v1312, %v1347
    %1349 = vrot.lane.b32.xlu0 %v1254, 64
    %v1350 = vpop.permute.xlu0 %1349
    %1351 = vrot.lane.b32.xlu0 %v1257, 64
    %v1352 = vpop.permute.xlu0 %1351
    %v1355 = vsel %vm285, %v1333, 0
    %v1358 = vsel %vm285, %v1348, 0
    %v1360 = vsel %vm346, %v1352, 0
    %1362 = vmatpush.msra.mxu0 0.0
    %1363 = vmatpush.msra.mxu0 0.0
    %1364 = vmatpush.msra.mxu0 0.0
    %1365 = vmatpush.msra.mxu0 0.0
    %1366 = vmatpush.msra.mxu0 0.0
    %1367 = vmatpush.msra.mxu0 0.0
    %1368 = vmatpush.msra.mxu0 0.0
    %1369 = vmatpush.msra.mxu0 0.0
    %1370 = vmatpush.msra.mxu0 0.0
    %1371 = vmatpush.msra.mxu0 0.0
    %1372 = vmatpush.msra.mxu0 0.0
    %1373 = vmatpush.msra.mxu0 0.0
    %1374 = vmatpush.msra.mxu0 0.0
    %1375 = vmatpush.msra.mxu0 0.0
    %1376 = vmatpush.msra.mxu0 %v1360
    %1377 = vmatpush.msra.mxu0 %v1350
    %1378 = vmatmul.f32.gmra.mxu0 %v1355
    %v1379 = vpop.f32.mrf.mxu0
    %v1380 = vadd.f32 0.0, %v1379
    %1381 = vmatmul.f32.gmra.mxu0 %v1358
    %v1382 = vpop.f32.mrf.mxu0
    %v1383 = vadd.f32 0.0, %v1382
    %1384 = vdwg.mxu0
    %1385 = vrot.lane.b32.xlu0 %v1254, 112
    %v1386 = vpop.permute.xlu0 %1385
    %1387 = vrot.lane.b32.xlu0 %v1257, 112
    %v1388 = vpop.permute.xlu0 %1387
    %1389 = vrot.lane.b32.xlu0 %v1254, 80
    %v1390 = vpop.permute.xlu0 %1389
    %1391 = vrot.lane.b32.xlu0 %v1257, 80
    %v1392 = vpop.permute.xlu0 %1391
    %v1393 = vsel %vm251, %v1386, 0
    %v1395 = vsel %vm251, %v1388, 0
    %v1397 = vsel %vm251, %v1390, 0
    %v1399 = vsel %vm251, %v1392, 0
    %1401 = vmatpush.xpose.msra.mxu0 0.0
    %1402 = vmatpush.xpose.msra.mxu0 0.0
    %1403 = vmatpush.xpose.msra.mxu0 0.0
    %1404 = vmatpush.xpose.msra.mxu0 0.0
    %1405 = vmatpush.xpose.msra.mxu0 0.0
    %1406 = vmatpush.xpose.msra.mxu0 0.0
    %1407 = vmatpush.xpose.msra.mxu0 0.0
    %1408 = vmatpush.xpose.msra.mxu0 0.0
    %1409 = vmatpush.xpose.msra.mxu0 0.0
    %1410 = vmatpush.xpose.msra.mxu0 0.0
    %1411 = vmatpush.xpose.msra.mxu0 0.0
    %1412 = vmatpush.xpose.msra.mxu0 0.0
    %1413 = vmatpush.xpose.msra.mxu0 0.0
    %1414 = vmatpush.xpose.msra.mxu0 0.0
    %1415 = vmatpush.xpose.msra.mxu0 %v1399
    %1416 = vmatpush.xpose.msra.mxu0 %v1397
    %1417 = vmatmul.f32.gmra.mxu0 %v1393
    %v1418 = vpop.f32.mrf.mxu0
    %v1419 = vadd.f32 0.0, %v1418
    %1420 = vmatmul.f32.gmra.mxu0 %v1395
    %v1421 = vpop.f32.mrf.mxu0
    %v1422 = vadd.f32 0.0, %v1421
    %1423 = vdwg.mxu0
    %v1424 = vmul.f32 %v1419, 0.25
    %v1425 = vmul.f32 %v1422, 0.25
    %v1426 = vsel %vm285, %v1424, -inf
    %1427 = vmax.xlane.f32.xlu0 %v1426
    %v1428 = vpop.xlane.xlu0 %1427
    %v1429 = vsel %vm289, %v1425, -inf
    %1430 = vmax.xlane.f32.xlu0 %v1429
    %v1431 = vpop.xlane.xlu0 %1430
    %v1432 = vsub.f32 %v1424, %v1428
    %v1433 = vsub.f32 %v1425, %v1431
    %v1434 = vmul.f32 %v1432, 1.442695
    %v1435 = vpow.pop %v1434
    %v1436 = vmul.f32 %v1433, 1.442695
    %v1437 = vpow.pop %v1436
    %v1438 = vsel %vm285, %v1435, 0.0
    %1439 = vadd.xlane.f32.xlu0 %v1438
    %v1440 = vpop.xlane.xlu0 %1439
    %v1441 = vsel %vm289, %v1437, 0.0
    %1442 = vadd.xlane.f32.xlu0 %v1441
    %v1443 = vpop.xlane.xlu0 %1442
    %v1444 = vrcp.pop %v1440
    %v1445 = vmul.f32 %v1440, %v1444
    %v1446 = vsub.f32 1.0, %v1445
    %v1447 = vmul.f32 %v1444, %v1446
    %v1448 = vadd.f32 %v1444, %v1447
    %vm1449 = vweird.f32 %v1440
    %vm1450 = vweird.f32 %v1444
    %vm1451 = vmor %vm1449, %vm1450
    %v1452 = vsel %vm1451, %v1444, %v1448
    %v1453 = vand.u32 2147483647, %v1440
    %vm1454 = vcmp.eq.f32.partialorder %v1453, 8.507059e+37
    %v1455 = vand.u32 %v1440, 2147483648
    %v1456 = vor.u32 1.1754944e-38, %v1455
    %v1457 = vsel %vm1454, %v1456, %v1452
    %v1458 = vmul.f32 %v1435, %v1457
    %v1459 = vrcp.pop %v1443
    %v1460 = vmul.f32 %v1443, %v1459
    %v1461 = vsub.f32 1.0, %v1460
    %v1462 = vmul.f32 %v1459, %v1461
    %v1463 = vadd.f32 %v1459, %v1462
    %vm1464 = vweird.f32 %v1443
    %vm1465 = vweird.f32 %v1459
    %vm1466 = vmor %vm1464, %vm1465
    %v1467 = vsel %vm1466, %v1459, %v1463
    %v1468 = vand.u32 2147483647, %v1443
    %vm1469 = vcmp.eq.f32.partialorder %v1468, 8.507059e+37
    %v1470 = vand.u32 %v1443, 2147483648
    %v1471 = vor.u32 1.1754944e-38, %v1470
    %v1472 = vsel %vm1469, %v1471, %v1467
    %v1473 = vmul.f32 %v1437, %v1472
    %1474 = vrot.lane.b32.xlu0 %v1254, 48
    %v1475 = vpop.permute.xlu0 %1474
    %1476 = vrot.lane.b32.xlu0 %v1257, 48
    %v1477 = vpop.permute.xlu0 %1476
    %v1480 = vsel %vm285, %v1458, 0
    %v1483 = vsel %vm285, %v1473, 0
    %v1485 = vsel %vm346, %v1477, 0
    %1487 = vmatpush.msra.mxu0 0.0
    %1488 = vmatpush.msra.mxu0 0.0
    %1489 = vmatpush.msra.mxu0 0.0
    %1490 = vmatpush.msra.mxu0 0.0
    %1491 = vmatpush.msra.mxu0 0.0
    %1492 = vmatpush.msra.mxu0 0.0
    %1493 = vmatpush.msra.mxu0 0.0
    %1494 = vmatpush.msra.mxu0 0.0
    %1495 = vmatpush.msra.mxu0 0.0
    %1496 = vmatpush.msra.mxu0 0.0
    %1497 = vmatpush.msra.mxu0 0.0
    %1498 = vmatpush.msra.mxu0 0.0
    %1499 = vmatpush.msra.mxu0 0.0
    %1500 = vmatpush.msra.mxu0 0.0
    %1501 = vmatpush.msra.mxu0 %v1485
    %1502 = vmatpush.msra.mxu0 %v1475
    %1503 = vmatmul.f32.gmra.mxu0 %v1480
    %v1504 = vpop.f32.mrf.mxu0
    %v1505 = vadd.f32 0.0, %v1504
    %1506 = vmatmul.f32.gmra.mxu0 %v1483
    %v1507 = vpop.f32.mrf.mxu0
    %v1508 = vadd.f32 0.0, %v1507
    %1509 = vdwg.mxu0
    %1512 = vrot.lane.b32.xlu0 %v1505, 16
    %v1513 = vpop.permute.xlu0 %1512
    %1514 = vrot.lane.b32.xlu0 %v1508, 16
    %v1515 = vpop.permute.xlu0 %1514
    %v1518 = vsel %vm251, %v1380, %v1513
    %v1519 = vsel %vm251, %v1383, %v1515
    %v1521 = vrot.slane %v1257, 1
    %v1522 = vrot.slane %v1260, 1
    %v1523 = vsel %vm508, %v1521, %v1522
    %1524 = vrot.lane.b32.xlu0 %v1523, 96
    %v1525 = vpop.permute.xlu0 %1524
    %1526 = vrot.lane.b32.xlu0 %v1522, 96
    %v1527 = vpop.permute.xlu0 %1526
    %v1528 = vsel %vm251, %v1523, 0
    %v1530 = vsel %vm251, %v1522, 0
    %v1532 = vsel %vm251, %v1525, 0
    %v1534 = vsel %vm251, %v1527, 0
    %1536 = vmatpush.xpose.msra.mxu0 0.0
    %1537 = vmatpush.xpose.msra.mxu0 0.0
    %1538 = vmatpush.xpose.msra.mxu0 0.0
    %1539 = vmatpush.xpose.msra.mxu0 0.0
    %1540 = vmatpush.xpose.msra.mxu0 0.0
    %1541 = vmatpush.xpose.msra.mxu0 0.0
    %1542 = vmatpush.xpose.msra.mxu0 0.0
    %1543 = vmatpush.xpose.msra.mxu0 0.0
    %1544 = vmatpush.xpose.msra.mxu0 0.0
    %1545 = vmatpush.xpose.msra.mxu0 0.0
    %1546 = vmatpush.xpose.msra.mxu0 0.0
    %1547 = vmatpush.xpose.msra.mxu0 0.0
    %1548 = vmatpush.xpose.msra.mxu0 0.0
    %1549 = vmatpush.xpose.msra.mxu0 0.0
    %1550 = vmatpush.xpose.msra.mxu0 %v1534
    %1551 = vmatpush.xpose.msra.mxu0 %v1532
    %1552 = vmatmul.f32.gmra.mxu0 %v1528
    %v1553 = vpop.f32.mrf.mxu0
    %v1554 = vadd.f32 0.0, %v1553
    %1555 = vmatmul.f32.gmra.mxu0 %v1530
    %v1556 = vpop.f32.mrf.mxu0
    %v1557 = vadd.f32 0.0, %v1556
    %1558 = vdwg.mxu0
    %v1559 = vmul.f32 %v1554, 0.25
    %v1560 = vmul.f32 %v1557, 0.25
    %v1561 = vsel %vm285, %v1559, -inf
    %1562 = vmax.xlane.f32.xlu0 %v1561
    %v1563 = vpop.xlane.xlu0 %1562
    %v1564 = vsel %vm289, %v1560, -inf
    %1565 = vmax.xlane.f32.xlu0 %v1564
    %v1566 = vpop.xlane.xlu0 %1565
    %v1567 = vsub.f32 %v1559, %v1563
    %v1568 = vsub.f32 %v1560, %v1566
    %v1569 = vmul.f32 %v1567, 1.442695
    %v1570 = vpow.pop %v1569
    %v1571 = vmul.f32 %v1568, 1.442695
    %v1572 = vpow.pop %v1571
    %v1573 = vsel %vm285, %v1570, 0.0
    %1574 = vadd.xlane.f32.xlu0 %v1573
    %v1575 = vpop.xlane.xlu0 %1574
    %v1576 = vsel %vm289, %v1572, 0.0
    %1577 = vadd.xlane.f32.xlu0 %v1576
    %v1578 = vpop.xlane.xlu0 %1577
    %v1579 = vrcp.pop %v1575
    %v1580 = vmul.f32 %v1575, %v1579
    %v1581 = vsub.f32 1.0, %v1580
    %v1582 = vmul.f32 %v1579, %v1581
    %v1583 = vadd.f32 %v1579, %v1582
    %vm1584 = vweird.f32 %v1575
    %vm1585 = vweird.f32 %v1579
    %vm1586 = vmor %vm1584, %vm1585
    %v1587 = vsel %vm1586, %v1579, %v1583
    %v1588 = vand.u32 2147483647, %v1575
    %vm1589 = vcmp.eq.f32.partialorder %v1588, 8.507059e+37
    %v1590 = vand.u32 %v1575, 2147483648
    %v1591 = vor.u32 1.1754944e-38, %v1590
    %v1592 = vsel %vm1589, %v1591, %v1587
    %v1593 = vmul.f32 %v1570, %v1592
    %v1594 = vrcp.pop %v1578
    %v1595 = vmul.f32 %v1578, %v1594
    %v1596 = vsub.f32 1.0, %v1595
    %v1597 = vmul.f32 %v1594, %v1596
    %v1598 = vadd.f32 %v1594, %v1597
    %vm1599 = vweird.f32 %v1578
    %vm1600 = vweird.f32 %v1594
    %vm1601 = vmor %vm1599, %vm1600
    %v1602 = vsel %vm1601, %v1594, %v1598
    %v1603 = vand.u32 2147483647, %v1578
    %vm1604 = vcmp.eq.f32.partialorder %v1603, 8.507059e+37
    %v1605 = vand.u32 %v1578, 2147483648
    %v1606 = vor.u32 1.1754944e-38, %v1605
    %v1607 = vsel %vm1604, %v1606, %v1602
    %v1608 = vmul.f32 %v1572, %v1607
    %1609 = vrot.lane.b32.xlu0 %v1523, 64
    %v1610 = vpop.permute.xlu0 %1609
    %1611 = vrot.lane.b32.xlu0 %v1522, 64
    %v1612 = vpop.permute.xlu0 %1611
    %v1615 = vsel %vm285, %v1593, 0
    %v1618 = vsel %vm285, %v1608, 0
    %v1620 = vsel %vm346, %v1612, 0
    %1622 = vmatpush.msra.mxu0 0.0
    %1623 = vmatpush.msra.mxu0 0.0
    %1624 = vmatpush.msra.mxu0 0.0
    %1625 = vmatpush.msra.mxu0 0.0
    %1626 = vmatpush.msra.mxu0 0.0
    %1627 = vmatpush.msra.mxu0 0.0
    %1628 = vmatpush.msra.mxu0 0.0
    %1629 = vmatpush.msra.mxu0 0.0
    %1630 = vmatpush.msra.mxu0 0.0
    %1631 = vmatpush.msra.mxu0 0.0
    %1632 = vmatpush.msra.mxu0 0.0
    %1633 = vmatpush.msra.mxu0 0.0
    %1634 = vmatpush.msra.mxu0 0.0
    %1635 = vmatpush.msra.mxu0 0.0
    %1636 = vmatpush.msra.mxu0 %v1620
    %1637 = vmatpush.msra.mxu0 %v1610
    %1638 = vmatmul.f32.gmra.mxu0 %v1615
    %v1639 = vpop.f32.mrf.mxu0
    %v1640 = vadd.f32 0.0, %v1639
    %1641 = vmatmul.f32.gmra.mxu0 %v1618
    %v1642 = vpop.f32.mrf.mxu0
    %v1643 = vadd.f32 0.0, %v1642
    %1644 = vdwg.mxu0
    %1645 = vrot.lane.b32.xlu0 %v1523, 112
    %v1646 = vpop.permute.xlu0 %1645
    %1647 = vrot.lane.b32.xlu0 %v1522, 112
    %v1648 = vpop.permute.xlu0 %1647
    %1649 = vrot.lane.b32.xlu0 %v1523, 80
    %v1650 = vpop.permute.xlu0 %1649
    %1651 = vrot.lane.b32.xlu0 %v1522, 80
    %v1652 = vpop.permute.xlu0 %1651
    %v1653 = vsel %vm251, %v1646, 0
    %v1655 = vsel %vm251, %v1648, 0
    %v1657 = vsel %vm251, %v1650, 0
    %v1659 = vsel %vm251, %v1652, 0
    %1661 = vmatpush.xpose.msra.mxu0 0.0
    %1662 = vmatpush.xpose.msra.mxu0 0.0
    %1663 = vmatpush.xpose.msra.mxu0 0.0
    %1664 = vmatpush.xpose.msra.mxu0 0.0
    %1665 = vmatpush.xpose.msra.mxu0 0.0
    %1666 = vmatpush.xpose.msra.mxu0 0.0
    %1667 = vmatpush.xpose.msra.mxu0 0.0
    %1668 = vmatpush.xpose.msra.mxu0 0.0
    %1669 = vmatpush.xpose.msra.mxu0 0.0
    %1670 = vmatpush.xpose.msra.mxu0 0.0
    %1671 = vmatpush.xpose.msra.mxu0 0.0
    %1672 = vmatpush.xpose.msra.mxu0 0.0
    %1673 = vmatpush.xpose.msra.mxu0 0.0
    %1674 = vmatpush.xpose.msra.mxu0 0.0
    %1675 = vmatpush.xpose.msra.mxu0 %v1659
    %1676 = vmatpush.xpose.msra.mxu0 %v1657
    %1677 = vmatmul.f32.gmra.mxu0 %v1653
    %v1678 = vpop.f32.mrf.mxu0
    %v1679 = vadd.f32 0.0, %v1678
    %1680 = vmatmul.f32.gmra.mxu0 %v1655
    %v1681 = vpop.f32.mrf.mxu0
    %v1682 = vadd.f32 0.0, %v1681
    %1683 = vdwg.mxu0
    %v1684 = vmul.f32 %v1679, 0.25
    %v1685 = vmul.f32 %v1682, 0.25
    %v1686 = vsel %vm285, %v1684, -inf
    %1687 = vmax.xlane.f32.xlu0 %v1686
    %v1688 = vpop.xlane.xlu0 %1687
    %v1689 = vsel %vm289, %v1685, -inf
    %1690 = vmax.xlane.f32.xlu0 %v1689
    %v1691 = vpop.xlane.xlu0 %1690
    %v1692 = vsub.f32 %v1684, %v1688
    %v1693 = vsub.f32 %v1685, %v1691
    %v1694 = vmul.f32 %v1692, 1.442695
    %v1695 = vpow.pop %v1694
    %v1696 = vmul.f32 %v1693, 1.442695
    %v1697 = vpow.pop %v1696
    %v1698 = vsel %vm285, %v1695, 0.0
    %1699 = vadd.xlane.f32.xlu0 %v1698
    %v1700 = vpop.xlane.xlu0 %1699
    %v1701 = vsel %vm289, %v1697, 0.0
    %1702 = vadd.xlane.f32.xlu0 %v1701
    %v1703 = vpop.xlane.xlu0 %1702
    %v1704 = vrcp.pop %v1700
    %v1705 = vmul.f32 %v1700, %v1704
    %v1706 = vsub.f32 1.0, %v1705
    %v1707 = vmul.f32 %v1704, %v1706
    %v1708 = vadd.f32 %v1704, %v1707
    %vm1709 = vweird.f32 %v1700
    %vm1710 = vweird.f32 %v1704
    %vm1711 = vmor %vm1709, %vm1710
    %v1712 = vsel %vm1711, %v1704, %v1708
    %v1713 = vand.u32 2147483647, %v1700
    %vm1714 = vcmp.eq.f32.partialorder %v1713, 8.507059e+37
    %v1715 = vand.u32 %v1700, 2147483648
    %v1716 = vor.u32 1.1754944e-38, %v1715
    %v1717 = vsel %vm1714, %v1716, %v1712
    %v1718 = vmul.f32 %v1695, %v1717
    %v1719 = vrcp.pop %v1703
    %v1720 = vmul.f32 %v1703, %v1719
    %v1721 = vsub.f32 1.0, %v1720
    %v1722 = vmul.f32 %v1719, %v1721
    %v1723 = vadd.f32 %v1719, %v1722
    %vm1724 = vweird.f32 %v1703
    %vm1725 = vweird.f32 %v1719
    %vm1726 = vmor %vm1724, %vm1725
    %v1727 = vsel %vm1726, %v1719, %v1723
    %v1728 = vand.u32 2147483647, %v1703
    %vm1729 = vcmp.eq.f32.partialorder %v1728, 8.507059e+37
    %v1730 = vand.u32 %v1703, 2147483648
    %v1731 = vor.u32 1.1754944e-38, %v1730
    %v1732 = vsel %vm1729, %v1731, %v1727
    %v1733 = vmul.f32 %v1697, %v1732
    %1734 = vrot.lane.b32.xlu0 %v1523, 48
    %v1735 = vpop.permute.xlu0 %1734
    %1736 = vrot.lane.b32.xlu0 %v1522, 48
    %v1737 = vpop.permute.xlu0 %1736
    %v1740 = vsel %vm285, %v1718, 0
    %v1743 = vsel %vm285, %v1733, 0
    %v1745 = vsel %vm346, %v1737, 0
    %1747 = vmatpush.msra.mxu0 0.0
    %1748 = vmatpush.msra.mxu0 0.0
    %1749 = vmatpush.msra.mxu0 0.0
    %1750 = vmatpush.msra.mxu0 0.0
    %1751 = vmatpush.msra.mxu0 0.0
    %1752 = vmatpush.msra.mxu0 0.0
    %1753 = vmatpush.msra.mxu0 0.0
    %1754 = vmatpush.msra.mxu0 0.0
    %1755 = vmatpush.msra.mxu0 0.0
    %1756 = vmatpush.msra.mxu0 0.0
    %1757 = vmatpush.msra.mxu0 0.0
    %1758 = vmatpush.msra.mxu0 0.0
    %1759 = vmatpush.msra.mxu0 0.0
    %1760 = vmatpush.msra.mxu0 0.0
    %1761 = vmatpush.msra.mxu0 %v1745
    %1762 = vmatpush.msra.mxu0 %v1735
    %1763 = vmatmul.f32.gmra.mxu0 %v1740
    %v1764 = vpop.f32.mrf.mxu0
    %v1765 = vadd.f32 0.0, %v1764
    %1766 = vmatmul.f32.gmra.mxu0 %v1743
    %v1767 = vpop.f32.mrf.mxu0
    %v1768 = vadd.f32 0.0, %v1767
    %1769 = vdwg.mxu0
    %1772 = vrot.lane.b32.xlu0 %v1765, 16
    %v1773 = vpop.permute.xlu0 %1772
    %1774 = vrot.lane.b32.xlu0 %v1768, 16
    %v1775 = vpop.permute.xlu0 %1774
    %v1778 = vsel %vm251, %v1640, %v1773
    %v1779 = vsel %vm251, %v1643, %v1775
    %v1782 = vrot.slane %v1778, 7
    %v1783 = vrot.slane %v1779, 7
    %v1784 = vsel %vm346, %v1782, %v1783
    %v1786 = vsel %vm346, %v1519, %v1782
    %s1787 = scalar_lea.vmem [#allocation4], 32
    %v1788 = vld [vmem:[%s1787] sm:$0xff]
    %v1789 = vld [vmem:[%s1787 + $0x8] sm:$0xff]
    %v1790 = vld [vmem:[%s1787 + $0x10] sm:$0xff]
    %v1791 = vld [vmem:[%s1787 + $0x18] sm:$0xff]
    %v1793 = vsel %vm779, %v1518, 0
    %v1796 = vsel %vm779, %v1786, 0
    %v1798 = vsel %vm779, %v1784, 0
    %1800 = vmatpush.msra.mxu0 0.0
    %1801 = vmatpush.msra.mxu0 0.0
    %1802 = vmatpush.msra.mxu0 0.0
    %1803 = vmatpush.msra.mxu0 0.0
    %1804 = vmatpush.msra.mxu0 0.0
    %1805 = vmatpush.msra.mxu0 0.0
    %1806 = vmatpush.msra.mxu0 0.0
    %1807 = vmatpush.msra.mxu0 0.0
    %1808 = vmatpush.msra.mxu0 0.0
    %1809 = vmatpush.msra.mxu0 0.0
    %1810 = vmatpush.msra.mxu0 0.0
    %1811 = vmatpush.msra.mxu0 0.0
    %1812 = vmatpush.msra.mxu0 %v1791
    %1813 = vmatpush.msra.mxu0 %v1790
    %1814 = vmatpush.msra.mxu0 %v1789
    %1815 = vmatpush.msra.mxu0 %v1788
    %1816 = vmatmul.f32.gmra.mxu0 %v1793
    %v1817 = vpop.f32.mrf.mxu0
    %v1818 = vadd.f32 0.0, %v1817
    %1819 = vmatmul.f32.gmra.mxu0 %v1796
    %v1820 = vpop.f32.mrf.mxu0
    %v1821 = vadd.f32 0.0, %v1820
    %1822 = vmatmul.f32.gmra.mxu0 %v1798
    %v1823 = vpop.f32.mrf.mxu0
    %v1824 = vadd.f32 0.0, %v1823
    %1825 = vdwg.mxu0
    %v1826 = vadd.f32 %v1133, %v1818
    %v1827 = vadd.f32 %v1134, %v1821
    %v1828 = vadd.f32 %v1135, %v1824
    %s1829 = scalar_lea.vmem %s5, 1
    %v1830 = vld [vmem:[%s1829] sm:$0x1]
    %v1832 = vperm.slane %v1830, 0
    %v1834 = vadd.f32 %v1826, %v1832
    %v1835 = vadd.f32 %v1827, %v1832
    %v1836 = vadd.f32 %v1828, %v1832
    %s1837 = scalar_lea.vmem %s6, 1
    %v1838 = vld [vmem:[%s1837] sm:$0x1]
    %s1839 = scalar_lea.vmem %s7, 1
    %v1840 = vld [vmem:[%s1839] sm:$0x1]
    %v1841 = vsel %vm115, %v1834, 0.0
    %1842 = vadd.xlane.f32.xlu0 %v1841
    %v1843 = vpop.xlane.xlu0 %1842
    %v1844 = vsel %vm115, %v1835, 0.0
    %1845 = vadd.xlane.f32.xlu0 %v1844
    %v1846 = vpop.xlane.xlu0 %1845
    %v1847 = vsel %vm122, %v1836, 0.0
    %1848 = vadd.xlane.f32.xlu0 %v1847
    %v1849 = vpop.xlane.xlu0 %1848
    %v1850 = vmul.f32 %v1843, %v132
    %v1851 = vmul.f32 %v1846, %v132
    %v1852 = vmul.f32 %v1849, %v132
    %v1853 = vsub.f32 %v1834, %v1850
    %v1854 = vsub.f32 %v1835, %v1851
    %v1855 = vsub.f32 %v1836, %v1852
    %v1856 = vmul.f32 %v1853, %v1853
    %v1857 = vmul.f32 %v1854, %v1854
    %v1858 = vmul.f32 %v1855, %v1855
    %v1859 = vsel %vm115, %v1856, 0.0
    %1860 = vadd.xlane.f32.xlu0 %v1859
    %v1861 = vpop.xlane.xlu0 %1860
    %v1862 = vsel %vm115, %v1857, 0.0
    %1863 = vadd.xlane.f32.xlu0 %v1862
    %v1864 = vpop.xlane.xlu0 %1863
    %v1865 = vsel %vm122, %v1858, 0.0
    %1866 = vadd.xlane.f32.xlu0 %v1865
    %v1867 = vpop.xlane.xlu0 %1866
    %v1868 = vmul.f32 %v1861, %v132
    %v1869 = vmul.f32 %v1864, %v132
    %v1870 = vmul.f32 %v1867, %v132
    %v1871 = vadd.f32 %v1868, 1e-05
    %v1872 = vadd.f32 %v1869, 1e-05
    %v1873 = vadd.f32 %v1870, 1e-05
    %v1874 = vrsqrt.pop %v1871
    %v1875 = vmul.f32 %v1874, %v1871
    %v1876 = vmul.f32 %v1875, %v1874
    %v1877 = vmul.f32 0.5, %v1876
    %v1878 = vsub.f32 1.5, %v1877
    %v1879 = vmul.f32 %v1874, %v1878
    %vm1880 = vweird.f32 %v1871
    %vm1881 = vweird.f32 %v1874
    %vm1882 = vmor %vm1880, %vm1881
    %v1883 = vsel %vm1882, %v1874, %v1879
    %v1884 = vrsqrt.pop %v1872
    %v1885 = vmul.f32 %v1884, %v1872
    %v1886 = vmul.f32 %v1885, %v1884
    %v1887 = vmul.f32 0.5, %v1886
    %v1888 = vsub.f32 1.5, %v1887
    %v1889 = vmul.f32 %v1884, %v1888
    %vm1890 = vweird.f32 %v1872
    %vm1891 = vweird.f32 %v1884
    %vm1892 = vmor %vm1890, %vm1891
    %v1893 = vsel %vm1892, %v1884, %v1889
    %v1894 = vrsqrt.pop %v1873
    %v1895 = vmul.f32 %v1894, %v1873
    %v1896 = vmul.f32 %v1895, %v1894
    %v1897 = vmul.f32 0.5, %v1896
    %v1898 = vsub.f32 1.5, %v1897
    %v1899 = vmul.f32 %v1894, %v1898
    %vm1900 = vweird.f32 %v1873
    %vm1901 = vweird.f32 %v1894
    %vm1902 = vmor %vm1900, %vm1901
    %v1903 = vsel %vm1902, %v1894, %v1899
    %v1904 = vmul.f32 %v1853, %v1883
    %v1905 = vmul.f32 %v1854, %v1893
    %v1906 = vmul.f32 %v1855, %v1903
    %v1908 = vperm.slane %v1838, 0
    %v1910 = vmul.f32 %v1904, %v1908
    %v1911 = vmul.f32 %v1905, %v1908
    %v1912 = vmul.f32 %v1906, %v1908
    %v1914 = vperm.slane %v1840, 0
    %v1916 = vadd.f32 %v1910, %v1914
    %v1917 = vadd.f32 %v1911, %v1914
    %v1918 = vadd.f32 %v1912, %v1914
    %s1919 = scalar_lea.vmem [#allocation6], 64
    %v1920 = vld [vmem:[%s1919] sm:$0xff]
    %v1921 = vld [vmem:[%s1919 + $0x8] sm:$0xff]
    %v1922 = vld [vmem:[%s1919 + $0x10] sm:$0xff]
    %v1923 = vld [vmem:[%s1919 + $0x18] sm:$0xff]
    %v1924 = vld [vmem:[%s1919 + $0x20] sm:$0xff]
    %v1925 = vld [vmem:[%s1919 + $0x28] sm:$0xff]
    %v1926 = vld [vmem:[%s1919 + $0x30] sm:$0xff]
    %v1927 = vld [vmem:[%s1919 + $0x38] sm:$0xff]
    %s1928 = scalar_lea.vmem %s9, 1
    %v1929 = vld [vmem:[%s1928] sm:$0x1]
    %v1931 = vperm.slane %v1929, 0
    %v1934 = vsel %vm115, %v1916, 0
    %v1937 = vsel %vm115, %v1917, 0
    %v1940 = vsel %vm115, %v1918, 0
    %1942 = vmatpush.msra.mxu0 0.0
    %1943 = vmatpush.msra.mxu0 0.0
    %1944 = vmatpush.msra.mxu0 0.0
    %1945 = vmatpush.msra.mxu0 0.0
    %1946 = vmatpush.msra.mxu0 0.0
    %1947 = vmatpush.msra.mxu0 0.0
    %1948 = vmatpush.msra.mxu0 0.0
    %1949 = vmatpush.msra.mxu0 0.0
    %1950 = vmatpush.msra.mxu0 %v1927
    %1951 = vmatpush.msra.mxu0 %v1926
    %1952 = vmatpush.msra.mxu0 %v1925
    %1953 = vmatpush.msra.mxu0 %v1924
    %1954 = vmatpush.msra.mxu0 %v1923
    %1955 = vmatpush.msra.mxu0 %v1922
    %1956 = vmatpush.msra.mxu0 %v1921
    %1957 = vmatpush.msra.mxu0 %v1920
    %1958 = vmatmul.f32.gmra.mxu0 %v1934
    %v1959 = vpop.f32.mrf.mxu0
    %v1960 = vadd.f32 %v1931, %v1959
    %1961 = vmatmul.f32.gmra.mxu0 %v1937
    %v1962 = vpop.f32.mrf.mxu0
    %v1963 = vadd.f32 %v1931, %v1962
    %1964 = vmatmul.f32.gmra.mxu0 %v1940
    %v1965 = vpop.f32.mrf.mxu0
    %v1966 = vadd.f32 %v1931, %v1965
    %1967 = vdwg.mxu0
    %v1968 = vmul.f32 %v1960, 0.5
    %v1969 = vmul.f32 %v1963, 0.5
    %v1970 = vmul.f32 %v1966, 0.5
    %v1971 = vmul.f32 %v1960, 0.70710677
    %v1972 = vmul.f32 %v1963, 0.70710677
    %v1973 = vmul.f32 %v1966, 0.70710677
    %v1974 = vmul.f32 %v1971, %v1971
    %v1975 = vmin.f32 16.0, %v1974
    %v1976 = vmul.f32 %v1975, 2.1237322e-06
    %v1977 = vadd.f32 %v1976, 0.00028619796
    %v1978 = vmul.f32 %v1975, %v1977
    %v1979 = vadd.f32 %v1978, 0.0036580483
    %v1980 = vmul.f32 %v1975, %v1979
    %v1981 = vadd.f32 %v1980, 0.05243302
    %v1982 = vmul.f32 %v1975, %v1981
    %v1983 = vadd.f32 %v1982, 0.18741608
    %v1984 = vmul.f32 %v1975, %v1983
    %v1985 = vadd.f32 %v1984, 1.1283791
    %v1986 = vmul.f32 %v1971, %v1985
    %v1987 = vmul.f32 %v1975, 3.8918573e-05
    %v1988 = vadd.f32 %v1987, 0.001143296
    %v1989 = vmul.f32 %v1975, %v1988
    %v1990 = vadd.f32 %v1989, 0.014752088
    %v1991 = vmul.f32 %v1975, %v1990
    %v1992 = vadd.f32 %v1991, 0.112945676
    %v1993 = vmul.f32 %v1975, %v1992
    %v1994 = vadd.f32 %v1993, 0.4994258
    %v1995 = vmul.f32 %v1975, %v1994
    %v1996 = vadd.f32 %v1995, 1.0
    %v1997 = vrcp.pop %v1996
    %v1998 = vmul.f32 %v1996, %v1997
    %v1999 = vsub.f32 1.0, %v1998
    %v2000 = vmul.f32 %v1997, %v1999
    %v2001 = vadd.f32 %v1997, %v2000
    %vm2002 = vweird.f32 %v1996
    %vm2003 = vweird.f32 %v1997
    %vm2004 = vmor %vm2002, %vm2003
    %v2005 = vsel %vm2004, %v1997, %v2001
    %v2006 = vand.u32 2147483647, %v1996
    %vm2007 = vcmp.eq.f32.partialorder %v2006, 8.507059e+37
    %v2008 = vand.u32 %v1996, 2147483648
    %v2009 = vor.u32 1.1754944e-38, %v2008
    %v2010 = vsel %vm2007, %v2009, %v2005
    %v2011 = vmul.f32 %v1986, %v2010
    %v2012 = vmin.f32 %v2011, 1.0
    %v2013 = vmax.f32 %v2012, -1.0
    %v2014 = vmul.f32 %v1972, %v1972
    %v2015 = vmin.f32 16.0, %v2014
    %v2016 = vmul.f32 %v2015, 2.1237322e-06
    %v2017 = vadd.f32 %v2016, 0.00028619796
    %v2018 = vmul.f32 %v2015, %v2017
    %v2019 = vadd.f32 %v2018, 0.0036580483
    %v2020 = vmul.f32 %v2015, %v2019
    %v2021 = vadd.f32 %v2020, 0.05243302
    %v2022 = vmul.f32 %v2015, %v2021
    %v2023 = vadd.f32 %v2022, 0.18741608
    %v2024 = vmul.f32 %v2015, %v2023
    %v2025 = vadd.f32 %v2024, 1.1283791
    %v2026 = vmul.f32 %v1972, %v2025
    %v2027 = vmul.f32 %v2015, 3.8918573e-05
    %v2028 = vadd.f32 %v2027, 0.001143296
    %v2029 = vmul.f32 %v2015, %v2028
    %v2030 = vadd.f32 %v2029, 0.014752088
    %v2031 = vmul.f32 %v2015, %v2030
    %v2032 = vadd.f32 %v2031, 0.112945676
    %v2033 = vmul.f32 %v2015, %v2032
    %v2034 = vadd.f32 %v2033, 0.4994258
    %v2035 = vmul.f32 %v2015, %v2034
    %v2036 = vadd.f32 %v2035, 1.0
    %v2037 = vrcp.pop %v2036
    %v2038 = vmul.f32 %v2036, %v2037
    %v2039 = vsub.f32 1.0, %v2038
    %v2040 = vmul.f32 %v2037, %v2039
    %v2041 = vadd.f32 %v2037, %v2040
    %vm2042 = vweird.f32 %v2036
    %vm2043 = vweird.f32 %v2037
    %vm2044 = vmor %vm2042, %vm2043
    %v2045 = vsel %vm2044, %v2037, %v2041
    %v2046 = vand.u32 2147483647, %v2036
    %vm2047 = vcmp.eq.f32.partialorder %v2046, 8.507059e+37
    %v2048 = vand.u32 %v2036, 2147483648
    %v2049 = vor.u32 1.1754944e-38, %v2048
    %v2050 = vsel %vm2047, %v2049, %v2045
    %v2051 = vmul.f32 %v2026, %v2050
    %v2052 = vmin.f32 %v2051, 1.0
    %v2053 = vmax.f32 %v2052, -1.0
    %v2054 = vmul.f32 %v1973, %v1973
    %v2055 = vmin.f32 16.0, %v2054
    %v2056 = vmul.f32 %v2055, 2.1237322e-06
    %v2057 = vadd.f32 %v2056, 0.00028619796
    %v2058 = vmul.f32 %v2055, %v2057
    %v2059 = vadd.f32 %v2058, 0.0036580483
    %v2060 = vmul.f32 %v2055, %v2059
    %v2061 = vadd.f32 %v2060, 0.05243302
    %v2062 = vmul.f32 %v2055, %v2061
    %v2063 = vadd.f32 %v2062, 0.18741608
    %v2064 = vmul.f32 %v2055, %v2063
    %v2065 = vadd.f32 %v2064, 1.1283791
    %v2066 = vmul.f32 %v1973, %v2065
    %v2067 = vmul.f32 %v2055, 3.8918573e-05
    %v2068 = vadd.f32 %v2067, 0.001143296
    %v2069 = vmul.f32 %v2055, %v2068
    %v2070 = vadd.f32 %v2069, 0.014752088
    %v2071 = vmul.f32 %v2055, %v2070
    %v2072 = vadd.f32 %v2071, 0.112945676
    %v2073 = vmul.f32 %v2055, %v2072
    %v2074 = vadd.f32 %v2073, 0.4994258
    %v2075 = vmul.f32 %v2055, %v2074
    %v2076 = vadd.f32 %v2075, 1.0
    %v2077 = vrcp.pop %v2076
    %v2078 = vmul.f32 %v2076, %v2077
    %v2079 = vsub.f32 1.0, %v2078
    %v2080 = vmul.f32 %v2077, %v2079
    %v2081 = vadd.f32 %v2077, %v2080
    %vm2082 = vweird.f32 %v2076
    %vm2083 = vweird.f32 %v2077
    %vm2084 = vmor %vm2082, %vm2083
    %v2085 = vsel %vm2084, %v2077, %v2081
    %v2086 = vand.u32 2147483647, %v2076
    %vm2087 = vcmp.eq.f32.partialorder %v2086, 8.507059e+37
    %v2088 = vand.u32 %v2076, 2147483648
    %v2089 = vor.u32 1.1754944e-38, %v2088
    %v2090 = vsel %vm2087, %v2089, %v2085
    %v2091 = vmul.f32 %v2066, %v2090
    %v2092 = vmin.f32 %v2091, 1.0
    %v2093 = vmax.f32 %v2092, -1.0
    %v2094 = vadd.f32 %v2013, 1.0
    %v2095 = vadd.f32 %v2053, 1.0
    %v2096 = vadd.f32 %v2093, 1.0
    %v2097 = vmul.f32 %v1968, %v2094
    %v2098 = vmul.f32 %v1969, %v2095
    %v2099 = vmul.f32 %v1970, %v2096
    %s2100 = scalar_lea.vmem [#allocation7], 64
    %v2101 = vld [vmem:[%s2100] sm:$0xff]
    %v2102 = vld [vmem:[%s2100 + $0x8] sm:$0xff]
    %v2103 = vld [vmem:[%s2100 + $0x10] sm:$0xff]
    %v2104 = vld [vmem:[%s2100 + $0x18] sm:$0xff]
    %v2105 = vld [vmem:[%s2100 + $0x20] sm:$0xff]
    %v2106 = vld [vmem:[%s2100 + $0x28] sm:$0xff]
    %v2107 = vld [vmem:[%s2100 + $0x30] sm:$0xff]
    %v2108 = vld [vmem:[%s2100 + $0x38] sm:$0xff]
    %v2110 = vsel %vm115, %v2097, 0
    %v2113 = vsel %vm115, %v2098, 0
    %v2116 = vsel %vm115, %v2099, 0
    %2118 = vmatpush.msra.mxu0 0.0
    %2119 = vmatpush.msra.mxu0 0.0
    %2120 = vmatpush.msra.mxu0 0.0
    %2121 = vmatpush.msra.mxu0 0.0
    %2122 = vmatpush.msra.mxu0 0.0
    %2123 = vmatpush.msra.mxu0 0.0
    %2124 = vmatpush.msra.mxu0 0.0
    %2125 = vmatpush.msra.mxu0 0.0
    %2126 = vmatpush.msra.mxu0 %v2108
    %2127 = vmatpush.msra.mxu0 %v2107
    %2128 = vmatpush.msra.mxu0 %v2106
    %2129 = vmatpush.msra.mxu0 %v2105
    %2130 = vmatpush.msra.mxu0 %v2104
    %2131 = vmatpush.msra.mxu0 %v2103
    %2132 = vmatpush.msra.mxu0 %v2102
    %2133 = vmatpush.msra.mxu0 %v2101
    %2134 = vmatmul.f32.gmra.mxu0 %v2110
    %v2135 = vpop.f32.mrf.mxu0
    %v2136 = vadd.f32 0.0, %v2135
    %2137 = vmatmul.f32.gmra.mxu0 %v2113
    %v2138 = vpop.f32.mrf.mxu0
    %v2139 = vadd.f32 0.0, %v2138
    %2140 = vmatmul.f32.gmra.mxu0 %v2116
    %v2141 = vpop.f32.mrf.mxu0
    %v2142 = vadd.f32 0.0, %v2141
    %2143 = vdwg.mxu0
    %v2144 = vadd.f32 %v1834, %v2136
    %v2145 = vadd.f32 %v1835, %v2139
    %v2146 = vadd.f32 %v1836, %v2142
    %s2147 = scalar_lea.vmem %s11, 1
    %v2148 = vld [vmem:[%s2147] sm:$0x1]
    %v2150 = vperm.slane %v2148, 0
    %v2152 = vadd.f32 %v2144, %v2150
    %v2153 = vadd.f32 %v2145, %v2150
    %v2154 = vadd.f32 %v2146, %v2150
    %v2155 = vld [vmem:[%s12] sm:$0x1]
    %v2156 = vld [vmem:[%s13] sm:$0x1]
    %v2157 = vsel %vm115, %v2152, 0.0
    %2158 = vadd.xlane.f32.xlu0 %v2157
    %v2159 = vpop.xlane.xlu0 %2158
    %v2160 = vsel %vm115, %v2153, 0.0
    %2161 = vadd.xlane.f32.xlu0 %v2160
    %v2162 = vpop.xlane.xlu0 %2161
    %v2163 = vsel %vm122, %v2154, 0.0
    %2164 = vadd.xlane.f32.xlu0 %v2163
    %v2165 = vpop.xlane.xlu0 %2164
    %v2166 = vmul.f32 %v2159, %v132
    %v2167 = vmul.f32 %v2162, %v132
    %v2168 = vmul.f32 %v2165, %v132
    %v2169 = vsub.f32 %v2152, %v2166
    %v2170 = vsub.f32 %v2153, %v2167
    %v2171 = vsub.f32 %v2154, %v2168
    %v2172 = vmul.f32 %v2169, %v2169
    %v2173 = vmul.f32 %v2170, %v2170
    %v2174 = vmul.f32 %v2171, %v2171
    %v2175 = vsel %vm115, %v2172, 0.0
    %2176 = vadd.xlane.f32.xlu0 %v2175
    %v2177 = vpop.xlane.xlu0 %2176
    %v2178 = vsel %vm115, %v2173, 0.0
    %2179 = vadd.xlane.f32.xlu0 %v2178
    %v2180 = vpop.xlane.xlu0 %2179
    %v2181 = vsel %vm122, %v2174, 0.0
    %2182 = vadd.xlane.f32.xlu0 %v2181
    %v2183 = vpop.xlane.xlu0 %2182
    %v2184 = vmul.f32 %v2177, %v132
    %v2185 = vmul.f32 %v2180, %v132
    %v2186 = vmul.f32 %v2183, %v132
    %v2187 = vadd.f32 %v2184, 1e-05
    %v2188 = vadd.f32 %v2185, 1e-05
    %v2189 = vadd.f32 %v2186, 1e-05
    %v2190 = vrsqrt.pop %v2187
    %v2191 = vmul.f32 %v2190, %v2187
    %v2192 = vmul.f32 %v2191, %v2190
    %v2193 = vmul.f32 0.5, %v2192
    %v2194 = vsub.f32 1.5, %v2193
    %v2195 = vmul.f32 %v2190, %v2194
    %vm2196 = vweird.f32 %v2187
    %vm2197 = vweird.f32 %v2190
    %vm2198 = vmor %vm2196, %vm2197
    %v2199 = vsel %vm2198, %v2190, %v2195
    %v2200 = vrsqrt.pop %v2188
    %v2201 = vmul.f32 %v2200, %v2188
    %v2202 = vmul.f32 %v2201, %v2200
    %v2203 = vmul.f32 0.5, %v2202
    %v2204 = vsub.f32 1.5, %v2203
    %v2205 = vmul.f32 %v2200, %v2204
    %vm2206 = vweird.f32 %v2188
    %vm2207 = vweird.f32 %v2200
    %vm2208 = vmor %vm2206, %vm2207
    %v2209 = vsel %vm2208, %v2200, %v2205
    %v2210 = vrsqrt.pop %v2189
    %v2211 = vmul.f32 %v2210, %v2189
    %v2212 = vmul.f32 %v2211, %v2210
    %v2213 = vmul.f32 0.5, %v2212
    %v2214 = vsub.f32 1.5, %v2213
    %v2215 = vmul.f32 %v2210, %v2214
    %vm2216 = vweird.f32 %v2189
    %vm2217 = vweird.f32 %v2210
    %vm2218 = vmor %vm2216, %vm2217
    %v2219 = vsel %vm2218, %v2210, %v2215
    %v2220 = vmul.f32 %v2169, %v2199
    %v2221 = vmul.f32 %v2170, %v2209
    %v2222 = vmul.f32 %v2171, %v2219
    %v2224 = vperm.slane %v2155, 0
    %v2226 = vmul.f32 %v2220, %v2224
    %v2227 = vmul.f32 %v2221, %v2224
    %v2228 = vmul.f32 %v2222, %v2224
    %v2230 = vperm.slane %v2156, 0
    %v2232 = vadd.f32 %v2226, %v2230
    %v2233 = vadd.f32 %v2227, %v2230
    %v2234 = vadd.f32 %v2228, %v2230
    %2235 = vst.msk [vmem:[%s14] sm:$0xff] %vm115, %v2232
    %2236 = vst.msk [vmem:[%s14 + $0x8] sm:$0xff] %vm115, %v2233
    %2237 = vst.msk [vmem:[%s14 + $0x10] sm:$0x3] %vm122, %v2234
    // Predicated region
    $region74: #{multiscale_encoder_fwd.4} parent=1 // pred_check
      _
    $region75: #{multiscale_encoder_fwd.4} parent=1 // pred_check_branch
      %2239 = sbr.rel (0) target = $region77
    $region76: #{multiscale_encoder_fwd.4} parent=1 // pred_region
      _
    $region77: #{multiscale_encoder_fwd.4} parent=1 // pred_fallthru
      _
    // Predicated region
    $region78: #{multiscale_encoder_fwd.4} parent=1 // pred_check
      _
    $region79: #{multiscale_encoder_fwd.4} parent=1 // pred_check_branch
      %2241 = sbr.rel (0) target = $region81
    $region80: #{multiscale_encoder_fwd.4} parent=1 // pred_region
      _
    $region81: #{multiscale_encoder_fwd.4} parent=1 // pred_fallthru
      _
    %2242 = vsyncpa [#allocation3], 1
    %2243 = vsyncpa [#allocation5], 1
    %2244 = vsyncpa [#allocation8], 1

// kernel: multiscale_encoder_fwd.5
$region0: #{multiscale_encoder_fwd.5}
  #allocation0 [shape = 'u32[]', space=smem, size = 0x4, offset = 0x4, fixed_abs, tag = 'smem constant byte address 0x4 - core index']
  #allocation1 [shape = 'u32[72,128]{1,0:T(1,128)}', space=vmem, size = 0x9000, scoped, tag = 'internal scratch']
  %s0 = inlined_call_operand.vmem [shape: f32[18,32], index: 0, kind: input, shape index: {}]
  %s1 = inlined_call_operand.vmem [shape: f32[18,64], index: 1, kind: input, shape index: {}]
  %s2 = inlined_call_operand.hbm [shape: f32[2,32,64], index: 2, kind: input, shape index: {}]
  %s3 = inlined_call_operand.vmem [shape: f32[2,1,64], index: 3, kind: input, shape index: {}, may-alias: {3,5,9,21}]
  %s4 = inlined_call_operand.vmem [shape: f32[2,1,64], index: 4, kind: input, shape index: {}]
  %s5 = inlined_call_operand.vmem [shape: f32[2,1,64], index: 5, kind: input, shape index: {}, may-alias: {3,5,9,21}]
  %s6 = inlined_call_operand.hbm [shape: f32[2,64,32], index: 6, kind: input, shape index: {}]
  %s7 = inlined_call_operand.hbm [shape: f32[2,64,64], index: 7, kind: input, shape index: {}]
  %s8 = inlined_call_operand.hbm [shape: f32[2,32,64], index: 8, kind: input, shape index: {}]
  %s9 = inlined_call_operand.vmem [shape: f32[2,1,64], index: 9, kind: input, shape index: {}, may-alias: {3,5,9,21}]
  %s10 = inlined_call_operand.hbm [shape: f32[2,64,32], index: 10, kind: input, shape index: {}]
  %s11 = inlined_call_operand.vmem [shape: f32[2,1,32], index: 11, kind: input, shape index: {}, may-alias: {11,13,15,19}]
  %s12 = inlined_call_operand.vmem [shape: f32[2,64,32], index: 12, kind: input, shape index: {}]
  %s13 = inlined_call_operand.vmem [shape: f32[2,1,32], index: 13, kind: input, shape index: {}, may-alias: {11,13,15,19}]
  %s14 = inlined_call_operand.vmem [shape: f32[2,1,32], index: 14, kind: input, shape index: {}]
  %s15 = inlined_call_operand.vmem [shape: f32[2,1,32], index: 15, kind: input, shape index: {}, may-alias: {11,13,15,19}]
  %s16 = inlined_call_operand.hbm [shape: f32[2,32,32], index: 16, kind: input, shape index: {}]
  %s17 = inlined_call_operand.hbm [shape: f32[2,32,64], index: 17, kind: input, shape index: {}]
  %s18 = inlined_call_operand.hbm [shape: f32[2,32,32], index: 18, kind: input, shape index: {}]
  %s19 = inlined_call_operand.vmem [shape: f32[2,1,32], index: 19, kind: input, shape index: {}, may-alias: {11,13,15,19}]
  %s20 = inlined_call_operand.vmem [shape: f32[2,32,64], index: 20, kind: input, shape index: {}]
  %s21 = inlined_call_operand.vmem [shape: f32[2,1,64], index: 21, kind: input, shape index: {}, may-alias: {3,5,9,21}]
  %s22 = inlined_call_operand.vmem [shape: f32[18,32], index: 22, kind: output, shape index: {0}]
  %s23 = inlined_call_operand.vmem [shape: f32[18,64], index: 23, kind: output, shape index: {1}]
  %24 = xla_tuple %s22, %s23
  %s25 = sld [smem:[#allocation0]]
  $region138: #{multiscale_encoder_fwd.5} parent=0
    _
  %s27 = ssub.s32 1, %s25
  %s28 = scalar_select 0, %s27, %s25
  $region1: #{multiscale_encoder_fwd.5} parent=0
    #allocation2 [shape = 'u8[32768]{0}', space=vmem, size = 0x8000, scoped, tag = 'input window, operand 2, single buffered']
    #allocation3 [shape = 's32[1]{0}', space=sflag, size = 0x4, scoped, tag = 'scoped memory for multiscale_encoder_fwd.5']
    #allocation4 [shape = 'u8[65536]{0}', space=vmem, size = 0x10000, scoped, tag = 'input window, operand 6, single buffered']
    #allocation5 [shape = 's32[1]{0}', space=sflag, size = 0x4, scoped, tag = 'scoped memory for multiscale_encoder_fwd.5']
    #allocation6 [shape = 'u8[65536]{0}', space=vmem, size = 0x10000, scoped, tag = 'input window, operand 7, single buffered']
    #allocation7 [shape = 'u8[32768]{0}', space=vmem, size = 0x8000, scoped, tag = 'input window, operand 8, single buffered']
    #allocation8 [shape = 's32[1]{0}', space=sflag, size = 0x4, scoped, tag = 'scoped memory for multiscale_encoder_fwd.5']
    #allocation9 [shape = 'u8[65536]{0}', space=vmem, size = 0x10000, scoped, tag = 'input window, operand 10, single buffered']
    #allocation10 [shape = 'u8[32768]{0}', space=vmem, size = 0x8000, scoped, tag = 'input window, operand 16, single buffered']
    #allocation11 [shape = 's32[1]{0}', space=sflag, size = 0x4, scoped, tag = 'scoped memory for multiscale_encoder_fwd.5']
    #allocation12 [shape = 'u8[32768]{0}', space=vmem, size = 0x8000, scoped, tag = 'input window, operand 17, single buffered']
    #allocation13 [shape = 'u8[32768]{0}', space=vmem, size = 0x8000, scoped, tag = 'input window, operand 18, single buffered']
    #allocation14 [shape = 's32[1]{0}', space=sflag, size = 0x4, scoped, tag = 'scoped memory for multiscale_encoder_fwd.5']
    %29 = vsyncpa [#allocation3], 0
    %30 = vsyncpa [#allocation5], 0
    %31 = vsyncpa [#allocation8], 0
    %32 = vsyncpa [#allocation11], 0
    %33 = vsyncpa [#allocation14], 0
    // Predicated region
    $region2: #{multiscale_encoder_fwd.5} parent=1 // pred_check
      _
    $region3: #{multiscale_encoder_fwd.5} parent=1 // pred_check_branch
      %35 = sbr.rel (0) target = $region5
    $region4: #{multiscale_encoder_fwd.5} parent=1 // pred_region
      _
    $region5: #{multiscale_encoder_fwd.5} parent=1 // pred_fallthru
      _
    // Predicated region
    $region6: #{multiscale_encoder_fwd.5} parent=1 // pred_check
      _
    $region7: #{multiscale_encoder_fwd.5} parent=1 // pred_check_branch
      %37 = sbr.rel (0) target = $region9
    $region8: #{multiscale_encoder_fwd.5} parent=1 // pred_region
      _
    $region9: #{multiscale_encoder_fwd.5} parent=1 // pred_fallthru
      _
    // Predicated region
    $region10: #{multiscale_encoder_fwd.5} parent=1 // pred_check
      _
    $region11: #{multiscale_encoder_fwd.5} parent=1 // pred_check_branch
      %39 = sbr.rel (0) target = $region13
    $region12: #{multiscale_encoder_fwd.5} parent=1 // pred_region
      %41 = vsyncadd [#allocation3], 0
      %s42 = sshll.u32 %s2, 4
      %s43 = int_to_ptr.hbm [resolvable:$true] %s42
      %s44 = sshll.u32 [#allocation2], 4
      %s45 = int_to_ptr.vmem [resolvable:$true] %s44
      %50 = dma.hbm_to_vmem [thread:$0]  %s43, 1024, %s45, [#allocation3], 128, 128, 8
    $region13: #{multiscale_encoder_fwd.5} parent=1 // pred_fallthru
      _
    // Predicated region
    $region14: #{multiscale_encoder_fwd.5} parent=1 // pred_check
      _
    $region15: #{multiscale_encoder_fwd.5} parent=1 // pred_check_branch
      %52 = sbr.rel (0) target = $region17
    $region16: #{multiscale_encoder_fwd.5} parent=1 // pred_region
      _
    $region17: #{multiscale_encoder_fwd.5} parent=1 // pred_fallthru
      _
    // Predicated region
    $region18: #{multiscale_encoder_fwd.5} parent=1 // pred_check
      _
    $region19: #{multiscale_encoder_fwd.5} parent=1 // pred_check_branch
      %54 = sbr.rel (0) target = $region21
    $region20: #{multiscale_encoder_fwd.5} parent=1 // pred_region
      _
    $region21: #{multiscale_encoder_fwd.5} parent=1 // pred_fallthru
      _
    // Predicated region
    $region22: #{multiscale_encoder_fwd.5} parent=1 // pred_check
      _
    $region23: #{multiscale_encoder_fwd.5} parent=1 // pred_check_branch
      %56 = sbr.rel (0) target = $region25
    $region24: #{multiscale_encoder_fwd.5} parent=1 // pred_region
      _
    $region25: #{multiscale_encoder_fwd.5} parent=1 // pred_fallthru
      _
    // Predicated region
    $region26: #{multiscale_encoder_fwd.5} parent=1 // pred_check
      _
    $region27: #{multiscale_encoder_fwd.5} parent=1 // pred_check_branch
      %58 = sbr.rel (0) target = $region29
    $region28: #{multiscale_encoder_fwd.5} parent=1 // pred_region
      %60 = vsyncadd [#allocation5], 0
      %s61 = sshll.u32 %s6, 4
      %s62 = int_to_ptr.hbm [resolvable:$true] %s61
      %s63 = sshll.u32 [#allocation4], 4
      %s64 = int_to_ptr.vmem [resolvable:$true] %s63
      %69 = dma.hbm_to_vmem [thread:$0]  %s62, 2048, %s64, [#allocation5], 128, 128, 8
    $region29: #{multiscale_encoder_fwd.5} parent=1 // pred_fallthru
      _
    // Predicated region
    $region30: #{multiscale_encoder_fwd.5} parent=1 // pred_check
      _
    $region31: #{multiscale_encoder_fwd.5} parent=1 // pred_check_branch
      %71 = sbr.rel (0) target = $region33
    $region32: #{multiscale_encoder_fwd.5} parent=1 // pred_region
      %73 = vsyncadd [#allocation5], 0
      %s74 = sshll.u32 %s7, 4
      %s75 = int_to_ptr.hbm [resolvable:$true] %s74
      %s76 = sshll.u32 [#allocation6], 4
      %s77 = int_to_ptr.vmem [resolvable:$true] %s76
      %82 = dma.hbm_to_vmem [thread:$0]  %s75, 2048, %s77, [#allocation5], 128, 128, 8
    $region33: #{multiscale_encoder_fwd.5} parent=1 // pred_fallthru
      _
    // Predicated region
    $region34: #{multiscale_encoder_fwd.5} parent=1 // pred_check
      _
    $region35: #{multiscale_encoder_fwd.5} parent=1 // pred_check_branch
      %84 = sbr.rel (0) target = $region37
    $region36: #{multiscale_encoder_fwd.5} parent=1 // pred_region
      %86 = vsyncadd [#allocation8], 0
      %s87 = sshll.u32 %s8, 4
      %s88 = int_to_ptr.hbm [resolvable:$true] %s87
      %s89 = sshll.u32 [#allocation7], 4
      %s90 = int_to_ptr.vmem [resolvable:$true] %s89
      %95 = dma.hbm_to_vmem [thread:$0]  %s88, 1024, %s90, [#allocation8], 128, 128, 8
    $region37: #{multiscale_encoder_fwd.5} parent=1 // pred_fallthru
      _
    // Predicated region
    $region38: #{multiscale_encoder_fwd.5} parent=1 // pred_check
      _
    $region39: #{multiscale_encoder_fwd.5} parent=1 // pred_check_branch
      %97 = sbr.rel (0) target = $region41
    $region40: #{multiscale_encoder_fwd.5} parent=1 // pred_region
      _
    $region41: #{multiscale_encoder_fwd.5} parent=1 // pred_fallthru
      _
    // Predicated region
    $region42: #{multiscale_encoder_fwd.5} parent=1 // pred_check
      _
    $region43: #{multiscale_encoder_fwd.5} parent=1 // pred_check_branch
      %99 = sbr.rel (0) target = $region45
    $region44: #{multiscale_encoder_fwd.5} parent=1 // pred_region
      %101 = vsyncadd [#allocation8], 0
      %s102 = sshll.u32 %s10, 4
      %s103 = int_to_ptr.hbm [resolvable:$true] %s102
      %s104 = sshll.u32 [#allocation9], 4
      %s105 = int_to_ptr.vmem [resolvable:$true] %s104
      %110 = dma.hbm_to_vmem [thread:$0]  %s103, 2048, %s105, [#allocation8], 128, 128, 8
    $region45: #{multiscale_encoder_fwd.5} parent=1 // pred_fallthru
      _
    // Predicated region
    $region46: #{multiscale_encoder_fwd.5} parent=1 // pred_check
      _
    $region47: #{multiscale_encoder_fwd.5} parent=1 // pred_check_branch
      %112 = sbr.rel (0) target = $region49
    $region48: #{multiscale_encoder_fwd.5} parent=1 // pred_region
      _
    $region49: #{multiscale_encoder_fwd.5} parent=1 // pred_fallthru
      _
    // Predicated region
    $region50: #{multiscale_encoder_fwd.5} parent=1 // pred_check
      _
    $region51: #{multiscale_encoder_fwd.5} parent=1 // pred_check_branch
      %114 = sbr.rel (0) target = $region53
    $region52: #{multiscale_encoder_fwd.5} parent=1 // pred_region
      _
    $region53: #{multiscale_encoder_fwd.5} parent=1 // pred_fallthru
      _
    // Predicated region
    $region54: #{multiscale_encoder_fwd.5} parent=1 // pred_check
      _
    $region55: #{multiscale_encoder_fwd.5} parent=1 // pred_check_branch
      %116 = sbr.rel (0) target = $region57
    $region56: #{multiscale_encoder_fwd.5} parent=1 // pred_region
      _
    $region57: #{multiscale_encoder_fwd.5} parent=1 // pred_fallthru
      _
    // Predicated region
    $region58: #{multiscale_encoder_fwd.5} parent=1 // pred_check
      _
    $region59: #{multiscale_encoder_fwd.5} parent=1 // pred_check_branch
      %118 = sbr.rel (0) target = $region61
    $region60: #{multiscale_encoder_fwd.5} parent=1 // pred_region
      _
    $region61: #{multiscale_encoder_fwd.5} parent=1 // pred_fallthru
      _
    // Predicated region
    $region62: #{multiscale_encoder_fwd.5} parent=1 // pred_check
      _
    $region63: #{multiscale_encoder_fwd.5} parent=1 // pred_check_branch
      %120 = sbr.rel (0) target = $region65
    $region64: #{multiscale_encoder_fwd.5} parent=1 // pred_region
      _
    $region65: #{multiscale_encoder_fwd.5} parent=1 // pred_fallthru
      _
    // Predicated region
    $region66: #{multiscale_encoder_fwd.5} parent=1 // pred_check
      _
    $region67: #{multiscale_encoder_fwd.5} parent=1 // pred_check_branch
      %122 = sbr.rel (0) target = $region69
    $region68: #{multiscale_encoder_fwd.5} parent=1 // pred_region
      %124 = vsyncadd [#allocation11], 0
      %s125 = sshll.u32 %s16, 4
      %s126 = int_to_ptr.hbm [resolvable:$true] %s125
      %s127 = sshll.u32 [#allocation10], 4
      %s128 = int_to_ptr.vmem [resolvable:$true] %s127
      %133 = dma.hbm_to_vmem [thread:$0]  %s126, 1024, %s128, [#allocation11], 128, 128, 8
    $region69: #{multiscale_encoder_fwd.5} parent=1 // pred_fallthru
      _
    // Predicated region
    $region70: #{multiscale_encoder_fwd.5} parent=1 // pred_check
      _
    $region71: #{multiscale_encoder_fwd.5} parent=1 // pred_check_branch
      %135 = sbr.rel (0) target = $region73
    $region72: #{multiscale_encoder_fwd.5} parent=1 // pred_region
      %137 = vsyncadd [#allocation11], 0
      %s138 = sshll.u32 %s17, 4
      %s139 = int_to_ptr.hbm [resolvable:$true] %s138
      %s140 = sshll.u32 [#allocation12], 4
      %s141 = int_to_ptr.vmem [resolvable:$true] %s140
      %146 = dma.hbm_to_vmem [thread:$0]  %s139, 1024, %s141, [#allocation11], 128, 128, 8
    $region73: #{multiscale_encoder_fwd.5} parent=1 // pred_fallthru
      _
    // Predicated region
    $region74: #{multiscale_encoder_fwd.5} parent=1 // pred_check
      _
    $region75: #{multiscale_encoder_fwd.5} parent=1 // pred_check_branch
      %148 = sbr.rel (0) target = $region77
    $region76: #{multiscale_encoder_fwd.5} parent=1 // pred_region
      %150 = vsyncadd [#allocation14], 0
      %s151 = sshll.u32 %s18, 4
      %s152 = int_to_ptr.hbm [resolvable:$true] %s151
      %s153 = sshll.u32 [#allocation13], 4
      %s154 = int_to_ptr.vmem [resolvable:$true] %s153
      %159 = dma.hbm_to_vmem [thread:$0]  %s152, 1024, %s154, [#allocation14], 128, 128, 8
    $region77: #{multiscale_encoder_fwd.5} parent=1 // pred_fallthru
      _
    // Predicated region
    $region78: #{multiscale_encoder_fwd.5} parent=1 // pred_check
      _
    $region79: #{multiscale_encoder_fwd.5} parent=1 // pred_check_branch
      %161 = sbr.rel (0) target = $region81
    $region80: #{multiscale_encoder_fwd.5} parent=1 // pred_region
      _
    $region81: #{multiscale_encoder_fwd.5} parent=1 // pred_fallthru
      _
    // Predicated region
    $region82: #{multiscale_encoder_fwd.5} parent=1 // pred_check
      _
    $region83: #{multiscale_encoder_fwd.5} parent=1 // pred_check_branch
      %163 = sbr.rel (0) target = $region85
    $region84: #{multiscale_encoder_fwd.5} parent=1 // pred_region
      _
    $region85: #{multiscale_encoder_fwd.5} parent=1 // pred_fallthru
      _
    // Predicated region
    $region86: #{multiscale_encoder_fwd.5} parent=1 // pred_check
      _
    $region87: #{multiscale_encoder_fwd.5} parent=1 // pred_check_branch
      %165 = sbr.rel (0) target = $region89
    $region88: #{multiscale_encoder_fwd.5} parent=1 // pred_region
      _
    $region89: #{multiscale_encoder_fwd.5} parent=1 // pred_fallthru
      _
    // Predicated region
    $region90: #{multiscale_encoder_fwd.5} parent=1 // pred_check
      _
    $region91: #{multiscale_encoder_fwd.5} parent=1 // pred_check_branch
      %167 = sbr.rel (0) target = $region93
    $region92: #{multiscale_encoder_fwd.5} parent=1 // pred_region
      %169 = dma.done [#allocation3], 1024
    $region93: #{multiscale_encoder_fwd.5} parent=1 // pred_fallthru
      _
    // Predicated region
    $region94: #{multiscale_encoder_fwd.5} parent=1 // pred_check
      _
    $region95: #{multiscale_encoder_fwd.5} parent=1 // pred_check_branch
      %171 = sbr.rel (0) target = $region97
    $region96: #{multiscale_encoder_fwd.5} parent=1 // pred_region
      %173 = dma.done [#allocation5], 2048
    $region97: #{multiscale_encoder_fwd.5} parent=1 // pred_fallthru
      _
    // Predicated region
    $region98: #{multiscale_encoder_fwd.5} parent=1 // pred_check
      _
    $region99: #{multiscale_encoder_fwd.5} parent=1 // pred_check_branch
      %175 = sbr.rel (0) target = $region101
    $region100: #{multiscale_encoder_fwd.5} parent=1 // pred_region
      %177 = dma.done [#allocation5], 2048
    $region101: #{multiscale_encoder_fwd.5} parent=1 // pred_fallthru
      _
    // Predicated region
    $region102: #{multiscale_encoder_fwd.5} parent=1 // pred_check
      _
    $region103: #{multiscale_encoder_fwd.5} parent=1 // pred_check_branch
      %179 = sbr.rel (0) target = $region105
    $region104: #{multiscale_encoder_fwd.5} parent=1 // pred_region
      %181 = dma.done [#allocation8], 1024
    $region105: #{multiscale_encoder_fwd.5} parent=1 // pred_fallthru
      _
    // Predicated region
    $region106: #{multiscale_encoder_fwd.5} parent=1 // pred_check
      _
    $region107: #{multiscale_encoder_fwd.5} parent=1 // pred_check_branch
      %183 = sbr.rel (0) target = $region109
    $region108: #{multiscale_encoder_fwd.5} parent=1 // pred_region
      %185 = dma.done [#allocation8], 2048
    $region109: #{multiscale_encoder_fwd.5} parent=1 // pred_fallthru
      _
    // Predicated region
    $region110: #{multiscale_encoder_fwd.5} parent=1 // pred_check
      _
    $region111: #{multiscale_encoder_fwd.5} parent=1 // pred_check_branch
      %187 = sbr.rel (0) target = $region113
    $region112: #{multiscale_encoder_fwd.5} parent=1 // pred_region
      %189 = dma.done [#allocation11], 1024
    $region113: #{multiscale_encoder_fwd.5} parent=1 // pred_fallthru
      _
    // Predicated region
    $region114: #{multiscale_encoder_fwd.5} parent=1 // pred_check
      _
    $region115: #{multiscale_encoder_fwd.5} parent=1 // pred_check_branch
      %191 = sbr.rel (0) target = $region117
    $region116: #{multiscale_encoder_fwd.5} parent=1 // pred_region
      %193 = dma.done [#allocation11], 1024
    $region117: #{multiscale_encoder_fwd.5} parent=1 // pred_fallthru
      _
    // Predicated region
    $region118: #{multiscale_encoder_fwd.5} parent=1 // pred_check
      _
    $region119: #{multiscale_encoder_fwd.5} parent=1 // pred_check_branch
      %195 = sbr.rel (0) target = $region121
    $region120: #{multiscale_encoder_fwd.5} parent=1 // pred_region
      %197 = dma.done [#allocation14], 1024
    $region121: #{multiscale_encoder_fwd.5} parent=1 // pred_fallthru
      _
    %v198 = vld [vmem:[%s0] sm:$0xff]
    %v199 = vld [vmem:[%s0 + $0x8] sm:$0xff]
    %v200 = vld [vmem:[%s0 + $0x10] sm:$0x3]
    %v201 = vld [vmem:[%s1] sm:$0xff]
    %v202 = vld [vmem:[%s1 + $0x8] sm:$0xff]
    %v203 = vld [vmem:[%s1 + $0x10] sm:$0x3]
    %vm204 = vcmask 1040384
    %v205 = vsel %vm204, %v198, %v199
    %v206 = vsel %vm204, %v201, %v202
    %vm209 = vcmask 1046528
    %v210 = vrot.slane %v198, 1
    %v211 = vrot.slane %v199, 1
    %v212 = vsel %vm209, %v210, %v211
    %vm214 = vcmask 1045504
    %v215 = vrot.slane %v199, 2
    %v216 = vrot.slane %v200, 2
    %v217 = vsel %vm214, %v215, %v216
    %v220 = vrot.slane %v201, 1
    %v221 = vrot.slane %v202, 1
    %v222 = vsel %vm209, %v220, %v221
    %v224 = vrot.slane %v202, 2
    %v225 = vrot.slane %v203, 2
    %v226 = vsel %vm214, %v224, %v225
    %v227 = vld [vmem:[#allocation2] sm:$0xff]
    %v228 = vld [vmem:[#allocation2 + $0x8] sm:$0xff]
    %v229 = vld [vmem:[#allocation2 + $0x10] sm:$0xff]
    %v230 = vld [vmem:[#allocation2 + $0x18] sm:$0xff]
    %v231 = vld [vmem:[%s3] sm:$0x1]
    %v233 = vperm.slane %v231, 0
    %vm235 = vcmask 261120
    %v237 = vsel %vm235, %v205, 0
    %239 = vmatpush.msra.mxu0 0.0
    %240 = vmatpush.msra.mxu0 0.0
    %241 = vmatpush.msra.mxu0 0.0
    %242 = vmatpush.msra.mxu0 0.0
    %243 = vmatpush.msra.mxu0 0.0
    %244 = vmatpush.msra.mxu0 0.0
    %245 = vmatpush.msra.mxu0 0.0
    %246 = vmatpush.msra.mxu0 0.0
    %247 = vmatpush.msra.mxu0 0.0
    %248 = vmatpush.msra.mxu0 0.0
    %249 = vmatpush.msra.mxu0 0.0
    %250 = vmatpush.msra.mxu0 0.0
    %251 = vmatpush.msra.mxu0 %v230
    %252 = vmatpush.msra.mxu0 %v229
    %253 = vmatpush.msra.mxu0 %v228
    %254 = vmatpush.msra.mxu0 %v227
    %255 = vmatmul.f32.gmra.mxu0 %v237
    %v256 = vpop.f32.mrf.mxu0
    %v257 = vadd.f32 %v233, %v256
    %258 = vdwg.mxu0
    %v259 = vld [vmem:[%s4] sm:$0x1]
    %v260 = vld [vmem:[%s5] sm:$0x1]
    %vm261 = vcmask 517120
    %v262 = vsel %vm261, %v257, 0.0
    %263 = vadd.xlane.f32.xlu0 %v262
    %v264 = vpop.xlane.xlu0 %263
    %v265 = vrcp.pop 64.0
    %v266 = vmul.f32 64.0, %v265
    %v267 = vsub.f32 1.0, %v266
    %v268 = vmul.f32 %v265, %v267
    %v269 = vadd.f32 %v265, %v268
    %vm270 = vweird.f32 %v265
    %v271 = vsel %vm270, %v265, %v269
    %v272 = vmul.f32 %v264, %v271
    %v273 = vsub.f32 %v257, %v272
    %v274 = vmul.f32 %v273, %v273
    %v275 = vsel %vm261, %v274, 0.0
    %276 = vadd.xlane.f32.xlu0 %v275
    %v277 = vpop.xlane.xlu0 %276
    %v278 = vmul.f32 %v277, %v271
    %v279 = vadd.f32 %v278, 1e-05
    %v280 = vrsqrt.pop %v279
    %v281 = vmul.f32 %v280, %v279
    %v282 = vmul.f32 %v281, %v280
    %v283 = vmul.f32 0.5, %v282
    %v284 = vsub.f32 1.5, %v283
    %v285 = vmul.f32 %v280, %v284
    %vm286 = vweird.f32 %v279
    %vm287 = vweird.f32 %v280
    %vm288 = vmor %vm286, %vm287
    %v289 = vsel %vm288, %v280, %v285
    %v290 = vmul.f32 %v273, %v289
    %v292 = vperm.slane %v259, 0
    %v294 = vmul.f32 %v290, %v292
    %v296 = vperm.slane %v260, 0
    %v298 = vadd.f32 %v294, %v296
    %v299 = vld [vmem:[#allocation4] sm:$0xff]
    %v300 = vld [vmem:[#allocation4 + $0x8] sm:$0xff]
    %v301 = vld [vmem:[#allocation4 + $0x10] sm:$0xff]
    %v302 = vld [vmem:[#allocation4 + $0x18] sm:$0xff]
    %v303 = vld [vmem:[#allocation4 + $0x20] sm:$0xff]
    %v304 = vld [vmem:[#allocation4 + $0x28] sm:$0xff]
    %v305 = vld [vmem:[#allocation4 + $0x30] sm:$0xff]
    %v306 = vld [vmem:[#allocation4 + $0x38] sm:$0xff]
    %vm307 = vcmask 523264
    %v309 = vsel %vm307, %v298, 0
    %311 = vmatpush.msra.mxu0 0.0
    %312 = vmatpush.msra.mxu0 0.0
    %313 = vmatpush.msra.mxu0 0.0
    %314 = vmatpush.msra.mxu0 0.0
    %315 = vmatpush.msra.mxu0 0.0
    %316 = vmatpush.msra.mxu0 0.0
    %317 = vmatpush.msra.mxu0 0.0
    %318 = vmatpush.msra.mxu0 0.0
    %319 = vmatpush.msra.mxu0 %v306
    %320 = vmatpush.msra.mxu0 %v305
    %321 = vmatpush.msra.mxu0 %v304
    %322 = vmatpush.msra.mxu0 %v303
    %323 = vmatpush.msra.mxu0 %v302
    %324 = vmatpush.msra.mxu0 %v301
    %325 = vmatpush.msra.mxu0 %v300
    %326 = vmatpush.msra.mxu0 %v299
    %327 = vmatmul.f32.gmra.mxu0 %v309
    %v328 = vpop.f32.mrf.mxu0
    %v329 = vadd.f32 0.0, %v328
    %330 = vdwg.mxu0
    %v331 = vld [vmem:[#allocation6] sm:$0xff]
    %v332 = vld [vmem:[#allocation6 + $0x8] sm:$0xff]
    %v333 = vld [vmem:[#allocation6 + $0x10] sm:$0xff]
    %v334 = vld [vmem:[#allocation6 + $0x18] sm:$0xff]
    %v335 = vld [vmem:[#allocation6 + $0x20] sm:$0xff]
    %v336 = vld [vmem:[#allocation6 + $0x28] sm:$0xff]
    %v337 = vld [vmem:[#allocation6 + $0x30] sm:$0xff]
    %v338 = vld [vmem:[#allocation6 + $0x38] sm:$0xff]
    %339 = vmatpush.msra.mxu0 0.0
    %340 = vmatpush.msra.mxu0 0.0
    %341 = vmatpush.msra.mxu0 0.0
    %342 = vmatpush.msra.mxu0 0.0
    %343 = vmatpush.msra.mxu0 0.0
    %344 = vmatpush.msra.mxu0 0.0
    %345 = vmatpush.msra.mxu0 0.0
    %346 = vmatpush.msra.mxu0 0.0
    %347 = vmatpush.msra.mxu0 %v338
    %348 = vmatpush.msra.mxu0 %v337
    %349 = vmatpush.msra.mxu0 %v336
    %350 = vmatpush.msra.mxu0 %v335
    %351 = vmatpush.msra.mxu0 %v334
    %352 = vmatpush.msra.mxu0 %v333
    %353 = vmatpush.msra.mxu0 %v332
    %354 = vmatpush.msra.mxu0 %v331
    %355 = vmatmul.f32.gmra.mxu0 %v309
    %v356 = vpop.f32.mrf.mxu0
    %v357 = vadd.f32 0.0, %v356
    %358 = vdwg.mxu0
    %v359 = vsel %vm307, %v222, 0
    %v361 = vsel %vm307, %v226, 0
    %363 = vmatpush.msra.mxu0 0.0
    %364 = vmatpush.msra.mxu0 0.0
    %365 = vmatpush.msra.mxu0 0.0
    %366 = vmatpush.msra.mxu0 0.0
    %367 = vmatpush.msra.mxu0 0.0
    %368 = vmatpush.msra.mxu0 0.0
    %369 = vmatpush.msra.mxu0 0.0
    %370 = vmatpush.msra.mxu0 0.0
    %371 = vmatpush.msra.mxu0 %v338
    %372 = vmatpush.msra.mxu0 %v337
    %373 = vmatpush.msra.mxu0 %v336
    %374 = vmatpush.msra.mxu0 %v335
    %375 = vmatpush.msra.mxu0 %v334
    %376 = vmatpush.msra.mxu0 %v333
    %377 = vmatpush.msra.mxu0 %v332
    %378 = vmatpush.msra.mxu0 %v331
    %379 = vmatmul.f32.gmra.mxu0 %v359
    %v380 = vpop.f32.mrf.mxu0
    %v381 = vadd.f32 0.0, %v380
    %382 = vmatmul.f32.gmra.mxu0 %v361
    %v383 = vpop.f32.mrf.mxu0
    %v384 = vadd.f32 0.0, %v383
    %385 = vdwg.mxu0
    %v387 = vrot.slane %v381, 7
    %v389 = vsel %vm204, %v357, %v387
    %vm390 = vcmask 130048
    %v392 = vsel %vm390, %v329, 0
    %v395 = vsel %vm390, %v389, 0
    %v397 = vsel %vm390, %v387, 0
    %399 = vmatpush.xpose.msra.mxu0 0.0
    %400 = vmatpush.xpose.msra.mxu0 0.0
    %401 = vmatpush.xpose.msra.mxu0 0.0
    %402 = vmatpush.xpose.msra.mxu0 0.0
    %403 = vmatpush.xpose.msra.mxu0 0.0
    %404 = vmatpush.xpose.msra.mxu0 0.0
    %405 = vmatpush.xpose.msra.mxu0 0.0
    %406 = vmatpush.xpose.msra.mxu0 0.0
    %407 = vmatpush.xpose.msra.mxu0 0.0
    %408 = vmatpush.xpose.msra.mxu0 0.0
    %409 = vmatpush.xpose.msra.mxu0 0.0
    %410 = vmatpush.xpose.msra.mxu0 0.0
    %411 = vmatpush.xpose.msra.mxu0 0.0
    %412 = vmatpush.xpose.msra.mxu0 0.0
    %413 = vmatpush.xpose.msra.mxu0 %v397
    %414 = vmatpush.xpose.msra.mxu0 %v395
    %415 = vmatmul.f32.gmra.mxu0 %v392
    %v416 = vpop.f32.mrf.mxu0
    %v417 = vadd.f32 0.0, %v416
    %418 = vdwg.mxu0
    %v419 = vmul.f32 %v417, 0.25
    %vm420 = vcmask 65536
    %v421 = vsel %vm420, %v419, -inf
    %422 = vmax.xlane.f32.xlu0 %v421
    %v423 = vpop.xlane.xlu0 %422
    %v424 = vsub.f32 %v419, %v423
    %v425 = vmul.f32 %v424, 1.442695
    %v426 = vpow.pop %v425
    %v427 = vsel %vm420, %v426, 0.0
    %428 = vadd.xlane.f32.xlu0 %v427
    %v429 = vpop.xlane.xlu0 %428
    %v430 = vrcp.pop %v429
    %v431 = vmul.f32 %v429, %v430
    %v432 = vsub.f32 1.0, %v431
    %v433 = vmul.f32 %v430, %v432
    %v434 = vadd.f32 %v430, %v433
    %vm435 = vweird.f32 %v429
    %vm436 = vweird.f32 %v430
    %vm437 = vmor %vm435, %vm436
    %v438 = vsel %vm437, %v430, %v434
    %v439 = vand.u32 2147483647, %v429
    %vm440 = vcmp.eq.f32.partialorder %v439, 8.507059e+37
    %v441 = vand.u32 %v429, 2147483648
    %v442 = vor.u32 1.1754944e-38, %v441
    %v443 = vsel %vm440, %v442, %v438
    %v444 = vmul.f32 %v426, %v443
    %445 = vrot.lane.b32.xlu0 %v389, 96
    %v446 = vpop.permute.xlu0 %445
    %447 = vrot.lane.b32.xlu0 %v387, 96
    %v448 = vpop.permute.xlu0 %447
    %vm450 = vcmask 72704
    %v452 = vsel %vm450, %v444, 0
    %v454 = vsel %vm204, %v448, 0
    %456 = vmatpush.msra.mxu0 0.0
    %457 = vmatpush.msra.mxu0 0.0
    %458 = vmatpush.msra.mxu0 0.0
    %459 = vmatpush.msra.mxu0 0.0
    %460 = vmatpush.msra.mxu0 0.0
    %461 = vmatpush.msra.mxu0 0.0
    %462 = vmatpush.msra.mxu0 0.0
    %463 = vmatpush.msra.mxu0 0.0
    %464 = vmatpush.msra.mxu0 0.0
    %465 = vmatpush.msra.mxu0 0.0
    %466 = vmatpush.msra.mxu0 0.0
    %467 = vmatpush.msra.mxu0 0.0
    %468 = vmatpush.msra.mxu0 0.0
    %469 = vmatpush.msra.mxu0 0.0
    %470 = vmatpush.msra.mxu0 %v454
    %471 = vmatpush.msra.mxu0 %v446
    %472 = vmatmul.f32.gmra.mxu0 %v452
    %v473 = vpop.f32.mrf.mxu0
    %v474 = vadd.f32 0.0, %v473
    %475 = vdwg.mxu0
    %476 = vrot.lane.b32.xlu0 %v329, 112
    %v477 = vpop.permute.xlu0 %476
    %478 = vrot.lane.b32.xlu0 %v389, 112
    %v479 = vpop.permute.xlu0 %478
    %480 = vrot.lane.b32.xlu0 %v387, 112
    %v481 = vpop.permute.xlu0 %480
    %v482 = vsel %vm390, %v477, 0
    %v484 = vsel %vm390, %v479, 0
    %v486 = vsel %vm390, %v481, 0
    %488 = vmatpush.xpose.msra.mxu0 0.0
    %489 = vmatpush.xpose.msra.mxu0 0.0
    %490 = vmatpush.xpose.msra.mxu0 0.0
    %491 = vmatpush.xpose.msra.mxu0 0.0
    %492 = vmatpush.xpose.msra.mxu0 0.0
    %493 = vmatpush.xpose.msra.mxu0 0.0
    %494 = vmatpush.xpose.msra.mxu0 0.0
    %495 = vmatpush.xpose.msra.mxu0 0.0
    %496 = vmatpush.xpose.msra.mxu0 0.0
    %497 = vmatpush.xpose.msra.mxu0 0.0
    %498 = vmatpush.xpose.msra.mxu0 0.0
    %499 = vmatpush.xpose.msra.mxu0 0.0
    %500 = vmatpush.xpose.msra.mxu0 0.0
    %501 = vmatpush.xpose.msra.mxu0 0.0
    %502 = vmatpush.xpose.msra.mxu0 %v486
    %503 = vmatpush.xpose.msra.mxu0 %v484
    %504 = vmatmul.f32.gmra.mxu0 %v482
    %v505 = vpop.f32.mrf.mxu0
    %v506 = vadd.f32 0.0, %v505
    %507 = vdwg.mxu0
    %v508 = vmul.f32 %v506, 0.25
    %v509 = vsel %vm420, %v508, -inf
    %510 = vmax.xlane.f32.xlu0 %v509
    %v511 = vpop.xlane.xlu0 %510
    %v512 = vsub.f32 %v508, %v511
    %v513 = vmul.f32 %v512, 1.442695
    %v514 = vpow.pop %v513
    %v515 = vsel %vm420, %v514, 0.0
    %516 = vadd.xlane.f32.xlu0 %v515
    %v517 = vpop.xlane.xlu0 %516
    %v518 = vrcp.pop %v517
    %v519 = vmul.f32 %v517, %v518
    %v520 = vsub.f32 1.0, %v519
    %v521 = vmul.f32 %v518, %v520
    %v522 = vadd.f32 %v518, %v521
    %vm523 = vweird.f32 %v517
    %vm524 = vweird.f32 %v518
    %vm525 = vmor %vm523, %vm524
    %v526 = vsel %vm525, %v518, %v522
    %v527 = vand.u32 2147483647, %v517
    %vm528 = vcmp.eq.f32.partialorder %v527, 8.507059e+37
    %v529 = vand.u32 %v517, 2147483648
    %v530 = vor.u32 1.1754944e-38, %v529
    %v531 = vsel %vm528, %v530, %v526
    %v532 = vmul.f32 %v514, %v531
    %533 = vrot.lane.b32.xlu0 %v389, 80
    %v534 = vpop.permute.xlu0 %533
    %535 = vrot.lane.b32.xlu0 %v387, 80
    %v536 = vpop.permute.xlu0 %535
    %v539 = vsel %vm450, %v532, 0
    %v541 = vsel %vm204, %v536, 0
    %543 = vmatpush.msra.mxu0 0.0
    %544 = vmatpush.msra.mxu0 0.0
    %545 = vmatpush.msra.mxu0 0.0
    %546 = vmatpush.msra.mxu0 0.0
    %547 = vmatpush.msra.mxu0 0.0
    %548 = vmatpush.msra.mxu0 0.0
    %549 = vmatpush.msra.mxu0 0.0
    %550 = vmatpush.msra.mxu0 0.0
    %551 = vmatpush.msra.mxu0 0.0
    %552 = vmatpush.msra.mxu0 0.0
    %553 = vmatpush.msra.mxu0 0.0
    %554 = vmatpush.msra.mxu0 0.0
    %555 = vmatpush.msra.mxu0 0.0
    %556 = vmatpush.msra.mxu0 0.0
    %557 = vmatpush.msra.mxu0 %v541
    %558 = vmatpush.msra.mxu0 %v534
    %559 = vmatmul.f32.gmra.mxu0 %v539
    %v560 = vpop.f32.mrf.mxu0
    %v561 = vadd.f32 0.0, %v560
    %562 = vdwg.mxu0
    %564 = vrot.lane.b32.xlu0 %v561, 16
    %v565 = vpop.permute.xlu0 %564
    %v567 = vsel %vm390, %v474, %v565
    %v569 = vrot.slane %v357, 1
    %v572 = vrot.slane %v384, 7
    %v574 = vsel %vm204, %v569, %v572
    %v575 = vrot.slane %v329, 1
    %v576 = vsel %vm390, %v575, 0
    %v579 = vsel %vm390, %v574, 0
    %v581 = vsel %vm390, %v572, 0
    %583 = vmatpush.xpose.msra.mxu0 0.0
    %584 = vmatpush.xpose.msra.mxu0 0.0
    %585 = vmatpush.xpose.msra.mxu0 0.0
    %586 = vmatpush.xpose.msra.mxu0 0.0
    %587 = vmatpush.xpose.msra.mxu0 0.0
    %588 = vmatpush.xpose.msra.mxu0 0.0
    %589 = vmatpush.xpose.msra.mxu0 0.0
    %590 = vmatpush.xpose.msra.mxu0 0.0
    %591 = vmatpush.xpose.msra.mxu0 0.0
    %592 = vmatpush.xpose.msra.mxu0 0.0
    %593 = vmatpush.xpose.msra.mxu0 0.0
    %594 = vmatpush.xpose.msra.mxu0 0.0
    %595 = vmatpush.xpose.msra.mxu0 0.0
    %596 = vmatpush.xpose.msra.mxu0 0.0
    %597 = vmatpush.xpose.msra.mxu0 %v581
    %598 = vmatpush.xpose.msra.mxu0 %v579
    %599 = vmatmul.f32.gmra.mxu0 %v576
    %v600 = vpop.f32.mrf.mxu0
    %v601 = vadd.f32 0.0, %v600
    %602 = vdwg.mxu0
    %v603 = vmul.f32 %v601, 0.25
    %v604 = vsel %vm420, %v603, -inf
    %605 = vmax.xlane.f32.xlu0 %v604
    %v606 = vpop.xlane.xlu0 %605
    %v607 = vsub.f32 %v603, %v606
    %v608 = vmul.f32 %v607, 1.442695
    %v609 = vpow.pop %v608
    %v610 = vsel %vm420, %v609, 0.0
    %611 = vadd.xlane.f32.xlu0 %v610
    %v612 = vpop.xlane.xlu0 %611
    %v613 = vrcp.pop %v612
    %v614 = vmul.f32 %v612, %v613
    %v615 = vsub.f32 1.0, %v614
    %v616 = vmul.f32 %v613, %v615
    %v617 = vadd.f32 %v613, %v616
    %vm618 = vweird.f32 %v612
    %vm619 = vweird.f32 %v613
    %vm620 = vmor %vm618, %vm619
    %v621 = vsel %vm620, %v613, %v617
    %v622 = vand.u32 2147483647, %v612
    %vm623 = vcmp.eq.f32.partialorder %v622, 8.507059e+37
    %v624 = vand.u32 %v612, 2147483648
    %v625 = vor.u32 1.1754944e-38, %v624
    %v626 = vsel %vm623, %v625, %v621
    %v627 = vmul.f32 %v609, %v626
    %628 = vrot.lane.b32.xlu0 %v574, 96
    %v629 = vpop.permute.xlu0 %628
    %630 = vrot.lane.b32.xlu0 %v572, 96
    %v631 = vpop.permute.xlu0 %630
    %v634 = vsel %vm450, %v627, 0
    %v636 = vsel %vm204, %v631, 0
    %638 = vmatpush.msra.mxu0 0.0
    %639 = vmatpush.msra.mxu0 0.0
    %640 = vmatpush.msra.mxu0 0.0
    %641 = vmatpush.msra.mxu0 0.0
    %642 = vmatpush.msra.mxu0 0.0
    %643 = vmatpush.msra.mxu0 0.0
    %644 = vmatpush.msra.mxu0 0.0
    %645 = vmatpush.msra.mxu0 0.0
    %646 = vmatpush.msra.mxu0 0.0
    %647 = vmatpush.msra.mxu0 0.0
    %648 = vmatpush.msra.mxu0 0.0
    %649 = vmatpush.msra.mxu0 0.0
    %650 = vmatpush.msra.mxu0 0.0
    %651 = vmatpush.msra.mxu0 0.0
    %652 = vmatpush.msra.mxu0 %v636
    %653 = vmatpush.msra.mxu0 %v629
    %654 = vmatmul.f32.gmra.mxu0 %v634
    %v655 = vpop.f32.mrf.mxu0
    %v656 = vadd.f32 0.0, %v655
    %657 = vdwg.mxu0
    %658 = vrot.lane.b32.xlu0 %v575, 112
    %v659 = vpop.permute.xlu0 %658
    %660 = vrot.lane.b32.xlu0 %v574, 112
    %v661 = vpop.permute.xlu0 %660
    %662 = vrot.lane.b32.xlu0 %v572, 112
    %v663 = vpop.permute.xlu0 %662
    %v664 = vsel %vm390, %v659, 0
    %v666 = vsel %vm390, %v661, 0
    %v668 = vsel %vm390, %v663, 0
    %670 = vmatpush.xpose.msra.mxu0 0.0
    %671 = vmatpush.xpose.msra.mxu0 0.0
    %672 = vmatpush.xpose.msra.mxu0 0.0
    %673 = vmatpush.xpose.msra.mxu0 0.0
    %674 = vmatpush.xpose.msra.mxu0 0.0
    %675 = vmatpush.xpose.msra.mxu0 0.0
    %676 = vmatpush.xpose.msra.mxu0 0.0
    %677 = vmatpush.xpose.msra.mxu0 0.0
    %678 = vmatpush.xpose.msra.mxu0 0.0
    %679 = vmatpush.xpose.msra.mxu0 0.0
    %680 = vmatpush.xpose.msra.mxu0 0.0
    %681 = vmatpush.xpose.msra.mxu0 0.0
    %682 = vmatpush.xpose.msra.mxu0 0.0
    %683 = vmatpush.xpose.msra.mxu0 0.0
    %684 = vmatpush.xpose.msra.mxu0 %v668
    %685 = vmatpush.xpose.msra.mxu0 %v666
    %686 = vmatmul.f32.gmra.mxu0 %v664
    %v687 = vpop.f32.mrf.mxu0
    %v688 = vadd.f32 0.0, %v687
    %689 = vdwg.mxu0
    %v690 = vmul.f32 %v688, 0.25
    %v691 = vsel %vm420, %v690, -inf
    %692 = vmax.xlane.f32.xlu0 %v691
    %v693 = vpop.xlane.xlu0 %692
    %v694 = vsub.f32 %v690, %v693
    %v695 = vmul.f32 %v694, 1.442695
    %v696 = vpow.pop %v695
    %v697 = vsel %vm420, %v696, 0.0
    %698 = vadd.xlane.f32.xlu0 %v697
    %v699 = vpop.xlane.xlu0 %698
    %v700 = vrcp.pop %v699
    %v701 = vmul.f32 %v699, %v700
    %v702 = vsub.f32 1.0, %v701
    %v703 = vmul.f32 %v700, %v702
    %v704 = vadd.f32 %v700, %v703
    %vm705 = vweird.f32 %v699
    %vm706 = vweird.f32 %v700
    %vm707 = vmor %vm705, %vm706
    %v708 = vsel %vm707, %v700, %v704
    %v709 = vand.u32 2147483647, %v699
    %vm710 = vcmp.eq.f32.partialorder %v709, 8.507059e+37
    %v711 = vand.u32 %v699, 2147483648
    %v712 = vor.u32 1.1754944e-38, %v711
    %v713 = vsel %vm710, %v712, %v708
    %v714 = vmul.f32 %v696, %v713
    %715 = vrot.lane.b32.xlu0 %v574, 80
    %v716 = vpop.permute.xlu0 %715
    %717 = vrot.lane.b32.xlu0 %v572, 80
    %v718 = vpop.permute.xlu0 %717
    %v721 = vsel %vm450, %v714, 0
    %v723 = vsel %vm204, %v718, 0
    %725 = vmatpush.msra.mxu0 0.0
    %726 = vmatpush.msra.mxu0 0.0
    %727 = vmatpush.msra.mxu0 0.0
    %728 = vmatpush.msra.mxu0 0.0
    %729 = vmatpush.msra.mxu0 0.0
    %730 = vmatpush.msra.mxu0 0.0
    %731 = vmatpush.msra.mxu0 0.0
    %732 = vmatpush.msra.mxu0 0.0
    %733 = vmatpush.msra.mxu0 0.0
    %734 = vmatpush.msra.mxu0 0.0
    %735 = vmatpush.msra.mxu0 0.0
    %736 = vmatpush.msra.mxu0 0.0
    %737 = vmatpush.msra.mxu0 0.0
    %738 = vmatpush.msra.mxu0 0.0
    %739 = vmatpush.msra.mxu0 %v723
    %740 = vmatpush.msra.mxu0 %v716
    %741 = vmatmul.f32.gmra.mxu0 %v721
    %v742 = vpop.f32.mrf.mxu0
    %v743 = vadd.f32 0.0, %v742
    %744 = vdwg.mxu0
    %746 = vrot.lane.b32.xlu0 %v743, 16
    %v747 = vpop.permute.xlu0 %746
    %v749 = vsel %vm390, %v656, %v747
    %v751 = vrot.slane %v749, 7
    %v753 = vsel %vm204, %v567, %v751
    %v754 = vld [vmem:[#allocation7] sm:$0xff]
    %v755 = vld [vmem:[#allocation7 + $0x8] sm:$0xff]
    %v756 = vld [vmem:[#allocation7 + $0x10] sm:$0xff]
    %v757 = vld [vmem:[#allocation7 + $0x18] sm:$0xff]
    %v758 = vld [vmem:[%s9] sm:$0x1]
    %v760 = vperm.slane %v758, 0
    %v763 = vsel %vm235, %v753, 0
    %765 = vmatpush.msra.mxu0 0.0
    %766 = vmatpush.msra.mxu0 0.0
    %767 = vmatpush.msra.mxu0 0.0
    %768 = vmatpush.msra.mxu0 0.0
    %769 = vmatpush.msra.mxu0 0.0
    %770 = vmatpush.msra.mxu0 0.0
    %771 = vmatpush.msra.mxu0 0.0
    %772 = vmatpush.msra.mxu0 0.0
    %773 = vmatpush.msra.mxu0 0.0
    %774 = vmatpush.msra.mxu0 0.0
    %775 = vmatpush.msra.mxu0 0.0
    %776 = vmatpush.msra.mxu0 0.0
    %777 = vmatpush.msra.mxu0 %v757
    %778 = vmatpush.msra.mxu0 %v756
    %779 = vmatpush.msra.mxu0 %v755
    %780 = vmatpush.msra.mxu0 %v754
    %781 = vmatmul.f32.gmra.mxu0 %v763
    %v782 = vpop.f32.mrf.mxu0
    %v783 = vadd.f32 %v760, %v782
    %784 = vdwg.mxu0
    %v785 = vld [vmem:[#allocation9] sm:$0xff]
    %v786 = vld [vmem:[#allocation9 + $0x8] sm:$0xff]
    %v787 = vld [vmem:[#allocation9 + $0x10] sm:$0xff]
    %v788 = vld [vmem:[#allocation9 + $0x18] sm:$0xff]
    %v789 = vld [vmem:[#allocation9 + $0x20] sm:$0xff]
    %v790 = vld [vmem:[#allocation9 + $0x28] sm:$0xff]
    %v791 = vld [vmem:[#allocation9 + $0x30] sm:$0xff]
    %v792 = vld [vmem:[#allocation9 + $0x38] sm:$0xff]
    %v793 = vld [vmem:[%s11] sm:$0x1]
    %v795 = vperm.slane %v793, 0
    %v798 = vsel %vm307, %v783, 0
    %800 = vmatpush.msra.mxu0 0.0
    %801 = vmatpush.msra.mxu0 0.0
    %802 = vmatpush.msra.mxu0 0.0
    %803 = vmatpush.msra.mxu0 0.0
    %804 = vmatpush.msra.mxu0 0.0
    %805 = vmatpush.msra.mxu0 0.0
    %806 = vmatpush.msra.mxu0 0.0
    %807 = vmatpush.msra.mxu0 0.0
    %808 = vmatpush.msra.mxu0 %v792
    %809 = vmatpush.msra.mxu0 %v791
    %810 = vmatpush.msra.mxu0 %v790
    %811 = vmatpush.msra.mxu0 %v789
    %812 = vmatpush.msra.mxu0 %v788
    %813 = vmatpush.msra.mxu0 %v787
    %814 = vmatpush.msra.mxu0 %v786
    %815 = vmatpush.msra.mxu0 %v785
    %816 = vmatmul.f32.gmra.mxu0 %v798
    %v817 = vpop.f32.mrf.mxu0
    %v818 = vadd.f32 %v795, %v817
    %819 = vdwg.mxu0
    %v820 = vadd.f32 %v205, %v818
    %v821 = vld [vmem:[%s12] sm:$0xff]
    %v822 = vld [vmem:[%s12 + $0x8] sm:$0xff]
    %v823 = vld [vmem:[%s12 + $0x10] sm:$0xff]
    %v824 = vld [vmem:[%s12 + $0x18] sm:$0xff]
    %v825 = vld [vmem:[%s12 + $0x20] sm:$0xff]
    %v826 = vld [vmem:[%s12 + $0x28] sm:$0xff]
    %v827 = vld [vmem:[%s12 + $0x30] sm:$0xff]
    %v828 = vld [vmem:[%s12 + $0x38] sm:$0xff]
    %v829 = vld [vmem:[%s13] sm:$0x1]
    %v831 = vperm.slane %v829, 0
    %v834 = vsel %vm307, %v206, 0
    %836 = vmatpush.msra.mxu0 0.0
    %837 = vmatpush.msra.mxu0 0.0
    %838 = vmatpush.msra.mxu0 0.0
    %839 = vmatpush.msra.mxu0 0.0
    %840 = vmatpush.msra.mxu0 0.0
    %841 = vmatpush.msra.mxu0 0.0
    %842 = vmatpush.msra.mxu0 0.0
    %843 = vmatpush.msra.mxu0 0.0
    %844 = vmatpush.msra.mxu0 %v828
    %845 = vmatpush.msra.mxu0 %v827
    %846 = vmatpush.msra.mxu0 %v826
    %847 = vmatpush.msra.mxu0 %v825
    %848 = vmatpush.msra.mxu0 %v824
    %849 = vmatpush.msra.mxu0 %v823
    %850 = vmatpush.msra.mxu0 %v822
    %851 = vmatpush.msra.mxu0 %v821
    %852 = vmatmul.f32.gmra.mxu0 %v834
    %v853 = vpop.f32.mrf.mxu0
    %v854 = vadd.f32 %v831, %v853
    %855 = vdwg.mxu0
    %v856 = vld [vmem:[%s14] sm:$0x1]
    %v857 = vld [vmem:[%s15] sm:$0x1]
    %vm858 = vcmask 254976
    %v859 = vsel %vm858, %v854, 0.0
    %860 = vadd.xlane.f32.xlu0 %v859
    %v861 = vpop.xlane.xlu0 %860
    %v862 = vrcp.pop 32.0
    %v863 = vmul.f32 32.0, %v862
    %v864 = vsub.f32 1.0, %v863
    %v865 = vmul.f32 %v862, %v864
    %v866 = vadd.f32 %v862, %v865
    %vm867 = vweird.f32 %v862
    %v868 = vsel %vm867, %v862, %v866
    %v869 = vmul.f32 %v861, %v868
    %v870 = vsub.f32 %v854, %v869
    %v871 = vmul.f32 %v870, %v870
    %v872 = vsel %vm858, %v871, 0.0
    %873 = vadd.xlane.f32.xlu0 %v872
    %v874 = vpop.xlane.xlu0 %873
    %v875 = vmul.f32 %v874, %v868
    %v876 = vadd.f32 %v875, 1e-05
    %v877 = vrsqrt.pop %v876
    %v878 = vmul.f32 %v877, %v876
    %v879 = vmul.f32 %v878, %v877
    %v880 = vmul.f32 0.5, %v879
    %v881 = vsub.f32 1.5, %v880
    %v882 = vmul.f32 %v877, %v881
    %vm883 = vweird.f32 %v876
    %vm884 = vweird.f32 %v877
    %vm885 = vmor %vm883, %vm884
    %v886 = vsel %vm885, %v877, %v882
    %v887 = vmul.f32 %v870, %v886
    %v889 = vperm.slane %v856, 0
    %v891 = vmul.f32 %v887, %v889
    %v893 = vperm.slane %v857, 0
    %v895 = vadd.f32 %v891, %v893
    %v896 = vld [vmem:[#allocation10] sm:$0xff]
    %v897 = vld [vmem:[#allocation10 + $0x8] sm:$0xff]
    %v898 = vld [vmem:[#allocation10 + $0x10] sm:$0xff]
    %v899 = vld [vmem:[#allocation10 + $0x18] sm:$0xff]
    %v901 = vsel %vm235, %v895, 0
    %903 = vmatpush.msra.mxu0 0.0
    %904 = vmatpush.msra.mxu0 0.0
    %905 = vmatpush.msra.mxu0 0.0
    %906 = vmatpush.msra.mxu0 0.0
    %907 = vmatpush.msra.mxu0 0.0
    %908 = vmatpush.msra.mxu0 0.0
    %909 = vmatpush.msra.mxu0 0.0
    %910 = vmatpush.msra.mxu0 0.0
    %911 = vmatpush.msra.mxu0 0.0
    %912 = vmatpush.msra.mxu0 0.0
    %913 = vmatpush.msra.mxu0 0.0
    %914 = vmatpush.msra.mxu0 0.0
    %915 = vmatpush.msra.mxu0 %v899
    %916 = vmatpush.msra.mxu0 %v898
    %917 = vmatpush.msra.mxu0 %v897
    %918 = vmatpush.msra.mxu0 %v896
    %919 = vmatmul.f32.gmra.mxu0 %v901
    %v920 = vpop.f32.mrf.mxu0
    %v921 = vadd.f32 0.0, %v920
    %922 = vdwg.mxu0
    %v923 = vld [vmem:[#allocation12] sm:$0xff]
    %v924 = vld [vmem:[#allocation12 + $0x8] sm:$0xff]
    %v925 = vld [vmem:[#allocation12 + $0x10] sm:$0xff]
    %v926 = vld [vmem:[#allocation12 + $0x18] sm:$0xff]
    %927 = vmatpush.msra.mxu0 0.0
    %928 = vmatpush.msra.mxu0 0.0
    %929 = vmatpush.msra.mxu0 0.0
    %930 = vmatpush.msra.mxu0 0.0
    %931 = vmatpush.msra.mxu0 0.0
    %932 = vmatpush.msra.mxu0 0.0
    %933 = vmatpush.msra.mxu0 0.0
    %934 = vmatpush.msra.mxu0 0.0
    %935 = vmatpush.msra.mxu0 0.0
    %936 = vmatpush.msra.mxu0 0.0
    %937 = vmatpush.msra.mxu0 0.0
    %938 = vmatpush.msra.mxu0 0.0
    %939 = vmatpush.msra.mxu0 %v926
    %940 = vmatpush.msra.mxu0 %v925
    %941 = vmatpush.msra.mxu0 %v924
    %942 = vmatpush.msra.mxu0 %v923
    %943 = vmatmul.f32.gmra.mxu0 %v901
    %v944 = vpop.f32.mrf.mxu0
    %v945 = vadd.f32 0.0, %v944
    %946 = vdwg.mxu0
    %v947 = vsel %vm235, %v212, 0
    %v949 = vsel %vm235, %v217, 0
    %951 = vmatpush.msra.mxu0 0.0
    %952 = vmatpush.msra.mxu0 0.0
    %953 = vmatpush.msra.mxu0 0.0
    %954 = vmatpush.msra.mxu0 0.0
    %955 = vmatpush.msra.mxu0 0.0
    %956 = vmatpush.msra.mxu0 0.0
    %957 = vmatpush.msra.mxu0 0.0
    %958 = vmatpush.msra.mxu0 0.0
    %959 = vmatpush.msra.mxu0 0.0
    %960 = vmatpush.msra.mxu0 0.0
    %961 = vmatpush.msra.mxu0 0.0
    %962 = vmatpush.msra.mxu0 0.0
    %963 = vmatpush.msra.mxu0 %v926
    %964 = vmatpush.msra.mxu0 %v925
    %965 = vmatpush.msra.mxu0 %v924
    %966 = vmatpush.msra.mxu0 %v923
    %967 = vmatmul.f32.gmra.mxu0 %v947
    %v968 = vpop.f32.mrf.mxu0
    %v969 = vadd.f32 0.0, %v968
    %970 = vmatmul.f32.gmra.mxu0 %v949
    %v971 = vpop.f32.mrf.mxu0
    %v972 = vadd.f32 0.0, %v971
    %973 = vdwg.mxu0
    %v975 = vrot.slane %v969, 7
    %v977 = vsel %vm204, %v945, %v975
    %v979 = vsel %vm390, %v921, 0
    %v982 = vsel %vm390, %v977, 0
    %v984 = vsel %vm390, %v975, 0
    %986 = vmatpush.xpose.msra.mxu0 0.0
    %987 = vmatpush.xpose.msra.mxu0 0.0
    %988 = vmatpush.xpose.msra.mxu0 0.0
    %989 = vmatpush.xpose.msra.mxu0 0.0
    %990 = vmatpush.xpose.msra.mxu0 0.0
    %991 = vmatpush.xpose.msra.mxu0 0.0
    %992 = vmatpush.xpose.msra.mxu0 0.0
    %993 = vmatpush.xpose.msra.mxu0 0.0
    %994 = vmatpush.xpose.msra.mxu0 0.0
    %995 = vmatpush.xpose.msra.mxu0 0.0
    %996 = vmatpush.xpose.msra.mxu0 0.0
    %997 = vmatpush.xpose.msra.mxu0 0.0
    %998 = vmatpush.xpose.msra.mxu0 0.0
    %999 = vmatpush.xpose.msra.mxu0 0.0
    %1000 = vmatpush.xpose.msra.mxu0 %v984
    %1001 = vmatpush.xpose.msra.mxu0 %v982
    %1002 = vmatmul.f32.gmra.mxu0 %v979
    %v1003 = vpop.f32.mrf.mxu0
    %v1004 = vadd.f32 0.0, %v1003
    %1005 = vdwg.mxu0
    %v1006 = vmul.f32 %v1004, 0.25
    %v1007 = vsel %vm420, %v1006, -inf
    %1008 = vmax.xlane.f32.xlu0 %v1007
    %v1009 = vpop.xlane.xlu0 %1008
    %v1010 = vsub.f32 %v1006, %v1009
    %v1011 = vmul.f32 %v1010, 1.442695
    %v1012 = vpow.pop %v1011
    %v1013 = vsel %vm420, %v1012, 0.0
    %1014 = vadd.xlane.f32.xlu0 %v1013
    %v1015 = vpop.xlane.xlu0 %1014
    %v1016 = vrcp.pop %v1015
    %v1017 = vmul.f32 %v1015, %v1016
    %v1018 = vsub.f32 1.0, %v1017
    %v1019 = vmul.f32 %v1016, %v1018
    %v1020 = vadd.f32 %v1016, %v1019
    %vm1021 = vweird.f32 %v1015
    %vm1022 = vweird.f32 %v1016
    %vm1023 = vmor %vm1021, %vm1022
    %v1024 = vsel %vm1023, %v1016, %v1020
    %v1025 = vand.u32 2147483647, %v1015
    %vm1026 = vcmp.eq.f32.partialorder %v1025, 8.507059e+37
    %v1027 = vand.u32 %v1015, 2147483648
    %v1028 = vor.u32 1.1754944e-38, %v1027
    %v1029 = vsel %vm1026, %v1028, %v1024
    %v1030 = vmul.f32 %v1012, %v1029
    %1031 = vrot.lane.b32.xlu0 %v977, 96
    %v1032 = vpop.permute.xlu0 %1031
    %1033 = vrot.lane.b32.xlu0 %v975, 96
    %v1034 = vpop.permute.xlu0 %1033
    %v1037 = vsel %vm450, %v1030, 0
    %v1039 = vsel %vm204, %v1034, 0
    %1041 = vmatpush.msra.mxu0 0.0
    %1042 = vmatpush.msra.mxu0 0.0
    %1043 = vmatpush.msra.mxu0 0.0
    %1044 = vmatpush.msra.mxu0 0.0
    %1045 = vmatpush.msra.mxu0 0.0
    %1046 = vmatpush.msra.mxu0 0.0
    %1047 = vmatpush.msra.mxu0 0.0
    %1048 = vmatpush.msra.mxu0 0.0
    %1049 = vmatpush.msra.mxu0 0.0
    %1050 = vmatpush.msra.mxu0 0.0
    %1051 = vmatpush.msra.mxu0 0.0
    %1052 = vmatpush.msra.mxu0 0.0
    %1053 = vmatpush.msra.mxu0 0.0
    %1054 = vmatpush.msra.mxu0 0.0
    %1055 = vmatpush.msra.mxu0 %v1039
    %1056 = vmatpush.msra.mxu0 %v1032
    %1057 = vmatmul.f32.gmra.mxu0 %v1037
    %v1058 = vpop.f32.mrf.mxu0
    %v1059 = vadd.f32 0.0, %v1058
    %1060 = vdwg.mxu0
    %1061 = vrot.lane.b32.xlu0 %v921, 112
    %v1062 = vpop.permute.xlu0 %1061
    %1063 = vrot.lane.b32.xlu0 %v977, 112
    %v1064 = vpop.permute.xlu0 %1063
    %1065 = vrot.lane.b32.xlu0 %v975, 112
    %v1066 = vpop.permute.xlu0 %1065
    %v1067 = vsel %vm390, %v1062, 0
    %v1069 = vsel %vm390, %v1064, 0
    %v1071 = vsel %vm390, %v1066, 0
    %1073 = vmatpush.xpose.msra.mxu0 0.0
    %1074 = vmatpush.xpose.msra.mxu0 0.0
    %1075 = vmatpush.xpose.msra.mxu0 0.0
    %1076 = vmatpush.xpose.msra.mxu0 0.0
    %1077 = vmatpush.xpose.msra.mxu0 0.0
    %1078 = vmatpush.xpose.msra.mxu0 0.0
    %1079 = vmatpush.xpose.msra.mxu0 0.0
    %1080 = vmatpush.xpose.msra.mxu0 0.0
    %1081 = vmatpush.xpose.msra.mxu0 0.0
    %1082 = vmatpush.xpose.msra.mxu0 0.0
    %1083 = vmatpush.xpose.msra.mxu0 0.0
    %1084 = vmatpush.xpose.msra.mxu0 0.0
    %1085 = vmatpush.xpose.msra.mxu0 0.0
    %1086 = vmatpush.xpose.msra.mxu0 0.0
    %1087 = vmatpush.xpose.msra.mxu0 %v1071
    %1088 = vmatpush.xpose.msra.mxu0 %v1069
    %1089 = vmatmul.f32.gmra.mxu0 %v1067
    %v1090 = vpop.f32.mrf.mxu0
    %v1091 = vadd.f32 0.0, %v1090
    %1092 = vdwg.mxu0
    %v1093 = vmul.f32 %v1091, 0.25
    %v1094 = vsel %vm420, %v1093, -inf
    %1095 = vmax.xlane.f32.xlu0 %v1094
    %v1096 = vpop.xlane.xlu0 %1095
    %v1097 = vsub.f32 %v1093, %v1096
    %v1098 = vmul.f32 %v1097, 1.442695
    %v1099 = vpow.pop %v1098
    %v1100 = vsel %vm420, %v1099, 0.0
    %1101 = vadd.xlane.f32.xlu0 %v1100
    %v1102 = vpop.xlane.xlu0 %1101
    %v1103 = vrcp.pop %v1102
    %v1104 = vmul.f32 %v1102, %v1103
    %v1105 = vsub.f32 1.0, %v1104
    %v1106 = vmul.f32 %v1103, %v1105
    %v1107 = vadd.f32 %v1103, %v1106
    %vm1108 = vweird.f32 %v1102
    %vm1109 = vweird.f32 %v1103
    %vm1110 = vmor %vm1108, %vm1109
    %v1111 = vsel %vm1110, %v1103, %v1107
    %v1112 = vand.u32 2147483647, %v1102
    %vm1113 = vcmp.eq.f32.partialorder %v1112, 8.507059e+37
    %v1114 = vand.u32 %v1102, 2147483648
    %v1115 = vor.u32 1.1754944e-38, %v1114
    %v1116 = vsel %vm1113, %v1115, %v1111
    %v1117 = vmul.f32 %v1099, %v1116
    %1118 = vrot.lane.b32.xlu0 %v977, 80
    %v1119 = vpop.permute.xlu0 %1118
    %1120 = vrot.lane.b32.xlu0 %v975, 80
    %v1121 = vpop.permute.xlu0 %1120
    %v1124 = vsel %vm450, %v1117, 0
    %v1126 = vsel %vm204, %v1121, 0
    %1128 = vmatpush.msra.mxu0 0.0
    %1129 = vmatpush.msra.mxu0 0.0
    %1130 = vmatpush.msra.mxu0 0.0
    %1131 = vmatpush.msra.mxu0 0.0
    %1132 = vmatpush.msra.mxu0 0.0
    %1133 = vmatpush.msra.mxu0 0.0
    %1134 = vmatpush.msra.mxu0 0.0
    %1135 = vmatpush.msra.mxu0 0.0
    %1136 = vmatpush.msra.mxu0 0.0
    %1137 = vmatpush.msra.mxu0 0.0
    %1138 = vmatpush.msra.mxu0 0.0
    %1139 = vmatpush.msra.mxu0 0.0
    %1140 = vmatpush.msra.mxu0 0.0
    %1141 = vmatpush.msra.mxu0 0.0
    %1142 = vmatpush.msra.mxu0 %v1126
    %1143 = vmatpush.msra.mxu0 %v1119
    %1144 = vmatmul.f32.gmra.mxu0 %v1124
    %v1145 = vpop.f32.mrf.mxu0
    %v1146 = vadd.f32 0.0, %v1145
    %1147 = vdwg.mxu0
    %1149 = vrot.lane.b32.xlu0 %v1146, 16
    %v1150 = vpop.permute.xlu0 %1149
    %v1152 = vsel %vm390, %v1059, %v1150
    %v1154 = vrot.slane %v945, 1
    %v1157 = vrot.slane %v972, 7
    %v1159 = vsel %vm204, %v1154, %v1157
    %v1160 = vrot.slane %v921, 1
    %v1161 = vsel %vm390, %v1160, 0
    %v1164 = vsel %vm390, %v1159, 0
    %v1166 = vsel %vm390, %v1157, 0
    %1168 = vmatpush.xpose.msra.mxu0 0.0
    %1169 = vmatpush.xpose.msra.mxu0 0.0
    %1170 = vmatpush.xpose.msra.mxu0 0.0
    %1171 = vmatpush.xpose.msra.mxu0 0.0
    %1172 = vmatpush.xpose.msra.mxu0 0.0
    %1173 = vmatpush.xpose.msra.mxu0 0.0
    %1174 = vmatpush.xpose.msra.mxu0 0.0
    %1175 = vmatpush.xpose.msra.mxu0 0.0
    %1176 = vmatpush.xpose.msra.mxu0 0.0
    %1177 = vmatpush.xpose.msra.mxu0 0.0
    %1178 = vmatpush.xpose.msra.mxu0 0.0
    %1179 = vmatpush.xpose.msra.mxu0 0.0
    %1180 = vmatpush.xpose.msra.mxu0 0.0
    %1181 = vmatpush.xpose.msra.mxu0 0.0
    %1182 = vmatpush.xpose.msra.mxu0 %v1166
    %1183 = vmatpush.xpose.msra.mxu0 %v1164
    %1184 = vmatmul.f32.gmra.mxu0 %v1161
    %v1185 = vpop.f32.mrf.mxu0
    %v1186 = vadd.f32 0.0, %v1185
    %1187 = vdwg.mxu0
    %v1188 = vmul.f32 %v1186, 0.25
    %v1189 = vsel %vm420, %v1188, -inf
    %1190 = vmax.xlane.f32.xlu0 %v1189
    %v1191 = vpop.xlane.xlu0 %1190
    %v1192 = vsub.f32 %v1188, %v1191
    %v1193 = vmul.f32 %v1192, 1.442695
    %v1194 = vpow.pop %v1193
    %v1195 = vsel %vm420, %v1194, 0.0
    %1196 = vadd.xlane.f32.xlu0 %v1195
    %v1197 = vpop.xlane.xlu0 %1196
    %v1198 = vrcp.pop %v1197
    %v1199 = vmul.f32 %v1197, %v1198
    %v1200 = vsub.f32 1.0, %v1199
    %v1201 = vmul.f32 %v1198, %v1200
    %v1202 = vadd.f32 %v1198, %v1201
    %vm1203 = vweird.f32 %v1197
    %vm1204 = vweird.f32 %v1198
    %vm1205 = vmor %vm1203, %vm1204
    %v1206 = vsel %vm1205, %v1198, %v1202
    %v1207 = vand.u32 2147483647, %v1197
    %vm1208 = vcmp.eq.f32.partialorder %v1207, 8.507059e+37
    %v1209 = vand.u32 %v1197, 2147483648
    %v1210 = vor.u32 1.1754944e-38, %v1209
    %v1211 = vsel %vm1208, %v1210, %v1206
    %v1212 = vmul.f32 %v1194, %v1211
    %1213 = vrot.lane.b32.xlu0 %v1159, 96
    %v1214 = vpop.permute.xlu0 %1213
    %1215 = vrot.lane.b32.xlu0 %v1157, 96
    %v1216 = vpop.permute.xlu0 %1215
    %v1219 = vsel %vm450, %v1212, 0
    %v1221 = vsel %vm204, %v1216, 0
    %1223 = vmatpush.msra.mxu0 0.0
    %1224 = vmatpush.msra.mxu0 0.0
    %1225 = vmatpush.msra.mxu0 0.0
    %1226 = vmatpush.msra.mxu0 0.0
    %1227 = vmatpush.msra.mxu0 0.0
    %1228 = vmatpush.msra.mxu0 0.0
    %1229 = vmatpush.msra.mxu0 0.0
    %1230 = vmatpush.msra.mxu0 0.0
    %1231 = vmatpush.msra.mxu0 0.0
    %1232 = vmatpush.msra.mxu0 0.0
    %1233 = vmatpush.msra.mxu0 0.0
    %1234 = vmatpush.msra.mxu0 0.0
    %1235 = vmatpush.msra.mxu0 0.0
    %1236 = vmatpush.msra.mxu0 0.0
    %1237 = vmatpush.msra.mxu0 %v1221
    %1238 = vmatpush.msra.mxu0 %v1214
    %1239 = vmatmul.f32.gmra.mxu0 %v1219
    %v1240 = vpop.f32.mrf.mxu0
    %v1241 = vadd.f32 0.0, %v1240
    %1242 = vdwg.mxu0
    %1243 = vrot.lane.b32.xlu0 %v1160, 112
    %v1244 = vpop.permute.xlu0 %1243
    %1245 = vrot.lane.b32.xlu0 %v1159, 112
    %v1246 = vpop.permute.xlu0 %1245
    %1247 = vrot.lane.b32.xlu0 %v1157, 112
    %v1248 = vpop.permute.xlu0 %1247
    %v1249 = vsel %vm390, %v1244, 0
    %v1251 = vsel %vm390, %v1246, 0
    %v1253 = vsel %vm390, %v1248, 0
    %1255 = vmatpush.xpose.msra.mxu0 0.0
    %1256 = vmatpush.xpose.msra.mxu0 0.0
    %1257 = vmatpush.xpose.msra.mxu0 0.0
    %1258 = vmatpush.xpose.msra.mxu0 0.0
    %1259 = vmatpush.xpose.msra.mxu0 0.0
    %1260 = vmatpush.xpose.msra.mxu0 0.0
    %1261 = vmatpush.xpose.msra.mxu0 0.0
    %1262 = vmatpush.xpose.msra.mxu0 0.0
    %1263 = vmatpush.xpose.msra.mxu0 0.0
    %1264 = vmatpush.xpose.msra.mxu0 0.0
    %1265 = vmatpush.xpose.msra.mxu0 0.0
    %1266 = vmatpush.xpose.msra.mxu0 0.0
    %1267 = vmatpush.xpose.msra.mxu0 0.0
    %1268 = vmatpush.xpose.msra.mxu0 0.0
    %1269 = vmatpush.xpose.msra.mxu0 %v1253
    %1270 = vmatpush.xpose.msra.mxu0 %v1251
    %1271 = vmatmul.f32.gmra.mxu0 %v1249
    %v1272 = vpop.f32.mrf.mxu0
    %v1273 = vadd.f32 0.0, %v1272
    %1274 = vdwg.mxu0
    %v1275 = vmul.f32 %v1273, 0.25
    %v1276 = vsel %vm420, %v1275, -inf
    %1277 = vmax.xlane.f32.xlu0 %v1276
    %v1278 = vpop.xlane.xlu0 %1277
    %v1279 = vsub.f32 %v1275, %v1278
    %v1280 = vmul.f32 %v1279, 1.442695
    %v1281 = vpow.pop %v1280
    %v1282 = vsel %vm420, %v1281, 0.0
    %1283 = vadd.xlane.f32.xlu0 %v1282
    %v1284 = vpop.xlane.xlu0 %1283
    %v1285 = vrcp.pop %v1284
    %v1286 = vmul.f32 %v1284, %v1285
    %v1287 = vsub.f32 1.0, %v1286
    %v1288 = vmul.f32 %v1285, %v1287
    %v1289 = vadd.f32 %v1285, %v1288
    %vm1290 = vweird.f32 %v1284
    %vm1291 = vweird.f32 %v1285
    %vm1292 = vmor %vm1290, %vm1291
    %v1293 = vsel %vm1292, %v1285, %v1289
    %v1294 = vand.u32 2147483647, %v1284
    %vm1295 = vcmp.eq.f32.partialorder %v1294, 8.507059e+37
    %v1296 = vand.u32 %v1284, 2147483648
    %v1297 = vor.u32 1.1754944e-38, %v1296
    %v1298 = vsel %vm1295, %v1297, %v1293
    %v1299 = vmul.f32 %v1281, %v1298
    %1300 = vrot.lane.b32.xlu0 %v1159, 80
    %v1301 = vpop.permute.xlu0 %1300
    %1302 = vrot.lane.b32.xlu0 %v1157, 80
    %v1303 = vpop.permute.xlu0 %1302
    %v1306 = vsel %vm450, %v1299, 0
    %v1308 = vsel %vm204, %v1303, 0
    %1310 = vmatpush.msra.mxu0 0.0
    %1311 = vmatpush.msra.mxu0 0.0
    %1312 = vmatpush.msra.mxu0 0.0
    %1313 = vmatpush.msra.mxu0 0.0
    %1314 = vmatpush.msra.mxu0 0.0
    %1315 = vmatpush.msra.mxu0 0.0
    %1316 = vmatpush.msra.mxu0 0.0
    %1317 = vmatpush.msra.mxu0 0.0
    %1318 = vmatpush.msra.mxu0 0.0
    %1319 = vmatpush.msra.mxu0 0.0
    %1320 = vmatpush.msra.mxu0 0.0
    %1321 = vmatpush.msra.mxu0 0.0
    %1322 = vmatpush.msra.mxu0 0.0
    %1323 = vmatpush.msra.mxu0 0.0
    %1324 = vmatpush.msra.mxu0 %v1308
    %1325 = vmatpush.msra.mxu0 %v1301
    %1326 = vmatmul.f32.gmra.mxu0 %v1306
    %v1327 = vpop.f32.mrf.mxu0
    %v1328 = vadd.f32 0.0, %v1327
    %1329 = vdwg.mxu0
    %1331 = vrot.lane.b32.xlu0 %v1328, 16
    %v1332 = vpop.permute.xlu0 %1331
    %v1334 = vsel %vm390, %v1241, %v1332
    %v1336 = vrot.slane %v1334, 7
    %v1338 = vsel %vm204, %v1152, %v1336
    %v1339 = vld [vmem:[#allocation13] sm:$0xff]
    %v1340 = vld [vmem:[#allocation13 + $0x8] sm:$0xff]
    %v1341 = vld [vmem:[#allocation13 + $0x10] sm:$0xff]
    %v1342 = vld [vmem:[#allocation13 + $0x18] sm:$0xff]
    %v1343 = vld [vmem:[%s19] sm:$0x1]
    %v1345 = vperm.slane %v1343, 0
    %v1348 = vsel %vm235, %v1338, 0
    %1350 = vmatpush.msra.mxu0 0.0
    %1351 = vmatpush.msra.mxu0 0.0
    %1352 = vmatpush.msra.mxu0 0.0
    %1353 = vmatpush.msra.mxu0 0.0
    %1354 = vmatpush.msra.mxu0 0.0
    %1355 = vmatpush.msra.mxu0 0.0
    %1356 = vmatpush.msra.mxu0 0.0
    %1357 = vmatpush.msra.mxu0 0.0
    %1358 = vmatpush.msra.mxu0 0.0
    %1359 = vmatpush.msra.mxu0 0.0
    %1360 = vmatpush.msra.mxu0 0.0
    %1361 = vmatpush.msra.mxu0 0.0
    %1362 = vmatpush.msra.mxu0 %v1342
    %1363 = vmatpush.msra.mxu0 %v1341
    %1364 = vmatpush.msra.mxu0 %v1340
    %1365 = vmatpush.msra.mxu0 %v1339
    %1366 = vmatmul.f32.gmra.mxu0 %v1348
    %v1367 = vpop.f32.mrf.mxu0
    %v1368 = vadd.f32 %v1345, %v1367
    %1369 = vdwg.mxu0
    %v1370 = vld [vmem:[%s20] sm:$0xff]
    %v1371 = vld [vmem:[%s20 + $0x8] sm:$0xff]
    %v1372 = vld [vmem:[%s20 + $0x10] sm:$0xff]
    %v1373 = vld [vmem:[%s20 + $0x18] sm:$0xff]
    %v1374 = vld [vmem:[%s21] sm:$0x1]
    %v1376 = vperm.slane %v1374, 0
    %v1379 = vsel %vm235, %v1368, 0
    %1381 = vmatpush.msra.mxu0 0.0
    %1382 = vmatpush.msra.mxu0 0.0
    %1383 = vmatpush.msra.mxu0 0.0
    %1384 = vmatpush.msra.mxu0 0.0
    %1385 = vmatpush.msra.mxu0 0.0
    %1386 = vmatpush.msra.mxu0 0.0
    %1387 = vmatpush.msra.mxu0 0.0
    %1388 = vmatpush.msra.mxu0 0.0
    %1389 = vmatpush.msra.mxu0 0.0
    %1390 = vmatpush.msra.mxu0 0.0
    %1391 = vmatpush.msra.mxu0 0.0
    %1392 = vmatpush.msra.mxu0 0.0
    %1393 = vmatpush.msra.mxu0 %v1373
    %1394 = vmatpush.msra.mxu0 %v1372
    %1395 = vmatpush.msra.mxu0 %v1371
    %1396 = vmatpush.msra.mxu0 %v1370
    %1397 = vmatmul.f32.gmra.mxu0 %v1379
    %v1398 = vpop.f32.mrf.mxu0
    %v1399 = vadd.f32 %v1376, %v1398
    %1400 = vdwg.mxu0
    %v1401 = vadd.f32 %v206, %v1399
    %s1402 = scalar_lea.vmem [#allocation2], 32
    %v1403 = vld [vmem:[%s1402] sm:$0xff]
    %v1404 = vld [vmem:[%s1402 + $0x8] sm:$0xff]
    %v1405 = vld [vmem:[%s1402 + $0x10] sm:$0xff]
    %v1406 = vld [vmem:[%s1402 + $0x18] sm:$0xff]
    %s1407 = scalar_lea.vmem %s3, 1
    %v1408 = vld [vmem:[%s1407] sm:$0x1]
    %v1410 = vperm.slane %v1408, 0
    %v1413 = vsel %vm235, %v820, 0
    %1415 = vmatpush.msra.mxu0 0.0
    %1416 = vmatpush.msra.mxu0 0.0
    %1417 = vmatpush.msra.mxu0 0.0
    %1418 = vmatpush.msra.mxu0 0.0
    %1419 = vmatpush.msra.mxu0 0.0
    %1420 = vmatpush.msra.mxu0 0.0
    %1421 = vmatpush.msra.mxu0 0.0
    %1422 = vmatpush.msra.mxu0 0.0
    %1423 = vmatpush.msra.mxu0 0.0
    %1424 = vmatpush.msra.mxu0 0.0
    %1425 = vmatpush.msra.mxu0 0.0
    %1426 = vmatpush.msra.mxu0 0.0
    %1427 = vmatpush.msra.mxu0 %v1406
    %1428 = vmatpush.msra.mxu0 %v1405
    %1429 = vmatpush.msra.mxu0 %v1404
    %1430 = vmatpush.msra.mxu0 %v1403
    %1431 = vmatmul.f32.gmra.mxu0 %v1413
    %v1432 = vpop.f32.mrf.mxu0
    %v1433 = vadd.f32 %v1410, %v1432
    %1434 = vdwg.mxu0
    %s1435 = scalar_lea.vmem %s4, 1
    %v1436 = vld [vmem:[%s1435] sm:$0x1]
    %s1437 = scalar_lea.vmem %s5, 1
    %v1438 = vld [vmem:[%s1437] sm:$0x1]
    %v1439 = vsel %vm261, %v1433, 0.0
    %1440 = vadd.xlane.f32.xlu0 %v1439
    %v1441 = vpop.xlane.xlu0 %1440
    %v1442 = vmul.f32 %v1441, %v271
    %v1443 = vsub.f32 %v1433, %v1442
    %v1444 = vmul.f32 %v1443, %v1443
    %v1445 = vsel %vm261, %v1444, 0.0
    %1446 = vadd.xlane.f32.xlu0 %v1445
    %v1447 = vpop.xlane.xlu0 %1446
    %v1448 = vmul.f32 %v1447, %v271
    %v1449 = vadd.f32 %v1448, 1e-05
    %v1450 = vrsqrt.pop %v1449
    %v1451 = vmul.f32 %v1450, %v1449
    %v1452 = vmul.f32 %v1451, %v1450
    %v1453 = vmul.f32 0.5, %v1452
    %v1454 = vsub.f32 1.5, %v1453
    %v1455 = vmul.f32 %v1450, %v1454
    %vm1456 = vweird.f32 %v1449
    %vm1457 = vweird.f32 %v1450
    %vm1458 = vmor %vm1456, %vm1457
    %v1459 = vsel %vm1458, %v1450, %v1455
    %v1460 = vmul.f32 %v1443, %v1459
    %v1462 = vperm.slane %v1436, 0
    %v1464 = vmul.f32 %v1460, %v1462
    %v1466 = vperm.slane %v1438, 0
    %v1468 = vadd.f32 %v1464, %v1466
    %s1469 = scalar_lea.vmem [#allocation4], 64
    %v1470 = vld [vmem:[%s1469] sm:$0xff]
    %v1471 = vld [vmem:[%s1469 + $0x8] sm:$0xff]
    %v1472 = vld [vmem:[%s1469 + $0x10] sm:$0xff]
    %v1473 = vld [vmem:[%s1469 + $0x18] sm:$0xff]
    %v1474 = vld [vmem:[%s1469 + $0x20] sm:$0xff]
    %v1475 = vld [vmem:[%s1469 + $0x28] sm:$0xff]
    %v1476 = vld [vmem:[%s1469 + $0x30] sm:$0xff]
    %v1477 = vld [vmem:[%s1469 + $0x38] sm:$0xff]
    %v1479 = vsel %vm307, %v1468, 0
    %1481 = vmatpush.msra.mxu0 0.0
    %1482 = vmatpush.msra.mxu0 0.0
    %1483 = vmatpush.msra.mxu0 0.0
    %1484 = vmatpush.msra.mxu0 0.0
    %1485 = vmatpush.msra.mxu0 0.0
    %1486 = vmatpush.msra.mxu0 0.0
    %1487 = vmatpush.msra.mxu0 0.0
    %1488 = vmatpush.msra.mxu0 0.0
    %1489 = vmatpush.msra.mxu0 %v1477
    %1490 = vmatpush.msra.mxu0 %v1476
    %1491 = vmatpush.msra.mxu0 %v1475
    %1492 = vmatpush.msra.mxu0 %v1474
    %1493 = vmatpush.msra.mxu0 %v1473
    %1494 = vmatpush.msra.mxu0 %v1472
    %1495 = vmatpush.msra.mxu0 %v1471
    %1496 = vmatpush.msra.mxu0 %v1470
    %1497 = vmatmul.f32.gmra.mxu0 %v1479
    %v1498 = vpop.f32.mrf.mxu0
    %v1499 = vadd.f32 0.0, %v1498
    %1500 = vdwg.mxu0
    %s1501 = scalar_lea.vmem [#allocation6], 64
    %v1502 = vld [vmem:[%s1501] sm:$0xff]
    %v1503 = vld [vmem:[%s1501 + $0x8] sm:$0xff]
    %v1504 = vld [vmem:[%s1501 + $0x10] sm:$0xff]
    %v1505 = vld [vmem:[%s1501 + $0x18] sm:$0xff]
    %v1506 = vld [vmem:[%s1501 + $0x20] sm:$0xff]
    %v1507 = vld [vmem:[%s1501 + $0x28] sm:$0xff]
    %v1508 = vld [vmem:[%s1501 + $0x30] sm:$0xff]
    %v1509 = vld [vmem:[%s1501 + $0x38] sm:$0xff]
    %1510 = vmatpush.msra.mxu0 0.0
    %1511 = vmatpush.msra.mxu0 0.0
    %1512 = vmatpush.msra.mxu0 0.0
    %1513 = vmatpush.msra.mxu0 0.0
    %1514 = vmatpush.msra.mxu0 0.0
    %1515 = vmatpush.msra.mxu0 0.0
    %1516 = vmatpush.msra.mxu0 0.0
    %1517 = vmatpush.msra.mxu0 0.0
    %1518 = vmatpush.msra.mxu0 %v1509
    %1519 = vmatpush.msra.mxu0 %v1508
    %1520 = vmatpush.msra.mxu0 %v1507
    %1521 = vmatpush.msra.mxu0 %v1506
    %1522 = vmatpush.msra.mxu0 %v1505
    %1523 = vmatpush.msra.mxu0 %v1504
    %1524 = vmatpush.msra.mxu0 %v1503
    %1525 = vmatpush.msra.mxu0 %v1502
    %1526 = vmatmul.f32.gmra.mxu0 %v1479
    %v1527 = vpop.f32.mrf.mxu0
    %v1528 = vadd.f32 0.0, %v1527
    %1529 = vdwg.mxu0
    %1530 = vmatpush.msra.mxu0 0.0
    %1531 = vmatpush.msra.mxu0 0.0
    %1532 = vmatpush.msra.mxu0 0.0
    %1533 = vmatpush.msra.mxu0 0.0
    %1534 = vmatpush.msra.mxu0 0.0
    %1535 = vmatpush.msra.mxu0 0.0
    %1536 = vmatpush.msra.mxu0 0.0
    %1537 = vmatpush.msra.mxu0 0.0
    %1538 = vmatpush.msra.mxu0 %v1509
    %1539 = vmatpush.msra.mxu0 %v1508
    %1540 = vmatpush.msra.mxu0 %v1507
    %1541 = vmatpush.msra.mxu0 %v1506
    %1542 = vmatpush.msra.mxu0 %v1505
    %1543 = vmatpush.msra.mxu0 %v1504
    %1544 = vmatpush.msra.mxu0 %v1503
    %1545 = vmatpush.msra.mxu0 %v1502
    %1546 = vmatmul.f32.gmra.mxu0 %v359
    %v1547 = vpop.f32.mrf.mxu0
    %v1548 = vadd.f32 0.0, %v1547
    %1549 = vmatmul.f32.gmra.mxu0 %v361
    %v1550 = vpop.f32.mrf.mxu0
    %v1551 = vadd.f32 0.0, %v1550
    %1552 = vdwg.mxu0
    %v1554 = vrot.slane %v1548, 7
    %v1556 = vsel %vm204, %v1528, %v1554
    %v1558 = vsel %vm390, %v1499, 0
    %v1561 = vsel %vm390, %v1556, 0
    %v1563 = vsel %vm390, %v1554, 0
    %1565 = vmatpush.xpose.msra.mxu0 0.0
    %1566 = vmatpush.xpose.msra.mxu0 0.0
    %1567 = vmatpush.xpose.msra.mxu0 0.0
    %1568 = vmatpush.xpose.msra.mxu0 0.0
    %1569 = vmatpush.xpose.msra.mxu0 0.0
    %1570 = vmatpush.xpose.msra.mxu0 0.0
    %1571 = vmatpush.xpose.msra.mxu0 0.0
    %1572 = vmatpush.xpose.msra.mxu0 0.0
    %1573 = vmatpush.xpose.msra.mxu0 0.0
    %1574 = vmatpush.xpose.msra.mxu0 0.0
    %1575 = vmatpush.xpose.msra.mxu0 0.0
    %1576 = vmatpush.xpose.msra.mxu0 0.0
    %1577 = vmatpush.xpose.msra.mxu0 0.0
    %1578 = vmatpush.xpose.msra.mxu0 0.0
    %1579 = vmatpush.xpose.msra.mxu0 %v1563
    %1580 = vmatpush.xpose.msra.mxu0 %v1561
    %1581 = vmatmul.f32.gmra.mxu0 %v1558
    %v1582 = vpop.f32.mrf.mxu0
    %v1583 = vadd.f32 0.0, %v1582
    %1584 = vdwg.mxu0
    %v1585 = vmul.f32 %v1583, 0.25
    %v1586 = vsel %vm420, %v1585, -inf
    %1587 = vmax.xlane.f32.xlu0 %v1586
    %v1588 = vpop.xlane.xlu0 %1587
    %v1589 = vsub.f32 %v1585, %v1588
    %v1590 = vmul.f32 %v1589, 1.442695
    %v1591 = vpow.pop %v1590
    %v1592 = vsel %vm420, %v1591, 0.0
    %1593 = vadd.xlane.f32.xlu0 %v1592
    %v1594 = vpop.xlane.xlu0 %1593
    %v1595 = vrcp.pop %v1594
    %v1596 = vmul.f32 %v1594, %v1595
    %v1597 = vsub.f32 1.0, %v1596
    %v1598 = vmul.f32 %v1595, %v1597
    %v1599 = vadd.f32 %v1595, %v1598
    %vm1600 = vweird.f32 %v1594
    %vm1601 = vweird.f32 %v1595
    %vm1602 = vmor %vm1600, %vm1601
    %v1603 = vsel %vm1602, %v1595, %v1599
    %v1604 = vand.u32 2147483647, %v1594
    %vm1605 = vcmp.eq.f32.partialorder %v1604, 8.507059e+37
    %v1606 = vand.u32 %v1594, 2147483648
    %v1607 = vor.u32 1.1754944e-38, %v1606
    %v1608 = vsel %vm1605, %v1607, %v1603
    %v1609 = vmul.f32 %v1591, %v1608
    %1610 = vrot.lane.b32.xlu0 %v1556, 96
    %v1611 = vpop.permute.xlu0 %1610
    %1612 = vrot.lane.b32.xlu0 %v1554, 96
    %v1613 = vpop.permute.xlu0 %1612
    %v1616 = vsel %vm450, %v1609, 0
    %v1618 = vsel %vm204, %v1613, 0
    %1620 = vmatpush.msra.mxu0 0.0
    %1621 = vmatpush.msra.mxu0 0.0
    %1622 = vmatpush.msra.mxu0 0.0
    %1623 = vmatpush.msra.mxu0 0.0
    %1624 = vmatpush.msra.mxu0 0.0
    %1625 = vmatpush.msra.mxu0 0.0
    %1626 = vmatpush.msra.mxu0 0.0
    %1627 = vmatpush.msra.mxu0 0.0
    %1628 = vmatpush.msra.mxu0 0.0
    %1629 = vmatpush.msra.mxu0 0.0
    %1630 = vmatpush.msra.mxu0 0.0
    %1631 = vmatpush.msra.mxu0 0.0
    %1632 = vmatpush.msra.mxu0 0.0
    %1633 = vmatpush.msra.mxu0 0.0
    %1634 = vmatpush.msra.mxu0 %v1618
    %1635 = vmatpush.msra.mxu0 %v1611
    %1636 = vmatmul.f32.gmra.mxu0 %v1616
    %v1637 = vpop.f32.mrf.mxu0
    %v1638 = vadd.f32 0.0, %v1637
    %1639 = vdwg.mxu0
    %1640 = vrot.lane.b32.xlu0 %v1499, 112
    %v1641 = vpop.permute.xlu0 %1640
    %1642 = vrot.lane.b32.xlu0 %v1556, 112
    %v1643 = vpop.permute.xlu0 %1642
    %1644 = vrot.lane.b32.xlu0 %v1554, 112
    %v1645 = vpop.permute.xlu0 %1644
    %v1646 = vsel %vm390, %v1641, 0
    %v1648 = vsel %vm390, %v1643, 0
    %v1650 = vsel %vm390, %v1645, 0
    %1652 = vmatpush.xpose.msra.mxu0 0.0
    %1653 = vmatpush.xpose.msra.mxu0 0.0
    %1654 = vmatpush.xpose.msra.mxu0 0.0
    %1655 = vmatpush.xpose.msra.mxu0 0.0
    %1656 = vmatpush.xpose.msra.mxu0 0.0
    %1657 = vmatpush.xpose.msra.mxu0 0.0
    %1658 = vmatpush.xpose.msra.mxu0 0.0
    %1659 = vmatpush.xpose.msra.mxu0 0.0
    %1660 = vmatpush.xpose.msra.mxu0 0.0
    %1661 = vmatpush.xpose.msra.mxu0 0.0
    %1662 = vmatpush.xpose.msra.mxu0 0.0
    %1663 = vmatpush.xpose.msra.mxu0 0.0
    %1664 = vmatpush.xpose.msra.mxu0 0.0
    %1665 = vmatpush.xpose.msra.mxu0 0.0
    %1666 = vmatpush.xpose.msra.mxu0 %v1650
    %1667 = vmatpush.xpose.msra.mxu0 %v1648
    %1668 = vmatmul.f32.gmra.mxu0 %v1646
    %v1669 = vpop.f32.mrf.mxu0
    %v1670 = vadd.f32 0.0, %v1669
    %1671 = vdwg.mxu0
    %v1672 = vmul.f32 %v1670, 0.25
    %v1673 = vsel %vm420, %v1672, -inf
    %1674 = vmax.xlane.f32.xlu0 %v1673
    %v1675 = vpop.xlane.xlu0 %1674
    %v1676 = vsub.f32 %v1672, %v1675
    %v1677 = vmul.f32 %v1676, 1.442695
    %v1678 = vpow.pop %v1677
    %v1679 = vsel %vm420, %v1678, 0.0
    %1680 = vadd.xlane.f32.xlu0 %v1679
    %v1681 = vpop.xlane.xlu0 %1680
    %v1682 = vrcp.pop %v1681
    %v1683 = vmul.f32 %v1681, %v1682
    %v1684 = vsub.f32 1.0, %v1683
    %v1685 = vmul.f32 %v1682, %v1684
    %v1686 = vadd.f32 %v1682, %v1685
    %vm1687 = vweird.f32 %v1681
    %vm1688 = vweird.f32 %v1682
    %vm1689 = vmor %vm1687, %vm1688
    %v1690 = vsel %vm1689, %v1682, %v1686
    %v1691 = vand.u32 2147483647, %v1681
    %vm1692 = vcmp.eq.f32.partialorder %v1691, 8.507059e+37
    %v1693 = vand.u32 %v1681, 2147483648
    %v1694 = vor.u32 1.1754944e-38, %v1693
    %v1695 = vsel %vm1692, %v1694, %v1690
    %v1696 = vmul.f32 %v1678, %v1695
    %1697 = vrot.lane.b32.xlu0 %v1556, 80
    %v1698 = vpop.permute.xlu0 %1697
    %1699 = vrot.lane.b32.xlu0 %v1554, 80
    %v1700 = vpop.permute.xlu0 %1699
    %v1703 = vsel %vm450, %v1696, 0
    %v1705 = vsel %vm204, %v1700, 0
    %1707 = vmatpush.msra.mxu0 0.0
    %1708 = vmatpush.msra.mxu0 0.0
    %1709 = vmatpush.msra.mxu0 0.0
    %1710 = vmatpush.msra.mxu0 0.0
    %1711 = vmatpush.msra.mxu0 0.0
    %1712 = vmatpush.msra.mxu0 0.0
    %1713 = vmatpush.msra.mxu0 0.0
    %1714 = vmatpush.msra.mxu0 0.0
    %1715 = vmatpush.msra.mxu0 0.0
    %1716 = vmatpush.msra.mxu0 0.0
    %1717 = vmatpush.msra.mxu0 0.0
    %1718 = vmatpush.msra.mxu0 0.0
    %1719 = vmatpush.msra.mxu0 0.0
    %1720 = vmatpush.msra.mxu0 0.0
    %1721 = vmatpush.msra.mxu0 %v1705
    %1722 = vmatpush.msra.mxu0 %v1698
    %1723 = vmatmul.f32.gmra.mxu0 %v1703
    %v1724 = vpop.f32.mrf.mxu0
    %v1725 = vadd.f32 0.0, %v1724
    %1726 = vdwg.mxu0
    %1728 = vrot.lane.b32.xlu0 %v1725, 16
    %v1729 = vpop.permute.xlu0 %1728
    %v1731 = vsel %vm390, %v1638, %v1729
    %v1733 = vrot.slane %v1528, 1
    %v1736 = vrot.slane %v1551, 7
    %v1738 = vsel %vm204, %v1733, %v1736
    %v1739 = vrot.slane %v1499, 1
    %v1740 = vsel %vm390, %v1739, 0
    %v1743 = vsel %vm390, %v1738, 0
    %v1745 = vsel %vm390, %v1736, 0
    %1747 = vmatpush.xpose.msra.mxu0 0.0
    %1748 = vmatpush.xpose.msra.mxu0 0.0
    %1749 = vmatpush.xpose.msra.mxu0 0.0
    %1750 = vmatpush.xpose.msra.mxu0 0.0
    %1751 = vmatpush.xpose.msra.mxu0 0.0
    %1752 = vmatpush.xpose.msra.mxu0 0.0
    %1753 = vmatpush.xpose.msra.mxu0 0.0
    %1754 = vmatpush.xpose.msra.mxu0 0.0
    %1755 = vmatpush.xpose.msra.mxu0 0.0
    %1756 = vmatpush.xpose.msra.mxu0 0.0
    %1757 = vmatpush.xpose.msra.mxu0 0.0
    %1758 = vmatpush.xpose.msra.mxu0 0.0
    %1759 = vmatpush.xpose.msra.mxu0 0.0
    %1760 = vmatpush.xpose.msra.mxu0 0.0
    %1761 = vmatpush.xpose.msra.mxu0 %v1745
    %1762 = vmatpush.xpose.msra.mxu0 %v1743
    %1763 = vmatmul.f32.gmra.mxu0 %v1740
    %v1764 = vpop.f32.mrf.mxu0
    %v1765 = vadd.f32 0.0, %v1764
    %1766 = vdwg.mxu0
    %v1767 = vmul.f32 %v1765, 0.25
    %v1768 = vsel %vm420, %v1767, -inf
    %1769 = vmax.xlane.f32.xlu0 %v1768
    %v1770 = vpop.xlane.xlu0 %1769
    %v1771 = vsub.f32 %v1767, %v1770
    %v1772 = vmul.f32 %v1771, 1.442695
    %v1773 = vpow.pop %v1772
    %v1774 = vsel %vm420, %v1773, 0.0
    %1775 = vadd.xlane.f32.xlu0 %v1774
    %v1776 = vpop.xlane.xlu0 %1775
    %v1777 = vrcp.pop %v1776
    %v1778 = vmul.f32 %v1776, %v1777
    %v1779 = vsub.f32 1.0, %v1778
    %v1780 = vmul.f32 %v1777, %v1779
    %v1781 = vadd.f32 %v1777, %v1780
    %vm1782 = vweird.f32 %v1776
    %vm1783 = vweird.f32 %v1777
    %vm1784 = vmor %vm1782, %vm1783
    %v1785 = vsel %vm1784, %v1777, %v1781
    %v1786 = vand.u32 2147483647, %v1776
    %vm1787 = vcmp.eq.f32.partialorder %v1786, 8.507059e+37
    %v1788 = vand.u32 %v1776, 2147483648
    %v1789 = vor.u32 1.1754944e-38, %v1788
    %v1790 = vsel %vm1787, %v1789, %v1785
    %v1791 = vmul.f32 %v1773, %v1790
    %1792 = vrot.lane.b32.xlu0 %v1738, 96
    %v1793 = vpop.permute.xlu0 %1792
    %1794 = vrot.lane.b32.xlu0 %v1736, 96
    %v1795 = vpop.permute.xlu0 %1794
    %v1798 = vsel %vm450, %v1791, 0
    %v1800 = vsel %vm204, %v1795, 0
    %1802 = vmatpush.msra.mxu0 0.0
    %1803 = vmatpush.msra.mxu0 0.0
    %1804 = vmatpush.msra.mxu0 0.0
    %1805 = vmatpush.msra.mxu0 0.0
    %1806 = vmatpush.msra.mxu0 0.0
    %1807 = vmatpush.msra.mxu0 0.0
    %1808 = vmatpush.msra.mxu0 0.0
    %1809 = vmatpush.msra.mxu0 0.0
    %1810 = vmatpush.msra.mxu0 0.0
    %1811 = vmatpush.msra.mxu0 0.0
    %1812 = vmatpush.msra.mxu0 0.0
    %1813 = vmatpush.msra.mxu0 0.0
    %1814 = vmatpush.msra.mxu0 0.0
    %1815 = vmatpush.msra.mxu0 0.0
    %1816 = vmatpush.msra.mxu0 %v1800
    %1817 = vmatpush.msra.mxu0 %v1793
    %1818 = vmatmul.f32.gmra.mxu0 %v1798
    %v1819 = vpop.f32.mrf.mxu0
    %v1820 = vadd.f32 0.0, %v1819
    %1821 = vdwg.mxu0
    %1822 = vrot.lane.b32.xlu0 %v1739, 112
    %v1823 = vpop.permute.xlu0 %1822
    %1824 = vrot.lane.b32.xlu0 %v1738, 112
    %v1825 = vpop.permute.xlu0 %1824
    %1826 = vrot.lane.b32.xlu0 %v1736, 112
    %v1827 = vpop.permute.xlu0 %1826
    %v1828 = vsel %vm390, %v1823, 0
    %v1830 = vsel %vm390, %v1825, 0
    %v1832 = vsel %vm390, %v1827, 0
    %1834 = vmatpush.xpose.msra.mxu0 0.0
    %1835 = vmatpush.xpose.msra.mxu0 0.0
    %1836 = vmatpush.xpose.msra.mxu0 0.0
    %1837 = vmatpush.xpose.msra.mxu0 0.0
    %1838 = vmatpush.xpose.msra.mxu0 0.0
    %1839 = vmatpush.xpose.msra.mxu0 0.0
    %1840 = vmatpush.xpose.msra.mxu0 0.0
    %1841 = vmatpush.xpose.msra.mxu0 0.0
    %1842 = vmatpush.xpose.msra.mxu0 0.0
    %1843 = vmatpush.xpose.msra.mxu0 0.0
    %1844 = vmatpush.xpose.msra.mxu0 0.0
    %1845 = vmatpush.xpose.msra.mxu0 0.0
    %1846 = vmatpush.xpose.msra.mxu0 0.0
    %1847 = vmatpush.xpose.msra.mxu0 0.0
    %1848 = vmatpush.xpose.msra.mxu0 %v1832
    %1849 = vmatpush.xpose.msra.mxu0 %v1830
    %1850 = vmatmul.f32.gmra.mxu0 %v1828
    %v1851 = vpop.f32.mrf.mxu0
    %v1852 = vadd.f32 0.0, %v1851
    %1853 = vdwg.mxu0
    %v1854 = vmul.f32 %v1852, 0.25
    %v1855 = vsel %vm420, %v1854, -inf
    %1856 = vmax.xlane.f32.xlu0 %v1855
    %v1857 = vpop.xlane.xlu0 %1856
    %v1858 = vsub.f32 %v1854, %v1857
    %v1859 = vmul.f32 %v1858, 1.442695
    %v1860 = vpow.pop %v1859
    %v1861 = vsel %vm420, %v1860, 0.0
    %1862 = vadd.xlane.f32.xlu0 %v1861
    %v1863 = vpop.xlane.xlu0 %1862
    %v1864 = vrcp.pop %v1863
    %v1865 = vmul.f32 %v1863, %v1864
    %v1866 = vsub.f32 1.0, %v1865
    %v1867 = vmul.f32 %v1864, %v1866
    %v1868 = vadd.f32 %v1864, %v1867
    %vm1869 = vweird.f32 %v1863
    %vm1870 = vweird.f32 %v1864
    %vm1871 = vmor %vm1869, %vm1870
    %v1872 = vsel %vm1871, %v1864, %v1868
    %v1873 = vand.u32 2147483647, %v1863
    %vm1874 = vcmp.eq.f32.partialorder %v1873, 8.507059e+37
    %v1875 = vand.u32 %v1863, 2147483648
    %v1876 = vor.u32 1.1754944e-38, %v1875
    %v1877 = vsel %vm1874, %v1876, %v1872
    %v1878 = vmul.f32 %v1860, %v1877
    %1879 = vrot.lane.b32.xlu0 %v1738, 80
    %v1880 = vpop.permute.xlu0 %1879
    %1881 = vrot.lane.b32.xlu0 %v1736, 80
    %v1882 = vpop.permute.xlu0 %1881
    %v1885 = vsel %vm450, %v1878, 0
    %v1887 = vsel %vm204, %v1882, 0
    %1889 = vmatpush.msra.mxu0 0.0
    %1890 = vmatpush.msra.mxu0 0.0
    %1891 = vmatpush.msra.mxu0 0.0
    %1892 = vmatpush.msra.mxu0 0.0
    %1893 = vmatpush.msra.mxu0 0.0
    %1894 = vmatpush.msra.mxu0 0.0
    %1895 = vmatpush.msra.mxu0 0.0
    %1896 = vmatpush.msra.mxu0 0.0
    %1897 = vmatpush.msra.mxu0 0.0
    %1898 = vmatpush.msra.mxu0 0.0
    %1899 = vmatpush.msra.mxu0 0.0
    %1900 = vmatpush.msra.mxu0 0.0
    %1901 = vmatpush.msra.mxu0 0.0
    %1902 = vmatpush.msra.mxu0 0.0
    %1903 = vmatpush.msra.mxu0 %v1887
    %1904 = vmatpush.msra.mxu0 %v1880
    %1905 = vmatmul.f32.gmra.mxu0 %v1885
    %v1906 = vpop.f32.mrf.mxu0
    %v1907 = vadd.f32 0.0, %v1906
    %1908 = vdwg.mxu0
    %1910 = vrot.lane.b32.xlu0 %v1907, 16
    %v1911 = vpop.permute.xlu0 %1910
    %v1913 = vsel %vm390, %v1820, %v1911
    %v1915 = vrot.slane %v1913, 7
    %v1917 = vsel %vm204, %v1731, %v1915
    %s1918 = scalar_lea.vmem [#allocation7], 32
    %v1919 = vld [vmem:[%s1918] sm:$0xff]
    %v1920 = vld [vmem:[%s1918 + $0x8] sm:$0xff]
    %v1921 = vld [vmem:[%s1918 + $0x10] sm:$0xff]
    %v1922 = vld [vmem:[%s1918 + $0x18] sm:$0xff]
    %s1923 = scalar_lea.vmem %s9, 1
    %v1924 = vld [vmem:[%s1923] sm:$0x1]
    %v1926 = vperm.slane %v1924, 0
    %v1929 = vsel %vm235, %v1917, 0
    %1931 = vmatpush.msra.mxu0 0.0
    %1932 = vmatpush.msra.mxu0 0.0
    %1933 = vmatpush.msra.mxu0 0.0
    %1934 = vmatpush.msra.mxu0 0.0
    %1935 = vmatpush.msra.mxu0 0.0
    %1936 = vmatpush.msra.mxu0 0.0
    %1937 = vmatpush.msra.mxu0 0.0
    %1938 = vmatpush.msra.mxu0 0.0
    %1939 = vmatpush.msra.mxu0 0.0
    %1940 = vmatpush.msra.mxu0 0.0
    %1941 = vmatpush.msra.mxu0 0.0
    %1942 = vmatpush.msra.mxu0 0.0
    %1943 = vmatpush.msra.mxu0 %v1922
    %1944 = vmatpush.msra.mxu0 %v1921
    %1945 = vmatpush.msra.mxu0 %v1920
    %1946 = vmatpush.msra.mxu0 %v1919
    %1947 = vmatmul.f32.gmra.mxu0 %v1929
    %v1948 = vpop.f32.mrf.mxu0
    %v1949 = vadd.f32 %v1926, %v1948
    %1950 = vdwg.mxu0
    %s1951 = scalar_lea.vmem [#allocation9], 64
    %v1952 = vld [vmem:[%s1951] sm:$0xff]
    %v1953 = vld [vmem:[%s1951 + $0x8] sm:$0xff]
    %v1954 = vld [vmem:[%s1951 + $0x10] sm:$0xff]
    %v1955 = vld [vmem:[%s1951 + $0x18] sm:$0xff]
    %v1956 = vld [vmem:[%s1951 + $0x20] sm:$0xff]
    %v1957 = vld [vmem:[%s1951 + $0x28] sm:$0xff]
    %v1958 = vld [vmem:[%s1951 + $0x30] sm:$0xff]
    %v1959 = vld [vmem:[%s1951 + $0x38] sm:$0xff]
    %s1960 = scalar_lea.vmem %s11, 1
    %v1961 = vld [vmem:[%s1960] sm:$0x1]
    %v1963 = vperm.slane %v1961, 0
    %v1966 = vsel %vm307, %v1949, 0
    %1968 = vmatpush.msra.mxu0 0.0
    %1969 = vmatpush.msra.mxu0 0.0
    %1970 = vmatpush.msra.mxu0 0.0
    %1971 = vmatpush.msra.mxu0 0.0
    %1972 = vmatpush.msra.mxu0 0.0
    %1973 = vmatpush.msra.mxu0 0.0
    %1974 = vmatpush.msra.mxu0 0.0
    %1975 = vmatpush.msra.mxu0 0.0
    %1976 = vmatpush.msra.mxu0 %v1959
    %1977 = vmatpush.msra.mxu0 %v1958
    %1978 = vmatpush.msra.mxu0 %v1957
    %1979 = vmatpush.msra.mxu0 %v1956
    %1980 = vmatpush.msra.mxu0 %v1955
    %1981 = vmatpush.msra.mxu0 %v1954
    %1982 = vmatpush.msra.mxu0 %v1953
    %1983 = vmatpush.msra.mxu0 %v1952
    %1984 = vmatmul.f32.gmra.mxu0 %v1966
    %v1985 = vpop.f32.mrf.mxu0
    %v1986 = vadd.f32 %v1963, %v1985
    %1987 = vdwg.mxu0
    %v1988 = vadd.f32 %v820, %v1986
    %s1989 = scalar_lea.vmem %s12, 64
    %v1990 = vld [vmem:[%s1989] sm:$0xff]
    %v1991 = vld [vmem:[%s1989 + $0x8] sm:$0xff]
    %v1992 = vld [vmem:[%s1989 + $0x10] sm:$0xff]
    %v1993 = vld [vmem:[%s1989 + $0x18] sm:$0xff]
    %v1994 = vld [vmem:[%s1989 + $0x20] sm:$0xff]
    %v1995 = vld [vmem:[%s1989 + $0x28] sm:$0xff]
    %v1996 = vld [vmem:[%s1989 + $0x30] sm:$0xff]
    %v1997 = vld [vmem:[%s1989 + $0x38] sm:$0xff]
    %s1998 = scalar_lea.vmem %s13, 1
    %v1999 = vld [vmem:[%s1998] sm:$0x1]
    %v2001 = vperm.slane %v1999, 0
    %v2004 = vsel %vm307, %v1401, 0
    %2006 = vmatpush.msra.mxu0 0.0
    %2007 = vmatpush.msra.mxu0 0.0
    %2008 = vmatpush.msra.mxu0 0.0
    %2009 = vmatpush.msra.mxu0 0.0
    %2010 = vmatpush.msra.mxu0 0.0
    %2011 = vmatpush.msra.mxu0 0.0
    %2012 = vmatpush.msra.mxu0 0.0
    %2013 = vmatpush.msra.mxu0 0.0
    %2014 = vmatpush.msra.mxu0 %v1997
    %2015 = vmatpush.msra.mxu0 %v1996
    %2016 = vmatpush.msra.mxu0 %v1995
    %2017 = vmatpush.msra.mxu0 %v1994
    %2018 = vmatpush.msra.mxu0 %v1993
    %2019 = vmatpush.msra.mxu0 %v1992
    %2020 = vmatpush.msra.mxu0 %v1991
    %2021 = vmatpush.msra.mxu0 %v1990
    %2022 = vmatmul.f32.gmra.mxu0 %v2004
    %v2023 = vpop.f32.mrf.mxu0
    %v2024 = vadd.f32 %v2001, %v2023
    %2025 = vdwg.mxu0
    %s2026 = scalar_lea.vmem %s14, 1
    %v2027 = vld [vmem:[%s2026] sm:$0x1]
    %s2028 = scalar_lea.vmem %s15, 1
    %v2029 = vld [vmem:[%s2028] sm:$0x1]
    %v2030 = vsel %vm858, %v2024, 0.0
    %2031 = vadd.xlane.f32.xlu0 %v2030
    %v2032 = vpop.xlane.xlu0 %2031
    %v2033 = vmul.f32 %v2032, %v868
    %v2034 = vsub.f32 %v2024, %v2033
    %v2035 = vmul.f32 %v2034, %v2034
    %v2036 = vsel %vm858, %v2035, 0.0
    %2037 = vadd.xlane.f32.xlu0 %v2036
    %v2038 = vpop.xlane.xlu0 %2037
    %v2039 = vmul.f32 %v2038, %v868
    %v2040 = vadd.f32 %v2039, 1e-05
    %v2041 = vrsqrt.pop %v2040
    %v2042 = vmul.f32 %v2041, %v2040
    %v2043 = vmul.f32 %v2042, %v2041
    %v2044 = vmul.f32 0.5, %v2043
    %v2045 = vsub.f32 1.5, %v2044
    %v2046 = vmul.f32 %v2041, %v2045
    %vm2047 = vweird.f32 %v2040
    %vm2048 = vweird.f32 %v2041
    %vm2049 = vmor %vm2047, %vm2048
    %v2050 = vsel %vm2049, %v2041, %v2046
    %v2051 = vmul.f32 %v2034, %v2050
    %v2053 = vperm.slane %v2027, 0
    %v2055 = vmul.f32 %v2051, %v2053
    %v2057 = vperm.slane %v2029, 0
    %v2059 = vadd.f32 %v2055, %v2057
    %s2060 = scalar_lea.vmem [#allocation10], 32
    %v2061 = vld [vmem:[%s2060] sm:$0xff]
    %v2062 = vld [vmem:[%s2060 + $0x8] sm:$0xff]
    %v2063 = vld [vmem:[%s2060 + $0x10] sm:$0xff]
    %v2064 = vld [vmem:[%s2060 + $0x18] sm:$0xff]
    %v2066 = vsel %vm235, %v2059, 0
    %2068 = vmatpush.msra.mxu0 0.0
    %2069 = vmatpush.msra.mxu0 0.0
    %2070 = vmatpush.msra.mxu0 0.0
    %2071 = vmatpush.msra.mxu0 0.0
    %2072 = vmatpush.msra.mxu0 0.0
    %2073 = vmatpush.msra.mxu0 0.0
    %2074 = vmatpush.msra.mxu0 0.0
    %2075 = vmatpush.msra.mxu0 0.0
    %2076 = vmatpush.msra.mxu0 0.0
    %2077 = vmatpush.msra.mxu0 0.0
    %2078 = vmatpush.msra.mxu0 0.0
    %2079 = vmatpush.msra.mxu0 0.0
    %2080 = vmatpush.msra.mxu0 %v2064
    %2081 = vmatpush.msra.mxu0 %v2063
    %2082 = vmatpush.msra.mxu0 %v2062
    %2083 = vmatpush.msra.mxu0 %v2061
    %2084 = vmatmul.f32.gmra.mxu0 %v2066
    %v2085 = vpop.f32.mrf.mxu0
    %v2086 = vadd.f32 0.0, %v2085
    %2087 = vdwg.mxu0
    %s2088 = scalar_lea.vmem [#allocation12], 32
    %v2089 = vld [vmem:[%s2088] sm:$0xff]
    %v2090 = vld [vmem:[%s2088 + $0x8] sm:$0xff]
    %v2091 = vld [vmem:[%s2088 + $0x10] sm:$0xff]
    %v2092 = vld [vmem:[%s2088 + $0x18] sm:$0xff]
    %2093 = vmatpush.msra.mxu0 0.0
    %2094 = vmatpush.msra.mxu0 0.0
    %2095 = vmatpush.msra.mxu0 0.0
    %2096 = vmatpush.msra.mxu0 0.0
    %2097 = vmatpush.msra.mxu0 0.0
    %2098 = vmatpush.msra.mxu0 0.0
    %2099 = vmatpush.msra.mxu0 0.0
    %2100 = vmatpush.msra.mxu0 0.0
    %2101 = vmatpush.msra.mxu0 0.0
    %2102 = vmatpush.msra.mxu0 0.0
    %2103 = vmatpush.msra.mxu0 0.0
    %2104 = vmatpush.msra.mxu0 0.0
    %2105 = vmatpush.msra.mxu0 %v2092
    %2106 = vmatpush.msra.mxu0 %v2091
    %2107 = vmatpush.msra.mxu0 %v2090
    %2108 = vmatpush.msra.mxu0 %v2089
    %2109 = vmatmul.f32.gmra.mxu0 %v2066
    %v2110 = vpop.f32.mrf.mxu0
    %v2111 = vadd.f32 0.0, %v2110
    %2112 = vdwg.mxu0
    %2113 = vmatpush.msra.mxu0 0.0
    %2114 = vmatpush.msra.mxu0 0.0
    %2115 = vmatpush.msra.mxu0 0.0
    %2116 = vmatpush.msra.mxu0 0.0
    %2117 = vmatpush.msra.mxu0 0.0
    %2118 = vmatpush.msra.mxu0 0.0
    %2119 = vmatpush.msra.mxu0 0.0
    %2120 = vmatpush.msra.mxu0 0.0
    %2121 = vmatpush.msra.mxu0 0.0
    %2122 = vmatpush.msra.mxu0 0.0
    %2123 = vmatpush.msra.mxu0 0.0
    %2124 = vmatpush.msra.mxu0 0.0
    %2125 = vmatpush.msra.mxu0 %v2092
    %2126 = vmatpush.msra.mxu0 %v2091
    %2127 = vmatpush.msra.mxu0 %v2090
    %2128 = vmatpush.msra.mxu0 %v2089
    %2129 = vmatmul.f32.gmra.mxu0 %v947
    %v2130 = vpop.f32.mrf.mxu0
    %v2131 = vadd.f32 0.0, %v2130
    %2132 = vmatmul.f32.gmra.mxu0 %v949
    %v2133 = vpop.f32.mrf.mxu0
    %v2134 = vadd.f32 0.0, %v2133
    %2135 = vdwg.mxu0
    %v2137 = vrot.slane %v2131, 7
    %v2139 = vsel %vm204, %v2111, %v2137
    %v2141 = vsel %vm390, %v2086, 0
    %v2144 = vsel %vm390, %v2139, 0
    %v2146 = vsel %vm390, %v2137, 0
    %2148 = vmatpush.xpose.msra.mxu0 0.0
    %2149 = vmatpush.xpose.msra.mxu0 0.0
    %2150 = vmatpush.xpose.msra.mxu0 0.0
    %2151 = vmatpush.xpose.msra.mxu0 0.0
    %2152 = vmatpush.xpose.msra.mxu0 0.0
    %2153 = vmatpush.xpose.msra.mxu0 0.0
    %2154 = vmatpush.xpose.msra.mxu0 0.0
    %2155 = vmatpush.xpose.msra.mxu0 0.0
    %2156 = vmatpush.xpose.msra.mxu0 0.0
    %2157 = vmatpush.xpose.msra.mxu0 0.0
    %2158 = vmatpush.xpose.msra.mxu0 0.0
    %2159 = vmatpush.xpose.msra.mxu0 0.0
    %2160 = vmatpush.xpose.msra.mxu0 0.0
    %2161 = vmatpush.xpose.msra.mxu0 0.0
    %2162 = vmatpush.xpose.msra.mxu0 %v2146
    %2163 = vmatpush.xpose.msra.mxu0 %v2144
    %2164 = vmatmul.f32.gmra.mxu0 %v2141
    %v2165 = vpop.f32.mrf.mxu0
    %v2166 = vadd.f32 0.0, %v2165
    %2167 = vdwg.mxu0
    %v2168 = vmul.f32 %v2166, 0.25
    %v2169 = vsel %vm420, %v2168, -inf
    %2170 = vmax.xlane.f32.xlu0 %v2169
    %v2171 = vpop.xlane.xlu0 %2170
    %v2172 = vsub.f32 %v2168, %v2171
    %v2173 = vmul.f32 %v2172, 1.442695
    %v2174 = vpow.pop %v2173
    %v2175 = vsel %vm420, %v2174, 0.0
    %2176 = vadd.xlane.f32.xlu0 %v2175
    %v2177 = vpop.xlane.xlu0 %2176
    %v2178 = vrcp.pop %v2177
    %v2179 = vmul.f32 %v2177, %v2178
    %v2180 = vsub.f32 1.0, %v2179
    %v2181 = vmul.f32 %v2178, %v2180
    %v2182 = vadd.f32 %v2178, %v2181
    %vm2183 = vweird.f32 %v2177
    %vm2184 = vweird.f32 %v2178
    %vm2185 = vmor %vm2183, %vm2184
    %v2186 = vsel %vm2185, %v2178, %v2182
    %v2187 = vand.u32 2147483647, %v2177
    %vm2188 = vcmp.eq.f32.partialorder %v2187, 8.507059e+37
    %v2189 = vand.u32 %v2177, 2147483648
    %v2190 = vor.u32 1.1754944e-38, %v2189
    %v2191 = vsel %vm2188, %v2190, %v2186
    %v2192 = vmul.f32 %v2174, %v2191
    %2193 = vrot.lane.b32.xlu0 %v2139, 96
    %v2194 = vpop.permute.xlu0 %2193
    %2195 = vrot.lane.b32.xlu0 %v2137, 96
    %v2196 = vpop.permute.xlu0 %2195
    %v2199 = vsel %vm450, %v2192, 0
    %v2201 = vsel %vm204, %v2196, 0
    %2203 = vmatpush.msra.mxu0 0.0
    %2204 = vmatpush.msra.mxu0 0.0
    %2205 = vmatpush.msra.mxu0 0.0
    %2206 = vmatpush.msra.mxu0 0.0
    %2207 = vmatpush.msra.mxu0 0.0
    %2208 = vmatpush.msra.mxu0 0.0
    %2209 = vmatpush.msra.mxu0 0.0
    %2210 = vmatpush.msra.mxu0 0.0
    %2211 = vmatpush.msra.mxu0 0.0
    %2212 = vmatpush.msra.mxu0 0.0
    %2213 = vmatpush.msra.mxu0 0.0
    %2214 = vmatpush.msra.mxu0 0.0
    %2215 = vmatpush.msra.mxu0 0.0
    %2216 = vmatpush.msra.mxu0 0.0
    %2217 = vmatpush.msra.mxu0 %v2201
    %2218 = vmatpush.msra.mxu0 %v2194
    %2219 = vmatmul.f32.gmra.mxu0 %v2199
    %v2220 = vpop.f32.mrf.mxu0
    %v2221 = vadd.f32 0.0, %v2220
    %2222 = vdwg.mxu0
    %2223 = vrot.lane.b32.xlu0 %v2086, 112
    %v2224 = vpop.permute.xlu0 %2223
    %2225 = vrot.lane.b32.xlu0 %v2139, 112
    %v2226 = vpop.permute.xlu0 %2225
    %2227 = vrot.lane.b32.xlu0 %v2137, 112
    %v2228 = vpop.permute.xlu0 %2227
    %v2229 = vsel %vm390, %v2224, 0
    %v2231 = vsel %vm390, %v2226, 0
    %v2233 = vsel %vm390, %v2228, 0
    %2235 = vmatpush.xpose.msra.mxu0 0.0
    %2236 = vmatpush.xpose.msra.mxu0 0.0
    %2237 = vmatpush.xpose.msra.mxu0 0.0
    %2238 = vmatpush.xpose.msra.mxu0 0.0
    %2239 = vmatpush.xpose.msra.mxu0 0.0
    %2240 = vmatpush.xpose.msra.mxu0 0.0
    %2241 = vmatpush.xpose.msra.mxu0 0.0
    %2242 = vmatpush.xpose.msra.mxu0 0.0
    %2243 = vmatpush.xpose.msra.mxu0 0.0
    %2244 = vmatpush.xpose.msra.mxu0 0.0
    %2245 = vmatpush.xpose.msra.mxu0 0.0
    %2246 = vmatpush.xpose.msra.mxu0 0.0
    %2247 = vmatpush.xpose.msra.mxu0 0.0
    %2248 = vmatpush.xpose.msra.mxu0 0.0
    %2249 = vmatpush.xpose.msra.mxu0 %v2233
    %2250 = vmatpush.xpose.msra.mxu0 %v2231
    %2251 = vmatmul.f32.gmra.mxu0 %v2229
    %v2252 = vpop.f32.mrf.mxu0
    %v2253 = vadd.f32 0.0, %v2252
    %2254 = vdwg.mxu0
    %v2255 = vmul.f32 %v2253, 0.25
    %v2256 = vsel %vm420, %v2255, -inf
    %2257 = vmax.xlane.f32.xlu0 %v2256
    %v2258 = vpop.xlane.xlu0 %2257
    %v2259 = vsub.f32 %v2255, %v2258
    %v2260 = vmul.f32 %v2259, 1.442695
    %v2261 = vpow.pop %v2260
    %v2262 = vsel %vm420, %v2261, 0.0
    %2263 = vadd.xlane.f32.xlu0 %v2262
    %v2264 = vpop.xlane.xlu0 %2263
    %v2265 = vrcp.pop %v2264
    %v2266 = vmul.f32 %v2264, %v2265
    %v2267 = vsub.f32 1.0, %v2266
    %v2268 = vmul.f32 %v2265, %v2267
    %v2269 = vadd.f32 %v2265, %v2268
    %vm2270 = vweird.f32 %v2264
    %vm2271 = vweird.f32 %v2265
    %vm2272 = vmor %vm2270, %vm2271
    %v2273 = vsel %vm2272, %v2265, %v2269
    %v2274 = vand.u32 2147483647, %v2264
    %vm2275 = vcmp.eq.f32.partialorder %v2274, 8.507059e+37
    %v2276 = vand.u32 %v2264, 2147483648
    %v2277 = vor.u32 1.1754944e-38, %v2276
    %v2278 = vsel %vm2275, %v2277, %v2273
    %v2279 = vmul.f32 %v2261, %v2278
    %2280 = vrot.lane.b32.xlu0 %v2139, 80
    %v2281 = vpop.permute.xlu0 %2280
    %2282 = vrot.lane.b32.xlu0 %v2137, 80
    %v2283 = vpop.permute.xlu0 %2282
    %v2286 = vsel %vm450, %v2279, 0
    %v2288 = vsel %vm204, %v2283, 0
    %2290 = vmatpush.msra.mxu0 0.0
    %2291 = vmatpush.msra.mxu0 0.0
    %2292 = vmatpush.msra.mxu0 0.0
    %2293 = vmatpush.msra.mxu0 0.0
    %2294 = vmatpush.msra.mxu0 0.0
    %2295 = vmatpush.msra.mxu0 0.0
    %2296 = vmatpush.msra.mxu0 0.0
    %2297 = vmatpush.msra.mxu0 0.0
    %2298 = vmatpush.msra.mxu0 0.0
    %2299 = vmatpush.msra.mxu0 0.0
    %2300 = vmatpush.msra.mxu0 0.0
    %2301 = vmatpush.msra.mxu0 0.0
    %2302 = vmatpush.msra.mxu0 0.0
    %2303 = vmatpush.msra.mxu0 0.0
    %2304 = vmatpush.msra.mxu0 %v2288
    %2305 = vmatpush.msra.mxu0 %v2281
    %2306 = vmatmul.f32.gmra.mxu0 %v2286
    %v2307 = vpop.f32.mrf.mxu0
    %v2308 = vadd.f32 0.0, %v2307
    %2309 = vdwg.mxu0
    %2311 = vrot.lane.b32.xlu0 %v2308, 16
    %v2312 = vpop.permute.xlu0 %2311
    %v2314 = vsel %vm390, %v2221, %v2312
    %v2316 = vrot.slane %v2111, 1
    %v2319 = vrot.slane %v2134, 7
    %v2321 = vsel %vm204, %v2316, %v2319
    %v2322 = vrot.slane %v2086, 1
    %v2323 = vsel %vm390, %v2322, 0
    %v2326 = vsel %vm390, %v2321, 0
    %v2328 = vsel %vm390, %v2319, 0
    %2330 = vmatpush.xpose.msra.mxu0 0.0
    %2331 = vmatpush.xpose.msra.mxu0 0.0
    %2332 = vmatpush.xpose.msra.mxu0 0.0
    %2333 = vmatpush.xpose.msra.mxu0 0.0
    %2334 = vmatpush.xpose.msra.mxu0 0.0
    %2335 = vmatpush.xpose.msra.mxu0 0.0
    %2336 = vmatpush.xpose.msra.mxu0 0.0
    %2337 = vmatpush.xpose.msra.mxu0 0.0
    %2338 = vmatpush.xpose.msra.mxu0 0.0
    %2339 = vmatpush.xpose.msra.mxu0 0.0
    %2340 = vmatpush.xpose.msra.mxu0 0.0
    %2341 = vmatpush.xpose.msra.mxu0 0.0
    %2342 = vmatpush.xpose.msra.mxu0 0.0
    %2343 = vmatpush.xpose.msra.mxu0 0.0
    %2344 = vmatpush.xpose.msra.mxu0 %v2328
    %2345 = vmatpush.xpose.msra.mxu0 %v2326
    %2346 = vmatmul.f32.gmra.mxu0 %v2323
    %v2347 = vpop.f32.mrf.mxu0
    %v2348 = vadd.f32 0.0, %v2347
    %2349 = vdwg.mxu0
    %v2350 = vmul.f32 %v2348, 0.25
    %v2351 = vsel %vm420, %v2350, -inf
    %2352 = vmax.xlane.f32.xlu0 %v2351
    %v2353 = vpop.xlane.xlu0 %2352
    %v2354 = vsub.f32 %v2350, %v2353
    %v2355 = vmul.f32 %v2354, 1.442695
    %v2356 = vpow.pop %v2355
    %v2357 = vsel %vm420, %v2356, 0.0
    %2358 = vadd.xlane.f32.xlu0 %v2357
    %v2359 = vpop.xlane.xlu0 %2358
    %v2360 = vrcp.pop %v2359
    %v2361 = vmul.f32 %v2359, %v2360
    %v2362 = vsub.f32 1.0, %v2361
    %v2363 = vmul.f32 %v2360, %v2362
    %v2364 = vadd.f32 %v2360, %v2363
    %vm2365 = vweird.f32 %v2359
    %vm2366 = vweird.f32 %v2360
    %vm2367 = vmor %vm2365, %vm2366
    %v2368 = vsel %vm2367, %v2360, %v2364
    %v2369 = vand.u32 2147483647, %v2359
    %vm2370 = vcmp.eq.f32.partialorder %v2369, 8.507059e+37
    %v2371 = vand.u32 %v2359, 2147483648
    %v2372 = vor.u32 1.1754944e-38, %v2371
    %v2373 = vsel %vm2370, %v2372, %v2368
    %v2374 = vmul.f32 %v2356, %v2373
    %2375 = vrot.lane.b32.xlu0 %v2321, 96
    %v2376 = vpop.permute.xlu0 %2375
    %2377 = vrot.lane.b32.xlu0 %v2319, 96
    %v2378 = vpop.permute.xlu0 %2377
    %v2381 = vsel %vm450, %v2374, 0
    %v2383 = vsel %vm204, %v2378, 0
    %2385 = vmatpush.msra.mxu0 0.0
    %2386 = vmatpush.msra.mxu0 0.0
    %2387 = vmatpush.msra.mxu0 0.0
    %2388 = vmatpush.msra.mxu0 0.0
    %2389 = vmatpush.msra.mxu0 0.0
    %2390 = vmatpush.msra.mxu0 0.0
    %2391 = vmatpush.msra.mxu0 0.0
    %2392 = vmatpush.msra.mxu0 0.0
    %2393 = vmatpush.msra.mxu0 0.0
    %2394 = vmatpush.msra.mxu0 0.0
    %2395 = vmatpush.msra.mxu0 0.0
    %2396 = vmatpush.msra.mxu0 0.0
    %2397 = vmatpush.msra.mxu0 0.0
    %2398 = vmatpush.msra.mxu0 0.0
    %2399 = vmatpush.msra.mxu0 %v2383
    %2400 = vmatpush.msra.mxu0 %v2376
    %2401 = vmatmul.f32.gmra.mxu0 %v2381
    %v2402 = vpop.f32.mrf.mxu0
    %v2403 = vadd.f32 0.0, %v2402
    %2404 = vdwg.mxu0
    %2405 = vrot.lane.b32.xlu0 %v2322, 112
    %v2406 = vpop.permute.xlu0 %2405
    %2407 = vrot.lane.b32.xlu0 %v2321, 112
    %v2408 = vpop.permute.xlu0 %2407
    %2409 = vrot.lane.b32.xlu0 %v2319, 112
    %v2410 = vpop.permute.xlu0 %2409
    %v2411 = vsel %vm390, %v2406, 0
    %v2413 = vsel %vm390, %v2408, 0
    %v2415 = vsel %vm390, %v2410, 0
    %2417 = vmatpush.xpose.msra.mxu0 0.0
    %2418 = vmatpush.xpose.msra.mxu0 0.0
    %2419 = vmatpush.xpose.msra.mxu0 0.0
    %2420 = vmatpush.xpose.msra.mxu0 0.0
    %2421 = vmatpush.xpose.msra.mxu0 0.0
    %2422 = vmatpush.xpose.msra.mxu0 0.0
    %2423 = vmatpush.xpose.msra.mxu0 0.0
    %2424 = vmatpush.xpose.msra.mxu0 0.0
    %2425 = vmatpush.xpose.msra.mxu0 0.0
    %2426 = vmatpush.xpose.msra.mxu0 0.0
    %2427 = vmatpush.xpose.msra.mxu0 0.0
    %2428 = vmatpush.xpose.msra.mxu0 0.0
    %2429 = vmatpush.xpose.msra.mxu0 0.0
    %2430 = vmatpush.xpose.msra.mxu0 0.0
    %2431 = vmatpush.xpose.msra.mxu0 %v2415
    %2432 = vmatpush.xpose.msra.mxu0 %v2413
    %2433 = vmatmul.f32.gmra.mxu0 %v2411
    %v2434 = vpop.f32.mrf.mxu0
    %v2435 = vadd.f32 0.0, %v2434
    %2436 = vdwg.mxu0
    %v2437 = vmul.f32 %v2435, 0.25
    %v2438 = vsel %vm420, %v2437, -inf
    %2439 = vmax.xlane.f32.xlu0 %v2438
    %v2440 = vpop.xlane.xlu0 %2439
    %v2441 = vsub.f32 %v2437, %v2440
    %v2442 = vmul.f32 %v2441, 1.442695
    %v2443 = vpow.pop %v2442
    %v2444 = vsel %vm420, %v2443, 0.0
    %2445 = vadd.xlane.f32.xlu0 %v2444
    %v2446 = vpop.xlane.xlu0 %2445
    %v2447 = vrcp.pop %v2446
    %v2448 = vmul.f32 %v2446, %v2447
    %v2449 = vsub.f32 1.0, %v2448
    %v2450 = vmul.f32 %v2447, %v2449
    %v2451 = vadd.f32 %v2447, %v2450
    %vm2452 = vweird.f32 %v2446
    %vm2453 = vweird.f32 %v2447
    %vm2454 = vmor %vm2452, %vm2453
    %v2455 = vsel %vm2454, %v2447, %v2451
    %v2456 = vand.u32 2147483647, %v2446
    %vm2457 = vcmp.eq.f32.partialorder %v2456, 8.507059e+37
    %v2458 = vand.u32 %v2446, 2147483648
    %v2459 = vor.u32 1.1754944e-38, %v2458
    %v2460 = vsel %vm2457, %v2459, %v2455
    %v2461 = vmul.f32 %v2443, %v2460
    %2462 = vrot.lane.b32.xlu0 %v2321, 80
    %v2463 = vpop.permute.xlu0 %2462
    %2464 = vrot.lane.b32.xlu0 %v2319, 80
    %v2465 = vpop.permute.xlu0 %2464
    %v2468 = vsel %vm450, %v2461, 0
    %v2470 = vsel %vm204, %v2465, 0
    %2472 = vmatpush.msra.mxu0 0.0
    %2473 = vmatpush.msra.mxu0 0.0
    %2474 = vmatpush.msra.mxu0 0.0
    %2475 = vmatpush.msra.mxu0 0.0
    %2476 = vmatpush.msra.mxu0 0.0
    %2477 = vmatpush.msra.mxu0 0.0
    %2478 = vmatpush.msra.mxu0 0.0
    %2479 = vmatpush.msra.mxu0 0.0
    %2480 = vmatpush.msra.mxu0 0.0
    %2481 = vmatpush.msra.mxu0 0.0
    %2482 = vmatpush.msra.mxu0 0.0
    %2483 = vmatpush.msra.mxu0 0.0
    %2484 = vmatpush.msra.mxu0 0.0
    %2485 = vmatpush.msra.mxu0 0.0
    %2486 = vmatpush.msra.mxu0 %v2470
    %2487 = vmatpush.msra.mxu0 %v2463
    %2488 = vmatmul.f32.gmra.mxu0 %v2468
    %v2489 = vpop.f32.mrf.mxu0
    %v2490 = vadd.f32 0.0, %v2489
    %2491 = vdwg.mxu0
    %2493 = vrot.lane.b32.xlu0 %v2490, 16
    %v2494 = vpop.permute.xlu0 %2493
    %v2496 = vsel %vm390, %v2403, %v2494
    %v2498 = vrot.slane %v2496, 7
    %v2500 = vsel %vm204, %v2314, %v2498
    %s2501 = scalar_lea.vmem [#allocation13], 32
    %v2502 = vld [vmem:[%s2501] sm:$0xff]
    %v2503 = vld [vmem:[%s2501 + $0x8] sm:$0xff]
    %v2504 = vld [vmem:[%s2501 + $0x10] sm:$0xff]
    %v2505 = vld [vmem:[%s2501 + $0x18] sm:$0xff]
    %s2506 = scalar_lea.vmem %s19, 1
    %v2507 = vld [vmem:[%s2506] sm:$0x1]
    %v2509 = vperm.slane %v2507, 0
    %v2512 = vsel %vm235, %v2500, 0
    %2514 = vmatpush.msra.mxu0 0.0
    %2515 = vmatpush.msra.mxu0 0.0
    %2516 = vmatpush.msra.mxu0 0.0
    %2517 = vmatpush.msra.mxu0 0.0
    %2518 = vmatpush.msra.mxu0 0.0
    %2519 = vmatpush.msra.mxu0 0.0
    %2520 = vmatpush.msra.mxu0 0.0
    %2521 = vmatpush.msra.mxu0 0.0
    %2522 = vmatpush.msra.mxu0 0.0
    %2523 = vmatpush.msra.mxu0 0.0
    %2524 = vmatpush.msra.mxu0 0.0
    %2525 = vmatpush.msra.mxu0 0.0
    %2526 = vmatpush.msra.mxu0 %v2505
    %2527 = vmatpush.msra.mxu0 %v2504
    %2528 = vmatpush.msra.mxu0 %v2503
    %2529 = vmatpush.msra.mxu0 %v2502
    %2530 = vmatmul.f32.gmra.mxu0 %v2512
    %v2531 = vpop.f32.mrf.mxu0
    %v2532 = vadd.f32 %v2509, %v2531
    %2533 = vdwg.mxu0
    %s2534 = scalar_lea.vmem %s20, 32
    %v2535 = vld [vmem:[%s2534] sm:$0xff]
    %v2536 = vld [vmem:[%s2534 + $0x8] sm:$0xff]
    %v2537 = vld [vmem:[%s2534 + $0x10] sm:$0xff]
    %v2538 = vld [vmem:[%s2534 + $0x18] sm:$0xff]
    %s2539 = scalar_lea.vmem %s21, 1
    %v2540 = vld [vmem:[%s2539] sm:$0x1]
    %v2542 = vperm.slane %v2540, 0
    %v2545 = vsel %vm235, %v2532, 0
    %2547 = vmatpush.msra.mxu0 0.0
    %2548 = vmatpush.msra.mxu0 0.0
    %2549 = vmatpush.msra.mxu0 0.0
    %2550 = vmatpush.msra.mxu0 0.0
    %2551 = vmatpush.msra.mxu0 0.0
    %2552 = vmatpush.msra.mxu0 0.0
    %2553 = vmatpush.msra.mxu0 0.0
    %2554 = vmatpush.msra.mxu0 0.0
    %2555 = vmatpush.msra.mxu0 0.0
    %2556 = vmatpush.msra.mxu0 0.0
    %2557 = vmatpush.msra.mxu0 0.0
    %2558 = vmatpush.msra.mxu0 0.0
    %2559 = vmatpush.msra.mxu0 %v2538
    %2560 = vmatpush.msra.mxu0 %v2537
    %2561 = vmatpush.msra.mxu0 %v2536
    %2562 = vmatpush.msra.mxu0 %v2535
    %2563 = vmatmul.f32.gmra.mxu0 %v2545
    %v2564 = vpop.f32.mrf.mxu0
    %v2565 = vadd.f32 %v2542, %v2564
    %2566 = vdwg.mxu0
    %v2567 = vadd.f32 %v1401, %v2565
    %v2568 = vsel %vm204, %v1988, %v198
    %v2570 = vrot.slane %v1988, 1
    %v2572 = vrot.slane %v200, 1
    %v2573 = vsel %vm209, %v211, %v2572
    %v2575 = vsel %vm204, %v2570, %v2573
    %v2577 = vrot.slane %v2575, 7
    %v2578 = vrot.slane %v2572, 7
    %v2579 = vsel %vm204, %v2577, %v2578
    %v2582 = vsel %vm204, %v199, %v2577
    %v2583 = vsel %vm204, %v2567, %v201
    %v2585 = vrot.slane %v2567, 1
    %v2587 = vrot.slane %v203, 1
    %v2588 = vsel %vm209, %v221, %v2587
    %v2590 = vsel %vm204, %v2585, %v2588
    %v2592 = vrot.slane %v2590, 7
    %v2593 = vrot.slane %v2587, 7
    %v2594 = vsel %vm204, %v2592, %v2593
    %v2597 = vsel %vm204, %v202, %v2592
    %2598 = vst.msk [vmem:[%s22] sm:$0xff] %vm235, %v2568
    %2599 = vst.msk [vmem:[%s22 + $0x8] sm:$0xff] %vm235, %v2582
    %2600 = vst.msk [vmem:[%s22 + $0x10] sm:$0x3] %vm858, %v2579
    %2601 = vst.msk [vmem:[%s23] sm:$0xff] %vm307, %v2583
    %2602 = vst.msk [vmem:[%s23 + $0x8] sm:$0xff] %vm307, %v2597
    %2603 = vst.msk [vmem:[%s23 + $0x10] sm:$0x3] %vm261, %v2594
    // Predicated region
    $region122: #{multiscale_encoder_fwd.5} parent=1 // pred_check
      _
    $region123: #{multiscale_encoder_fwd.5} parent=1 // pred_check_branch
      %2605 = sbr.rel (0) target = $region125
    $region124: #{multiscale_encoder_fwd.5} parent=1 // pred_region
      _
    $region125: #{multiscale_encoder_fwd.5} parent=1 // pred_fallthru
      _
    // Predicated region
    $region126: #{multiscale_encoder_fwd.5} parent=1 // pred_check
      _
    $region127: #{multiscale_encoder_fwd.5} parent=1 // pred_check_branch
      %2607 = sbr.rel (0) target = $region129
    $region128: #{multiscale_encoder_fwd.5} parent=1 // pred_region
      _
    $region129: #{multiscale_encoder_fwd.5} parent=1 // pred_fallthru
      _
    // Predicated region
    $region130: #{multiscale_encoder_fwd.5} parent=1 // pred_check
      _
    $region131: #{multiscale_encoder_fwd.5} parent=1 // pred_check_branch
      %2609 = sbr.rel (0) target = $region133
    $region132: #{multiscale_encoder_fwd.5} parent=1 // pred_region
      _
    $region133: #{multiscale_encoder_fwd.5} parent=1 // pred_fallthru
      _
    // Predicated region
    $region134: #{multiscale_encoder_fwd.5} parent=1 // pred_check
      _
    $region135: #{multiscale_encoder_fwd.5} parent=1 // pred_check_branch
      %2611 = sbr.rel (0) target = $region137
    $region136: #{multiscale_encoder_fwd.5} parent=1 // pred_region
      _
    $region137: #{multiscale_encoder_fwd.5} parent=1 // pred_fallthru
      _
    %2612 = vsyncpa [#allocation3], 1
    %2613 = vsyncpa [#allocation5], 1
    %2614 = vsyncpa [#allocation8], 1
    %2615 = vsyncpa [#allocation11], 1
    %2616 = vsyncpa [#allocation14], 1

</llo_original>
